<compile_context>
chip_gen: v7x
topology: tpu7x:2x2x1
jax: 0.10.0
libtpu: 0.0.40
codegen_flags: <defaults>
</compile_context>

<pallas_src>
import functools
import numpy as np
import jax
import jax.numpy as jnp
from jax.experimental import pallas as pl
from jax.experimental.pallas import tpu as pltpu


# ---------------------------------------------------------------------------
# Encoder layer: conv(matmul) + downsample(matmul) + BN(batch stats) + add + ReLU
# ---------------------------------------------------------------------------
def _encoder_layer_kernel(p_ref, xs_ref, wc_ref, bc_ref, wd_ref, bd_ref,
                          g_ref, b_ref, o_ref):
    y = jnp.dot(p_ref[...], wc_ref[...], preferred_element_type=jnp.float32)
    y = y + bc_ref[...]
    iden = jnp.dot(xs_ref[...], wd_ref[...], preferred_element_type=jnp.float32)
    iden = iden + bd_ref[...]
    # BatchNorm1d train-mode math: stats over all rows (= batch * length).
    mu = jnp.mean(y, axis=0, keepdims=True)
    var = jnp.mean((y - mu) ** 2, axis=0, keepdims=True)
    yhat = (y - mu) * jax.lax.rsqrt(var + 1e-5)
    o_ref[...] = jnp.maximum(yhat * g_ref[...] + b_ref[...] + iden, 0.0)


def encoder_forward(x_ncl, enc_params, kernel_sizes, strides):
    """x_ncl: (N, Cin, L) -> (N, C_out) after conv stack + adaptive avg pool."""
    h = x_ncl.transpose(0, 2, 1)  # NCL -> NLC
    for i, lp in enumerate(enc_params):
        K, s = kernel_sizes[i], strides[i]
        pad = K // 2
        N, Lc, Ci = h.shape
        Co = lp["w"].shape[0]
        hp = jnp.pad(h, ((0, 0), (pad, pad), (0, 0)))
        Lout = (Lc + 2 * pad - K) // s + 1
        hi = (Lout - 1) * s + 1
        # K shifted strided slices instead of a gather-based im2col.
        cols = [hp[:, k:k + hi:s, :] for k in range(K)]
        patches = jnp.concatenate(cols, axis=-1).reshape(N * Lout, K * Ci)
        xs = h[:, 0:hi:s, :].reshape(N * Lout, Ci)  # kernel-1 downsample input
        wc = lp["w"].transpose(2, 1, 0).reshape(K * Ci, Co)  # [k*Ci+ci, co]
        wd = lp["dw"][:, :, 0].T                              # (Ci, Co)
        out2d = pl.pallas_call(
            _encoder_layer_kernel,
            out_shape=jax.ShapeDtypeStruct((N * Lout, Co), jnp.float32),
        )(patches, xs, wc, lp["b"].reshape(1, Co), wd, lp["db"].reshape(1, Co),
          lp["gamma"].reshape(1, Co), lp["beta"].reshape(1, Co))
        h = out2d.reshape(N, Lout, Co)
    return jnp.mean(h, axis=1)  # AdaptiveAvgPool1d(1)


# ---------------------------------------------------------------------------
# Fully fused transformer stack + dense head (post-norm, gelu FFN), one call.
# Grid over batch (parallel). All activations stay in VMEM/vregs across layers.
# ---------------------------------------------------------------------------
def _transformer_stack_kernel(x_ref, wqkv_ref, bqkv_ref, wo_ref, bo_ref,
                              ln1g_ref, ln1b_ref, w1_ref, b1_ref,
                              w2_ref, b2_ref, ln2g_ref, ln2b_ref,
                              demo_ref, dwa_ref, wd_ref, b0_ref, o_ref,
                              *, heads, n_layers, n_cls, ffn_chunk):
    x = x_ref[0]                                  # (T, d) f32
    T, d = x.shape
    dh = d // heads
    dff = w1_ref.shape[2]
    scale = jnp.float32(1.0 / float(np.sqrt(dh)))

    # Per-head lane masks (compile-time constants, shared across layers).
    col = jax.lax.broadcasted_iota(jnp.int32, (1, d), 1)
    masks = [((col >= h * dh) & (col < (h + 1) * dh)).astype(jnp.float32)
             for h in range(heads)]

    def _ln(z, g, b):
        mu = jnp.mean(z, axis=-1, keepdims=True)
        var = jnp.mean((z - mu) ** 2, axis=-1, keepdims=True)
        return (z - mu) * jax.lax.rsqrt(var + 1e-5) * g + b

    for l in range(n_layers):
        # Fused QKV projection (lane-dense N = 3d).
        qkv = jnp.dot(x, wqkv_ref[l], preferred_element_type=jnp.float32)
        qkv = qkv + bqkv_ref[l]
        q = qkv[:, 0:d]
        k = qkv[:, d:2 * d]
        v = qkv[:, 2 * d:3 * d]

        # Multi-head attention via per-head column masks (keeps matmuls
        # lane-dense, avoids tiny Dh=8 last dims and concatenates).
        ctx = jnp.zeros((T, d), jnp.float32)
        for m in masks:
            s = jax.lax.dot_general(q * m, k, (((1,), (1,)), ((), ())),
                                    preferred_element_type=jnp.float32) * scale
            s = s - jnp.max(s, axis=-1, keepdims=True)
            p = jnp.exp(s)
            p = p / jnp.sum(p, axis=-1, keepdims=True)
            ctx = ctx + jnp.dot(p, v * m, preferred_element_type=jnp.float32)

        attn = jnp.dot(ctx, wo_ref[l], preferred_element_type=jnp.float32)
        attn = attn + bo_ref[l]
        # TODO(synk): dropout (p=0.1, train mode) treated as identity.
        x1 = _ln(x + attn, ln1g_ref[l], ln1b_ref[l])

        # FFN: chunked over dff so intermediates stay within vreg budget;
        # bf16 MXU inputs, f32 accumulation; exact erf-gelu (torch F.gelu).
        x1_bf = x1.astype(jnp.bfloat16)
        acc = jnp.zeros((T, d), jnp.float32)
        for c0 in range(0, dff, ffn_chunk):
            c1 = c0 + ffn_chunk
            hc = jnp.dot(x1_bf, w1_ref[l, :, c0:c1],
                         preferred_element_type=jnp.float32)
            hc = hc + b1_ref[l, :, c0:c1]
            hc = 0.5 * hc * (1.0 + jax.lax.erf(hc * jnp.float32(0.7071067811865476)))
            acc = acc + jnp.dot(hc.astype(jnp.bfloat16), w2_ref[l, c0:c1, :],
                                preferred_element_type=jnp.float32)
        x = _ln(x1 + acc + b2_ref[l], ln2g_ref[l], ln2b_ref[l])

    # Dense head fused in: y[c] = x[c] . w_d + (demo_embed[c]*w_a) . demo + b0
    y = jnp.dot(x[:n_cls, :], wd_ref[...], preferred_element_type=jnp.float32)
    y = y + jnp.dot(dwa_ref[...], demo_ref[0], preferred_element_type=jnp.float32)
    o_ref[0] = y + b0_ref[...]


def transformer_head_forward(tokens, demographics, params, cfg):
    """tokens: (B, T, d) -> logits (B, n_classes)."""
    B, T, d = tokens.shape
    heads = cfg["heads"]
    n_cls = cfg["n_classes"]
    n_add = cfg["num_additional_features"]
    layers = params["layers"]
    nl = len(layers)
    dff = layers[0]["w1"].shape[0]
    ffn_chunk = 512 if dff % 512 == 0 else dff

    # Stack per-layer weights on a leading layer axis (DMA'd once per call).
    wqkv = jnp.stack([jnp.concatenate([lp["wq"].T, lp["wk"].T, lp["wv"].T],
                                      axis=1) for lp in layers])        # (nl,d,3d)
    bqkv = jnp.stack([jnp.concatenate([lp["bq"], lp["bk"], lp["bv"]])
                      .reshape(1, 3 * d) for lp in layers])             # (nl,1,3d)
    wo = jnp.stack([lp["wo"].T for lp in layers])                       # (nl,d,d)
    bo = jnp.stack([lp["bo"].reshape(1, d) for lp in layers])
    ln1g = jnp.stack([lp["ln1_g"].reshape(1, d) for lp in layers])
    ln1b = jnp.stack([lp["ln1_b"].reshape(1, d) for lp in layers])
    w1 = jnp.stack([lp["w1"].T for lp in layers]).astype(jnp.bfloat16)  # (nl,d,dff)
    b1 = jnp.stack([lp["b1"].reshape(1, dff) for lp in layers])
    w2 = jnp.stack([lp["w2"].T for lp in layers]).astype(jnp.bfloat16)  # (nl,dff,d)
    b2 = jnp.stack([lp["b2"].reshape(1, d) for lp in layers])
    ln2g = jnp.stack([lp["ln2_g"].reshape(1, d) for lp in layers])
    ln2b = jnp.stack([lp["ln2_b"].reshape(1, d) for lp in layers])

    # Head weights: split dense weight into token part and demographics part.
    wd = params["dense_w"][0, :d].reshape(d, 1)                 # (d, 1)
    wa = params["dense_w"][0, d:]                               # (n_add,)
    dwa = params["demo_embed"] * wa[None, :]                    # (27, n_add)
    b0 = params["dense_b"].reshape(1, 1)
    demo3 = demographics.reshape(B, n_add, 1)

    def full(shape):
        return pl.BlockSpec(shape, lambda *_: (0,) * len(shape))

    xspec = pl.BlockSpec((1, T, d), lambda b: (b, 0, 0))

    y = pl.pallas_call(
        functools.partial(_transformer_stack_kernel, heads=heads, n_layers=nl,
                          n_cls=n_cls, ffn_chunk=ffn_chunk),
        out_shape=jax.ShapeDtypeStruct((B, n_cls, 1), jnp.float32),
        grid=(B,),
        in_specs=[xspec,
                  full((nl, d, 3 * d)), full((nl, 1, 3 * d)),
                  full((nl, d, d)), full((nl, 1, d)),
                  full((nl, 1, d)), full((nl, 1, d)),
                  full((nl, d, dff)), full((nl, 1, dff)),
                  full((nl, dff, d)), full((nl, 1, d)),
                  full((nl, 1, d)), full((nl, 1, d)),
                  pl.BlockSpec((1, n_add, 1), lambda b: (b, 0, 0)),
                  full((n_cls, n_add)), full((d, 1)), full((1, 1))],
        out_specs=pl.BlockSpec((1, n_cls, 1), lambda b: (b, 0, 0)),
        compiler_params=pltpu.CompilerParams(
            dimension_semantics=("parallel",)),
    )(tokens, wqkv, bqkv, wo, bo, ln1g, ln1b, w1, b1, w2, b2, ln2g, ln2b,
      demo3, dwa, wd, b0)
    return y.reshape(B, n_cls)


# ---------------------------------------------------------------------------
# Full forward
# ---------------------------------------------------------------------------
def ecgformer_forward(params, cfg, x, demographics):
    B, Cin, S, L = x.shape
    d = cfg["out_channels"]
    n_cls = cfg["n_classes"]

    xr = x.transpose(0, 2, 1, 3).reshape(B * S, Cin, L)               # (B*S, C, L)
    enc = encoder_forward(xr, params["encoder"], cfg["kernel_sizes"],
                          cfg["strides"])                              # (B*S, d)
    seq_tok = enc.reshape(B, S, d)
    cls_tok = jnp.broadcast_to(params["class_emb"].T[None], (B, n_cls, d))
    tokens = jnp.concatenate([cls_tok, seq_tok], axis=1)               # (B, T, d)
    tokens = tokens + params["pos"][None, :, :]

    return transformer_head_forward(tokens, demographics, params, cfg)


# ---------------------------------------------------------------------------
# Parameter init (mirrors the PyTorch module's init choices)
# ---------------------------------------------------------------------------
def init_params(key, cfg):
    keys = iter(jax.random.split(key, 256))

    def normal(shape, std):
        return std * jax.random.normal(next(keys), shape, jnp.float32)

    def xavier(shape):
        fan_out = shape[0]
        fan_in = int(np.prod(shape[1:]))
        return normal(shape, float(np.sqrt(2.0 / (fan_in + fan_out))))

    d = cfg["out_channels"]
    enc = []
    ch = cfg["in_channels"]
    for ksz in cfg["kernel_sizes"]:
        nxt = ch
        if ch < d:
            nxt = min(ch * 2, d)
        enc.append(dict(
            w=xavier((nxt, ch, ksz)), b=normal((nxt,), 0.01),
            dw=xavier((nxt, ch, 1)), db=normal((nxt,), 0.01),
            gamma=jnp.ones((nxt,), jnp.float32),
            beta=jnp.zeros((nxt,), jnp.float32),
        ))
        ch = nxt

    dff = cfg["dim_feedforward"]
    layers = []
    for _ in range(cfg["n_layers"]):
        layers.append(dict(
            wq=xavier((d, d)), bq=jnp.zeros((d,), jnp.float32),
            wk=xavier((d, d)), bk=jnp.zeros((d,), jnp.float32),
            wv=xavier((d, d)), bv=jnp.zeros((d,), jnp.float32),
            wo=xavier((d, d)), bo=jnp.zeros((d,), jnp.float32),
            ln1_g=jnp.ones((d,), jnp.float32), ln1_b=jnp.zeros((d,), jnp.float32),
            w1=xavier((dff, d)), b1=normal((dff,), 0.01),
            w2=xavier((d, dff)), b2=normal((d,), 0.01),
            ln2_g=jnp.ones((d,), jnp.float32), ln2_b=jnp.zeros((d,), jnp.float32),
        ))

    S, n_cls = cfg["max_seq_length"], cfg["n_classes"]
    pos = np.ones((S + n_cls, d), np.float32)   # same init as the PyTorch module
    for i in range(S):
        for j in range(d):
            if j % 2 == 0:
                pos[i, j] = np.sin(i / 10000 ** (j / d))
            else:
                pos[i, j] = np.cos(i / 10000 ** ((j - 1) / d))

    return dict(
        encoder=enc,
        layers=layers,
        class_emb=normal((d, n_cls), 0.5),
        pos=jnp.asarray(pos),
        demo_embed=normal((27, cfg["num_additional_features"]), 0.5),
        dense_w=xavier((1, d + cfg["num_additional_features"])),
        dense_b=jnp.zeros((1,), jnp.float32),
    )


if __name__ == "__main__":
    cfg = dict(
        in_channels=4, out_channels=32, kernel_sizes=[3, 3, 3], strides=[2, 2, 2],
        n_layers=2, heads=4, num_additional_features=4, max_seq_length=8,
        n_classes=27, dim_feedforward=2048,
    )
    key = jax.random.PRNGKey(0)
    pkey, xkey, dkey = jax.random.split(key, 3)
    params = init_params(pkey, cfg)

    B, L = 2, 16
    # x: heartbeat-template tensor (post biosppy extraction): (B, leads, max_seq, L)
    x = jax.random.normal(xkey, (B, cfg["in_channels"], cfg["max_seq_length"], L),
                          jnp.float32)
    demographics = jax.random.normal(dkey, (B, cfg["num_additional_features"]),
                                     jnp.float32)

    fwd = jax.jit(lambda p, xx, dd: ecgformer_forward(p, cfg, xx, dd))
    out = fwd(params, x, demographics)
    out = jax.block_until_ready(out)
    assert out.shape == (B, 27) and bool(jnp.all(jnp.isfinite(out)))
    print("KERNEL_OK")
</pallas_src>

<mosaic_0001>
module attributes {stable_mosaic.version = 11 : i64} {
  func.func @_encoder_layer_kernel(%arg0: memref<128x12xf32, #tpu.memory_space<vmem>>, %arg1: memref<128x4xf32, #tpu.memory_space<vmem>>, %arg2: memref<12x8xf32, #tpu.memory_space<vmem>>, %arg3: memref<1x8xf32, #tpu.memory_space<vmem>>, %arg4: memref<4x8xf32, #tpu.memory_space<vmem>>, %arg5: memref<1x8xf32, #tpu.memory_space<vmem>>, %arg6: memref<1x8xf32, #tpu.memory_space<vmem>>, %arg7: memref<1x8xf32, #tpu.memory_space<vmem>>, %arg8: memref<128x8xf32, #tpu.memory_space<vmem>>) attributes {dimension_semantics = [], scalar_prefetch = 0 : i64, scratch_operands = 0 : i64, tpu.core_type = #tpu.core_type<tc>} {
    %c0 = arith.constant 0 : index
    %c0_0 = arith.constant 0 : index
    %0 = vector.load %arg0[%c0, %c0_0] : memref<128x12xf32, #tpu.memory_space<vmem>>, vector<128x12xf32>
    %c0_1 = arith.constant 0 : index
    %c0_2 = arith.constant 0 : index
    %1 = vector.load %arg2[%c0_1, %c0_2] : memref<12x8xf32, #tpu.memory_space<vmem>>, vector<12x8xf32>
    %cst = arith.constant dense<0.000000e+00> : vector<128x8xf32>
    %2 = tpu.matmul %0, %1, %cst {dimension_numbers = #tpu.dot_dimension_numbers<[1], [0], [0], [1], [0, 0, 1, 1], [], []>} : vector<128x12xf32>, vector<12x8xf32>, vector<128x8xf32> -> vector<128x8xf32>
    %c0_3 = arith.constant 0 : index
    %c0_4 = arith.constant 0 : index
    %3 = vector.load %arg3[%c0_3, %c0_4] : memref<1x8xf32, #tpu.memory_space<vmem>>, vector<1x8xf32>
    %4 = vector.broadcast %3 : vector<1x8xf32> to vector<128x8xf32>
    %5 = arith.addf %2, %4 : vector<128x8xf32>
    %c0_5 = arith.constant 0 : index
    %c0_6 = arith.constant 0 : index
    %6 = vector.load %arg1[%c0_5, %c0_6] : memref<128x4xf32, #tpu.memory_space<vmem>>, vector<128x4xf32>
    %c0_7 = arith.constant 0 : index
    %c0_8 = arith.constant 0 : index
    %7 = vector.load %arg4[%c0_7, %c0_8] : memref<4x8xf32, #tpu.memory_space<vmem>>, vector<4x8xf32>
    %cst_9 = arith.constant dense<0.000000e+00> : vector<128x8xf32>
    %8 = tpu.matmul %6, %7, %cst_9 {dimension_numbers = #tpu.dot_dimension_numbers<[1], [0], [0], [1], [0, 0, 1, 1], [], []>} : vector<128x4xf32>, vector<4x8xf32>, vector<128x8xf32> -> vector<128x8xf32>
    %c0_10 = arith.constant 0 : index
    %c0_11 = arith.constant 0 : index
    %9 = vector.load %arg5[%c0_10, %c0_11] : memref<1x8xf32, #tpu.memory_space<vmem>>, vector<1x8xf32>
    %10 = vector.broadcast %9 : vector<1x8xf32> to vector<128x8xf32>
    %11 = arith.addf %8, %10 : vector<128x8xf32>
    %cst_12 = arith.constant dense<0.000000e+00> : vector<8xf32>
    %12 = vector.multi_reduction <add>, %5, %cst_12 [0] : vector<128x8xf32> to vector<8xf32>
    %13 = vector.shape_cast %12 : vector<8xf32> to vector<1x8xf32>
    %cst_13 = arith.constant 1.280000e+02 : f32
    %14 = vector.broadcast %cst_13 : f32 to vector<1x8xf32>
    %15 = arith.divf %13, %14 : vector<1x8xf32>
    %16 = vector.broadcast %15 : vector<1x8xf32> to vector<128x8xf32>
    %17 = arith.subf %5, %16 : vector<128x8xf32>
    %18 = arith.mulf %17, %17 : vector<128x8xf32>
    %cst_14 = arith.constant dense<0.000000e+00> : vector<8xf32>
    %19 = vector.multi_reduction <add>, %18, %cst_14 [0] : vector<128x8xf32> to vector<8xf32>
    %20 = vector.shape_cast %19 : vector<8xf32> to vector<1x8xf32>
    %cst_15 = arith.constant 1.280000e+02 : f32
    %21 = vector.broadcast %cst_15 : f32 to vector<1x8xf32>
    %22 = arith.divf %20, %21 : vector<1x8xf32>
    %23 = vector.broadcast %15 : vector<1x8xf32> to vector<128x8xf32>
    %24 = arith.subf %5, %23 : vector<128x8xf32>
    %cst_16 = arith.constant 9.99999974E-6 : f32
    %25 = vector.broadcast %cst_16 : f32 to vector<1x8xf32>
    %26 = arith.addf %22, %25 : vector<1x8xf32>
    %27 = math.rsqrt %26 : vector<1x8xf32>
    %28 = vector.broadcast %27 : vector<1x8xf32> to vector<128x8xf32>
    %29 = arith.mulf %24, %28 : vector<128x8xf32>
    %c0_17 = arith.constant 0 : index
    %c0_18 = arith.constant 0 : index
    %30 = vector.load %arg6[%c0_17, %c0_18] : memref<1x8xf32, #tpu.memory_space<vmem>>, vector<1x8xf32>
    %31 = vector.broadcast %30 : vector<1x8xf32> to vector<128x8xf32>
    %32 = arith.mulf %29, %31 : vector<128x8xf32>
    %c0_19 = arith.constant 0 : index
    %c0_20 = arith.constant 0 : index
    %33 = vector.load %arg7[%c0_19, %c0_20] : memref<1x8xf32, #tpu.memory_space<vmem>>, vector<1x8xf32>
    %34 = vector.broadcast %33 : vector<1x8xf32> to vector<128x8xf32>
    %35 = arith.addf %32, %34 : vector<128x8xf32>
    %36 = arith.addf %35, %11 : vector<128x8xf32>
    %cst_21 = arith.constant 0.000000e+00 : f32
    %37 = vector.broadcast %cst_21 : f32 to vector<128x8xf32>
    %38 = arith.maximumf %36, %37 : vector<128x8xf32>
    %c0_22 = arith.constant 0 : index
    %c0_23 = arith.constant 0 : index
    %39 = vector.load %arg8[%c0_22, %c0_23] : memref<128x8xf32, #tpu.memory_space<vmem>>, vector<128x8xf32>
    tpu.vector_store %arg8[%c0_22, %c0_23], %38 {strides = array<i32>} : memref<128x8xf32, #tpu.memory_space<vmem>>, vector<128x8xf32>,
    return
  }
}

module attributes {stable_mosaic.version = 11 : i64} {
  func.func @_encoder_layer_kernel(%arg0: memref<64x24xf32, #tpu.memory_space<vmem>>, %arg1: memref<64x8xf32, #tpu.memory_space<vmem>>, %arg2: memref<24x16xf32, #tpu.memory_space<vmem>>, %arg3: memref<1x16xf32, #tpu.memory_space<vmem>>, %arg4: memref<8x16xf32, #tpu.memory_space<vmem>>, %arg5: memref<1x16xf32, #tpu.memory_space<vmem>>, %arg6: memref<1x16xf32, #tpu.memory_space<vmem>>, %arg7: memref<1x16xf32, #tpu.memory_space<vmem>>, %arg8: memref<64x16xf32, #tpu.memory_space<vmem>>) attributes {dimension_semantics = [], scalar_prefetch = 0 : i64, scratch_operands = 0 : i64, tpu.core_type = #tpu.core_type<tc>} {
    %c0 = arith.constant 0 : index
    %c0_0 = arith.constant 0 : index
    %0 = vector.load %arg0[%c0, %c0_0] : memref<64x24xf32, #tpu.memory_space<vmem>>, vector<64x24xf32>
    %c0_1 = arith.constant 0 : index
    %c0_2 = arith.constant 0 : index
    %1 = vector.load %arg2[%c0_1, %c0_2] : memref<24x16xf32, #tpu.memory_space<vmem>>, vector<24x16xf32>
    %cst = arith.constant dense<0.000000e+00> : vector<64x16xf32>
    %2 = tpu.matmul %0, %1, %cst {dimension_numbers = #tpu.dot_dimension_numbers<[1], [0], [0], [1], [0, 0, 1, 1], [], []>} : vector<64x24xf32>, vector<24x16xf32>, vector<64x16xf32> -> vector<64x16xf32>
    %c0_3 = arith.constant 0 : index
    %c0_4 = arith.constant 0 : index
    %3 = vector.load %arg3[%c0_3, %c0_4] : memref<1x16xf32, #tpu.memory_space<vmem>>, vector<1x16xf32>
    %4 = vector.broadcast %3 : vector<1x16xf32> to vector<64x16xf32>
    %5 = arith.addf %2, %4 : vector<64x16xf32>
    %c0_5 = arith.constant 0 : index
    %c0_6 = arith.constant 0 : index
    %6 = vector.load %arg1[%c0_5, %c0_6] : memref<64x8xf32, #tpu.memory_space<vmem>>, vector<64x8xf32>
    %c0_7 = arith.constant 0 : index
    %c0_8 = arith.constant 0 : index
    %7 = vector.load %arg4[%c0_7, %c0_8] : memref<8x16xf32, #tpu.memory_space<vmem>>, vector<8x16xf32>
    %cst_9 = arith.constant dense<0.000000e+00> : vector<64x16xf32>
    %8 = tpu.matmul %6, %7, %cst_9 {dimension_numbers = #tpu.dot_dimension_numbers<[1], [0], [0], [1], [0, 0, 1, 1], [], []>} : vector<64x8xf32>, vector<8x16xf32>, vector<64x16xf32> -> vector<64x16xf32>
    %c0_10 = arith.constant 0 : index
    %c0_11 = arith.constant 0 : index
    %9 = vector.load %arg5[%c0_10, %c0_11] : memref<1x16xf32, #tpu.memory_space<vmem>>, vector<1x16xf32>
    %10 = vector.broadcast %9 : vector<1x16xf32> to vector<64x16xf32>
    %11 = arith.addf %8, %10 : vector<64x16xf32>
    %cst_12 = arith.constant dense<0.000000e+00> : vector<16xf32>
    %12 = vector.multi_reduction <add>, %5, %cst_12 [0] : vector<64x16xf32> to vector<16xf32>
    %13 = vector.shape_cast %12 : vector<16xf32> to vector<1x16xf32>
    %cst_13 = arith.constant 6.400000e+01 : f32
    %14 = vector.broadcast %cst_13 : f32 to vector<1x16xf32>
    %15 = arith.divf %13, %14 : vector<1x16xf32>
    %16 = vector.broadcast %15 : vector<1x16xf32> to vector<64x16xf32>
    %17 = arith.subf %5, %16 : vector<64x16xf32>
    %18 = arith.mulf %17, %17 : vector<64x16xf32>
    %cst_14 = arith.constant dense<0.000000e+00> : vector<16xf32>
    %19 = vector.multi_reduction <add>, %18, %cst_14 [0] : vector<64x16xf32> to vector<16xf32>
    %20 = vector.shape_cast %19 : vector<16xf32> to vector<1x16xf32>
    %cst_15 = arith.constant 6.400000e+01 : f32
    %21 = vector.broadcast %cst_15 : f32 to vector<1x16xf32>
    %22 = arith.divf %20, %21 : vector<1x16xf32>
    %23 = vector.broadcast %15 : vector<1x16xf32> to vector<64x16xf32>
    %24 = arith.subf %5, %23 : vector<64x16xf32>
    %cst_16 = arith.constant 9.99999974E-6 : f32
    %25 = vector.broadcast %cst_16 : f32 to vector<1x16xf32>
    %26 = arith.addf %22, %25 : vector<1x16xf32>
    %27 = math.rsqrt %26 : vector<1x16xf32>
    %28 = vector.broadcast %27 : vector<1x16xf32> to vector<64x16xf32>
    %29 = arith.mulf %24, %28 : vector<64x16xf32>
    %c0_17 = arith.constant 0 : index
    %c0_18 = arith.constant 0 : index
    %30 = vector.load %arg6[%c0_17, %c0_18] : memref<1x16xf32, #tpu.memory_space<vmem>>, vector<1x16xf32>
    %31 = vector.broadcast %30 : vector<1x16xf32> to vector<64x16xf32>
    %32 = arith.mulf %29, %31 : vector<64x16xf32>
    %c0_19 = arith.constant 0 : index
    %c0_20 = arith.constant 0 : index
    %33 = vector.load %arg7[%c0_19, %c0_20] : memref<1x16xf32, #tpu.memory_space<vmem>>, vector<1x16xf32>
    %34 = vector.broadcast %33 : vector<1x16xf32> to vector<64x16xf32>
    %35 = arith.addf %32, %34 : vector<64x16xf32>
    %36 = arith.addf %35, %11 : vector<64x16xf32>
    %cst_21 = arith.constant 0.000000e+00 : f32
    %37 = vector.broadcast %cst_21 : f32 to vector<64x16xf32>
    %38 = arith.maximumf %36, %37 : vector<64x16xf32>
    %c0_22 = arith.constant 0 : index
    %c0_23 = arith.constant 0 : index
    %39 = vector.load %arg8[%c0_22, %c0_23] : memref<64x16xf32, #tpu.memory_space<vmem>>, vector<64x16xf32>
    tpu.vector_store %arg8[%c0_22, %c0_23], %38 {strides = array<i32>} : memref<64x16xf32, #tpu.memory_space<vmem>>, vector<64x16xf32>,
    return
  }
}

module attributes {stable_mosaic.version = 11 : i64} {
  func.func @_encoder_layer_kernel(%arg0: memref<32x48xf32, #tpu.memory_space<vmem>>, %arg1: memref<32x16xf32, #tpu.memory_space<vmem>>, %arg2: memref<48x32xf32, #tpu.memory_space<vmem>>, %arg3: memref<1x32xf32, #tpu.memory_space<vmem>>, %arg4: memref<16x32xf32, #tpu.memory_space<vmem>>, %arg5: memref<1x32xf32, #tpu.memory_space<vmem>>, %arg6: memref<1x32xf32, #tpu.memory_space<vmem>>, %arg7: memref<1x32xf32, #tpu.memory_space<vmem>>, %arg8: memref<32x32xf32, #tpu.memory_space<vmem>>) attributes {dimension_semantics = [], scalar_prefetch = 0 : i64, scratch_operands = 0 : i64, tpu.core_type = #tpu.core_type<tc>} {
    %c0 = arith.constant 0 : index
    %c0_0 = arith.constant 0 : index
    %0 = vector.load %arg0[%c0, %c0_0] : memref<32x48xf32, #tpu.memory_space<vmem>>, vector<32x48xf32>
    %c0_1 = arith.constant 0 : index
    %c0_2 = arith.constant 0 : index
    %1 = vector.load %arg2[%c0_1, %c0_2] : memref<48x32xf32, #tpu.memory_space<vmem>>, vector<48x32xf32>
    %cst = arith.constant dense<0.000000e+00> : vector<32x32xf32>
    %2 = tpu.matmul %0, %1, %cst {dimension_numbers = #tpu.dot_dimension_numbers<[1], [0], [0], [1], [0, 0, 1, 1], [], []>} : vector<32x48xf32>, vector<48x32xf32>, vector<32x32xf32> -> vector<32x32xf32>
    %c0_3 = arith.constant 0 : index
    %c0_4 = arith.constant 0 : index
    %3 = vector.load %arg3[%c0_3, %c0_4] : memref<1x32xf32, #tpu.memory_space<vmem>>, vector<1x32xf32>
    %4 = vector.broadcast %3 : vector<1x32xf32> to vector<32x32xf32>
    %5 = arith.addf %2, %4 : vector<32x32xf32>
    %c0_5 = arith.constant 0 : index
    %c0_6 = arith.constant 0 : index
    %6 = vector.load %arg1[%c0_5, %c0_6] : memref<32x16xf32, #tpu.memory_space<vmem>>, vector<32x16xf32>
    %c0_7 = arith.constant 0 : index
    %c0_8 = arith.constant 0 : index
    %7 = vector.load %arg4[%c0_7, %c0_8] : memref<16x32xf32, #tpu.memory_space<vmem>>, vector<16x32xf32>
    %cst_9 = arith.constant dense<0.000000e+00> : vector<32x32xf32>
    %8 = tpu.matmul %6, %7, %cst_9 {dimension_numbers = #tpu.dot_dimension_numbers<[1], [0], [0], [1], [0, 0, 1, 1], [], []>} : vector<32x16xf32>, vector<16x32xf32>, vector<32x32xf32> -> vector<32x32xf32>
    %c0_10 = arith.constant 0 : index
    %c0_11 = arith.constant 0 : index
    %9 = vector.load %arg5[%c0_10, %c0_11] : memref<1x32xf32, #tpu.memory_space<vmem>>, vector<1x32xf32>
    %10 = vector.broadcast %9 : vector<1x32xf32> to vector<32x32xf32>
    %11 = arith.addf %8, %10 : vector<32x32xf32>
    %cst_12 = arith.constant dense<0.000000e+00> : vector<32xf32>
    %12 = vector.multi_reduction <add>, %5, %cst_12 [0] : vector<32x32xf32> to vector<32xf32>
    %13 = vector.shape_cast %12 : vector<32xf32> to vector<1x32xf32>
    %cst_13 = arith.constant 3.200000e+01 : f32
    %14 = vector.broadcast %cst_13 : f32 to vector<1x32xf32>
    %15 = arith.divf %13, %14 : vector<1x32xf32>
    %16 = vector.broadcast %15 : vector<1x32xf32> to vector<32x32xf32>
    %17 = arith.subf %5, %16 : vector<32x32xf32>
    %18 = arith.mulf %17, %17 : vector<32x32xf32>
    %cst_14 = arith.constant dense<0.000000e+00> : vector<32xf32>
    %19 = vector.multi_reduction <add>, %18, %cst_14 [0] : vector<32x32xf32> to vector<32xf32>
    %20 = vector.shape_cast %19 : vector<32xf32> to vector<1x32xf32>
    %cst_15 = arith.constant 3.200000e+01 : f32
    %21 = vector.broadcast %cst_15 : f32 to vector<1x32xf32>
    %22 = arith.divf %20, %21 : vector<1x32xf32>
    %23 = vector.broadcast %15 : vector<1x32xf32> to vector<32x32xf32>
    %24 = arith.subf %5, %23 : vector<32x32xf32>
    %cst_16 = arith.constant 9.99999974E-6 : f32
    %25 = vector.broadcast %cst_16 : f32 to vector<1x32xf32>
    %26 = arith.addf %22, %25 : vector<1x32xf32>
    %27 = math.rsqrt %26 : vector<1x32xf32>
    %28 = vector.broadcast %27 : vector<1x32xf32> to vector<32x32xf32>
    %29 = arith.mulf %24, %28 : vector<32x32xf32>
    %c0_17 = arith.constant 0 : index
    %c0_18 = arith.constant 0 : index
    %30 = vector.load %arg6[%c0_17, %c0_18] : memref<1x32xf32, #tpu.memory_space<vmem>>, vector<1x32xf32>
    %31 = vector.broadcast %30 : vector<1x32xf32> to vector<32x32xf32>
    %32 = arith.mulf %29, %31 : vector<32x32xf32>
    %c0_19 = arith.constant 0 : index
    %c0_20 = arith.constant 0 : index
    %33 = vector.load %arg7[%c0_19, %c0_20] : memref<1x32xf32, #tpu.memory_space<vmem>>, vector<1x32xf32>
    %34 = vector.broadcast %33 : vector<1x32xf32> to vector<32x32xf32>
    %35 = arith.addf %32, %34 : vector<32x32xf32>
    %36 = arith.addf %35, %11 : vector<32x32xf32>
    %cst_21 = arith.constant 0.000000e+00 : f32
    %37 = vector.broadcast %cst_21 : f32 to vector<32x32xf32>
    %38 = arith.maximumf %36, %37 : vector<32x32xf32>
    %c0_22 = arith.constant 0 : index
    %c0_23 = arith.constant 0 : index
    %39 = vector.load %arg8[%c0_22, %c0_23] : memref<32x32xf32, #tpu.memory_space<vmem>>, vector<32x32xf32>
    tpu.vector_store %arg8[%c0_22, %c0_23], %38 {strides = array<i32>} : memref<32x32xf32, #tpu.memory_space<vmem>>, vector<32x32xf32>,
    return
  }
}

module attributes {stable_mosaic.version = 11 : i64} {
  func.func @_transformer_stack_kernel(%arg0: i32, %arg1: memref<1x35x32xf32, #tpu.memory_space<vmem>>, %arg2: memref<2x32x96xf32, #tpu.memory_space<vmem>>, %arg3: memref<2x1x96xf32, #tpu.memory_space<vmem>>, %arg4: memref<2x32x32xf32, #tpu.memory_space<vmem>>, %arg5: memref<2x1x32xf32, #tpu.memory_space<vmem>>, %arg6: memref<2x1x32xf32, #tpu.memory_space<vmem>>, %arg7: memref<2x1x32xf32, #tpu.memory_space<vmem>>, %arg8: memref<2x32x2048xbf16, #tpu.memory_space<vmem>>, %arg9: memref<2x1x2048xf32, #tpu.memory_space<vmem>>, %arg10: memref<2x2048x32xbf16, #tpu.memory_space<vmem>>, %arg11: memref<2x1x32xf32, #tpu.memory_space<vmem>>, %arg12: memref<2x1x32xf32, #tpu.memory_space<vmem>>, %arg13: memref<2x1x32xf32, #tpu.memory_space<vmem>>, %arg14: memref<1x4x1xf32, #tpu.memory_space<vmem>>, %arg15: memref<27x4xf32, #tpu.memory_space<vmem>>, %arg16: memref<32x1xf32, #tpu.memory_space<vmem>>, %arg17: memref<1x1xf32, #tpu.memory_space<vmem>>, %arg18: memref<1x27x1xf32, #tpu.memory_space<vmem>>) attributes {dimension_semantics = [#tpu.dimension_semantics<parallel>], iteration_bounds = array<i64: 2>, scalar_prefetch = 0 : i64, scratch_operands = 0 : i64, tpu.core_type = #tpu.core_type<tc>, window_params = [{transform_indices = @transform_0, window_bounds = array<i64: 1, 35, 32>}, {pipeline_mode = #tpu.pipeline_mode<synchronous>, transform_indices = @transform_1, window_bounds = array<i64: 2, 32, 96>}, {pipeline_mode = #tpu.pipeline_mode<synchronous>, transform_indices = @transform_2, window_bounds = array<i64: 2, 1, 96>}, {pipeline_mode = #tpu.pipeline_mode<synchronous>, transform_indices = @transform_3, window_bounds = array<i64: 2, 32, 32>}, {pipeline_mode = #tpu.pipeline_mode<synchronous>, transform_indices = @transform_4, window_bounds = array<i64: 2, 1, 32>}, {pipeline_mode = #tpu.pipeline_mode<synchronous>, transform_indices = @transform_5, window_bounds = array<i64: 2, 1, 32>}, {pipeline_mode = #tpu.pipeline_mode<synchronous>, transform_indices = @transform_6, window_bounds = array<i64: 2, 1, 32>}, {pipeline_mode = #tpu.pipeline_mode<synchronous>, transform_indices = @transform_7, window_bounds = array<i64: 2, 32, 2048>}, {pipeline_mode = #tpu.pipeline_mode<synchronous>, transform_indices = @transform_8, window_bounds = array<i64: 2, 1, 2048>}, {pipeline_mode = #tpu.pipeline_mode<synchronous>, transform_indices = @transform_9, window_bounds = array<i64: 2, 2048, 32>}, {pipeline_mode = #tpu.pipeline_mode<synchronous>, transform_indices = @transform_10, window_bounds = array<i64: 2, 1, 32>}, {pipeline_mode = #tpu.pipeline_mode<synchronous>, transform_indices = @transform_11, window_bounds = array<i64: 2, 1, 32>}, {pipeline_mode = #tpu.pipeline_mode<synchronous>, transform_indices = @transform_12, window_bounds = array<i64: 2, 1, 32>}, {transform_indices = @transform_13, window_bounds = array<i64: 1, 4, 1>}, {pipeline_mode = #tpu.pipeline_mode<synchronous>, transform_indices = @transform_14, window_bounds = array<i64: 27, 4>}, {pipeline_mode = #tpu.pipeline_mode<synchronous>, transform_indices = @transform_15, window_bounds = array<i64: 32, 1>}, {pipeline_mode = #tpu.pipeline_mode<synchronous>, transform_indices = @transform_16, window_bounds = array<i64: 1, 1>}, {transform_indices = @transform_17, window_bounds = array<i64: 1, 27, 1>}]} {
    %c0 = arith.constant 0 : index
    %c0_0 = arith.constant 0 : index
    %c0_1 = arith.constant 0 : index
    %0 = vector.load %arg1[%c0, %c0_0, %c0_1] : memref<1x35x32xf32, #tpu.memory_space<vmem>>, vector<1x35x32xf32>
    %1 = vector.shape_cast %0 : vector<1x35x32xf32> to vector<35x32xf32>
    %2 = tpu.iota {dimensions = array<i32: 1>} : vector<1x32xi32>
    %c0_i32 = arith.constant 0 : i32
    %3 = vector.broadcast %c0_i32 : i32 to vector<1x32xi32>
    %4 = arith.cmpi sge, %2, %3 : vector<1x32xi32>
    %c8_i32 = arith.constant 8 : i32
    %5 = vector.broadcast %c8_i32 : i32 to vector<1x32xi32>
    %6 = arith.cmpi slt, %2, %5 : vector<1x32xi32>
    %7 = arith.andi %4, %6 : vector<1x32xi1>
    %8 = arith.extui %7 : vector<1x32xi1> to vector<1x32xi32>
    %9 = arith.sitofp %8 : vector<1x32xi32> to vector<1x32xf32>
    %c8_i32_2 = arith.constant 8 : i32
    %10 = vector.broadcast %c8_i32_2 : i32 to vector<1x32xi32>
    %11 = arith.cmpi sge, %2, %10 : vector<1x32xi32>
    %c16_i32 = arith.constant 16 : i32
    %12 = vector.broadcast %c16_i32 : i32 to vector<1x32xi32>
    %13 = arith.cmpi slt, %2, %12 : vector<1x32xi32>
    %14 = arith.andi %11, %13 : vector<1x32xi1>
    %15 = arith.extui %14 : vector<1x32xi1> to vector<1x32xi32>
    %16 = arith.sitofp %15 : vector<1x32xi32> to vector<1x32xf32>
    %c16_i32_3 = arith.constant 16 : i32
    %17 = vector.broadcast %c16_i32_3 : i32 to vector<1x32xi32>
    %18 = arith.cmpi sge, %2, %17 : vector<1x32xi32>
    %c24_i32 = arith.constant 24 : i32
    %19 = vector.broadcast %c24_i32 : i32 to vector<1x32xi32>
    %20 = arith.cmpi slt, %2, %19 : vector<1x32xi32>
    %21 = arith.andi %18, %20 : vector<1x32xi1>
    %22 = arith.extui %21 : vector<1x32xi1> to vector<1x32xi32>
    %23 = arith.sitofp %22 : vector<1x32xi32> to vector<1x32xf32>
    %c24_i32_4 = arith.constant 24 : i32
    %24 = vector.broadcast %c24_i32_4 : i32 to vector<1x32xi32>
    %25 = arith.cmpi sge, %2, %24 : vector<1x32xi32>
    %c32_i32 = arith.constant 32 : i32
    %26 = vector.broadcast %c32_i32 : i32 to vector<1x32xi32>
    %27 = arith.cmpi slt, %2, %26 : vector<1x32xi32>
    %28 = arith.andi %25, %27 : vector<1x32xi1>
    %29 = arith.extui %28 : vector<1x32xi1> to vector<1x32xi32>
    %30 = arith.sitofp %29 : vector<1x32xi32> to vector<1x32xf32>
    %c0_5 = arith.constant 0 : index
    %c0_6 = arith.constant 0 : index
    %c0_7 = arith.constant 0 : index
    %31 = vector.load %arg2[%c0_5, %c0_6, %c0_7] : memref<2x32x96xf32, #tpu.memory_space<vmem>>, vector<1x32x96xf32>
    %32 = vector.shape_cast %31 : vector<1x32x96xf32> to vector<32x96xf32>
    %cst = arith.constant dense<0.000000e+00> : vector<35x96xf32>
    %33 = tpu.matmul %1, %32, %cst {dimension_numbers = #tpu.dot_dimension_numbers<[1], [0], [0], [1], [0, 0, 1, 1], [], []>} : vector<35x32xf32>, vector<32x96xf32>, vector<35x96xf32> -> vector<35x96xf32>
    %c0_8 = arith.constant 0 : index
    %c0_9 = arith.constant 0 : index
    %c0_10 = arith.constant 0 : index
    %34 = vector.load %arg3[%c0_8, %c0_9, %c0_10] : memref<2x1x96xf32, #tpu.memory_space<vmem>>, vector<1x1x96xf32>
    %35 = vector.shape_cast %34 : vector<1x1x96xf32> to vector<1x96xf32>
    %36 = vector.broadcast %35 : vector<1x96xf32> to vector<35x96xf32>
    %37 = arith.addf %33, %36 : vector<35x96xf32>
    %38 = vector.extract_strided_slice %37 {offsets = [0, 0], sizes = [35, 32], strides = [1, 1]} : vector<35x96xf32> to vector<35x32xf32>
    %39 = vector.extract_strided_slice %37 {offsets = [0, 32], sizes = [35, 32], strides = [1, 1]} : vector<35x96xf32> to vector<35x32xf32>
    %40 = vector.extract_strided_slice %37 {offsets = [0, 64], sizes = [35, 32], strides = [1, 1]} : vector<35x96xf32> to vector<35x32xf32>
    %cst_11 = arith.constant 0.000000e+00 : f32
    %41 = vector.broadcast %cst_11 : f32 to vector<35x32xf32>
    %42 = vector.broadcast %9 : vector<1x32xf32> to vector<35x32xf32>
    %43 = arith.mulf %38, %42 : vector<35x32xf32>
    %cst_12 = arith.constant dense<0.000000e+00> : vector<35x35xf32>
    %44 = tpu.matmul %43, %39, %cst_12 {dimension_numbers = #tpu.dot_dimension_numbers<[1], [1], [0], [0], [0, 0, 1, 0], [], []>} : vector<35x32xf32>, vector<35x32xf32>, vector<35x35xf32> -> vector<35x35xf32>
    %cst_13 = arith.constant 0.353553385 : f32
    %45 = vector.broadcast %cst_13 : f32 to vector<35x35xf32>
    %46 = arith.mulf %44, %45 : vector<35x35xf32>
    %cst_14 = arith.constant dense<0xFF800000> : vector<35xf32>
    %47 = vector.multi_reduction <maximumf>, %46, %cst_14 [1] : vector<35x35xf32> to vector<35xf32>
    %48 = vector.shape_cast %47 : vector<35xf32> to vector<35x1xf32>
    %49 = vector.broadcast %48 : vector<35x1xf32> to vector<35x35xf32>
    %50 = arith.subf %46, %49 : vector<35x35xf32>
    %51 = math.exp %50 : vector<35x35xf32>
    %cst_15 = arith.constant dense<0.000000e+00> : vector<35xf32>
    %52 = vector.multi_reduction <add>, %51, %cst_15 [1] : vector<35x35xf32> to vector<35xf32>
    %53 = vector.shape_cast %52 : vector<35xf32> to vector<35x1xf32>
    %54 = vector.broadcast %53 : vector<35x1xf32> to vector<35x35xf32>
    %55 = arith.divf %51, %54 : vector<35x35xf32>
    %56 = vector.broadcast %9 : vector<1x32xf32> to vector<35x32xf32>
    %57 = arith.mulf %40, %56 : vector<35x32xf32>
    %cst_16 = arith.constant dense<0.000000e+00> : vector<35x32xf32>
    %58 = tpu.matmul %55, %57, %cst_16 {dimension_numbers = #tpu.dot_dimension_numbers<[1], [0], [0], [1], [0, 0, 1, 1], [], []>} : vector<35x35xf32>, vector<35x32xf32>, vector<35x32xf32> -> vector<35x32xf32>
    %59 = arith.addf %41, %58 : vector<35x32xf32>
    %60 = vector.broadcast %16 : vector<1x32xf32> to vector<35x32xf32>
    %61 = arith.mulf %38, %60 : vector<35x32xf32>
    %cst_17 = arith.constant dense<0.000000e+00> : vector<35x35xf32>
    %62 = tpu.matmul %61, %39, %cst_17 {dimension_numbers = #tpu.dot_dimension_numbers<[1], [1], [0], [0], [0, 0, 1, 0], [], []>} : vector<35x32xf32>, vector<35x32xf32>, vector<35x35xf32> -> vector<35x35xf32>
    %cst_18 = arith.constant 0.353553385 : f32
    %63 = vector.broadcast %cst_18 : f32 to vector<35x35xf32>
    %64 = arith.mulf %62, %63 : vector<35x35xf32>
    %cst_19 = arith.constant dense<0xFF800000> : vector<35xf32>
    %65 = vector.multi_reduction <maximumf>, %64, %cst_19 [1] : vector<35x35xf32> to vector<35xf32>
    %66 = vector.shape_cast %65 : vector<35xf32> to vector<35x1xf32>
    %67 = vector.broadcast %66 : vector<35x1xf32> to vector<35x35xf32>
    %68 = arith.subf %64, %67 : vector<35x35xf32>
    %69 = math.exp %68 : vector<35x35xf32>
    %cst_20 = arith.constant dense<0.000000e+00> : vector<35xf32>
    %70 = vector.multi_reduction <add>, %69, %cst_20 [1] : vector<35x35xf32> to vector<35xf32>
    %71 = vector.shape_cast %70 : vector<35xf32> to vector<35x1xf32>
    %72 = vector.broadcast %71 : vector<35x1xf32> to vector<35x35xf32>
    %73 = arith.divf %69, %72 : vector<35x35xf32>
    %74 = vector.broadcast %16 : vector<1x32xf32> to vector<35x32xf32>
    %75 = arith.mulf %40, %74 : vector<35x32xf32>
    %cst_21 = arith.constant dense<0.000000e+00> : vector<35x32xf32>
    %76 = tpu.matmul %73, %75, %cst_21 {dimension_numbers = #tpu.dot_dimension_numbers<[1], [0], [0], [1], [0, 0, 1, 1], [], []>} : vector<35x35xf32>, vector<35x32xf32>, vector<35x32xf32> -> vector<35x32xf32>
    %77 = arith.addf %59, %76 : vector<35x32xf32>
    %78 = vector.broadcast %23 : vector<1x32xf32> to vector<35x32xf32>
    %79 = arith.mulf %38, %78 : vector<35x32xf32>
    %cst_22 = arith.constant dense<0.000000e+00> : vector<35x35xf32>
    %80 = tpu.matmul %79, %39, %cst_22 {dimension_numbers = #tpu.dot_dimension_numbers<[1], [1], [0], [0], [0, 0, 1, 0], [], []>} : vector<35x32xf32>, vector<35x32xf32>, vector<35x35xf32> -> vector<35x35xf32>
    %cst_23 = arith.constant 0.353553385 : f32
    %81 = vector.broadcast %cst_23 : f32 to vector<35x35xf32>
    %82 = arith.mulf %80, %81 : vector<35x35xf32>
    %cst_24 = arith.constant dense<0xFF800000> : vector<35xf32>
    %83 = vector.multi_reduction <maximumf>, %82, %cst_24 [1] : vector<35x35xf32> to vector<35xf32>
    %84 = vector.shape_cast %83 : vector<35xf32> to vector<35x1xf32>
    %85 = vector.broadcast %84 : vector<35x1xf32> to vector<35x35xf32>
    %86 = arith.subf %82, %85 : vector<35x35xf32>
    %87 = math.exp %86 : vector<35x35xf32>
    %cst_25 = arith.constant dense<0.000000e+00> : vector<35xf32>
    %88 = vector.multi_reduction <add>, %87, %cst_25 [1] : vector<35x35xf32> to vector<35xf32>
    %89 = vector.shape_cast %88 : vector<35xf32> to vector<35x1xf32>
    %90 = vector.broadcast %89 : vector<35x1xf32> to vector<35x35xf32>
    %91 = arith.divf %87, %90 : vector<35x35xf32>
    %92 = vector.broadcast %23 : vector<1x32xf32> to vector<35x32xf32>
    %93 = arith.mulf %40, %92 : vector<35x32xf32>
    %cst_26 = arith.constant dense<0.000000e+00> : vector<35x32xf32>
    %94 = tpu.matmul %91, %93, %cst_26 {dimension_numbers = #tpu.dot_dimension_numbers<[1], [0], [0], [1], [0, 0, 1, 1], [], []>} : vector<35x35xf32>, vector<35x32xf32>, vector<35x32xf32> -> vector<35x32xf32>
    %95 = arith.addf %77, %94 : vector<35x32xf32>
    %96 = vector.broadcast %30 : vector<1x32xf32> to vector<35x32xf32>
    %97 = arith.mulf %38, %96 : vector<35x32xf32>
    %cst_27 = arith.constant dense<0.000000e+00> : vector<35x35xf32>
    %98 = tpu.matmul %97, %39, %cst_27 {dimension_numbers = #tpu.dot_dimension_numbers<[1], [1], [0], [0], [0, 0, 1, 0], [], []>} : vector<35x32xf32>, vector<35x32xf32>, vector<35x35xf32> -> vector<35x35xf32>
    %cst_28 = arith.constant 0.353553385 : f32
    %99 = vector.broadcast %cst_28 : f32 to vector<35x35xf32>
    %100 = arith.mulf %98, %99 : vector<35x35xf32>
    %cst_29 = arith.constant dense<0xFF800000> : vector<35xf32>
    %101 = vector.multi_reduction <maximumf>, %100, %cst_29 [1] : vector<35x35xf32> to vector<35xf32>
    %102 = vector.shape_cast %101 : vector<35xf32> to vector<35x1xf32>
    %103 = vector.broadcast %102 : vector<35x1xf32> to vector<35x35xf32>
    %104 = arith.subf %100, %103 : vector<35x35xf32>
    %105 = math.exp %104 : vector<35x35xf32>
    %cst_30 = arith.constant dense<0.000000e+00> : vector<35xf32>
    %106 = vector.multi_reduction <add>, %105, %cst_30 [1] : vector<35x35xf32> to vector<35xf32>
    %107 = vector.shape_cast %106 : vector<35xf32> to vector<35x1xf32>
    %108 = vector.broadcast %107 : vector<35x1xf32> to vector<35x35xf32>
    %109 = arith.divf %105, %108 : vector<35x35xf32>
    %110 = vector.broadcast %30 : vector<1x32xf32> to vector<35x32xf32>
    %111 = arith.mulf %40, %110 : vector<35x32xf32>
    %cst_31 = arith.constant dense<0.000000e+00> : vector<35x32xf32>
    %112 = tpu.matmul %109, %111, %cst_31 {dimension_numbers = #tpu.dot_dimension_numbers<[1], [0], [0], [1], [0, 0, 1, 1], [], []>} : vector<35x35xf32>, vector<35x32xf32>, vector<35x32xf32> -> vector<35x32xf32>
    %113 = arith.addf %95, %112 : vector<35x32xf32>
    %c0_32 = arith.constant 0 : index
    %c0_33 = arith.constant 0 : index
    %c0_34 = arith.constant 0 : index
    %114 = vector.load %arg4[%c0_32, %c0_33, %c0_34] : memref<2x32x32xf32, #tpu.memory_space<vmem>>, vector<1x32x32xf32>
    %115 = vector.shape_cast %114 : vector<1x32x32xf32> to vector<32x32xf32>
    %cst_35 = arith.constant dense<0.000000e+00> : vector<35x32xf32>
    %116 = tpu.matmul %113, %115, %cst_35 {dimension_numbers = #tpu.dot_dimension_numbers<[1], [0], [0], [1], [0, 0, 1, 1], [], []>} : vector<35x32xf32>, vector<32x32xf32>, vector<35x32xf32> -> vector<35x32xf32>
    %c0_36 = arith.constant 0 : index
    %c0_37 = arith.constant 0 : index
    %c0_38 = arith.constant 0 : index
    %117 = vector.load %arg5[%c0_36, %c0_37, %c0_38] : memref<2x1x32xf32, #tpu.memory_space<vmem>>, vector<1x1x32xf32>
    %118 = vector.shape_cast %117 : vector<1x1x32xf32> to vector<1x32xf32>
    %119 = vector.broadcast %118 : vector<1x32xf32> to vector<35x32xf32>
    %120 = arith.addf %116, %119 : vector<35x32xf32>
    %121 = arith.addf %1, %120 : vector<35x32xf32>
    %c0_39 = arith.constant 0 : index
    %c0_40 = arith.constant 0 : index
    %c0_41 = arith.constant 0 : index
    %122 = vector.load %arg6[%c0_39, %c0_40, %c0_41] : memref<2x1x32xf32, #tpu.memory_space<vmem>>, vector<1x1x32xf32>
    %123 = vector.shape_cast %122 : vector<1x1x32xf32> to vector<1x32xf32>
    %c0_42 = arith.constant 0 : index
    %c0_43 = arith.constant 0 : index
    %c0_44 = arith.constant 0 : index
    %124 = vector.load %arg7[%c0_42, %c0_43, %c0_44] : memref<2x1x32xf32, #tpu.memory_space<vmem>>, vector<1x1x32xf32>
    %125 = vector.shape_cast %124 : vector<1x1x32xf32> to vector<1x32xf32>
    %cst_45 = arith.constant dense<0.000000e+00> : vector<35xf32>
    %126 = vector.multi_reduction <add>, %121, %cst_45 [1] : vector<35x32xf32> to vector<35xf32>
    %127 = vector.shape_cast %126 : vector<35xf32> to vector<35x1xf32>
    %cst_46 = arith.constant 3.200000e+01 : f32
    %128 = vector.broadcast %cst_46 : f32 to vector<35x1xf32>
    %129 = arith.divf %127, %128 : vector<35x1xf32>
    %130 = vector.broadcast %129 : vector<35x1xf32> to vector<35x32xf32>
    %131 = arith.subf %121, %130 : vector<35x32xf32>
    %132 = arith.mulf %131, %131 : vector<35x32xf32>
    %cst_47 = arith.constant dense<0.000000e+00> : vector<35xf32>
    %133 = vector.multi_reduction <add>, %132, %cst_47 [1] : vector<35x32xf32> to vector<35xf32>
    %134 = vector.shape_cast %133 : vector<35xf32> to vector<35x1xf32>
    %cst_48 = arith.constant 3.200000e+01 : f32
    %135 = vector.broadcast %cst_48 : f32 to vector<35x1xf32>
    %136 = arith.divf %134, %135 : vector<35x1xf32>
    %137 = vector.broadcast %129 : vector<35x1xf32> to vector<35x32xf32>
    %138 = arith.subf %121, %137 : vector<35x32xf32>
    %cst_49 = arith.constant 9.99999974E-6 : f32
    %139 = vector.broadcast %cst_49 : f32 to vector<35x1xf32>
    %140 = arith.addf %136, %139 : vector<35x1xf32>
    %141 = math.rsqrt %140 : vector<35x1xf32>
    %142 = vector.broadcast %141 : vector<35x1xf32> to vector<35x32xf32>
    %143 = arith.mulf %138, %142 : vector<35x32xf32>
    %144 = vector.broadcast %123 : vector<1x32xf32> to vector<35x32xf32>
    %145 = arith.mulf %143, %144 : vector<35x32xf32>
    %146 = vector.broadcast %125 : vector<1x32xf32> to vector<35x32xf32>
    %147 = arith.addf %145, %146 : vector<35x32xf32>
    %148 = arith.truncf %147 : vector<35x32xf32> to vector<35x32xbf16>
    %cst_50 = arith.constant 0.000000e+00 : f32
    %149 = vector.broadcast %cst_50 : f32 to vector<35x32xf32>
    %c0_51 = arith.constant 0 : index
    %c0_52 = arith.constant 0 : index
    %c0_53 = arith.constant 0 : index
    %150 = vector.load %arg8[%c0_51, %c0_52, %c0_53] : memref<2x32x2048xbf16, #tpu.memory_space<vmem>>, vector<1x32x512xbf16>
    %151 = vector.shape_cast %150 : vector<1x32x512xbf16> to vector<32x512xbf16>
    %cst_54 = arith.constant dense<0.000000e+00> : vector<35x512xf32>
    %152 = tpu.matmul %148, %151, %cst_54 {dimension_numbers = #tpu.dot_dimension_numbers<[1], [0], [0], [1], [0, 0, 1, 1], [], []>} : vector<35x32xbf16>, vector<32x512xbf16>, vector<35x512xf32> -> vector<35x512xf32>
    %c0_55 = arith.constant 0 : index
    %c0_56 = arith.constant 0 : index
    %c0_57 = arith.constant 0 : index
    %153 = vector.load %arg9[%c0_55, %c0_56, %c0_57] : memref<2x1x2048xf32, #tpu.memory_space<vmem>>, vector<1x1x512xf32>
    %154 = vector.shape_cast %153 : vector<1x1x512xf32> to vector<1x512xf32>
    %155 = vector.broadcast %154 : vector<1x512xf32> to vector<35x512xf32>
    %156 = arith.addf %152, %155 : vector<35x512xf32>
    %cst_58 = arith.constant 5.000000e-01 : f32
    %157 = vector.broadcast %cst_58 : f32 to vector<35x512xf32>
    %158 = arith.mulf %157, %156 : vector<35x512xf32>
    %cst_59 = arith.constant 0.707106769 : f32
    %159 = vector.broadcast %cst_59 : f32 to vector<35x512xf32>
    %160 = arith.mulf %156, %159 : vector<35x512xf32>
    %161 = math.erf %160 : vector<35x512xf32>
    %cst_60 = arith.constant 1.000000e+00 : f32
    %162 = vector.broadcast %cst_60 : f32 to vector<35x512xf32>
    %163 = arith.addf %162, %161 : vector<35x512xf32>
    %164 = arith.mulf %158, %163 : vector<35x512xf32>
    %165 = arith.truncf %164 : vector<35x512xf32> to vector<35x512xbf16>
    %c0_61 = arith.constant 0 : index
    %c0_62 = arith.constant 0 : index
    %c0_63 = arith.constant 0 : index
    %166 = vector.load %arg10[%c0_61, %c0_62, %c0_63] : memref<2x2048x32xbf16, #tpu.memory_space<vmem>>, vector<1x512x32xbf16>
    %167 = vector.shape_cast %166 : vector<1x512x32xbf16> to vector<512x32xbf16>
    %cst_64 = arith.constant dense<0.000000e+00> : vector<35x32xf32>
    %168 = tpu.matmul %165, %167, %cst_64 {dimension_numbers = #tpu.dot_dimension_numbers<[1], [0], [0], [1], [0, 0, 1, 1], [], []>} : vector<35x512xbf16>, vector<512x32xbf16>, vector<35x32xf32> -> vector<35x32xf32>
    %169 = arith.addf %149, %168 : vector<35x32xf32>
    %c0_65 = arith.constant 0 : index
    %c0_66 = arith.constant 0 : index
    %c512 = arith.constant 512 : index
    %170 = vector.load %arg8[%c0_65, %c0_66, %c512] : memref<2x32x2048xbf16, #tpu.memory_space<vmem>>, vector<1x32x512xbf16>
    %171 = vector.shape_cast %170 : vector<1x32x512xbf16> to vector<32x512xbf16>
    %cst_67 = arith.constant dense<0.000000e+00> : vector<35x512xf32>
    %172 = tpu.matmul %148, %171, %cst_67 {dimension_numbers = #tpu.dot_dimension_numbers<[1], [0], [0], [1], [0, 0, 1, 1], [], []>} : vector<35x32xbf16>, vector<32x512xbf16>, vector<35x512xf32> -> vector<35x512xf32>
    %c0_68 = arith.constant 0 : index
    %c0_69 = arith.constant 0 : index
    %c512_70 = arith.constant 512 : index
    %173 = vector.load %arg9[%c0_68, %c0_69, %c512_70] : memref<2x1x2048xf32, #tpu.memory_space<vmem>>, vector<1x1x512xf32>
    %174 = vector.shape_cast %173 : vector<1x1x512xf32> to vector<1x512xf32>
    %175 = vector.broadcast %174 : vector<1x512xf32> to vector<35x512xf32>
    %176 = arith.addf %172, %175 : vector<35x512xf32>
    %cst_71 = arith.constant 5.000000e-01 : f32
    %177 = vector.broadcast %cst_71 : f32 to vector<35x512xf32>
    %178 = arith.mulf %177, %176 : vector<35x512xf32>
    %cst_72 = arith.constant 0.707106769 : f32
    %179 = vector.broadcast %cst_72 : f32 to vector<35x512xf32>
    %180 = arith.mulf %176, %179 : vector<35x512xf32>
    %181 = math.erf %180 : vector<35x512xf32>
    %cst_73 = arith.constant 1.000000e+00 : f32
    %182 = vector.broadcast %cst_73 : f32 to vector<35x512xf32>
    %183 = arith.addf %182, %181 : vector<35x512xf32>
    %184 = arith.mulf %178, %183 : vector<35x512xf32>
    %185 = arith.truncf %184 : vector<35x512xf32> to vector<35x512xbf16>
    %c0_74 = arith.constant 0 : index
    %c512_75 = arith.constant 512 : index
    %c0_76 = arith.constant 0 : index
    %186 = vector.load %arg10[%c0_74, %c512_75, %c0_76] : memref<2x2048x32xbf16, #tpu.memory_space<vmem>>, vector<1x512x32xbf16>
    %187 = vector.shape_cast %186 : vector<1x512x32xbf16> to vector<512x32xbf16>
    %cst_77 = arith.constant dense<0.000000e+00> : vector<35x32xf32>
    %188 = tpu.matmul %185, %187, %cst_77 {dimension_numbers = #tpu.dot_dimension_numbers<[1], [0], [0], [1], [0, 0, 1, 1], [], []>} : vector<35x512xbf16>, vector<512x32xbf16>, vector<35x32xf32> -> vector<35x32xf32>
    %189 = arith.addf %169, %188 : vector<35x32xf32>
    %c0_78 = arith.constant 0 : index
    %c0_79 = arith.constant 0 : index
    %c1024 = arith.constant 1024 : index
    %190 = vector.load %arg8[%c0_78, %c0_79, %c1024] : memref<2x32x2048xbf16, #tpu.memory_space<vmem>>, vector<1x32x512xbf16>
    %191 = vector.shape_cast %190 : vector<1x32x512xbf16> to vector<32x512xbf16>
    %cst_80 = arith.constant dense<0.000000e+00> : vector<35x512xf32>
    %192 = tpu.matmul %148, %191, %cst_80 {dimension_numbers = #tpu.dot_dimension_numbers<[1], [0], [0], [1], [0, 0, 1, 1], [], []>} : vector<35x32xbf16>, vector<32x512xbf16>, vector<35x512xf32> -> vector<35x512xf32>
    %c0_81 = arith.constant 0 : index
    %c0_82 = arith.constant 0 : index
    %c1024_83 = arith.constant 1024 : index
    %193 = vector.load %arg9[%c0_81, %c0_82, %c1024_83] : memref<2x1x2048xf32, #tpu.memory_space<vmem>>, vector<1x1x512xf32>
    %194 = vector.shape_cast %193 : vector<1x1x512xf32> to vector<1x512xf32>
    %195 = vector.broadcast %194 : vector<1x512xf32> to vector<35x512xf32>
    %196 = arith.addf %192, %195 : vector<35x512xf32>
    %cst_84 = arith.constant 5.000000e-01 : f32
    %197 = vector.broadcast %cst_84 : f32 to vector<35x512xf32>
    %198 = arith.mulf %197, %196 : vector<35x512xf32>
    %cst_85 = arith.constant 0.707106769 : f32
    %199 = vector.broadcast %cst_85 : f32 to vector<35x512xf32>
    %200 = arith.mulf %196, %199 : vector<35x512xf32>
    %201 = math.erf %200 : vector<35x512xf32>
    %cst_86 = arith.constant 1.000000e+00 : f32
    %202 = vector.broadcast %cst_86 : f32 to vector<35x512xf32>
    %203 = arith.addf %202, %201 : vector<35x512xf32>
    %204 = arith.mulf %198, %203 : vector<35x512xf32>
    %205 = arith.truncf %204 : vector<35x512xf32> to vector<35x512xbf16>
    %c0_87 = arith.constant 0 : index
    %c1024_88 = arith.constant 1024 : index
    %c0_89 = arith.constant 0 : index
    %206 = vector.load %arg10[%c0_87, %c1024_88, %c0_89] : memref<2x2048x32xbf16, #tpu.memory_space<vmem>>, vector<1x512x32xbf16>
    %207 = vector.shape_cast %206 : vector<1x512x32xbf16> to vector<512x32xbf16>
    %cst_90 = arith.constant dense<0.000000e+00> : vector<35x32xf32>
    %208 = tpu.matmul %205, %207, %cst_90 {dimension_numbers = #tpu.dot_dimension_numbers<[1], [0], [0], [1], [0, 0, 1, 1], [], []>} : vector<35x512xbf16>, vector<512x32xbf16>, vector<35x32xf32> -> vector<35x32xf32>
    %209 = arith.addf %189, %208 : vector<35x32xf32>
    %c0_91 = arith.constant 0 : index
    %c0_92 = arith.constant 0 : index
    %c1536 = arith.constant 1536 : index
    %210 = vector.load %arg8[%c0_91, %c0_92, %c1536] : memref<2x32x2048xbf16, #tpu.memory_space<vmem>>, vector<1x32x512xbf16>
    %211 = vector.shape_cast %210 : vector<1x32x512xbf16> to vector<32x512xbf16>
    %cst_93 = arith.constant dense<0.000000e+00> : vector<35x512xf32>
    %212 = tpu.matmul %148, %211, %cst_93 {dimension_numbers = #tpu.dot_dimension_numbers<[1], [0], [0], [1], [0, 0, 1, 1], [], []>} : vector<35x32xbf16>, vector<32x512xbf16>, vector<35x512xf32> -> vector<35x512xf32>
    %c0_94 = arith.constant 0 : index
    %c0_95 = arith.constant 0 : index
    %c1536_96 = arith.constant 1536 : index
    %213 = vector.load %arg9[%c0_94, %c0_95, %c1536_96] : memref<2x1x2048xf32, #tpu.memory_space<vmem>>, vector<1x1x512xf32>
    %214 = vector.shape_cast %213 : vector<1x1x512xf32> to vector<1x512xf32>
    %215 = vector.broadcast %214 : vector<1x512xf32> to vector<35x512xf32>
    %216 = arith.addf %212, %215 : vector<35x512xf32>
    %cst_97 = arith.constant 5.000000e-01 : f32
    %217 = vector.broadcast %cst_97 : f32 to vector<35x512xf32>
    %218 = arith.mulf %217, %216 : vector<35x512xf32>
    %cst_98 = arith.constant 0.707106769 : f32
    %219 = vector.broadcast %cst_98 : f32 to vector<35x512xf32>
    %220 = arith.mulf %216, %219 : vector<35x512xf32>
    %221 = math.erf %220 : vector<35x512xf32>
    %cst_99 = arith.constant 1.000000e+00 : f32
    %222 = vector.broadcast %cst_99 : f32 to vector<35x512xf32>
    %223 = arith.addf %222, %221 : vector<35x512xf32>
    %224 = arith.mulf %218, %223 : vector<35x512xf32>
    %225 = arith.truncf %224 : vector<35x512xf32> to vector<35x512xbf16>
    %c0_100 = arith.constant 0 : index
    %c1536_101 = arith.constant 1536 : index
    %c0_102 = arith.constant 0 : index
    %226 = vector.load %arg10[%c0_100, %c1536_101, %c0_102] : memref<2x2048x32xbf16, #tpu.memory_space<vmem>>, vector<1x512x32xbf16>
    %227 = vector.shape_cast %226 : vector<1x512x32xbf16> to vector<512x32xbf16>
    %cst_103 = arith.constant dense<0.000000e+00> : vector<35x32xf32>
    %228 = tpu.matmul %225, %227, %cst_103 {dimension_numbers = #tpu.dot_dimension_numbers<[1], [0], [0], [1], [0, 0, 1, 1], [], []>} : vector<35x512xbf16>, vector<512x32xbf16>, vector<35x32xf32> -> vector<35x32xf32>
    %229 = arith.addf %209, %228 : vector<35x32xf32>
    %230 = arith.addf %147, %229 : vector<35x32xf32>
    %c0_104 = arith.constant 0 : index
    %c0_105 = arith.constant 0 : index
    %c0_106 = arith.constant 0 : index
    %231 = vector.load %arg11[%c0_104, %c0_105, %c0_106] : memref<2x1x32xf32, #tpu.memory_space<vmem>>, vector<1x1x32xf32>
    %232 = vector.shape_cast %231 : vector<1x1x32xf32> to vector<1x32xf32>
    %233 = vector.broadcast %232 : vector<1x32xf32> to vector<35x32xf32>
    %234 = arith.addf %230, %233 : vector<35x32xf32>
    %c0_107 = arith.constant 0 : index
    %c0_108 = arith.constant 0 : index
    %c0_109 = arith.constant 0 : index
    %235 = vector.load %arg12[%c0_107, %c0_108, %c0_109] : memref<2x1x32xf32, #tpu.memory_space<vmem>>, vector<1x1x32xf32>
    %236 = vector.shape_cast %235 : vector<1x1x32xf32> to vector<1x32xf32>
    %c0_110 = arith.constant 0 : index
    %c0_111 = arith.constant 0 : index
    %c0_112 = arith.constant 0 : index
    %237 = vector.load %arg13[%c0_110, %c0_111, %c0_112] : memref<2x1x32xf32, #tpu.memory_space<vmem>>, vector<1x1x32xf32>
    %238 = vector.shape_cast %237 : vector<1x1x32xf32> to vector<1x32xf32>
    %cst_113 = arith.constant dense<0.000000e+00> : vector<35xf32>
    %239 = vector.multi_reduction <add>, %234, %cst_113 [1] : vector<35x32xf32> to vector<35xf32>
    %240 = vector.shape_cast %239 : vector<35xf32> to vector<35x1xf32>
    %cst_114 = arith.constant 3.200000e+01 : f32
    %241 = vector.broadcast %cst_114 : f32 to vector<35x1xf32>
    %242 = arith.divf %240, %241 : vector<35x1xf32>
    %243 = vector.broadcast %242 : vector<35x1xf32> to vector<35x32xf32>
    %244 = arith.subf %234, %243 : vector<35x32xf32>
    %245 = arith.mulf %244, %244 : vector<35x32xf32>
    %cst_115 = arith.constant dense<0.000000e+00> : vector<35xf32>
    %246 = vector.multi_reduction <add>, %245, %cst_115 [1] : vector<35x32xf32> to vector<35xf32>
    %247 = vector.shape_cast %246 : vector<35xf32> to vector<35x1xf32>
    %cst_116 = arith.constant 3.200000e+01 : f32
    %248 = vector.broadcast %cst_116 : f32 to vector<35x1xf32>
    %249 = arith.divf %247, %248 : vector<35x1xf32>
    %250 = vector.broadcast %242 : vector<35x1xf32> to vector<35x32xf32>
    %251 = arith.subf %234, %250 : vector<35x32xf32>
    %cst_117 = arith.constant 9.99999974E-6 : f32
    %252 = vector.broadcast %cst_117 : f32 to vector<35x1xf32>
    %253 = arith.addf %249, %252 : vector<35x1xf32>
    %254 = math.rsqrt %253 : vector<35x1xf32>
    %255 = vector.broadcast %254 : vector<35x1xf32> to vector<35x32xf32>
    %256 = arith.mulf %251, %255 : vector<35x32xf32>
    %257 = vector.broadcast %236 : vector<1x32xf32> to vector<35x32xf32>
    %258 = arith.mulf %256, %257 : vector<35x32xf32>
    %259 = vector.broadcast %238 : vector<1x32xf32> to vector<35x32xf32>
    %260 = arith.addf %258, %259 : vector<35x32xf32>
    %c1 = arith.constant 1 : index
    %c0_118 = arith.constant 0 : index
    %c0_119 = arith.constant 0 : index
    %261 = vector.load %arg2[%c1, %c0_118, %c0_119] : memref<2x32x96xf32, #tpu.memory_space<vmem>>, vector<1x32x96xf32>
    %262 = vector.shape_cast %261 : vector<1x32x96xf32> to vector<32x96xf32>
    %cst_120 = arith.constant dense<0.000000e+00> : vector<35x96xf32>
    %263 = tpu.matmul %260, %262, %cst_120 {dimension_numbers = #tpu.dot_dimension_numbers<[1], [0], [0], [1], [0, 0, 1, 1], [], []>} : vector<35x32xf32>, vector<32x96xf32>, vector<35x96xf32> -> vector<35x96xf32>
    %c1_121 = arith.constant 1 : index
    %c0_122 = arith.constant 0 : index
    %c0_123 = arith.constant 0 : index
    %264 = vector.load %arg3[%c1_121, %c0_122, %c0_123] : memref<2x1x96xf32, #tpu.memory_space<vmem>>, vector<1x1x96xf32>
    %265 = vector.shape_cast %264 : vector<1x1x96xf32> to vector<1x96xf32>
    %266 = vector.broadcast %265 : vector<1x96xf32> to vector<35x96xf32>
    %267 = arith.addf %263, %266 : vector<35x96xf32>
    %268 = vector.extract_strided_slice %267 {offsets = [0, 0], sizes = [35, 32], strides = [1, 1]} : vector<35x96xf32> to vector<35x32xf32>
    %269 = vector.extract_strided_slice %267 {offsets = [0, 32], sizes = [35, 32], strides = [1, 1]} : vector<35x96xf32> to vector<35x32xf32>
    %270 = vector.extract_strided_slice %267 {offsets = [0, 64], sizes = [35, 32], strides = [1, 1]} : vector<35x96xf32> to vector<35x32xf32>
    %cst_124 = arith.constant 0.000000e+00 : f32
    %271 = vector.broadcast %cst_124 : f32 to vector<35x32xf32>
    %272 = vector.broadcast %9 : vector<1x32xf32> to vector<35x32xf32>
    %273 = arith.mulf %268, %272 : vector<35x32xf32>
    %cst_125 = arith.constant dense<0.000000e+00> : vector<35x35xf32>
    %274 = tpu.matmul %273, %269, %cst_125 {dimension_numbers = #tpu.dot_dimension_numbers<[1], [1], [0], [0], [0, 0, 1, 0], [], []>} : vector<35x32xf32>, vector<35x32xf32>, vector<35x35xf32> -> vector<35x35xf32>
    %cst_126 = arith.constant 0.353553385 : f32
    %275 = vector.broadcast %cst_126 : f32 to vector<35x35xf32>
    %276 = arith.mulf %274, %275 : vector<35x35xf32>
    %cst_127 = arith.constant dense<0xFF800000> : vector<35xf32>
    %277 = vector.multi_reduction <maximumf>, %276, %cst_127 [1] : vector<35x35xf32> to vector<35xf32>
    %278 = vector.shape_cast %277 : vector<35xf32> to vector<35x1xf32>
    %279 = vector.broadcast %278 : vector<35x1xf32> to vector<35x35xf32>
    %280 = arith.subf %276, %279 : vector<35x35xf32>
    %281 = math.exp %280 : vector<35x35xf32>
    %cst_128 = arith.constant dense<0.000000e+00> : vector<35xf32>
    %282 = vector.multi_reduction <add>, %281, %cst_128 [1] : vector<35x35xf32> to vector<35xf32>
    %283 = vector.shape_cast %282 : vector<35xf32> to vector<35x1xf32>
    %284 = vector.broadcast %283 : vector<35x1xf32> to vector<35x35xf32>
    %285 = arith.divf %281, %284 : vector<35x35xf32>
    %286 = vector.broadcast %9 : vector<1x32xf32> to vector<35x32xf32>
    %287 = arith.mulf %270, %286 : vector<35x32xf32>
    %cst_129 = arith.constant dense<0.000000e+00> : vector<35x32xf32>
    %288 = tpu.matmul %285, %287, %cst_129 {dimension_numbers = #tpu.dot_dimension_numbers<[1], [0], [0], [1], [0, 0, 1, 1], [], []>} : vector<35x35xf32>, vector<35x32xf32>, vector<35x32xf32> -> vector<35x32xf32>
    %289 = arith.addf %271, %288 : vector<35x32xf32>
    %290 = vector.broadcast %16 : vector<1x32xf32> to vector<35x32xf32>
    %291 = arith.mulf %268, %290 : vector<35x32xf32>
    %cst_130 = arith.constant dense<0.000000e+00> : vector<35x35xf32>
    %292 = tpu.matmul %291, %269, %cst_130 {dimension_numbers = #tpu.dot_dimension_numbers<[1], [1], [0], [0], [0, 0, 1, 0], [], []>} : vector<35x32xf32>, vector<35x32xf32>, vector<35x35xf32> -> vector<35x35xf32>
    %cst_131 = arith.constant 0.353553385 : f32
    %293 = vector.broadcast %cst_131 : f32 to vector<35x35xf32>
    %294 = arith.mulf %292, %293 : vector<35x35xf32>
    %cst_132 = arith.constant dense<0xFF800000> : vector<35xf32>
    %295 = vector.multi_reduction <maximumf>, %294, %cst_132 [1] : vector<35x35xf32> to vector<35xf32>
    %296 = vector.shape_cast %295 : vector<35xf32> to vector<35x1xf32>
    %297 = vector.broadcast %296 : vector<35x1xf32> to vector<35x35xf32>
    %298 = arith.subf %294, %297 : vector<35x35xf32>
    %299 = math.exp %298 : vector<35x35xf32>
    %cst_133 = arith.constant dense<0.000000e+00> : vector<35xf32>
    %300 = vector.multi_reduction <add>, %299, %cst_133 [1] : vector<35x35xf32> to vector<35xf32>
    %301 = vector.shape_cast %300 : vector<35xf32> to vector<35x1xf32>
    %302 = vector.broadcast %301 : vector<35x1xf32> to vector<35x35xf32>
    %303 = arith.divf %299, %302 : vector<35x35xf32>
    %304 = vector.broadcast %16 : vector<1x32xf32> to vector<35x32xf32>
    %305 = arith.mulf %270, %304 : vector<35x32xf32>
    %cst_134 = arith.constant dense<0.000000e+00> : vector<35x32xf32>
    %306 = tpu.matmul %303, %305, %cst_134 {dimension_numbers = #tpu.dot_dimension_numbers<[1], [0], [0], [1], [0, 0, 1, 1], [], []>} : vector<35x35xf32>, vector<35x32xf32>, vector<35x32xf32> -> vector<35x32xf32>
    %307 = arith.addf %289, %306 : vector<35x32xf32>
    %308 = vector.broadcast %23 : vector<1x32xf32> to vector<35x32xf32>
    %309 = arith.mulf %268, %308 : vector<35x32xf32>
    %cst_135 = arith.constant dense<0.000000e+00> : vector<35x35xf32>
    %310 = tpu.matmul %309, %269, %cst_135 {dimension_numbers = #tpu.dot_dimension_numbers<[1], [1], [0], [0], [0, 0, 1, 0], [], []>} : vector<35x32xf32>, vector<35x32xf32>, vector<35x35xf32> -> vector<35x35xf32>
    %cst_136 = arith.constant 0.353553385 : f32
    %311 = vector.broadcast %cst_136 : f32 to vector<35x35xf32>
    %312 = arith.mulf %310, %311 : vector<35x35xf32>
    %cst_137 = arith.constant dense<0xFF800000> : vector<35xf32>
    %313 = vector.multi_reduction <maximumf>, %312, %cst_137 [1] : vector<35x35xf32> to vector<35xf32>
    %314 = vector.shape_cast %313 : vector<35xf32> to vector<35x1xf32>
    %315 = vector.broadcast %314 : vector<35x1xf32> to vector<35x35xf32>
    %316 = arith.subf %312, %315 : vector<35x35xf32>
    %317 = math.exp %316 : vector<35x35xf32>
    %cst_138 = arith.constant dense<0.000000e+00> : vector<35xf32>
    %318 = vector.multi_reduction <add>, %317, %cst_138 [1] : vector<35x35xf32> to vector<35xf32>
    %319 = vector.shape_cast %318 : vector<35xf32> to vector<35x1xf32>
    %320 = vector.broadcast %319 : vector<35x1xf32> to vector<35x35xf32>
    %321 = arith.divf %317, %320 : vector<35x35xf32>
    %322 = vector.broadcast %23 : vector<1x32xf32> to vector<35x32xf32>
    %323 = arith.mulf %270, %322 : vector<35x32xf32>
    %cst_139 = arith.constant dense<0.000000e+00> : vector<35x32xf32>
    %324 = tpu.matmul %321, %323, %cst_139 {dimension_numbers = #tpu.dot_dimension_numbers<[1], [0], [0], [1], [0, 0, 1, 1], [], []>} : vector<35x35xf32>, vector<35x32xf32>, vector<35x32xf32> -> vector<35x32xf32>
    %325 = arith.addf %307, %324 : vector<35x32xf32>
    %326 = vector.broadcast %30 : vector<1x32xf32> to vector<35x32xf32>
    %327 = arith.mulf %268, %326 : vector<35x32xf32>
    %cst_140 = arith.constant dense<0.000000e+00> : vector<35x35xf32>
    %328 = tpu.matmul %327, %269, %cst_140 {dimension_numbers = #tpu.dot_dimension_numbers<[1], [1], [0], [0], [0, 0, 1, 0], [], []>} : vector<35x32xf32>, vector<35x32xf32>, vector<35x35xf32> -> vector<35x35xf32>
    %cst_141 = arith.constant 0.353553385 : f32
    %329 = vector.broadcast %cst_141 : f32 to vector<35x35xf32>
    %330 = arith.mulf %328, %329 : vector<35x35xf32>
    %cst_142 = arith.constant dense<0xFF800000> : vector<35xf32>
    %331 = vector.multi_reduction <maximumf>, %330, %cst_142 [1] : vector<35x35xf32> to vector<35xf32>
    %332 = vector.shape_cast %331 : vector<35xf32> to vector<35x1xf32>
    %333 = vector.broadcast %332 : vector<35x1xf32> to vector<35x35xf32>
    %334 = arith.subf %330, %333 : vector<35x35xf32>
    %335 = math.exp %334 : vector<35x35xf32>
    %cst_143 = arith.constant dense<0.000000e+00> : vector<35xf32>
    %336 = vector.multi_reduction <add>, %335, %cst_143 [1] : vector<35x35xf32> to vector<35xf32>
    %337 = vector.shape_cast %336 : vector<35xf32> to vector<35x1xf32>
    %338 = vector.broadcast %337 : vector<35x1xf32> to vector<35x35xf32>
    %339 = arith.divf %335, %338 : vector<35x35xf32>
    %340 = vector.broadcast %30 : vector<1x32xf32> to vector<35x32xf32>
    %341 = arith.mulf %270, %340 : vector<35x32xf32>
    %cst_144 = arith.constant dense<0.000000e+00> : vector<35x32xf32>
    %342 = tpu.matmul %339, %341, %cst_144 {dimension_numbers = #tpu.dot_dimension_numbers<[1], [0], [0], [1], [0, 0, 1, 1], [], []>} : vector<35x35xf32>, vector<35x32xf32>, vector<35x32xf32> -> vector<35x32xf32>
    %343 = arith.addf %325, %342 : vector<35x32xf32>
    %c1_145 = arith.constant 1 : index
    %c0_146 = arith.constant 0 : index
    %c0_147 = arith.constant 0 : index
    %344 = vector.load %arg4[%c1_145, %c0_146, %c0_147] : memref<2x32x32xf32, #tpu.memory_space<vmem>>, vector<1x32x32xf32>
    %345 = vector.shape_cast %344 : vector<1x32x32xf32> to vector<32x32xf32>
    %cst_148 = arith.constant dense<0.000000e+00> : vector<35x32xf32>
    %346 = tpu.matmul %343, %345, %cst_148 {dimension_numbers = #tpu.dot_dimension_numbers<[1], [0], [0], [1], [0, 0, 1, 1], [], []>} : vector<35x32xf32>, vector<32x32xf32>, vector<35x32xf32> -> vector<35x32xf32>
    %c1_149 = arith.constant 1 : index
    %c0_150 = arith.constant 0 : index
    %c0_151 = arith.constant 0 : index
    %347 = vector.load %arg5[%c1_149, %c0_150, %c0_151] : memref<2x1x32xf32, #tpu.memory_space<vmem>>, vector<1x1x32xf32>
    %348 = vector.shape_cast %347 : vector<1x1x32xf32> to vector<1x32xf32>
    %349 = vector.broadcast %348 : vector<1x32xf32> to vector<35x32xf32>
    %350 = arith.addf %346, %349 : vector<35x32xf32>
    %351 = arith.addf %260, %350 : vector<35x32xf32>
    %c1_152 = arith.constant 1 : index
    %c0_153 = arith.constant 0 : index
    %c0_154 = arith.constant 0 : index
    %352 = vector.load %arg6[%c1_152, %c0_153, %c0_154] : memref<2x1x32xf32, #tpu.memory_space<vmem>>, vector<1x1x32xf32>
    %353 = vector.shape_cast %352 : vector<1x1x32xf32> to vector<1x32xf32>
    %c1_155 = arith.constant 1 : index
    %c0_156 = arith.constant 0 : index
    %c0_157 = arith.constant 0 : index
    %354 = vector.load %arg7[%c1_155, %c0_156, %c0_157] : memref<2x1x32xf32, #tpu.memory_space<vmem>>, vector<1x1x32xf32>
    %355 = vector.shape_cast %354 : vector<1x1x32xf32> to vector<1x32xf32>
    %cst_158 = arith.constant dense<0.000000e+00> : vector<35xf32>
    %356 = vector.multi_reduction <add>, %351, %cst_158 [1] : vector<35x32xf32> to vector<35xf32>
    %357 = vector.shape_cast %356 : vector<35xf32> to vector<35x1xf32>
    %cst_159 = arith.constant 3.200000e+01 : f32
    %358 = vector.broadcast %cst_159 : f32 to vector<35x1xf32>
    %359 = arith.divf %357, %358 : vector<35x1xf32>
    %360 = vector.broadcast %359 : vector<35x1xf32> to vector<35x32xf32>
    %361 = arith.subf %351, %360 : vector<35x32xf32>
    %362 = arith.mulf %361, %361 : vector<35x32xf32>
    %cst_160 = arith.constant dense<0.000000e+00> : vector<35xf32>
    %363 = vector.multi_reduction <add>, %362, %cst_160 [1] : vector<35x32xf32> to vector<35xf32>
    %364 = vector.shape_cast %363 : vector<35xf32> to vector<35x1xf32>
    %cst_161 = arith.constant 3.200000e+01 : f32
    %365 = vector.broadcast %cst_161 : f32 to vector<35x1xf32>
    %366 = arith.divf %364, %365 : vector<35x1xf32>
    %367 = vector.broadcast %359 : vector<35x1xf32> to vector<35x32xf32>
    %368 = arith.subf %351, %367 : vector<35x32xf32>
    %cst_162 = arith.constant 9.99999974E-6 : f32
    %369 = vector.broadcast %cst_162 : f32 to vector<35x1xf32>
    %370 = arith.addf %366, %369 : vector<35x1xf32>
    %371 = math.rsqrt %370 : vector<35x1xf32>
    %372 = vector.broadcast %371 : vector<35x1xf32> to vector<35x32xf32>
    %373 = arith.mulf %368, %372 : vector<35x32xf32>
    %374 = vector.broadcast %353 : vector<1x32xf32> to vector<35x32xf32>
    %375 = arith.mulf %373, %374 : vector<35x32xf32>
    %376 = vector.broadcast %355 : vector<1x32xf32> to vector<35x32xf32>
    %377 = arith.addf %375, %376 : vector<35x32xf32>
    %378 = arith.truncf %377 : vector<35x32xf32> to vector<35x32xbf16>
    %cst_163 = arith.constant 0.000000e+00 : f32
    %379 = vector.broadcast %cst_163 : f32 to vector<35x32xf32>
    %c1_164 = arith.constant 1 : index
    %c0_165 = arith.constant 0 : index
    %c0_166 = arith.constant 0 : index
    %380 = vector.load %arg8[%c1_164, %c0_165, %c0_166] : memref<2x32x2048xbf16, #tpu.memory_space<vmem>>, vector<1x32x512xbf16>
    %381 = vector.shape_cast %380 : vector<1x32x512xbf16> to vector<32x512xbf16>
    %cst_167 = arith.constant dense<0.000000e+00> : vector<35x512xf32>
    %382 = tpu.matmul %378, %381, %cst_167 {dimension_numbers = #tpu.dot_dimension_numbers<[1], [0], [0], [1], [0, 0, 1, 1], [], []>} : vector<35x32xbf16>, vector<32x512xbf16>, vector<35x512xf32> -> vector<35x512xf32>
    %c1_168 = arith.constant 1 : index
    %c0_169 = arith.constant 0 : index
    %c0_170 = arith.constant 0 : index
    %383 = vector.load %arg9[%c1_168, %c0_169, %c0_170] : memref<2x1x2048xf32, #tpu.memory_space<vmem>>, vector<1x1x512xf32>
    %384 = vector.shape_cast %383 : vector<1x1x512xf32> to vector<1x512xf32>
    %385 = vector.broadcast %384 : vector<1x512xf32> to vector<35x512xf32>
    %386 = arith.addf %382, %385 : vector<35x512xf32>
    %cst_171 = arith.constant 5.000000e-01 : f32
    %387 = vector.broadcast %cst_171 : f32 to vector<35x512xf32>
    %388 = arith.mulf %387, %386 : vector<35x512xf32>
    %cst_172 = arith.constant 0.707106769 : f32
    %389 = vector.broadcast %cst_172 : f32 to vector<35x512xf32>
    %390 = arith.mulf %386, %389 : vector<35x512xf32>
    %391 = math.erf %390 : vector<35x512xf32>
    %cst_173 = arith.constant 1.000000e+00 : f32
    %392 = vector.broadcast %cst_173 : f32 to vector<35x512xf32>
    %393 = arith.addf %392, %391 : vector<35x512xf32>
    %394 = arith.mulf %388, %393 : vector<35x512xf32>
    %395 = arith.truncf %394 : vector<35x512xf32> to vector<35x512xbf16>
    %c1_174 = arith.constant 1 : index
    %c0_175 = arith.constant 0 : index
    %c0_176 = arith.constant 0 : index
    %396 = vector.load %arg10[%c1_174, %c0_175, %c0_176] : memref<2x2048x32xbf16, #tpu.memory_space<vmem>>, vector<1x512x32xbf16>
    %397 = vector.shape_cast %396 : vector<1x512x32xbf16> to vector<512x32xbf16>
    %cst_177 = arith.constant dense<0.000000e+00> : vector<35x32xf32>
    %398 = tpu.matmul %395, %397, %cst_177 {dimension_numbers = #tpu.dot_dimension_numbers<[1], [0], [0], [1], [0, 0, 1, 1], [], []>} : vector<35x512xbf16>, vector<512x32xbf16>, vector<35x32xf32> -> vector<35x32xf32>
    %399 = arith.addf %379, %398 : vector<35x32xf32>
    %c1_178 = arith.constant 1 : index
    %c0_179 = arith.constant 0 : index
    %c512_180 = arith.constant 512 : index
    %400 = vector.load %arg8[%c1_178, %c0_179, %c512_180] : memref<2x32x2048xbf16, #tpu.memory_space<vmem>>, vector<1x32x512xbf16>
    %401 = vector.shape_cast %400 : vector<1x32x512xbf16> to vector<32x512xbf16>
    %cst_181 = arith.constant dense<0.000000e+00> : vector<35x512xf32>
    %402 = tpu.matmul %378, %401, %cst_181 {dimension_numbers = #tpu.dot_dimension_numbers<[1], [0], [0], [1], [0, 0, 1, 1], [], []>} : vector<35x32xbf16>, vector<32x512xbf16>, vector<35x512xf32> -> vector<35x512xf32>
    %c1_182 = arith.constant 1 : index
    %c0_183 = arith.constant 0 : index
    %c512_184 = arith.constant 512 : index
    %403 = vector.load %arg9[%c1_182, %c0_183, %c512_184] : memref<2x1x2048xf32, #tpu.memory_space<vmem>>, vector<1x1x512xf32>
    %404 = vector.shape_cast %403 : vector<1x1x512xf32> to vector<1x512xf32>
    %405 = vector.broadcast %404 : vector<1x512xf32> to vector<35x512xf32>
    %406 = arith.addf %402, %405 : vector<35x512xf32>
    %cst_185 = arith.constant 5.000000e-01 : f32
    %407 = vector.broadcast %cst_185 : f32 to vector<35x512xf32>
    %408 = arith.mulf %407, %406 : vector<35x512xf32>
    %cst_186 = arith.constant 0.707106769 : f32
    %409 = vector.broadcast %cst_186 : f32 to vector<35x512xf32>
    %410 = arith.mulf %406, %409 : vector<35x512xf32>
    %411 = math.erf %410 : vector<35x512xf32>
    %cst_187 = arith.constant 1.000000e+00 : f32
    %412 = vector.broadcast %cst_187 : f32 to vector<35x512xf32>
    %413 = arith.addf %412, %411 : vector<35x512xf32>
    %414 = arith.mulf %408, %413 : vector<35x512xf32>
    %415 = arith.truncf %414 : vector<35x512xf32> to vector<35x512xbf16>
    %c1_188 = arith.constant 1 : index
    %c512_189 = arith.constant 512 : index
    %c0_190 = arith.constant 0 : index
    %416 = vector.load %arg10[%c1_188, %c512_189, %c0_190] : memref<2x2048x32xbf16, #tpu.memory_space<vmem>>, vector<1x512x32xbf16>
    %417 = vector.shape_cast %416 : vector<1x512x32xbf16> to vector<512x32xbf16>
    %cst_191 = arith.constant dense<0.000000e+00> : vector<35x32xf32>
    %418 = tpu.matmul %415, %417, %cst_191 {dimension_numbers = #tpu.dot_dimension_numbers<[1], [0], [0], [1], [0, 0, 1, 1], [], []>} : vector<35x512xbf16>, vector<512x32xbf16>, vector<35x32xf32> -> vector<35x32xf32>
    %419 = arith.addf %399, %418 : vector<35x32xf32>
    %c1_192 = arith.constant 1 : index
    %c0_193 = arith.constant 0 : index
    %c1024_194 = arith.constant 1024 : index
    %420 = vector.load %arg8[%c1_192, %c0_193, %c1024_194] : memref<2x32x2048xbf16, #tpu.memory_space<vmem>>, vector<1x32x512xbf16>
    %421 = vector.shape_cast %420 : vector<1x32x512xbf16> to vector<32x512xbf16>
    %cst_195 = arith.constant dense<0.000000e+00> : vector<35x512xf32>
    %422 = tpu.matmul %378, %421, %cst_195 {dimension_numbers = #tpu.dot_dimension_numbers<[1], [0], [0], [1], [0, 0, 1, 1], [], []>} : vector<35x32xbf16>, vector<32x512xbf16>, vector<35x512xf32> -> vector<35x512xf32>
    %c1_196 = arith.constant 1 : index
    %c0_197 = arith.constant 0 : index
    %c1024_198 = arith.constant 1024 : index
    %423 = vector.load %arg9[%c1_196, %c0_197, %c1024_198] : memref<2x1x2048xf32, #tpu.memory_space<vmem>>, vector<1x1x512xf32>
    %424 = vector.shape_cast %423 : vector<1x1x512xf32> to vector<1x512xf32>
    %425 = vector.broadcast %424 : vector<1x512xf32> to vector<35x512xf32>
    %426 = arith.addf %422, %425 : vector<35x512xf32>
    %cst_199 = arith.constant 5.000000e-01 : f32
    %427 = vector.broadcast %cst_199 : f32 to vector<35x512xf32>
    %428 = arith.mulf %427, %426 : vector<35x512xf32>
    %cst_200 = arith.constant 0.707106769 : f32
    %429 = vector.broadcast %cst_200 : f32 to vector<35x512xf32>
    %430 = arith.mulf %426, %429 : vector<35x512xf32>
    %431 = math.erf %430 : vector<35x512xf32>
    %cst_201 = arith.constant 1.000000e+00 : f32
    %432 = vector.broadcast %cst_201 : f32 to vector<35x512xf32>
    %433 = arith.addf %432, %431 : vector<35x512xf32>
    %434 = arith.mulf %428, %433 : vector<35x512xf32>
    %435 = arith.truncf %434 : vector<35x512xf32> to vector<35x512xbf16>
    %c1_202 = arith.constant 1 : index
    %c1024_203 = arith.constant 1024 : index
    %c0_204 = arith.constant 0 : index
    %436 = vector.load %arg10[%c1_202, %c1024_203, %c0_204] : memref<2x2048x32xbf16, #tpu.memory_space<vmem>>, vector<1x512x32xbf16>
    %437 = vector.shape_cast %436 : vector<1x512x32xbf16> to vector<512x32xbf16>
    %cst_205 = arith.constant dense<0.000000e+00> : vector<35x32xf32>
    %438 = tpu.matmul %435, %437, %cst_205 {dimension_numbers = #tpu.dot_dimension_numbers<[1], [0], [0], [1], [0, 0, 1, 1], [], []>} : vector<35x512xbf16>, vector<512x32xbf16>, vector<35x32xf32> -> vector<35x32xf32>
    %439 = arith.addf %419, %438 : vector<35x32xf32>
    %c1_206 = arith.constant 1 : index
    %c0_207 = arith.constant 0 : index
    %c1536_208 = arith.constant 1536 : index
    %440 = vector.load %arg8[%c1_206, %c0_207, %c1536_208] : memref<2x32x2048xbf16, #tpu.memory_space<vmem>>, vector<1x32x512xbf16>
    %441 = vector.shape_cast %440 : vector<1x32x512xbf16> to vector<32x512xbf16>
    %cst_209 = arith.constant dense<0.000000e+00> : vector<35x512xf32>
    %442 = tpu.matmul %378, %441, %cst_209 {dimension_numbers = #tpu.dot_dimension_numbers<[1], [0], [0], [1], [0, 0, 1, 1], [], []>} : vector<35x32xbf16>, vector<32x512xbf16>, vector<35x512xf32> -> vector<35x512xf32>
    %c1_210 = arith.constant 1 : index
    %c0_211 = arith.constant 0 : index
    %c1536_212 = arith.constant 1536 : index
    %443 = vector.load %arg9[%c1_210, %c0_211, %c1536_212] : memref<2x1x2048xf32, #tpu.memory_space<vmem>>, vector<1x1x512xf32>
    %444 = vector.shape_cast %443 : vector<1x1x512xf32> to vector<1x512xf32>
    %445 = vector.broadcast %444 : vector<1x512xf32> to vector<35x512xf32>
    %446 = arith.addf %442, %445 : vector<35x512xf32>
    %cst_213 = arith.constant 5.000000e-01 : f32
    %447 = vector.broadcast %cst_213 : f32 to vector<35x512xf32>
    %448 = arith.mulf %447, %446 : vector<35x512xf32>
    %cst_214 = arith.constant 0.707106769 : f32
    %449 = vector.broadcast %cst_214 : f32 to vector<35x512xf32>
    %450 = arith.mulf %446, %449 : vector<35x512xf32>
    %451 = math.erf %450 : vector<35x512xf32>
    %cst_215 = arith.constant 1.000000e+00 : f32
    %452 = vector.broadcast %cst_215 : f32 to vector<35x512xf32>
    %453 = arith.addf %452, %451 : vector<35x512xf32>
    %454 = arith.mulf %448, %453 : vector<35x512xf32>
    %455 = arith.truncf %454 : vector<35x512xf32> to vector<35x512xbf16>
    %c1_216 = arith.constant 1 : index
    %c1536_217 = arith.constant 1536 : index
    %c0_218 = arith.constant 0 : index
    %456 = vector.load %arg10[%c1_216, %c1536_217, %c0_218] : memref<2x2048x32xbf16, #tpu.memory_space<vmem>>, vector<1x512x32xbf16>
    %457 = vector.shape_cast %456 : vector<1x512x32xbf16> to vector<512x32xbf16>
    %cst_219 = arith.constant dense<0.000000e+00> : vector<35x32xf32>
    %458 = tpu.matmul %455, %457, %cst_219 {dimension_numbers = #tpu.dot_dimension_numbers<[1], [0], [0], [1], [0, 0, 1, 1], [], []>} : vector<35x512xbf16>, vector<512x32xbf16>, vector<35x32xf32> -> vector<35x32xf32>
    %459 = arith.addf %439, %458 : vector<35x32xf32>
    %460 = arith.addf %377, %459 : vector<35x32xf32>
    %c1_220 = arith.constant 1 : index
    %c0_221 = arith.constant 0 : index
    %c0_222 = arith.constant 0 : index
    %461 = vector.load %arg11[%c1_220, %c0_221, %c0_222] : memref<2x1x32xf32, #tpu.memory_space<vmem>>, vector<1x1x32xf32>
    %462 = vector.shape_cast %461 : vector<1x1x32xf32> to vector<1x32xf32>
    %463 = vector.broadcast %462 : vector<1x32xf32> to vector<35x32xf32>
    %464 = arith.addf %460, %463 : vector<35x32xf32>
    %c1_223 = arith.constant 1 : index
    %c0_224 = arith.constant 0 : index
    %c0_225 = arith.constant 0 : index
    %465 = vector.load %arg12[%c1_223, %c0_224, %c0_225] : memref<2x1x32xf32, #tpu.memory_space<vmem>>, vector<1x1x32xf32>
    %466 = vector.shape_cast %465 : vector<1x1x32xf32> to vector<1x32xf32>
    %c1_226 = arith.constant 1 : index
    %c0_227 = arith.constant 0 : index
    %c0_228 = arith.constant 0 : index
    %467 = vector.load %arg13[%c1_226, %c0_227, %c0_228] : memref<2x1x32xf32, #tpu.memory_space<vmem>>, vector<1x1x32xf32>
    %468 = vector.shape_cast %467 : vector<1x1x32xf32> to vector<1x32xf32>
    %cst_229 = arith.constant dense<0.000000e+00> : vector<35xf32>
    %469 = vector.multi_reduction <add>, %464, %cst_229 [1] : vector<35x32xf32> to vector<35xf32>
    %470 = vector.shape_cast %469 : vector<35xf32> to vector<35x1xf32>
    %cst_230 = arith.constant 3.200000e+01 : f32
    %471 = vector.broadcast %cst_230 : f32 to vector<35x1xf32>
    %472 = arith.divf %470, %471 : vector<35x1xf32>
    %473 = vector.broadcast %472 : vector<35x1xf32> to vector<35x32xf32>
    %474 = arith.subf %464, %473 : vector<35x32xf32>
    %475 = arith.mulf %474, %474 : vector<35x32xf32>
    %cst_231 = arith.constant dense<0.000000e+00> : vector<35xf32>
    %476 = vector.multi_reduction <add>, %475, %cst_231 [1] : vector<35x32xf32> to vector<35xf32>
    %477 = vector.shape_cast %476 : vector<35xf32> to vector<35x1xf32>
    %cst_232 = arith.constant 3.200000e+01 : f32
    %478 = vector.broadcast %cst_232 : f32 to vector<35x1xf32>
    %479 = arith.divf %477, %478 : vector<35x1xf32>
    %480 = vector.broadcast %472 : vector<35x1xf32> to vector<35x32xf32>
    %481 = arith.subf %464, %480 : vector<35x32xf32>
    %cst_233 = arith.constant 9.99999974E-6 : f32
    %482 = vector.broadcast %cst_233 : f32 to vector<35x1xf32>
    %483 = arith.addf %479, %482 : vector<35x1xf32>
    %484 = math.rsqrt %483 : vector<35x1xf32>
    %485 = vector.broadcast %484 : vector<35x1xf32> to vector<35x32xf32>
    %486 = arith.mulf %481, %485 : vector<35x32xf32>
    %487 = vector.broadcast %466 : vector<1x32xf32> to vector<35x32xf32>
    %488 = arith.mulf %486, %487 : vector<35x32xf32>
    %489 = vector.broadcast %468 : vector<1x32xf32> to vector<35x32xf32>
    %490 = arith.addf %488, %489 : vector<35x32xf32>
    %491 = vector.extract_strided_slice %490 {offsets = [0, 0], sizes = [27, 32], strides = [1, 1]} : vector<35x32xf32> to vector<27x32xf32>
    %c0_234 = arith.constant 0 : index
    %c0_235 = arith.constant 0 : index
    %492 = vector.load %arg16[%c0_234, %c0_235] : memref<32x1xf32, #tpu.memory_space<vmem>>, vector<32x1xf32>
    %cst_236 = arith.constant dense<0.000000e+00> : vector<27x1xf32>
    %493 = tpu.matmul %491, %492, %cst_236 {dimension_numbers = #tpu.dot_dimension_numbers<[1], [0], [0], [1], [0, 0, 1, 1], [], []>} : vector<27x32xf32>, vector<32x1xf32>, vector<27x1xf32> -> vector<27x1xf32>
    %c0_237 = arith.constant 0 : index
    %c0_238 = arith.constant 0 : index
    %494 = vector.load %arg15[%c0_237, %c0_238] : memref<27x4xf32, #tpu.memory_space<vmem>>, vector<27x4xf32>
    %c0_239 = arith.constant 0 : index
    %c0_240 = arith.constant 0 : index
    %c0_241 = arith.constant 0 : index
    %495 = vector.load %arg14[%c0_239, %c0_240, %c0_241] : memref<1x4x1xf32, #tpu.memory_space<vmem>>, vector<1x4x1xf32>
    %496 = vector.shape_cast %495 : vector<1x4x1xf32> to vector<4x1xf32>
    %cst_242 = arith.constant dense<0.000000e+00> : vector<27x1xf32>
    %497 = tpu.matmul %494, %496, %cst_242 {dimension_numbers = #tpu.dot_dimension_numbers<[1], [0], [0], [1], [0, 0, 1, 1], [], []>} : vector<27x4xf32>, vector<4x1xf32>, vector<27x1xf32> -> vector<27x1xf32>
    %498 = arith.addf %493, %497 : vector<27x1xf32>
    %c0_243 = arith.constant 0 : index
    %c0_244 = arith.constant 0 : index
    %499 = vector.load %arg17[%c0_243, %c0_244] : memref<1x1xf32, #tpu.memory_space<vmem>>, vector<1x1xf32>
    %500 = vector.broadcast %499 : vector<1x1xf32> to vector<27x1xf32>
    %501 = arith.addf %498, %500 : vector<27x1xf32>
    %c0_245 = arith.constant 0 : index
    %c0_246 = arith.constant 0 : index
    %c0_247 = arith.constant 0 : index
    %502 = vector.load %arg18[%c0_245, %c0_246, %c0_247] : memref<1x27x1xf32, #tpu.memory_space<vmem>>, vector<1x27x1xf32>
    %503 = vector.shape_cast %502 : vector<1x27x1xf32> to vector<27x1xf32>
    %504 = vector.shape_cast %501 : vector<27x1xf32> to vector<1x27x1xf32>
    tpu.vector_store %arg18[%c0_245, %c0_246, %c0_247], %504 {strides = array<i32>} : memref<1x27x1xf32, #tpu.memory_space<vmem>>, vector<1x27x1xf32>,
    return
  }
  func.func @transform_0(%arg0: i32) -> (i32, i32, i32) {
    %c0_i32 = arith.constant 0 : i32
    %c0_i32_0 = arith.constant 0 : i32
    %c0_i32_1 = arith.constant 0 : i32
    return %arg0, %c0_i32, %c0_i32_0 : i32, i32, i32
  }
  func.func @transform_1(%arg0: i32) -> (i32, i32, i32) {
    %c0_i32 = arith.constant 0 : i32
    %c0_i32_0 = arith.constant 0 : i32
    %c0_i32_1 = arith.constant 0 : i32
    %c0_i32_2 = arith.constant 0 : i32
    return %c0_i32, %c0_i32_0, %c0_i32_1 : i32, i32, i32
  }
  func.func @transform_2(%arg0: i32) -> (i32, i32, i32) {
    %c0_i32 = arith.constant 0 : i32
    %c0_i32_0 = arith.constant 0 : i32
    %c0_i32_1 = arith.constant 0 : i32
    %c0_i32_2 = arith.constant 0 : i32
    return %c0_i32, %c0_i32_0, %c0_i32_1 : i32, i32, i32
  }
  func.func @transform_3(%arg0: i32) -> (i32, i32, i32) {
    %c0_i32 = arith.constant 0 : i32
    %c0_i32_0 = arith.constant 0 : i32
    %c0_i32_1 = arith.constant 0 : i32
    %c0_i32_2 = arith.constant 0 : i32
    return %c0_i32, %c0_i32_0, %c0_i32_1 : i32, i32, i32
  }
  func.func @transform_4(%arg0: i32) -> (i32, i32, i32) {
    %c0_i32 = arith.constant 0 : i32
    %c0_i32_0 = arith.constant 0 : i32
    %c0_i32_1 = arith.constant 0 : i32
    %c0_i32_2 = arith.constant 0 : i32
    return %c0_i32, %c0_i32_0, %c0_i32_1 : i32, i32, i32
  }
  func.func @transform_5(%arg0: i32) -> (i32, i32, i32) {
    %c0_i32 = arith.constant 0 : i32
    %c0_i32_0 = arith.constant 0 : i32
    %c0_i32_1 = arith.constant 0 : i32
    %c0_i32_2 = arith.constant 0 : i32
    return %c0_i32, %c0_i32_0, %c0_i32_1 : i32, i32, i32
  }
  func.func @transform_6(%arg0: i32) -> (i32, i32, i32) {
    %c0_i32 = arith.constant 0 : i32
    %c0_i32_0 = arith.constant 0 : i32
    %c0_i32_1 = arith.constant 0 : i32
    %c0_i32_2 = arith.constant 0 : i32
    return %c0_i32, %c0_i32_0, %c0_i32_1 : i32, i32, i32
  }
  func.func @transform_7(%arg0: i32) -> (i32, i32, i32) {
    %c0_i32 = arith.constant 0 : i32
    %c0_i32_0 = arith.constant 0 : i32
    %c0_i32_1 = arith.constant 0 : i32
    %c0_i32_2 = arith.constant 0 : i32
    return %c0_i32, %c0_i32_0, %c0_i32_1 : i32, i32, i32
  }
  func.func @transform_8(%arg0: i32) -> (i32, i32, i32) {
    %c0_i32 = arith.constant 0 : i32
    %c0_i32_0 = arith.constant 0 : i32
    %c0_i32_1 = arith.constant 0 : i32
    %c0_i32_2 = arith.constant 0 : i32
    return %c0_i32, %c0_i32_0, %c0_i32_1 : i32, i32, i32
  }
  func.func @transform_9(%arg0: i32) -> (i32, i32, i32) {
    %c0_i32 = arith.constant 0 : i32
    %c0_i32_0 = arith.constant 0 : i32
    %c0_i32_1 = arith.constant 0 : i32
    %c0_i32_2 = arith.constant 0 : i32
    return %c0_i32, %c0_i32_0, %c0_i32_1 : i32, i32, i32
  }
  func.func @transform_10(%arg0: i32) -> (i32, i32, i32) {
    %c0_i32 = arith.constant 0 : i32
    %c0_i32_0 = arith.constant 0 : i32
    %c0_i32_1 = arith.constant 0 : i32
    %c0_i32_2 = arith.constant 0 : i32
    return %c0_i32, %c0_i32_0, %c0_i32_1 : i32, i32, i32
  }
  func.func @transform_11(%arg0: i32) -> (i32, i32, i32) {
    %c0_i32 = arith.constant 0 : i32
    %c0_i32_0 = arith.constant 0 : i32
    %c0_i32_1 = arith.constant 0 : i32
    %c0_i32_2 = arith.constant 0 : i32
    return %c0_i32, %c0_i32_0, %c0_i32_1 : i32, i32, i32
  }
  func.func @transform_12(%arg0: i32) -> (i32, i32, i32) {
    %c0_i32 = arith.constant 0 : i32
    %c0_i32_0 = arith.constant 0 : i32
    %c0_i32_1 = arith.constant 0 : i32
    %c0_i32_2 = arith.constant 0 : i32
    return %c0_i32, %c0_i32_0, %c0_i32_1 : i32, i32, i32
  }
  func.func @transform_13(%arg0: i32) -> (i32, i32, i32) {
    %c0_i32 = arith.constant 0 : i32
    %c0_i32_0 = arith.constant 0 : i32
    %c0_i32_1 = arith.constant 0 : i32
    return %arg0, %c0_i32, %c0_i32_0 : i32, i32, i32
  }
  func.func @transform_14(%arg0: i32) -> (i32, i32) {
    %c0_i32 = arith.constant 0 : i32
    %c0_i32_0 = arith.constant 0 : i32
    %c0_i32_1 = arith.constant 0 : i32
    return %c0_i32, %c0_i32_0 : i32, i32
  }
  func.func @transform_15(%arg0: i32) -> (i32, i32) {
    %c0_i32 = arith.constant 0 : i32
    %c0_i32_0 = arith.constant 0 : i32
    %c0_i32_1 = arith.constant 0 : i32
    return %c0_i32, %c0_i32_0 : i32, i32
  }
  func.func @transform_16(%arg0: i32) -> (i32, i32) {
    %c0_i32 = arith.constant 0 : i32
    %c0_i32_0 = arith.constant 0 : i32
    %c0_i32_1 = arith.constant 0 : i32
    return %c0_i32, %c0_i32_0 : i32, i32
  }
  func.func @transform_17(%arg0: i32) -> (i32, i32, i32) {
    %c0_i32 = arith.constant 0 : i32
    %c0_i32_0 = arith.constant 0 : i32
    %c0_i32_1 = arith.constant 0 : i32
    return %arg0, %c0_i32, %c0_i32_0 : i32, i32, i32
  }
}

</mosaic_0001>

<llo_original>
// kernel: _lambda_.5
$region0: #{_lambda_.5}
  #allocation0 [shape = 'u32[]', space=smem, size = 0x4, offset = 0x4, fixed_abs, tag = 'smem constant byte address 0x4 - core index']
  #allocation1 [shape = 'u32[144,128]{1,0:T(1,128)}', space=vmem, size = 0x12000, scoped, tag = 'internal scratch']
  %s0 = inlined_call_operand.vmem [shape: f32[64,24], index: 0, kind: input, shape index: {}]
  %s1 = inlined_call_operand.vmem [shape: f32[64,8], index: 1, kind: input, shape index: {}]
  %s2 = inlined_call_operand.vmem [shape: f32[24,16], index: 2, kind: input, shape index: {}]
  %s3 = inlined_call_operand.vmem [shape: f32[1,16], index: 3, kind: input, shape index: {}]
  %s4 = inlined_call_operand.vmem [shape: f32[8,16], index: 4, kind: input, shape index: {}]
  %s5 = inlined_call_operand.vmem [shape: f32[1,16], index: 5, kind: input, shape index: {}]
  %s6 = inlined_call_operand.vmem [shape: f32[1,16], index: 6, kind: input, shape index: {}]
  %s7 = inlined_call_operand.vmem [shape: f32[1,16], index: 7, kind: input, shape index: {}]
  %s8 = inlined_call_operand.vmem [shape: f32[64,16], index: 8, kind: output, shape index: {}]
  %s9 = sld [smem:[#allocation0]]
  $region42: #{_lambda_.5} parent=0
    _
  %s11 = ssub.s32 1, %s9
  %s12 = scalar_select 0, %s11, %s9
  // Predicated region
  $region2: #{_lambda_.5} parent=0 // pred_check
    _
  $region3: #{_lambda_.5} parent=0 // pred_check_branch
    %14 = sbr.rel (0) target = $region5
  $region4: #{_lambda_.5} parent=0 // pred_region
    _
  $region5: #{_lambda_.5} parent=0 // pred_fallthru
    _
  // Predicated region
  $region6: #{_lambda_.5} parent=0 // pred_check
    _
  $region7: #{_lambda_.5} parent=0 // pred_check_branch
    %16 = sbr.rel (0) target = $region9
  $region8: #{_lambda_.5} parent=0 // pred_region
    _
  $region9: #{_lambda_.5} parent=0 // pred_fallthru
    _
  // Predicated region
  $region10: #{_lambda_.5} parent=0 // pred_check
    _
  $region11: #{_lambda_.5} parent=0 // pred_check_branch
    %18 = sbr.rel (0) target = $region13
  $region12: #{_lambda_.5} parent=0 // pred_region
    _
  $region13: #{_lambda_.5} parent=0 // pred_fallthru
    _
  // Predicated region
  $region14: #{_lambda_.5} parent=0 // pred_check
    _
  $region15: #{_lambda_.5} parent=0 // pred_check_branch
    %20 = sbr.rel (0) target = $region17
  $region16: #{_lambda_.5} parent=0 // pred_region
    _
  $region17: #{_lambda_.5} parent=0 // pred_fallthru
    _
  // Predicated region
  $region18: #{_lambda_.5} parent=0 // pred_check
    _
  $region19: #{_lambda_.5} parent=0 // pred_check_branch
    %22 = sbr.rel (0) target = $region21
  $region20: #{_lambda_.5} parent=0 // pred_region
    _
  $region21: #{_lambda_.5} parent=0 // pred_fallthru
    _
  // Predicated region
  $region22: #{_lambda_.5} parent=0 // pred_check
    _
  $region23: #{_lambda_.5} parent=0 // pred_check_branch
    %24 = sbr.rel (0) target = $region25
  $region24: #{_lambda_.5} parent=0 // pred_region
    _
  $region25: #{_lambda_.5} parent=0 // pred_fallthru
    _
  // Predicated region
  $region26: #{_lambda_.5} parent=0 // pred_check
    _
  $region27: #{_lambda_.5} parent=0 // pred_check_branch
    %26 = sbr.rel (0) target = $region29
  $region28: #{_lambda_.5} parent=0 // pred_region
    _
  $region29: #{_lambda_.5} parent=0 // pred_fallthru
    _
  // Predicated region
  $region30: #{_lambda_.5} parent=0 // pred_check
    _
  $region31: #{_lambda_.5} parent=0 // pred_check_branch
    %28 = sbr.rel (0) target = $region33
  $region32: #{_lambda_.5} parent=0 // pred_region
    _
  $region33: #{_lambda_.5} parent=0 // pred_fallthru
    _
  %v29 = vld [vmem:[%s0] sm:$0xff]
  %v30 = vld [vmem:[%s0 + $0x8] sm:$0xff]
  %v31 = vld [vmem:[%s0 + $0x10] sm:$0xff]
  %v32 = vld [vmem:[%s0 + $0x18] sm:$0xff]
  %v33 = vld [vmem:[%s0 + $0x20] sm:$0xff]
  %v34 = vld [vmem:[%s0 + $0x28] sm:$0xff]
  %v35 = vld [vmem:[%s0 + $0x30] sm:$0xff]
  %v36 = vld [vmem:[%s0 + $0x38] sm:$0xff]
  %v37 = vld [vmem:[%s2] sm:$0xff]
  %v38 = vld [vmem:[%s2 + $0x8] sm:$0xff]
  %v39 = vld [vmem:[%s2 + $0x10] sm:$0xff]
  %v40 = vld [vmem:[%s3] sm:$0x1]
  %v42 = vlaneseq
  %v43 = vshrl.u32 %v42, 7
  %v44 = vsub.s32 0, %v43
  %v45 = vrot.slane %v40, %v44
  %vm47 = vcmask 195584
  %v49 = vsel %vm47, %v29, 0
  %v52 = vsel %vm47, %v30, 0
  %v55 = vsel %vm47, %v31, 0
  %v58 = vsel %vm47, %v32, 0
  %v61 = vsel %vm47, %v33, 0
  %v64 = vsel %vm47, %v34, 0
  %v67 = vsel %vm47, %v35, 0
  %v70 = vsel %vm47, %v36, 0
  %72 = vmatprep.subr.mxu0 0.0
  %73 = vmatpush1.msra.mxu0 %v37
  %74 = vmatprep.subr.mxu0 0.0
  %75 = vmatpush1.msra.mxu0 %v38
  %76 = vmatprep.subr.mxu0 0.0
  %77 = vmatpush1.msra.mxu0 %v39
  %78 = vmatprep.subr.mxu0 0.0
  %79 = vmatpush1.msra.mxu0 0.0
  %80 = vmatprep.subr.mxu0 0.0
  %81 = vmatpush1.msra.mxu0 0.0
  %82 = vmatprep.subr.mxu0 0.0
  %83 = vmatpush1.msra.mxu0 0.0
  %84 = vmatprep.subr.mxu0 0.0
  %85 = vmatpush1.msra.mxu0 0.0
  %86 = vmatprep.subr.mxu0 0.0
  %87 = vmatpush1.msra.mxu0 0.0
  %88 = vmatprep.subr.mxu0 0.0
  %89 = vmatpush1.msra.mxu0 0.0
  %90 = vmatprep.subr.mxu0 0.0
  %91 = vmatpush1.msra.mxu0 0.0
  %92 = vmatprep.subr.mxu0 0.0
  %93 = vmatpush1.msra.mxu0 0.0
  %94 = vmatprep.subr.mxu0 0.0
  %95 = vmatpush1.msra.mxu0 0.0
  %96 = vmatprep.subr.mxu0 0.0
  %97 = vmatpush1.msra.mxu0 0.0
  %98 = vmatprep.subr.mxu0 0.0
  %99 = vmatpush1.msra.mxu0 0.0
  %100 = vmatprep.subr.mxu0 0.0
  %101 = vmatpush1.msra.mxu0 0.0
  %102 = vmatprep.subr.mxu0 0.0
  %103 = vmatpush1.msra.mxu0 0.0
  %104 = vmatprep.subr.mxu0 0.0
  %105 = vmatpush1.msra.mxu0 0.0
  %106 = vmatprep.subr.mxu0 0.0
  %107 = vmatpush1.msra.mxu0 0.0
  %108 = vmatprep.subr.mxu0 0.0
  %109 = vmatpush1.msra.mxu0 0.0
  %110 = vmatprep.subr.mxu0 0.0
  %111 = vmatpush1.msra.mxu0 0.0
  %112 = vmatprep.subr.mxu0 0.0
  %113 = vmatpush1.msra.mxu0 0.0
  %114 = vmatprep.subr.mxu0 0.0
  %115 = vmatpush1.msra.mxu0 0.0
  %116 = vmatprep.subr.mxu0 0.0
  %117 = vmatpush1.msra.mxu0 0.0
  %118 = vmatprep.subr.mxu0 0.0
  %119 = vmatpush1.msra.mxu0 0.0
  %120 = vmatprep.subr.mxu0 0.0
  %121 = vmatpush1.msra.mxu0 0.0
  %122 = vmatprep.subr.mxu0 0.0
  %123 = vmatpush1.msra.mxu0 0.0
  %124 = vmatprep.subr.mxu0 0.0
  %125 = vmatpush1.msra.mxu0 0.0
  %126 = vmatprep.subr.mxu0 0.0
  %127 = vmatpush1.msra.mxu0 0.0
  %128 = vmatprep.subr.mxu0 0.0
  %129 = vmatpush1.msra.mxu0 0.0
  %130 = vmatprep.subr.mxu0 0.0
  %131 = vmatpush1.msra.mxu0 0.0
  %132 = vmatprep.subr.mxu0 0.0
  %133 = vmatpush1.msra.mxu0 0.0
  %134 = vmatprep.subr.mxu0 0.0
  %135 = vmatpush1.msra.mxu0 0.0
  %136 = vmatprep.mubr.f32.mxu0 0.0
  %137 = vmatmul.mubr.f32.gmra.mrb[0].mxu0 %v49
  %v138 = vpop.f32.mrb[0].mxu0
  %v139 = vadd.f32 %v45, %v138
  %v140 = vpop.f32.mrb[0].mxu0
  %141 = vmatprep.mubr.f32.mxu0 0.0
  %142 = vmatmul.mubr.f32.gmra.mrb[0].mxu0 %v52
  %v143 = vpop.f32.mrb[0].mxu0
  %v144 = vadd.f32 %v45, %v143
  %v145 = vpop.f32.mrb[0].mxu0
  %146 = vmatprep.mubr.f32.mxu0 0.0
  %147 = vmatmul.mubr.f32.gmra.mrb[0].mxu0 %v55
  %v148 = vpop.f32.mrb[0].mxu0
  %v149 = vadd.f32 %v45, %v148
  %v150 = vpop.f32.mrb[0].mxu0
  %151 = vmatprep.mubr.f32.mxu0 0.0
  %152 = vmatmul.mubr.f32.gmra.mrb[0].mxu0 %v58
  %v153 = vpop.f32.mrb[0].mxu0
  %v154 = vadd.f32 %v45, %v153
  %v155 = vpop.f32.mrb[0].mxu0
  %156 = vmatprep.mubr.f32.mxu0 0.0
  %157 = vmatmul.mubr.f32.gmra.mrb[0].mxu0 %v61
  %v158 = vpop.f32.mrb[0].mxu0
  %v159 = vadd.f32 %v45, %v158
  %v160 = vpop.f32.mrb[0].mxu0
  %161 = vmatprep.mubr.f32.mxu0 0.0
  %162 = vmatmul.mubr.f32.gmra.mrb[0].mxu0 %v64
  %v163 = vpop.f32.mrb[0].mxu0
  %v164 = vadd.f32 %v45, %v163
  %v165 = vpop.f32.mrb[0].mxu0
  %166 = vmatprep.mubr.f32.mxu0 0.0
  %167 = vmatmul.mubr.f32.gmra.mrb[0].mxu0 %v67
  %v168 = vpop.f32.mrb[0].mxu0
  %v169 = vadd.f32 %v45, %v168
  %v170 = vpop.f32.mrb[0].mxu0
  %171 = vmatprep.mubr.f32.mxu0 0.0
  %172 = vmatmul.mubr.f32.gmra.mrb[0].mxu0 %v70
  %v173 = vpop.f32.mrb[0].mxu0
  %v174 = vadd.f32 %v45, %v173
  %v175 = vpop.f32.mrb[0].mxu0
  %176 = vdwg.mxu0
  %v177 = vld [vmem:[%s1] sm:$0xff]
  %v178 = vld [vmem:[%s1 + $0x8] sm:$0xff]
  %v179 = vld [vmem:[%s1 + $0x10] sm:$0xff]
  %v180 = vld [vmem:[%s1 + $0x18] sm:$0xff]
  %v181 = vld [vmem:[%s1 + $0x20] sm:$0xff]
  %v182 = vld [vmem:[%s1 + $0x28] sm:$0xff]
  %v183 = vld [vmem:[%s1 + $0x30] sm:$0xff]
  %v184 = vld [vmem:[%s1 + $0x38] sm:$0xff]
  %v185 = vld [vmem:[%s4] sm:$0xff]
  %v186 = vld [vmem:[%s5] sm:$0x1]
  %v188 = vlaneseq
  %v189 = vshrl.u32 %v188, 7
  %v190 = vsub.s32 0, %v189
  %v191 = vrot.slane %v186, %v190
  %vm193 = vcmask 64512
  %v195 = vsel %vm193, %v177, 0
  %v198 = vsel %vm193, %v178, 0
  %v201 = vsel %vm193, %v179, 0
  %v204 = vsel %vm193, %v180, 0
  %v207 = vsel %vm193, %v181, 0
  %v210 = vsel %vm193, %v182, 0
  %v213 = vsel %vm193, %v183, 0
  %v216 = vsel %vm193, %v184, 0
  %218 = vmatprep.subr.mxu0 0.0
  %219 = vmatpush1.msra.mxu0 %v185
  %220 = vmatprep.subr.mxu0 0.0
  %221 = vmatpush1.msra.mxu0 0.0
  %222 = vmatprep.subr.mxu0 0.0
  %223 = vmatpush1.msra.mxu0 0.0
  %224 = vmatprep.subr.mxu0 0.0
  %225 = vmatpush1.msra.mxu0 0.0
  %226 = vmatprep.subr.mxu0 0.0
  %227 = vmatpush1.msra.mxu0 0.0
  %228 = vmatprep.subr.mxu0 0.0
  %229 = vmatpush1.msra.mxu0 0.0
  %230 = vmatprep.subr.mxu0 0.0
  %231 = vmatpush1.msra.mxu0 0.0
  %232 = vmatprep.subr.mxu0 0.0
  %233 = vmatpush1.msra.mxu0 0.0
  %234 = vmatprep.subr.mxu0 0.0
  %235 = vmatpush1.msra.mxu0 0.0
  %236 = vmatprep.subr.mxu0 0.0
  %237 = vmatpush1.msra.mxu0 0.0
  %238 = vmatprep.subr.mxu0 0.0
  %239 = vmatpush1.msra.mxu0 0.0
  %240 = vmatprep.subr.mxu0 0.0
  %241 = vmatpush1.msra.mxu0 0.0
  %242 = vmatprep.subr.mxu0 0.0
  %243 = vmatpush1.msra.mxu0 0.0
  %244 = vmatprep.subr.mxu0 0.0
  %245 = vmatpush1.msra.mxu0 0.0
  %246 = vmatprep.subr.mxu0 0.0
  %247 = vmatpush1.msra.mxu0 0.0
  %248 = vmatprep.subr.mxu0 0.0
  %249 = vmatpush1.msra.mxu0 0.0
  %250 = vmatprep.subr.mxu0 0.0
  %251 = vmatpush1.msra.mxu0 0.0
  %252 = vmatprep.subr.mxu0 0.0
  %253 = vmatpush1.msra.mxu0 0.0
  %254 = vmatprep.subr.mxu0 0.0
  %255 = vmatpush1.msra.mxu0 0.0
  %256 = vmatprep.subr.mxu0 0.0
  %257 = vmatpush1.msra.mxu0 0.0
  %258 = vmatprep.subr.mxu0 0.0
  %259 = vmatpush1.msra.mxu0 0.0
  %260 = vmatprep.subr.mxu0 0.0
  %261 = vmatpush1.msra.mxu0 0.0
  %262 = vmatprep.subr.mxu0 0.0
  %263 = vmatpush1.msra.mxu0 0.0
  %264 = vmatprep.subr.mxu0 0.0
  %265 = vmatpush1.msra.mxu0 0.0
  %266 = vmatprep.subr.mxu0 0.0
  %267 = vmatpush1.msra.mxu0 0.0
  %268 = vmatprep.subr.mxu0 0.0
  %269 = vmatpush1.msra.mxu0 0.0
  %270 = vmatprep.subr.mxu0 0.0
  %271 = vmatpush1.msra.mxu0 0.0
  %272 = vmatprep.subr.mxu0 0.0
  %273 = vmatpush1.msra.mxu0 0.0
  %274 = vmatprep.subr.mxu0 0.0
  %275 = vmatpush1.msra.mxu0 0.0
  %276 = vmatprep.subr.mxu0 0.0
  %277 = vmatpush1.msra.mxu0 0.0
  %278 = vmatprep.subr.mxu0 0.0
  %279 = vmatpush1.msra.mxu0 0.0
  %280 = vmatprep.subr.mxu0 0.0
  %281 = vmatpush1.msra.mxu0 0.0
  %282 = vmatprep.mubr.f32.mxu0 0.0
  %283 = vmatmul.mubr.f32.gmra.mrb[0].mxu0 %v195
  %v284 = vpop.f32.mrb[0].mxu0
  %v285 = vadd.f32 %v191, %v284
  %v286 = vpop.f32.mrb[0].mxu0
  %287 = vmatprep.mubr.f32.mxu0 0.0
  %288 = vmatmul.mubr.f32.gmra.mrb[0].mxu0 %v198
  %v289 = vpop.f32.mrb[0].mxu0
  %v290 = vadd.f32 %v191, %v289
  %v291 = vpop.f32.mrb[0].mxu0
  %292 = vmatprep.mubr.f32.mxu0 0.0
  %293 = vmatmul.mubr.f32.gmra.mrb[0].mxu0 %v201
  %v294 = vpop.f32.mrb[0].mxu0
  %v295 = vadd.f32 %v191, %v294
  %v296 = vpop.f32.mrb[0].mxu0
  %297 = vmatprep.mubr.f32.mxu0 0.0
  %298 = vmatmul.mubr.f32.gmra.mrb[0].mxu0 %v204
  %v299 = vpop.f32.mrb[0].mxu0
  %v300 = vadd.f32 %v191, %v299
  %v301 = vpop.f32.mrb[0].mxu0
  %302 = vmatprep.mubr.f32.mxu0 0.0
  %303 = vmatmul.mubr.f32.gmra.mrb[0].mxu0 %v207
  %v304 = vpop.f32.mrb[0].mxu0
  %v305 = vadd.f32 %v191, %v304
  %v306 = vpop.f32.mrb[0].mxu0
  %307 = vmatprep.mubr.f32.mxu0 0.0
  %308 = vmatmul.mubr.f32.gmra.mrb[0].mxu0 %v210
  %v309 = vpop.f32.mrb[0].mxu0
  %v310 = vadd.f32 %v191, %v309
  %v311 = vpop.f32.mrb[0].mxu0
  %312 = vmatprep.mubr.f32.mxu0 0.0
  %313 = vmatmul.mubr.f32.gmra.mrb[0].mxu0 %v213
  %v314 = vpop.f32.mrb[0].mxu0
  %v315 = vadd.f32 %v191, %v314
  %v316 = vpop.f32.mrb[0].mxu0
  %317 = vmatprep.mubr.f32.mxu0 0.0
  %318 = vmatmul.mubr.f32.gmra.mrb[0].mxu0 %v216
  %v319 = vpop.f32.mrb[0].mxu0
  %v320 = vadd.f32 %v191, %v319
  %v321 = vpop.f32.mrb[0].mxu0
  %322 = vdwg.mxu0
  %vm323 = vcmask 130048
  %v324 = vsel %vm323, %v139, 0.0
  %v325 = vsel %vm323, %v144, 0.0
  %v326 = vadd.f32 %v324, %v325
  %v327 = vsel %vm323, %v149, 0.0
  %v328 = vadd.f32 %v326, %v327
  %v329 = vsel %vm323, %v154, 0.0
  %v330 = vadd.f32 %v328, %v329
  %v331 = vsel %vm323, %v159, 0.0
  %v332 = vadd.f32 %v330, %v331
  %v333 = vsel %vm323, %v164, 0.0
  %v334 = vadd.f32 %v332, %v333
  %v335 = vsel %vm323, %v169, 0.0
  %v336 = vadd.f32 %v334, %v335
  %v337 = vsel %vm323, %v174, 0.0
  %v338 = vadd.f32 %v336, %v337
  %v339 = vrot.slane %v338, 4
  %v340 = vadd.f32 %v338, %v339
  %v341 = vrot.slane %v340, 2
  %v342 = vadd.f32 %v340, %v341
  %v343 = vrot.slane %v342, 1
  %v344 = vadd.f32 %v342, %v343
  %v345 = vrcp.pop 64.0
  %v346 = vmul.f32 %v344, %v345
  %v347 = vsub.f32 %v139, %v346
  %v348 = vsub.f32 %v144, %v346
  %v349 = vsub.f32 %v149, %v346
  %v350 = vsub.f32 %v154, %v346
  %v351 = vsub.f32 %v159, %v346
  %v352 = vsub.f32 %v164, %v346
  %v353 = vsub.f32 %v169, %v346
  %v354 = vsub.f32 %v174, %v346
  %v355 = vmul.f32 %v347, %v347
  %v356 = vmul.f32 %v348, %v348
  %v357 = vmul.f32 %v349, %v349
  %v358 = vmul.f32 %v350, %v350
  %v359 = vmul.f32 %v351, %v351
  %v360 = vmul.f32 %v352, %v352
  %v361 = vmul.f32 %v353, %v353
  %v362 = vmul.f32 %v354, %v354
  %v363 = vsel %vm323, %v355, 0.0
  %v364 = vsel %vm323, %v356, 0.0
  %v365 = vadd.f32 %v363, %v364
  %v366 = vsel %vm323, %v357, 0.0
  %v367 = vadd.f32 %v365, %v366
  %v368 = vsel %vm323, %v358, 0.0
  %v369 = vadd.f32 %v367, %v368
  %v370 = vsel %vm323, %v359, 0.0
  %v371 = vadd.f32 %v369, %v370
  %v372 = vsel %vm323, %v360, 0.0
  %v373 = vadd.f32 %v371, %v372
  %v374 = vsel %vm323, %v361, 0.0
  %v375 = vadd.f32 %v373, %v374
  %v376 = vsel %vm323, %v362, 0.0
  %v377 = vadd.f32 %v375, %v376
  %v378 = vrot.slane %v377, 4
  %v379 = vadd.f32 %v377, %v378
  %v380 = vrot.slane %v379, 2
  %v381 = vadd.f32 %v379, %v380
  %v382 = vrot.slane %v381, 1
  %v383 = vadd.f32 %v381, %v382
  %v384 = vmul.f32 %v383, %v345
  %v385 = vadd.f32 %v384, 1e-05
  %v386 = vrsqrt.pop %v385
  %v387 = vmul.f32 %v347, %v386
  %v388 = vmul.f32 %v348, %v386
  %v389 = vmul.f32 %v349, %v386
  %v390 = vmul.f32 %v350, %v386
  %v391 = vmul.f32 %v351, %v386
  %v392 = vmul.f32 %v352, %v386
  %v393 = vmul.f32 %v353, %v386
  %v394 = vmul.f32 %v354, %v386
  %v395 = vld [vmem:[%s6] sm:$0x1]
  %v397 = vlaneseq
  %v398 = vshrl.u32 %v397, 7
  %v399 = vsub.s32 0, %v398
  %v400 = vrot.slane %v395, %v399
  %v402 = vmul.f32 %v387, %v400
  %v403 = vmul.f32 %v388, %v400
  %v404 = vmul.f32 %v389, %v400
  %v405 = vmul.f32 %v390, %v400
  %v406 = vmul.f32 %v391, %v400
  %v407 = vmul.f32 %v392, %v400
  %v408 = vmul.f32 %v393, %v400
  %v409 = vmul.f32 %v394, %v400
  %v410 = vld [vmem:[%s7] sm:$0x1]
  %v412 = vlaneseq
  %v413 = vshrl.u32 %v412, 7
  %v414 = vsub.s32 0, %v413
  %v415 = vrot.slane %v410, %v414
  %v417 = vadd.f32 %v402, %v415
  %v418 = vadd.f32 %v403, %v415
  %v419 = vadd.f32 %v404, %v415
  %v420 = vadd.f32 %v405, %v415
  %v421 = vadd.f32 %v406, %v415
  %v422 = vadd.f32 %v407, %v415
  %v423 = vadd.f32 %v408, %v415
  %v424 = vadd.f32 %v409, %v415
  %v425 = vadd.f32 %v417, %v285
  %v426 = vadd.f32 %v418, %v290
  %v427 = vadd.f32 %v419, %v295
  %v428 = vadd.f32 %v420, %v300
  %v429 = vadd.f32 %v421, %v305
  %v430 = vadd.f32 %v422, %v310
  %v431 = vadd.f32 %v423, %v315
  %v432 = vadd.f32 %v424, %v320
  %v433 = vmax.f32 %v425, 0.0
  %v434 = vmax.f32 %v426, 0.0
  %v435 = vmax.f32 %v427, 0.0
  %v436 = vmax.f32 %v428, 0.0
  %v437 = vmax.f32 %v429, 0.0
  %v438 = vmax.f32 %v430, 0.0
  %v439 = vmax.f32 %v431, 0.0
  %v440 = vmax.f32 %v432, 0.0
  %441 = vst.msk [vmem:[%s8] sm:$0xff] %vm323, %v433
  %442 = vst.msk [vmem:[%s8 + $0x8] sm:$0xff] %vm323, %v434
  %443 = vst.msk [vmem:[%s8 + $0x10] sm:$0xff] %vm323, %v435
  %444 = vst.msk [vmem:[%s8 + $0x18] sm:$0xff] %vm323, %v436
  %445 = vst.msk [vmem:[%s8 + $0x20] sm:$0xff] %vm323, %v437
  %446 = vst.msk [vmem:[%s8 + $0x28] sm:$0xff] %vm323, %v438
  %447 = vst.msk [vmem:[%s8 + $0x30] sm:$0xff] %vm323, %v439
  %448 = vst.msk [vmem:[%s8 + $0x38] sm:$0xff] %vm323, %v440
  // Predicated region
  $region34: #{_lambda_.5} parent=0 // pred_check
    _
  $region35: #{_lambda_.5} parent=0 // pred_check_branch
    %450 = sbr.rel (0) target = $region37
  $region36: #{_lambda_.5} parent=0 // pred_region
    _
  $region37: #{_lambda_.5} parent=0 // pred_fallthru
    _
  // Predicated region
  $region38: #{_lambda_.5} parent=0 // pred_check
    _
  $region39: #{_lambda_.5} parent=0 // pred_check_branch
    %452 = sbr.rel (0) target = $region41
  $region40: #{_lambda_.5} parent=0 // pred_region
    _
  $region41: #{_lambda_.5} parent=0 // pred_fallthru
    _

// kernel: _lambda_.4
$region0: #{_lambda_.4}
  #allocation0 [shape = 'u32[]', space=smem, size = 0x4, offset = 0x4, fixed_abs, tag = 'smem constant byte address 0x4 - core index']
  #allocation1 [shape = 'u32[144,128]{1,0:T(1,128)}', space=vmem, size = 0x12000, scoped, tag = 'internal scratch']
  %s0 = inlined_call_operand.vmem [shape: f32[128,12], index: 0, kind: input, shape index: {}]
  %s1 = inlined_call_operand.vmem [shape: f32[128,4], index: 1, kind: input, shape index: {}]
  %s2 = inlined_call_operand.vmem [shape: f32[12,8], index: 2, kind: input, shape index: {}]
  %s3 = inlined_call_operand.vmem [shape: f32[1,8], index: 3, kind: input, shape index: {}]
  %s4 = inlined_call_operand.vmem [shape: f32[4,8], index: 4, kind: input, shape index: {}]
  %s5 = inlined_call_operand.vmem [shape: f32[1,8], index: 5, kind: input, shape index: {}]
  %s6 = inlined_call_operand.vmem [shape: f32[1,8], index: 6, kind: input, shape index: {}]
  %s7 = inlined_call_operand.vmem [shape: f32[1,8], index: 7, kind: input, shape index: {}]
  %s8 = inlined_call_operand.vmem [shape: f32[128,8], index: 8, kind: output, shape index: {}]
  %s9 = sld [smem:[#allocation0]]
  $region42: #{_lambda_.4} parent=0
    _
  %s11 = ssub.s32 1, %s9
  %s12 = scalar_select 0, %s11, %s9
  // Predicated region
  $region2: #{_lambda_.4} parent=0 // pred_check
    _
  $region3: #{_lambda_.4} parent=0 // pred_check_branch
    %14 = sbr.rel (0) target = $region5
  $region4: #{_lambda_.4} parent=0 // pred_region
    _
  $region5: #{_lambda_.4} parent=0 // pred_fallthru
    _
  // Predicated region
  $region6: #{_lambda_.4} parent=0 // pred_check
    _
  $region7: #{_lambda_.4} parent=0 // pred_check_branch
    %16 = sbr.rel (0) target = $region9
  $region8: #{_lambda_.4} parent=0 // pred_region
    _
  $region9: #{_lambda_.4} parent=0 // pred_fallthru
    _
  // Predicated region
  $region10: #{_lambda_.4} parent=0 // pred_check
    _
  $region11: #{_lambda_.4} parent=0 // pred_check_branch
    %18 = sbr.rel (0) target = $region13
  $region12: #{_lambda_.4} parent=0 // pred_region
    _
  $region13: #{_lambda_.4} parent=0 // pred_fallthru
    _
  // Predicated region
  $region14: #{_lambda_.4} parent=0 // pred_check
    _
  $region15: #{_lambda_.4} parent=0 // pred_check_branch
    %20 = sbr.rel (0) target = $region17
  $region16: #{_lambda_.4} parent=0 // pred_region
    _
  $region17: #{_lambda_.4} parent=0 // pred_fallthru
    _
  // Predicated region
  $region18: #{_lambda_.4} parent=0 // pred_check
    _
  $region19: #{_lambda_.4} parent=0 // pred_check_branch
    %22 = sbr.rel (0) target = $region21
  $region20: #{_lambda_.4} parent=0 // pred_region
    _
  $region21: #{_lambda_.4} parent=0 // pred_fallthru
    _
  // Predicated region
  $region22: #{_lambda_.4} parent=0 // pred_check
    _
  $region23: #{_lambda_.4} parent=0 // pred_check_branch
    %24 = sbr.rel (0) target = $region25
  $region24: #{_lambda_.4} parent=0 // pred_region
    _
  $region25: #{_lambda_.4} parent=0 // pred_fallthru
    _
  // Predicated region
  $region26: #{_lambda_.4} parent=0 // pred_check
    _
  $region27: #{_lambda_.4} parent=0 // pred_check_branch
    %26 = sbr.rel (0) target = $region29
  $region28: #{_lambda_.4} parent=0 // pred_region
    _
  $region29: #{_lambda_.4} parent=0 // pred_fallthru
    _
  // Predicated region
  $region30: #{_lambda_.4} parent=0 // pred_check
    _
  $region31: #{_lambda_.4} parent=0 // pred_check_branch
    %28 = sbr.rel (0) target = $region33
  $region32: #{_lambda_.4} parent=0 // pred_region
    _
  $region33: #{_lambda_.4} parent=0 // pred_fallthru
    _
  %v29 = vld [vmem:[%s0] sm:$0xff]
  %v30 = vld [vmem:[%s0 + $0x8] sm:$0xff]
  %v31 = vld [vmem:[%s0 + $0x10] sm:$0xff]
  %v32 = vld [vmem:[%s0 + $0x18] sm:$0xff]
  %v33 = vld [vmem:[%s0 + $0x20] sm:$0xff]
  %v34 = vld [vmem:[%s0 + $0x28] sm:$0xff]
  %v35 = vld [vmem:[%s0 + $0x30] sm:$0xff]
  %v36 = vld [vmem:[%s0 + $0x38] sm:$0xff]
  %v37 = vld [vmem:[%s0 + $0x40] sm:$0xff]
  %v38 = vld [vmem:[%s0 + $0x48] sm:$0xff]
  %v39 = vld [vmem:[%s0 + $0x50] sm:$0xff]
  %v40 = vld [vmem:[%s0 + $0x58] sm:$0xff]
  %v41 = vld [vmem:[%s0 + $0x60] sm:$0xff]
  %v42 = vld [vmem:[%s0 + $0x68] sm:$0xff]
  %v43 = vld [vmem:[%s0 + $0x70] sm:$0xff]
  %v44 = vld [vmem:[%s0 + $0x78] sm:$0xff]
  %v45 = vld [vmem:[%s2] sm:$0xff]
  %v46 = vld [vmem:[%s2 + $0x8] sm:$0xf]
  %v47 = vld [vmem:[%s3] sm:$0x1]
  %v49 = vlaneseq
  %v50 = vshrl.u32 %v49, 7
  %v51 = vsub.s32 0, %v50
  %v52 = vrot.slane %v47, %v51
  %vm54 = vcmask 97280
  %v56 = vsel %vm54, %v29, 0
  %v59 = vsel %vm54, %v30, 0
  %v62 = vsel %vm54, %v31, 0
  %v65 = vsel %vm54, %v32, 0
  %v68 = vsel %vm54, %v33, 0
  %v71 = vsel %vm54, %v34, 0
  %v74 = vsel %vm54, %v35, 0
  %v77 = vsel %vm54, %v36, 0
  %v80 = vsel %vm54, %v37, 0
  %v83 = vsel %vm54, %v38, 0
  %v86 = vsel %vm54, %v39, 0
  %v89 = vsel %vm54, %v40, 0
  %v92 = vsel %vm54, %v41, 0
  %v95 = vsel %vm54, %v42, 0
  %v98 = vsel %vm54, %v43, 0
  %v101 = vsel %vm54, %v44, 0
  %vm103 = vcmask 1043456
  %v105 = vsel %vm103, %v46, 0
  %107 = vmatprep.subr.mxu0 0.0
  %108 = vmatpush1.msra.mxu0 %v45
  %109 = vmatprep.subr.mxu0 0.0
  %110 = vmatpush1.msra.mxu0 %v105
  %111 = vmatprep.subr.mxu0 0.0
  %112 = vmatpush1.msra.mxu0 0.0
  %113 = vmatprep.subr.mxu0 0.0
  %114 = vmatpush1.msra.mxu0 0.0
  %115 = vmatprep.subr.mxu0 0.0
  %116 = vmatpush1.msra.mxu0 0.0
  %117 = vmatprep.subr.mxu0 0.0
  %118 = vmatpush1.msra.mxu0 0.0
  %119 = vmatprep.subr.mxu0 0.0
  %120 = vmatpush1.msra.mxu0 0.0
  %121 = vmatprep.subr.mxu0 0.0
  %122 = vmatpush1.msra.mxu0 0.0
  %123 = vmatprep.subr.mxu0 0.0
  %124 = vmatpush1.msra.mxu0 0.0
  %125 = vmatprep.subr.mxu0 0.0
  %126 = vmatpush1.msra.mxu0 0.0
  %127 = vmatprep.subr.mxu0 0.0
  %128 = vmatpush1.msra.mxu0 0.0
  %129 = vmatprep.subr.mxu0 0.0
  %130 = vmatpush1.msra.mxu0 0.0
  %131 = vmatprep.subr.mxu0 0.0
  %132 = vmatpush1.msra.mxu0 0.0
  %133 = vmatprep.subr.mxu0 0.0
  %134 = vmatpush1.msra.mxu0 0.0
  %135 = vmatprep.subr.mxu0 0.0
  %136 = vmatpush1.msra.mxu0 0.0
  %137 = vmatprep.subr.mxu0 0.0
  %138 = vmatpush1.msra.mxu0 0.0
  %139 = vmatprep.subr.mxu0 0.0
  %140 = vmatpush1.msra.mxu0 0.0
  %141 = vmatprep.subr.mxu0 0.0
  %142 = vmatpush1.msra.mxu0 0.0
  %143 = vmatprep.subr.mxu0 0.0
  %144 = vmatpush1.msra.mxu0 0.0
  %145 = vmatprep.subr.mxu0 0.0
  %146 = vmatpush1.msra.mxu0 0.0
  %147 = vmatprep.subr.mxu0 0.0
  %148 = vmatpush1.msra.mxu0 0.0
  %149 = vmatprep.subr.mxu0 0.0
  %150 = vmatpush1.msra.mxu0 0.0
  %151 = vmatprep.subr.mxu0 0.0
  %152 = vmatpush1.msra.mxu0 0.0
  %153 = vmatprep.subr.mxu0 0.0
  %154 = vmatpush1.msra.mxu0 0.0
  %155 = vmatprep.subr.mxu0 0.0
  %156 = vmatpush1.msra.mxu0 0.0
  %157 = vmatprep.subr.mxu0 0.0
  %158 = vmatpush1.msra.mxu0 0.0
  %159 = vmatprep.subr.mxu0 0.0
  %160 = vmatpush1.msra.mxu0 0.0
  %161 = vmatprep.subr.mxu0 0.0
  %162 = vmatpush1.msra.mxu0 0.0
  %163 = vmatprep.subr.mxu0 0.0
  %164 = vmatpush1.msra.mxu0 0.0
  %165 = vmatprep.subr.mxu0 0.0
  %166 = vmatpush1.msra.mxu0 0.0
  %167 = vmatprep.subr.mxu0 0.0
  %168 = vmatpush1.msra.mxu0 0.0
  %169 = vmatprep.subr.mxu0 0.0
  %170 = vmatpush1.msra.mxu0 0.0
  %171 = vmatprep.mubr.f32.mxu0 0.0
  %172 = vmatmul.mubr.f32.gmra.mrb[0].mxu0 %v56
  %v173 = vpop.f32.mrb[0].mxu0
  %v174 = vadd.f32 %v52, %v173
  %v175 = vpop.f32.mrb[0].mxu0
  %176 = vmatprep.mubr.f32.mxu0 0.0
  %177 = vmatmul.mubr.f32.gmra.mrb[0].mxu0 %v59
  %v178 = vpop.f32.mrb[0].mxu0
  %v179 = vadd.f32 %v52, %v178
  %v180 = vpop.f32.mrb[0].mxu0
  %181 = vmatprep.mubr.f32.mxu0 0.0
  %182 = vmatmul.mubr.f32.gmra.mrb[0].mxu0 %v62
  %v183 = vpop.f32.mrb[0].mxu0
  %v184 = vadd.f32 %v52, %v183
  %v185 = vpop.f32.mrb[0].mxu0
  %186 = vmatprep.mubr.f32.mxu0 0.0
  %187 = vmatmul.mubr.f32.gmra.mrb[0].mxu0 %v65
  %v188 = vpop.f32.mrb[0].mxu0
  %v189 = vadd.f32 %v52, %v188
  %v190 = vpop.f32.mrb[0].mxu0
  %191 = vmatprep.mubr.f32.mxu0 0.0
  %192 = vmatmul.mubr.f32.gmra.mrb[0].mxu0 %v68
  %v193 = vpop.f32.mrb[0].mxu0
  %v194 = vadd.f32 %v52, %v193
  %v195 = vpop.f32.mrb[0].mxu0
  %196 = vmatprep.mubr.f32.mxu0 0.0
  %197 = vmatmul.mubr.f32.gmra.mrb[0].mxu0 %v71
  %v198 = vpop.f32.mrb[0].mxu0
  %v199 = vadd.f32 %v52, %v198
  %v200 = vpop.f32.mrb[0].mxu0
  %201 = vmatprep.mubr.f32.mxu0 0.0
  %202 = vmatmul.mubr.f32.gmra.mrb[0].mxu0 %v74
  %v203 = vpop.f32.mrb[0].mxu0
  %v204 = vadd.f32 %v52, %v203
  %v205 = vpop.f32.mrb[0].mxu0
  %206 = vmatprep.mubr.f32.mxu0 0.0
  %207 = vmatmul.mubr.f32.gmra.mrb[0].mxu0 %v77
  %v208 = vpop.f32.mrb[0].mxu0
  %v209 = vadd.f32 %v52, %v208
  %v210 = vpop.f32.mrb[0].mxu0
  %211 = vmatprep.mubr.f32.mxu0 0.0
  %212 = vmatmul.mubr.f32.gmra.mrb[0].mxu0 %v80
  %v213 = vpop.f32.mrb[0].mxu0
  %v214 = vadd.f32 %v52, %v213
  %v215 = vpop.f32.mrb[0].mxu0
  %216 = vmatprep.mubr.f32.mxu0 0.0
  %217 = vmatmul.mubr.f32.gmra.mrb[0].mxu0 %v83
  %v218 = vpop.f32.mrb[0].mxu0
  %v219 = vadd.f32 %v52, %v218
  %v220 = vpop.f32.mrb[0].mxu0
  %221 = vmatprep.mubr.f32.mxu0 0.0
  %222 = vmatmul.mubr.f32.gmra.mrb[0].mxu0 %v86
  %v223 = vpop.f32.mrb[0].mxu0
  %v224 = vadd.f32 %v52, %v223
  %v225 = vpop.f32.mrb[0].mxu0
  %226 = vmatprep.mubr.f32.mxu0 0.0
  %227 = vmatmul.mubr.f32.gmra.mrb[0].mxu0 %v89
  %v228 = vpop.f32.mrb[0].mxu0
  %v229 = vadd.f32 %v52, %v228
  %v230 = vpop.f32.mrb[0].mxu0
  %231 = vmatprep.mubr.f32.mxu0 0.0
  %232 = vmatmul.mubr.f32.gmra.mrb[0].mxu0 %v92
  %v233 = vpop.f32.mrb[0].mxu0
  %v234 = vadd.f32 %v52, %v233
  %v235 = vpop.f32.mrb[0].mxu0
  %236 = vmatprep.mubr.f32.mxu0 0.0
  %237 = vmatmul.mubr.f32.gmra.mrb[0].mxu0 %v95
  %v238 = vpop.f32.mrb[0].mxu0
  %v239 = vadd.f32 %v52, %v238
  %v240 = vpop.f32.mrb[0].mxu0
  %241 = vmatprep.mubr.f32.mxu0 0.0
  %242 = vmatmul.mubr.f32.gmra.mrb[0].mxu0 %v98
  %v243 = vpop.f32.mrb[0].mxu0
  %v244 = vadd.f32 %v52, %v243
  %v245 = vpop.f32.mrb[0].mxu0
  %246 = vmatprep.mubr.f32.mxu0 0.0
  %247 = vmatmul.mubr.f32.gmra.mrb[0].mxu0 %v101
  %v248 = vpop.f32.mrb[0].mxu0
  %v249 = vadd.f32 %v52, %v248
  %v250 = vpop.f32.mrb[0].mxu0
  %251 = vdwg.mxu0
  %v252 = vld [vmem:[%s1] sm:$0xff]
  %v253 = vld [vmem:[%s1 + $0x8] sm:$0xff]
  %v254 = vld [vmem:[%s1 + $0x10] sm:$0xff]
  %v255 = vld [vmem:[%s1 + $0x18] sm:$0xff]
  %v256 = vld [vmem:[%s1 + $0x20] sm:$0xff]
  %v257 = vld [vmem:[%s1 + $0x28] sm:$0xff]
  %v258 = vld [vmem:[%s1 + $0x30] sm:$0xff]
  %v259 = vld [vmem:[%s1 + $0x38] sm:$0xff]
  %v260 = vld [vmem:[%s1 + $0x40] sm:$0xff]
  %v261 = vld [vmem:[%s1 + $0x48] sm:$0xff]
  %v262 = vld [vmem:[%s1 + $0x50] sm:$0xff]
  %v263 = vld [vmem:[%s1 + $0x58] sm:$0xff]
  %v264 = vld [vmem:[%s1 + $0x60] sm:$0xff]
  %v265 = vld [vmem:[%s1 + $0x68] sm:$0xff]
  %v266 = vld [vmem:[%s1 + $0x70] sm:$0xff]
  %v267 = vld [vmem:[%s1 + $0x78] sm:$0xff]
  %v268 = vld [vmem:[%s4] sm:$0xf]
  %v269 = vld [vmem:[%s5] sm:$0x1]
  %v271 = vlaneseq
  %v272 = vshrl.u32 %v271, 7
  %v273 = vsub.s32 0, %v272
  %v274 = vrot.slane %v269, %v273
  %vm276 = vcmask 31744
  %v278 = vsel %vm276, %v252, 0
  %v281 = vsel %vm276, %v253, 0
  %v284 = vsel %vm276, %v254, 0
  %v287 = vsel %vm276, %v255, 0
  %v290 = vsel %vm276, %v256, 0
  %v293 = vsel %vm276, %v257, 0
  %v296 = vsel %vm276, %v258, 0
  %v299 = vsel %vm276, %v259, 0
  %v302 = vsel %vm276, %v260, 0
  %v305 = vsel %vm276, %v261, 0
  %v308 = vsel %vm276, %v262, 0
  %v311 = vsel %vm276, %v263, 0
  %v314 = vsel %vm276, %v264, 0
  %v317 = vsel %vm276, %v265, 0
  %v320 = vsel %vm276, %v266, 0
  %v323 = vsel %vm276, %v267, 0
  %v326 = vsel %vm103, %v268, 0
  %328 = vmatprep.subr.mxu0 0.0
  %329 = vmatpush1.msra.mxu0 %v326
  %330 = vmatprep.subr.mxu0 0.0
  %331 = vmatpush1.msra.mxu0 0.0
  %332 = vmatprep.subr.mxu0 0.0
  %333 = vmatpush1.msra.mxu0 0.0
  %334 = vmatprep.subr.mxu0 0.0
  %335 = vmatpush1.msra.mxu0 0.0
  %336 = vmatprep.subr.mxu0 0.0
  %337 = vmatpush1.msra.mxu0 0.0
  %338 = vmatprep.subr.mxu0 0.0
  %339 = vmatpush1.msra.mxu0 0.0
  %340 = vmatprep.subr.mxu0 0.0
  %341 = vmatpush1.msra.mxu0 0.0
  %342 = vmatprep.subr.mxu0 0.0
  %343 = vmatpush1.msra.mxu0 0.0
  %344 = vmatprep.subr.mxu0 0.0
  %345 = vmatpush1.msra.mxu0 0.0
  %346 = vmatprep.subr.mxu0 0.0
  %347 = vmatpush1.msra.mxu0 0.0
  %348 = vmatprep.subr.mxu0 0.0
  %349 = vmatpush1.msra.mxu0 0.0
  %350 = vmatprep.subr.mxu0 0.0
  %351 = vmatpush1.msra.mxu0 0.0
  %352 = vmatprep.subr.mxu0 0.0
  %353 = vmatpush1.msra.mxu0 0.0
  %354 = vmatprep.subr.mxu0 0.0
  %355 = vmatpush1.msra.mxu0 0.0
  %356 = vmatprep.subr.mxu0 0.0
  %357 = vmatpush1.msra.mxu0 0.0
  %358 = vmatprep.subr.mxu0 0.0
  %359 = vmatpush1.msra.mxu0 0.0
  %360 = vmatprep.subr.mxu0 0.0
  %361 = vmatpush1.msra.mxu0 0.0
  %362 = vmatprep.subr.mxu0 0.0
  %363 = vmatpush1.msra.mxu0 0.0
  %364 = vmatprep.subr.mxu0 0.0
  %365 = vmatpush1.msra.mxu0 0.0
  %366 = vmatprep.subr.mxu0 0.0
  %367 = vmatpush1.msra.mxu0 0.0
  %368 = vmatprep.subr.mxu0 0.0
  %369 = vmatpush1.msra.mxu0 0.0
  %370 = vmatprep.subr.mxu0 0.0
  %371 = vmatpush1.msra.mxu0 0.0
  %372 = vmatprep.subr.mxu0 0.0
  %373 = vmatpush1.msra.mxu0 0.0
  %374 = vmatprep.subr.mxu0 0.0
  %375 = vmatpush1.msra.mxu0 0.0
  %376 = vmatprep.subr.mxu0 0.0
  %377 = vmatpush1.msra.mxu0 0.0
  %378 = vmatprep.subr.mxu0 0.0
  %379 = vmatpush1.msra.mxu0 0.0
  %380 = vmatprep.subr.mxu0 0.0
  %381 = vmatpush1.msra.mxu0 0.0
  %382 = vmatprep.subr.mxu0 0.0
  %383 = vmatpush1.msra.mxu0 0.0
  %384 = vmatprep.subr.mxu0 0.0
  %385 = vmatpush1.msra.mxu0 0.0
  %386 = vmatprep.subr.mxu0 0.0
  %387 = vmatpush1.msra.mxu0 0.0
  %388 = vmatprep.subr.mxu0 0.0
  %389 = vmatpush1.msra.mxu0 0.0
  %390 = vmatprep.subr.mxu0 0.0
  %391 = vmatpush1.msra.mxu0 0.0
  %392 = vmatprep.mubr.f32.mxu0 0.0
  %393 = vmatmul.mubr.f32.gmra.mrb[0].mxu0 %v278
  %v394 = vpop.f32.mrb[0].mxu0
  %v395 = vadd.f32 %v274, %v394
  %v396 = vpop.f32.mrb[0].mxu0
  %397 = vmatprep.mubr.f32.mxu0 0.0
  %398 = vmatmul.mubr.f32.gmra.mrb[0].mxu0 %v281
  %v399 = vpop.f32.mrb[0].mxu0
  %v400 = vadd.f32 %v274, %v399
  %v401 = vpop.f32.mrb[0].mxu0
  %402 = vmatprep.mubr.f32.mxu0 0.0
  %403 = vmatmul.mubr.f32.gmra.mrb[0].mxu0 %v284
  %v404 = vpop.f32.mrb[0].mxu0
  %v405 = vadd.f32 %v274, %v404
  %v406 = vpop.f32.mrb[0].mxu0
  %407 = vmatprep.mubr.f32.mxu0 0.0
  %408 = vmatmul.mubr.f32.gmra.mrb[0].mxu0 %v287
  %v409 = vpop.f32.mrb[0].mxu0
  %v410 = vadd.f32 %v274, %v409
  %v411 = vpop.f32.mrb[0].mxu0
  %412 = vmatprep.mubr.f32.mxu0 0.0
  %413 = vmatmul.mubr.f32.gmra.mrb[0].mxu0 %v290
  %v414 = vpop.f32.mrb[0].mxu0
  %v415 = vadd.f32 %v274, %v414
  %v416 = vpop.f32.mrb[0].mxu0
  %417 = vmatprep.mubr.f32.mxu0 0.0
  %418 = vmatmul.mubr.f32.gmra.mrb[0].mxu0 %v293
  %v419 = vpop.f32.mrb[0].mxu0
  %v420 = vadd.f32 %v274, %v419
  %v421 = vpop.f32.mrb[0].mxu0
  %422 = vmatprep.mubr.f32.mxu0 0.0
  %423 = vmatmul.mubr.f32.gmra.mrb[0].mxu0 %v296
  %v424 = vpop.f32.mrb[0].mxu0
  %v425 = vadd.f32 %v274, %v424
  %v426 = vpop.f32.mrb[0].mxu0
  %427 = vmatprep.mubr.f32.mxu0 0.0
  %428 = vmatmul.mubr.f32.gmra.mrb[0].mxu0 %v299
  %v429 = vpop.f32.mrb[0].mxu0
  %v430 = vadd.f32 %v274, %v429
  %v431 = vpop.f32.mrb[0].mxu0
  %432 = vmatprep.mubr.f32.mxu0 0.0
  %433 = vmatmul.mubr.f32.gmra.mrb[0].mxu0 %v302
  %v434 = vpop.f32.mrb[0].mxu0
  %v435 = vadd.f32 %v274, %v434
  %v436 = vpop.f32.mrb[0].mxu0
  %437 = vmatprep.mubr.f32.mxu0 0.0
  %438 = vmatmul.mubr.f32.gmra.mrb[0].mxu0 %v305
  %v439 = vpop.f32.mrb[0].mxu0
  %v440 = vadd.f32 %v274, %v439
  %v441 = vpop.f32.mrb[0].mxu0
  %442 = vmatprep.mubr.f32.mxu0 0.0
  %443 = vmatmul.mubr.f32.gmra.mrb[0].mxu0 %v308
  %v444 = vpop.f32.mrb[0].mxu0
  %v445 = vadd.f32 %v274, %v444
  %v446 = vpop.f32.mrb[0].mxu0
  %447 = vmatprep.mubr.f32.mxu0 0.0
  %448 = vmatmul.mubr.f32.gmra.mrb[0].mxu0 %v311
  %v449 = vpop.f32.mrb[0].mxu0
  %v450 = vadd.f32 %v274, %v449
  %v451 = vpop.f32.mrb[0].mxu0
  %452 = vmatprep.mubr.f32.mxu0 0.0
  %453 = vmatmul.mubr.f32.gmra.mrb[0].mxu0 %v314
  %v454 = vpop.f32.mrb[0].mxu0
  %v455 = vadd.f32 %v274, %v454
  %v456 = vpop.f32.mrb[0].mxu0
  %457 = vmatprep.mubr.f32.mxu0 0.0
  %458 = vmatmul.mubr.f32.gmra.mrb[0].mxu0 %v317
  %v459 = vpop.f32.mrb[0].mxu0
  %v460 = vadd.f32 %v274, %v459
  %v461 = vpop.f32.mrb[0].mxu0
  %462 = vmatprep.mubr.f32.mxu0 0.0
  %463 = vmatmul.mubr.f32.gmra.mrb[0].mxu0 %v320
  %v464 = vpop.f32.mrb[0].mxu0
  %v465 = vadd.f32 %v274, %v464
  %v466 = vpop.f32.mrb[0].mxu0
  %467 = vmatprep.mubr.f32.mxu0 0.0
  %468 = vmatmul.mubr.f32.gmra.mrb[0].mxu0 %v323
  %v469 = vpop.f32.mrb[0].mxu0
  %v470 = vadd.f32 %v274, %v469
  %v471 = vpop.f32.mrb[0].mxu0
  %472 = vdwg.mxu0
  %vm473 = vcmask 64512
  %v474 = vsel %vm473, %v174, 0.0
  %v475 = vsel %vm473, %v179, 0.0
  %v476 = vadd.f32 %v474, %v475
  %v477 = vsel %vm473, %v184, 0.0
  %v478 = vadd.f32 %v476, %v477
  %v479 = vsel %vm473, %v189, 0.0
  %v480 = vadd.f32 %v478, %v479
  %v481 = vsel %vm473, %v194, 0.0
  %v482 = vadd.f32 %v480, %v481
  %v483 = vsel %vm473, %v199, 0.0
  %v484 = vadd.f32 %v482, %v483
  %v485 = vsel %vm473, %v204, 0.0
  %v486 = vadd.f32 %v484, %v485
  %v487 = vsel %vm473, %v209, 0.0
  %v488 = vadd.f32 %v486, %v487
  %v489 = vsel %vm473, %v214, 0.0
  %v490 = vadd.f32 %v488, %v489
  %v491 = vsel %vm473, %v219, 0.0
  %v492 = vadd.f32 %v490, %v491
  %v493 = vsel %vm473, %v224, 0.0
  %v494 = vadd.f32 %v492, %v493
  %v495 = vsel %vm473, %v229, 0.0
  %v496 = vadd.f32 %v494, %v495
  %v497 = vsel %vm473, %v234, 0.0
  %v498 = vadd.f32 %v496, %v497
  %v499 = vsel %vm473, %v239, 0.0
  %v500 = vadd.f32 %v498, %v499
  %v501 = vsel %vm473, %v244, 0.0
  %v502 = vadd.f32 %v500, %v501
  %v503 = vsel %vm473, %v249, 0.0
  %v504 = vadd.f32 %v502, %v503
  %v505 = vrot.slane %v504, 4
  %v506 = vadd.f32 %v504, %v505
  %v507 = vrot.slane %v506, 2
  %v508 = vadd.f32 %v506, %v507
  %v509 = vrot.slane %v508, 1
  %v510 = vadd.f32 %v508, %v509
  %v511 = vrcp.pop 128.0
  %v512 = vmul.f32 %v510, %v511
  %v513 = vsub.f32 %v174, %v512
  %v514 = vsub.f32 %v179, %v512
  %v515 = vsub.f32 %v184, %v512
  %v516 = vsub.f32 %v189, %v512
  %v517 = vsub.f32 %v194, %v512
  %v518 = vsub.f32 %v199, %v512
  %v519 = vsub.f32 %v204, %v512
  %v520 = vsub.f32 %v209, %v512
  %v521 = vsub.f32 %v214, %v512
  %v522 = vsub.f32 %v219, %v512
  %v523 = vsub.f32 %v224, %v512
  %v524 = vsub.f32 %v229, %v512
  %v525 = vsub.f32 %v234, %v512
  %v526 = vsub.f32 %v239, %v512
  %v527 = vsub.f32 %v244, %v512
  %v528 = vsub.f32 %v249, %v512
  %v529 = vmul.f32 %v513, %v513
  %v530 = vmul.f32 %v514, %v514
  %v531 = vmul.f32 %v515, %v515
  %v532 = vmul.f32 %v516, %v516
  %v533 = vmul.f32 %v517, %v517
  %v534 = vmul.f32 %v518, %v518
  %v535 = vmul.f32 %v519, %v519
  %v536 = vmul.f32 %v520, %v520
  %v537 = vmul.f32 %v521, %v521
  %v538 = vmul.f32 %v522, %v522
  %v539 = vmul.f32 %v523, %v523
  %v540 = vmul.f32 %v524, %v524
  %v541 = vmul.f32 %v525, %v525
  %v542 = vmul.f32 %v526, %v526
  %v543 = vmul.f32 %v527, %v527
  %v544 = vmul.f32 %v528, %v528
  %v545 = vsel %vm473, %v529, 0.0
  %v546 = vsel %vm473, %v530, 0.0
  %v547 = vadd.f32 %v545, %v546
  %v548 = vsel %vm473, %v531, 0.0
  %v549 = vadd.f32 %v547, %v548
  %v550 = vsel %vm473, %v532, 0.0
  %v551 = vadd.f32 %v549, %v550
  %v552 = vsel %vm473, %v533, 0.0
  %v553 = vadd.f32 %v551, %v552
  %v554 = vsel %vm473, %v534, 0.0
  %v555 = vadd.f32 %v553, %v554
  %v556 = vsel %vm473, %v535, 0.0
  %v557 = vadd.f32 %v555, %v556
  %v558 = vsel %vm473, %v536, 0.0
  %v559 = vadd.f32 %v557, %v558
  %v560 = vsel %vm473, %v537, 0.0
  %v561 = vadd.f32 %v559, %v560
  %v562 = vsel %vm473, %v538, 0.0
  %v563 = vadd.f32 %v561, %v562
  %v564 = vsel %vm473, %v539, 0.0
  %v565 = vadd.f32 %v563, %v564
  %v566 = vsel %vm473, %v540, 0.0
  %v567 = vadd.f32 %v565, %v566
  %v568 = vsel %vm473, %v541, 0.0
  %v569 = vadd.f32 %v567, %v568
  %v570 = vsel %vm473, %v542, 0.0
  %v571 = vadd.f32 %v569, %v570
  %v572 = vsel %vm473, %v543, 0.0
  %v573 = vadd.f32 %v571, %v572
  %v574 = vsel %vm473, %v544, 0.0
  %v575 = vadd.f32 %v573, %v574
  %v576 = vrot.slane %v575, 4
  %v577 = vadd.f32 %v575, %v576
  %v578 = vrot.slane %v577, 2
  %v579 = vadd.f32 %v577, %v578
  %v580 = vrot.slane %v579, 1
  %v581 = vadd.f32 %v579, %v580
  %v582 = vmul.f32 %v581, %v511
  %v583 = vadd.f32 %v582, 1e-05
  %v584 = vrsqrt.pop %v583
  %v585 = vmul.f32 %v513, %v584
  %v586 = vmul.f32 %v514, %v584
  %v587 = vmul.f32 %v515, %v584
  %v588 = vmul.f32 %v516, %v584
  %v589 = vmul.f32 %v517, %v584
  %v590 = vmul.f32 %v518, %v584
  %v591 = vmul.f32 %v519, %v584
  %v592 = vmul.f32 %v520, %v584
  %v593 = vmul.f32 %v521, %v584
  %v594 = vmul.f32 %v522, %v584
  %v595 = vmul.f32 %v523, %v584
  %v596 = vmul.f32 %v524, %v584
  %v597 = vmul.f32 %v525, %v584
  %v598 = vmul.f32 %v526, %v584
  %v599 = vmul.f32 %v527, %v584
  %v600 = vmul.f32 %v528, %v584
  %v601 = vld [vmem:[%s6] sm:$0x1]
  %v603 = vlaneseq
  %v604 = vshrl.u32 %v603, 7
  %v605 = vsub.s32 0, %v604
  %v606 = vrot.slane %v601, %v605
  %v608 = vmul.f32 %v585, %v606
  %v609 = vmul.f32 %v586, %v606
  %v610 = vmul.f32 %v587, %v606
  %v611 = vmul.f32 %v588, %v606
  %v612 = vmul.f32 %v589, %v606
  %v613 = vmul.f32 %v590, %v606
  %v614 = vmul.f32 %v591, %v606
  %v615 = vmul.f32 %v592, %v606
  %v616 = vmul.f32 %v593, %v606
  %v617 = vmul.f32 %v594, %v606
  %v618 = vmul.f32 %v595, %v606
  %v619 = vmul.f32 %v596, %v606
  %v620 = vmul.f32 %v597, %v606
  %v621 = vmul.f32 %v598, %v606
  %v622 = vmul.f32 %v599, %v606
  %v623 = vmul.f32 %v600, %v606
  %v624 = vld [vmem:[%s7] sm:$0x1]
  %v626 = vlaneseq
  %v627 = vshrl.u32 %v626, 7
  %v628 = vsub.s32 0, %v627
  %v629 = vrot.slane %v624, %v628
  %v631 = vadd.f32 %v608, %v629
  %v632 = vadd.f32 %v609, %v629
  %v633 = vadd.f32 %v610, %v629
  %v634 = vadd.f32 %v611, %v629
  %v635 = vadd.f32 %v612, %v629
  %v636 = vadd.f32 %v613, %v629
  %v637 = vadd.f32 %v614, %v629
  %v638 = vadd.f32 %v615, %v629
  %v639 = vadd.f32 %v616, %v629
  %v640 = vadd.f32 %v617, %v629
  %v641 = vadd.f32 %v618, %v629
  %v642 = vadd.f32 %v619, %v629
  %v643 = vadd.f32 %v620, %v629
  %v644 = vadd.f32 %v621, %v629
  %v645 = vadd.f32 %v622, %v629
  %v646 = vadd.f32 %v623, %v629
  %v647 = vadd.f32 %v631, %v395
  %v648 = vadd.f32 %v632, %v400
  %v649 = vadd.f32 %v633, %v405
  %v650 = vadd.f32 %v634, %v410
  %v651 = vadd.f32 %v635, %v415
  %v652 = vadd.f32 %v636, %v420
  %v653 = vadd.f32 %v637, %v425
  %v654 = vadd.f32 %v638, %v430
  %v655 = vadd.f32 %v639, %v435
  %v656 = vadd.f32 %v640, %v440
  %v657 = vadd.f32 %v641, %v445
  %v658 = vadd.f32 %v642, %v450
  %v659 = vadd.f32 %v643, %v455
  %v660 = vadd.f32 %v644, %v460
  %v661 = vadd.f32 %v645, %v465
  %v662 = vadd.f32 %v646, %v470
  %v663 = vmax.f32 %v647, 0.0
  %v664 = vmax.f32 %v648, 0.0
  %v665 = vmax.f32 %v649, 0.0
  %v666 = vmax.f32 %v650, 0.0
  %v667 = vmax.f32 %v651, 0.0
  %v668 = vmax.f32 %v652, 0.0
  %v669 = vmax.f32 %v653, 0.0
  %v670 = vmax.f32 %v654, 0.0
  %v671 = vmax.f32 %v655, 0.0
  %v672 = vmax.f32 %v656, 0.0
  %v673 = vmax.f32 %v657, 0.0
  %v674 = vmax.f32 %v658, 0.0
  %v675 = vmax.f32 %v659, 0.0
  %v676 = vmax.f32 %v660, 0.0
  %v677 = vmax.f32 %v661, 0.0
  %v678 = vmax.f32 %v662, 0.0
  %679 = vst.msk [vmem:[%s8] sm:$0xff] %vm473, %v663
  %680 = vst.msk [vmem:[%s8 + $0x8] sm:$0xff] %vm473, %v664
  %681 = vst.msk [vmem:[%s8 + $0x10] sm:$0xff] %vm473, %v665
  %682 = vst.msk [vmem:[%s8 + $0x18] sm:$0xff] %vm473, %v666
  %683 = vst.msk [vmem:[%s8 + $0x20] sm:$0xff] %vm473, %v667
  %684 = vst.msk [vmem:[%s8 + $0x28] sm:$0xff] %vm473, %v668
  %685 = vst.msk [vmem:[%s8 + $0x30] sm:$0xff] %vm473, %v669
  %686 = vst.msk [vmem:[%s8 + $0x38] sm:$0xff] %vm473, %v670
  %687 = vst.msk [vmem:[%s8 + $0x40] sm:$0xff] %vm473, %v671
  %688 = vst.msk [vmem:[%s8 + $0x48] sm:$0xff] %vm473, %v672
  %689 = vst.msk [vmem:[%s8 + $0x50] sm:$0xff] %vm473, %v673
  %690 = vst.msk [vmem:[%s8 + $0x58] sm:$0xff] %vm473, %v674
  %691 = vst.msk [vmem:[%s8 + $0x60] sm:$0xff] %vm473, %v675
  %692 = vst.msk [vmem:[%s8 + $0x68] sm:$0xff] %vm473, %v676
  %693 = vst.msk [vmem:[%s8 + $0x70] sm:$0xff] %vm473, %v677
  %694 = vst.msk [vmem:[%s8 + $0x78] sm:$0xff] %vm473, %v678
  // Predicated region
  $region34: #{_lambda_.4} parent=0 // pred_check
    _
  $region35: #{_lambda_.4} parent=0 // pred_check_branch
    %696 = sbr.rel (0) target = $region37
  $region36: #{_lambda_.4} parent=0 // pred_region
    _
  $region37: #{_lambda_.4} parent=0 // pred_fallthru
    _
  // Predicated region
  $region38: #{_lambda_.4} parent=0 // pred_check
    _
  $region39: #{_lambda_.4} parent=0 // pred_check_branch
    %698 = sbr.rel (0) target = $region41
  $region40: #{_lambda_.4} parent=0 // pred_region
    _
  $region41: #{_lambda_.4} parent=0 // pred_fallthru
    _

// kernel: _lambda_.6
$region0: #{_lambda_.6}
  #allocation0 [shape = 'u32[]', space=smem, size = 0x4, offset = 0x4, fixed_abs, tag = 'smem constant byte address 0x4 - core index']
  #allocation1 [shape = 'u32[144,128]{1,0:T(1,128)}', space=vmem, size = 0x12000, scoped, tag = 'internal scratch']
  %s0 = inlined_call_operand.vmem [shape: f32[32,48], index: 0, kind: input, shape index: {}]
  %s1 = inlined_call_operand.vmem [shape: f32[32,16], index: 1, kind: input, shape index: {}]
  %s2 = inlined_call_operand.vmem [shape: f32[48,32], index: 2, kind: input, shape index: {}]
  %s3 = inlined_call_operand.vmem [shape: f32[1,32], index: 3, kind: input, shape index: {}]
  %s4 = inlined_call_operand.vmem [shape: f32[16,32], index: 4, kind: input, shape index: {}]
  %s5 = inlined_call_operand.vmem [shape: f32[1,32], index: 5, kind: input, shape index: {}]
  %s6 = inlined_call_operand.vmem [shape: f32[1,32], index: 6, kind: input, shape index: {}]
  %s7 = inlined_call_operand.vmem [shape: f32[1,32], index: 7, kind: input, shape index: {}]
  %s8 = inlined_call_operand.vmem [shape: f32[32,32], index: 8, kind: output, shape index: {}]
  %s9 = sld [smem:[#allocation0]]
  $region42: #{_lambda_.6} parent=0
    _
  %s11 = ssub.s32 1, %s9
  %s12 = scalar_select 0, %s11, %s9
  // Predicated region
  $region2: #{_lambda_.6} parent=0 // pred_check
    _
  $region3: #{_lambda_.6} parent=0 // pred_check_branch
    %14 = sbr.rel (0) target = $region5
  $region4: #{_lambda_.6} parent=0 // pred_region
    _
  $region5: #{_lambda_.6} parent=0 // pred_fallthru
    _
  // Predicated region
  $region6: #{_lambda_.6} parent=0 // pred_check
    _
  $region7: #{_lambda_.6} parent=0 // pred_check_branch
    %16 = sbr.rel (0) target = $region9
  $region8: #{_lambda_.6} parent=0 // pred_region
    _
  $region9: #{_lambda_.6} parent=0 // pred_fallthru
    _
  // Predicated region
  $region10: #{_lambda_.6} parent=0 // pred_check
    _
  $region11: #{_lambda_.6} parent=0 // pred_check_branch
    %18 = sbr.rel (0) target = $region13
  $region12: #{_lambda_.6} parent=0 // pred_region
    _
  $region13: #{_lambda_.6} parent=0 // pred_fallthru
    _
  // Predicated region
  $region14: #{_lambda_.6} parent=0 // pred_check
    _
  $region15: #{_lambda_.6} parent=0 // pred_check_branch
    %20 = sbr.rel (0) target = $region17
  $region16: #{_lambda_.6} parent=0 // pred_region
    _
  $region17: #{_lambda_.6} parent=0 // pred_fallthru
    _
  // Predicated region
  $region18: #{_lambda_.6} parent=0 // pred_check
    _
  $region19: #{_lambda_.6} parent=0 // pred_check_branch
    %22 = sbr.rel (0) target = $region21
  $region20: #{_lambda_.6} parent=0 // pred_region
    _
  $region21: #{_lambda_.6} parent=0 // pred_fallthru
    _
  // Predicated region
  $region22: #{_lambda_.6} parent=0 // pred_check
    _
  $region23: #{_lambda_.6} parent=0 // pred_check_branch
    %24 = sbr.rel (0) target = $region25
  $region24: #{_lambda_.6} parent=0 // pred_region
    _
  $region25: #{_lambda_.6} parent=0 // pred_fallthru
    _
  // Predicated region
  $region26: #{_lambda_.6} parent=0 // pred_check
    _
  $region27: #{_lambda_.6} parent=0 // pred_check_branch
    %26 = sbr.rel (0) target = $region29
  $region28: #{_lambda_.6} parent=0 // pred_region
    _
  $region29: #{_lambda_.6} parent=0 // pred_fallthru
    _
  // Predicated region
  $region30: #{_lambda_.6} parent=0 // pred_check
    _
  $region31: #{_lambda_.6} parent=0 // pred_check_branch
    %28 = sbr.rel (0) target = $region33
  $region32: #{_lambda_.6} parent=0 // pred_region
    _
  $region33: #{_lambda_.6} parent=0 // pred_fallthru
    _
  %v29 = vld [vmem:[%s0] sm:$0xff]
  %v30 = vld [vmem:[%s0 + $0x8] sm:$0xff]
  %v31 = vld [vmem:[%s0 + $0x10] sm:$0xff]
  %v32 = vld [vmem:[%s0 + $0x18] sm:$0xff]
  %v33 = vld [vmem:[%s2] sm:$0xff]
  %v34 = vld [vmem:[%s2 + $0x8] sm:$0xff]
  %v35 = vld [vmem:[%s2 + $0x10] sm:$0xff]
  %v36 = vld [vmem:[%s2 + $0x18] sm:$0xff]
  %v37 = vld [vmem:[%s2 + $0x20] sm:$0xff]
  %v38 = vld [vmem:[%s2 + $0x28] sm:$0xff]
  %v39 = vld [vmem:[%s3] sm:$0x1]
  %v41 = vlaneseq
  %v42 = vshrl.u32 %v41, 7
  %v43 = vsub.s32 0, %v42
  %v44 = vrot.slane %v39, %v43
  %vm46 = vcmask 392192
  %v48 = vsel %vm46, %v29, 0
  %v51 = vsel %vm46, %v30, 0
  %v54 = vsel %vm46, %v31, 0
  %v57 = vsel %vm46, %v32, 0
  %59 = vmatprep.subr.mxu0 0.0
  %60 = vmatpush1.msra.mxu0 %v33
  %61 = vmatprep.subr.mxu0 0.0
  %62 = vmatpush1.msra.mxu0 %v34
  %63 = vmatprep.subr.mxu0 0.0
  %64 = vmatpush1.msra.mxu0 %v35
  %65 = vmatprep.subr.mxu0 0.0
  %66 = vmatpush1.msra.mxu0 %v36
  %67 = vmatprep.subr.mxu0 0.0
  %68 = vmatpush1.msra.mxu0 %v37
  %69 = vmatprep.subr.mxu0 0.0
  %70 = vmatpush1.msra.mxu0 %v38
  %71 = vmatprep.subr.mxu0 0.0
  %72 = vmatpush1.msra.mxu0 0.0
  %73 = vmatprep.subr.mxu0 0.0
  %74 = vmatpush1.msra.mxu0 0.0
  %75 = vmatprep.subr.mxu0 0.0
  %76 = vmatpush1.msra.mxu0 0.0
  %77 = vmatprep.subr.mxu0 0.0
  %78 = vmatpush1.msra.mxu0 0.0
  %79 = vmatprep.subr.mxu0 0.0
  %80 = vmatpush1.msra.mxu0 0.0
  %81 = vmatprep.subr.mxu0 0.0
  %82 = vmatpush1.msra.mxu0 0.0
  %83 = vmatprep.subr.mxu0 0.0
  %84 = vmatpush1.msra.mxu0 0.0
  %85 = vmatprep.subr.mxu0 0.0
  %86 = vmatpush1.msra.mxu0 0.0
  %87 = vmatprep.subr.mxu0 0.0
  %88 = vmatpush1.msra.mxu0 0.0
  %89 = vmatprep.subr.mxu0 0.0
  %90 = vmatpush1.msra.mxu0 0.0
  %91 = vmatprep.subr.mxu0 0.0
  %92 = vmatpush1.msra.mxu0 0.0
  %93 = vmatprep.subr.mxu0 0.0
  %94 = vmatpush1.msra.mxu0 0.0
  %95 = vmatprep.subr.mxu0 0.0
  %96 = vmatpush1.msra.mxu0 0.0
  %97 = vmatprep.subr.mxu0 0.0
  %98 = vmatpush1.msra.mxu0 0.0
  %99 = vmatprep.subr.mxu0 0.0
  %100 = vmatpush1.msra.mxu0 0.0
  %101 = vmatprep.subr.mxu0 0.0
  %102 = vmatpush1.msra.mxu0 0.0
  %103 = vmatprep.subr.mxu0 0.0
  %104 = vmatpush1.msra.mxu0 0.0
  %105 = vmatprep.subr.mxu0 0.0
  %106 = vmatpush1.msra.mxu0 0.0
  %107 = vmatprep.subr.mxu0 0.0
  %108 = vmatpush1.msra.mxu0 0.0
  %109 = vmatprep.subr.mxu0 0.0
  %110 = vmatpush1.msra.mxu0 0.0
  %111 = vmatprep.subr.mxu0 0.0
  %112 = vmatpush1.msra.mxu0 0.0
  %113 = vmatprep.subr.mxu0 0.0
  %114 = vmatpush1.msra.mxu0 0.0
  %115 = vmatprep.subr.mxu0 0.0
  %116 = vmatpush1.msra.mxu0 0.0
  %117 = vmatprep.subr.mxu0 0.0
  %118 = vmatpush1.msra.mxu0 0.0
  %119 = vmatprep.subr.mxu0 0.0
  %120 = vmatpush1.msra.mxu0 0.0
  %121 = vmatprep.subr.mxu0 0.0
  %122 = vmatpush1.msra.mxu0 0.0
  %123 = vmatprep.mubr.f32.mxu0 0.0
  %124 = vmatmul.mubr.f32.gmra.mrb[0].mxu0 %v48
  %v125 = vpop.f32.mrb[0].mxu0
  %v126 = vadd.f32 %v44, %v125
  %v127 = vpop.f32.mrb[0].mxu0
  %128 = vmatprep.mubr.f32.mxu0 0.0
  %129 = vmatmul.mubr.f32.gmra.mrb[0].mxu0 %v51
  %v130 = vpop.f32.mrb[0].mxu0
  %v131 = vadd.f32 %v44, %v130
  %v132 = vpop.f32.mrb[0].mxu0
  %133 = vmatprep.mubr.f32.mxu0 0.0
  %134 = vmatmul.mubr.f32.gmra.mrb[0].mxu0 %v54
  %v135 = vpop.f32.mrb[0].mxu0
  %v136 = vadd.f32 %v44, %v135
  %v137 = vpop.f32.mrb[0].mxu0
  %138 = vmatprep.mubr.f32.mxu0 0.0
  %139 = vmatmul.mubr.f32.gmra.mrb[0].mxu0 %v57
  %v140 = vpop.f32.mrb[0].mxu0
  %v141 = vadd.f32 %v44, %v140
  %v142 = vpop.f32.mrb[0].mxu0
  %143 = vdwg.mxu0
  %v144 = vld [vmem:[%s1] sm:$0xff]
  %v145 = vld [vmem:[%s1 + $0x8] sm:$0xff]
  %v146 = vld [vmem:[%s1 + $0x10] sm:$0xff]
  %v147 = vld [vmem:[%s1 + $0x18] sm:$0xff]
  %v148 = vld [vmem:[%s4] sm:$0xff]
  %v149 = vld [vmem:[%s4 + $0x8] sm:$0xff]
  %v150 = vld [vmem:[%s5] sm:$0x1]
  %v152 = vlaneseq
  %v153 = vshrl.u32 %v152, 7
  %v154 = vsub.s32 0, %v153
  %v155 = vrot.slane %v150, %v154
  %vm157 = vcmask 130048
  %v159 = vsel %vm157, %v144, 0
  %v162 = vsel %vm157, %v145, 0
  %v165 = vsel %vm157, %v146, 0
  %v168 = vsel %vm157, %v147, 0
  %170 = vmatprep.subr.mxu0 0.0
  %171 = vmatpush1.msra.mxu0 %v148
  %172 = vmatprep.subr.mxu0 0.0
  %173 = vmatpush1.msra.mxu0 %v149
  %174 = vmatprep.subr.mxu0 0.0
  %175 = vmatpush1.msra.mxu0 0.0
  %176 = vmatprep.subr.mxu0 0.0
  %177 = vmatpush1.msra.mxu0 0.0
  %178 = vmatprep.subr.mxu0 0.0
  %179 = vmatpush1.msra.mxu0 0.0
  %180 = vmatprep.subr.mxu0 0.0
  %181 = vmatpush1.msra.mxu0 0.0
  %182 = vmatprep.subr.mxu0 0.0
  %183 = vmatpush1.msra.mxu0 0.0
  %184 = vmatprep.subr.mxu0 0.0
  %185 = vmatpush1.msra.mxu0 0.0
  %186 = vmatprep.subr.mxu0 0.0
  %187 = vmatpush1.msra.mxu0 0.0
  %188 = vmatprep.subr.mxu0 0.0
  %189 = vmatpush1.msra.mxu0 0.0
  %190 = vmatprep.subr.mxu0 0.0
  %191 = vmatpush1.msra.mxu0 0.0
  %192 = vmatprep.subr.mxu0 0.0
  %193 = vmatpush1.msra.mxu0 0.0
  %194 = vmatprep.subr.mxu0 0.0
  %195 = vmatpush1.msra.mxu0 0.0
  %196 = vmatprep.subr.mxu0 0.0
  %197 = vmatpush1.msra.mxu0 0.0
  %198 = vmatprep.subr.mxu0 0.0
  %199 = vmatpush1.msra.mxu0 0.0
  %200 = vmatprep.subr.mxu0 0.0
  %201 = vmatpush1.msra.mxu0 0.0
  %202 = vmatprep.subr.mxu0 0.0
  %203 = vmatpush1.msra.mxu0 0.0
  %204 = vmatprep.subr.mxu0 0.0
  %205 = vmatpush1.msra.mxu0 0.0
  %206 = vmatprep.subr.mxu0 0.0
  %207 = vmatpush1.msra.mxu0 0.0
  %208 = vmatprep.subr.mxu0 0.0
  %209 = vmatpush1.msra.mxu0 0.0
  %210 = vmatprep.subr.mxu0 0.0
  %211 = vmatpush1.msra.mxu0 0.0
  %212 = vmatprep.subr.mxu0 0.0
  %213 = vmatpush1.msra.mxu0 0.0
  %214 = vmatprep.subr.mxu0 0.0
  %215 = vmatpush1.msra.mxu0 0.0
  %216 = vmatprep.subr.mxu0 0.0
  %217 = vmatpush1.msra.mxu0 0.0
  %218 = vmatprep.subr.mxu0 0.0
  %219 = vmatpush1.msra.mxu0 0.0
  %220 = vmatprep.subr.mxu0 0.0
  %221 = vmatpush1.msra.mxu0 0.0
  %222 = vmatprep.subr.mxu0 0.0
  %223 = vmatpush1.msra.mxu0 0.0
  %224 = vmatprep.subr.mxu0 0.0
  %225 = vmatpush1.msra.mxu0 0.0
  %226 = vmatprep.subr.mxu0 0.0
  %227 = vmatpush1.msra.mxu0 0.0
  %228 = vmatprep.subr.mxu0 0.0
  %229 = vmatpush1.msra.mxu0 0.0
  %230 = vmatprep.subr.mxu0 0.0
  %231 = vmatpush1.msra.mxu0 0.0
  %232 = vmatprep.subr.mxu0 0.0
  %233 = vmatpush1.msra.mxu0 0.0
  %234 = vmatprep.mubr.f32.mxu0 0.0
  %235 = vmatmul.mubr.f32.gmra.mrb[0].mxu0 %v159
  %v236 = vpop.f32.mrb[0].mxu0
  %v237 = vadd.f32 %v155, %v236
  %v238 = vpop.f32.mrb[0].mxu0
  %239 = vmatprep.mubr.f32.mxu0 0.0
  %240 = vmatmul.mubr.f32.gmra.mrb[0].mxu0 %v162
  %v241 = vpop.f32.mrb[0].mxu0
  %v242 = vadd.f32 %v155, %v241
  %v243 = vpop.f32.mrb[0].mxu0
  %244 = vmatprep.mubr.f32.mxu0 0.0
  %245 = vmatmul.mubr.f32.gmra.mrb[0].mxu0 %v165
  %v246 = vpop.f32.mrb[0].mxu0
  %v247 = vadd.f32 %v155, %v246
  %v248 = vpop.f32.mrb[0].mxu0
  %249 = vmatprep.mubr.f32.mxu0 0.0
  %250 = vmatmul.mubr.f32.gmra.mrb[0].mxu0 %v168
  %v251 = vpop.f32.mrb[0].mxu0
  %v252 = vadd.f32 %v155, %v251
  %v253 = vpop.f32.mrb[0].mxu0
  %254 = vdwg.mxu0
  %vm255 = vcmask 261120
  %v256 = vsel %vm255, %v126, 0.0
  %v257 = vsel %vm255, %v131, 0.0
  %v258 = vadd.f32 %v256, %v257
  %v259 = vsel %vm255, %v136, 0.0
  %v260 = vadd.f32 %v258, %v259
  %v261 = vsel %vm255, %v141, 0.0
  %v262 = vadd.f32 %v260, %v261
  %v263 = vrot.slane %v262, 4
  %v264 = vadd.f32 %v262, %v263
  %v265 = vrot.slane %v264, 2
  %v266 = vadd.f32 %v264, %v265
  %v267 = vrot.slane %v266, 1
  %v268 = vadd.f32 %v266, %v267
  %v269 = vrcp.pop 32.0
  %v270 = vmul.f32 %v268, %v269
  %v271 = vsub.f32 %v126, %v270
  %v272 = vsub.f32 %v131, %v270
  %v273 = vsub.f32 %v136, %v270
  %v274 = vsub.f32 %v141, %v270
  %v275 = vmul.f32 %v271, %v271
  %v276 = vmul.f32 %v272, %v272
  %v277 = vmul.f32 %v273, %v273
  %v278 = vmul.f32 %v274, %v274
  %v279 = vsel %vm255, %v275, 0.0
  %v280 = vsel %vm255, %v276, 0.0
  %v281 = vadd.f32 %v279, %v280
  %v282 = vsel %vm255, %v277, 0.0
  %v283 = vadd.f32 %v281, %v282
  %v284 = vsel %vm255, %v278, 0.0
  %v285 = vadd.f32 %v283, %v284
  %v286 = vrot.slane %v285, 4
  %v287 = vadd.f32 %v285, %v286
  %v288 = vrot.slane %v287, 2
  %v289 = vadd.f32 %v287, %v288
  %v290 = vrot.slane %v289, 1
  %v291 = vadd.f32 %v289, %v290
  %v292 = vmul.f32 %v291, %v269
  %v293 = vadd.f32 %v292, 1e-05
  %v294 = vrsqrt.pop %v293
  %v295 = vmul.f32 %v271, %v294
  %v296 = vmul.f32 %v272, %v294
  %v297 = vmul.f32 %v273, %v294
  %v298 = vmul.f32 %v274, %v294
  %v299 = vld [vmem:[%s6] sm:$0x1]
  %v301 = vlaneseq
  %v302 = vshrl.u32 %v301, 7
  %v303 = vsub.s32 0, %v302
  %v304 = vrot.slane %v299, %v303
  %v306 = vmul.f32 %v295, %v304
  %v307 = vmul.f32 %v296, %v304
  %v308 = vmul.f32 %v297, %v304
  %v309 = vmul.f32 %v298, %v304
  %v310 = vld [vmem:[%s7] sm:$0x1]
  %v312 = vlaneseq
  %v313 = vshrl.u32 %v312, 7
  %v314 = vsub.s32 0, %v313
  %v315 = vrot.slane %v310, %v314
  %v317 = vadd.f32 %v306, %v315
  %v318 = vadd.f32 %v307, %v315
  %v319 = vadd.f32 %v308, %v315
  %v320 = vadd.f32 %v309, %v315
  %v321 = vadd.f32 %v317, %v237
  %v322 = vadd.f32 %v318, %v242
  %v323 = vadd.f32 %v319, %v247
  %v324 = vadd.f32 %v320, %v252
  %v325 = vmax.f32 %v321, 0.0
  %v326 = vmax.f32 %v322, 0.0
  %v327 = vmax.f32 %v323, 0.0
  %v328 = vmax.f32 %v324, 0.0
  %329 = vst.msk [vmem:[%s8] sm:$0xff] %vm255, %v325
  %330 = vst.msk [vmem:[%s8 + $0x8] sm:$0xff] %vm255, %v326
  %331 = vst.msk [vmem:[%s8 + $0x10] sm:$0xff] %vm255, %v327
  %332 = vst.msk [vmem:[%s8 + $0x18] sm:$0xff] %vm255, %v328
  // Predicated region
  $region34: #{_lambda_.6} parent=0 // pred_check
    _
  $region35: #{_lambda_.6} parent=0 // pred_check_branch
    %334 = sbr.rel (0) target = $region37
  $region36: #{_lambda_.6} parent=0 // pred_region
    _
  $region37: #{_lambda_.6} parent=0 // pred_fallthru
    _
  // Predicated region
  $region38: #{_lambda_.6} parent=0 // pred_check
    _
  $region39: #{_lambda_.6} parent=0 // pred_check_branch
    %336 = sbr.rel (0) target = $region41
  $region40: #{_lambda_.6} parent=0 // pred_region
    _
  $region41: #{_lambda_.6} parent=0 // pred_fallthru
    _

// kernel: _lambda_.7
$region0: #{_lambda_.7}
  #allocation0 [shape = 'u32[]', space=smem, size = 0x4, offset = 0x4, fixed_abs, tag = 'smem constant byte address 0x4 - core index']
  #allocation1 [shape = 'u32[144,128]{1,0:T(1,128)}', space=vmem, size = 0x12000, scoped, tag = 'internal scratch']
  #allocation2 [shape = 'f32[1,1]{1,0:T(1,128)S(1)}', space=vmem, size = 0x200, scoped, tag = 'scoped memory for _lambda_.7']
  %s0 = inlined_call_operand.vmem [shape: f32[2,35,32], index: 0, kind: input, shape index: {}]
  %s1 = inlined_call_operand.vmem [shape: f32[2,32,96], index: 1, kind: input, shape index: {}]
  %s2 = inlined_call_operand.vmem [shape: f32[2,1,96], index: 2, kind: input, shape index: {}]
  %s3 = inlined_call_operand.vmem [shape: f32[2,32,32], index: 3, kind: input, shape index: {}]
  %s4 = inlined_call_operand.vmem [shape: f32[2,1,32], index: 4, kind: input, shape index: {}]
  %s5 = inlined_call_operand.vmem [shape: f32[2,1,32], index: 5, kind: input, shape index: {}]
  %s6 = inlined_call_operand.vmem [shape: f32[2,1,32], index: 6, kind: input, shape index: {}]
  %s7 = inlined_call_operand.vmem [shape: bf16[2,32,2048], index: 7, kind: input, shape index: {}]
  %s8 = inlined_call_operand.vmem [shape: f32[2,1,2048], index: 8, kind: input, shape index: {}]
  %s9 = inlined_call_operand.vmem [shape: bf16[2,2048,32], index: 9, kind: input, shape index: {}]
  %s10 = inlined_call_operand.vmem [shape: f32[2,1,32], index: 10, kind: input, shape index: {}]
  %s11 = inlined_call_operand.vmem [shape: f32[2,1,32], index: 11, kind: input, shape index: {}]
  %s12 = inlined_call_operand.vmem [shape: f32[2,1,32], index: 12, kind: input, shape index: {}]
  %s13 = inlined_call_operand.vmem [shape: f32[2,4,1], index: 13, kind: input, shape index: {}]
  %s14 = inlined_call_operand.vmem [shape: f32[27,4], index: 14, kind: input, shape index: {}]
  %s15 = inlined_call_operand.vmem [shape: f32[32,1], index: 15, kind: input, shape index: {}]
  %s16 = inlined_call_operand.<no memory space> [shape: f32[1,1], index: 16, kind: input, shape index: {}]
  %s17 = inlined_call_operand.vmem [shape: f32[2,27,1], index: 17, kind: output, shape index: {}]
  %s18 = sld [smem:[#allocation0]]
  $region101: #{_lambda_.7} parent=0
    _
  %s20 = ssub.s32 1, %s18
  %s21 = scalar_select 0, %s20, %s18
  %v22 = vstv %s16
  %23 = vst [vmem:[#allocation2] sm:$0x1] %v22
  loop: start=0, step=1, limit=4
  $region2: #{_lambda_.7} parent=0 // loop_pre_header
    _
  $region3: #{_lambda_.7} parent=0 // loop_header
    %s25 = sphi 0, %s29
    %p26 = scmp.ge.s32.totalorder %s25, 4
    %s35 = sphi 0, %s37
    %s38 = sphi 0, %s35
    %s39 = sphi 0, %s38
    %s55 = sphi 0, %s39
    %s59 = sphi 0, %s59
    %s61 = sphi 0, %s59
    %s62 = sphi 0, %s61
    %s76 = sphi 0, %s62
    %s80 = sphi 0, %s80
    %s82 = sphi 0, %s80
    %s83 = sphi 0, %s82
    %s97 = sphi 0, %s83
    %s101 = sphi 0, %s101
    %s103 = sphi 0, %s101
    %s104 = sphi 0, %s103
    %s118 = sphi 0, %s104
    %s122 = sphi 0, %s122
    %s124 = sphi 0, %s122
    %s125 = sphi 0, %s124
    %s139 = sphi 0, %s125
    %s143 = sphi 0, %s143
    %s145 = sphi 0, %s143
    %s146 = sphi 0, %s145
    %s160 = sphi 0, %s146
    %s164 = sphi 0, %s164
    %s166 = sphi 0, %s164
    %s167 = sphi 0, %s166
    %s181 = sphi 0, %s167
    %s185 = sphi 0, %s185
    %s187 = sphi 0, %s185
    %s188 = sphi 0, %s187
    %s202 = sphi 0, %s188
    %s206 = sphi 0, %s206
    %s208 = sphi 0, %s206
    %s209 = sphi 0, %s208
    %s223 = sphi 0, %s209
    %s227 = sphi 0, %s227
    %s229 = sphi 0, %s227
    %s230 = sphi 0, %s229
    %s244 = sphi 0, %s230
    %s248 = sphi 0, %s248
    %s250 = sphi 0, %s248
    %s251 = sphi 0, %s250
    %s265 = sphi 0, %s251
    %s269 = sphi 0, %s269
    %s271 = sphi 0, %s269
    %s272 = sphi 0, %s271
    %s286 = sphi 0, %s272
    %s290 = sphi 0, %s290
    %s292 = sphi 0, %s290
    %s293 = sphi 0, %s292
    %s307 = sphi 0, %s293
    %s313 = sphi 0, %s315
    %s316 = sphi 0, %s313
    %s317 = sphi 0, %s316
    %s333 = sphi 0, %s317
    %s337 = sphi 0, %s337
    %s339 = sphi 0, %s337
    %s340 = sphi 0, %s339
    %s354 = sphi 0, %s340
    %s358 = sphi 0, %s358
    %s360 = sphi 0, %s358
    %s361 = sphi 0, %s360
    %s375 = sphi 0, %s361
    %s379 = sphi 0, %s379
    %s381 = sphi 0, %s379
    %s382 = sphi 0, %s381
    %s396 = sphi 0, %s382
    %s402 = sphi 0, %s404
    %s405 = sphi 0, %s402
    %s406 = sphi 0, %s405
    %s422 = sphi 0, %s406
  $region4: #{_lambda_.7} parent=0 // loop_header_branch
    %28 = sbr.rel (%p26) target = $region8
  $region5: #{_lambda_.7} parent=0 // loop_body
    %s30 = ssub.s32 %s25, 1
    %s31 = ssub.s32 %s25, 2
    %s32 = sadd.s32 %s25, 1
    %s33 = ssub.s32 %s25, %s32
    %p34 = scmp.eq.s32.totalorder %s33, 0
    %s36 = sadd.s32 %s35, 1
    %s37 = scalar_select %p34, %s35, %s36
    %p40 = pneg %p34
    %p41 = scmp.eq.s32.totalorder %s25, 1
    %p42 = por %p40, %p41
    %p43 = scmp.ne.s32.totalorder %s35, %s38
    %p44 = scmp.eq.s32.totalorder %s25, 0
    %p45 = por %p43, %p44
    %p46 = scmp.ne.s32.totalorder %s35, %s38
    %p47 = scmp.eq.s32.totalorder %s30, 1
    %p48 = por %p46, %p47
    %p49 = scmp.ne.s32.totalorder %s38, %s39
    %p50 = scmp.eq.s32.totalorder %s30, 0
    %p51 = por %p49, %p50
    %p52 = scmp.ne.s32.totalorder %s38, %s39
    %p53 = scmp.eq.s32.totalorder %s31, 1
    %p54 = por %p52, %p53
    %p56 = scmp.ne.s32.totalorder %s39, %s55
    %p57 = scmp.eq.s32.totalorder %s31, 0
    %p58 = por %p56, %p57
    %s60 = sadd.s32 %s59, 1
    %p63 = scmp.eq.s32.totalorder %s25, 1
    %p64 = scmp.ne.s32.totalorder %s59, %s61
    %p65 = scmp.eq.s32.totalorder %s25, 0
    %p66 = por %p64, %p65
    %p67 = scmp.ne.s32.totalorder %s59, %s61
    %p68 = scmp.eq.s32.totalorder %s30, 1
    %p69 = por %p67, %p68
    %p70 = scmp.ne.s32.totalorder %s61, %s62
    %p71 = scmp.eq.s32.totalorder %s30, 0
    %p72 = por %p70, %p71
    %p73 = scmp.ne.s32.totalorder %s61, %s62
    %p74 = scmp.eq.s32.totalorder %s31, 1
    %p75 = por %p73, %p74
    %p77 = scmp.ne.s32.totalorder %s62, %s76
    %p78 = scmp.eq.s32.totalorder %s31, 0
    %p79 = por %p77, %p78
    %s81 = sadd.s32 %s80, 1
    %p84 = scmp.eq.s32.totalorder %s25, 1
    %p85 = scmp.ne.s32.totalorder %s80, %s82
    %p86 = scmp.eq.s32.totalorder %s25, 0
    %p87 = por %p85, %p86
    %p88 = scmp.ne.s32.totalorder %s80, %s82
    %p89 = scmp.eq.s32.totalorder %s30, 1
    %p90 = por %p88, %p89
    %p91 = scmp.ne.s32.totalorder %s82, %s83
    %p92 = scmp.eq.s32.totalorder %s30, 0
    %p93 = por %p91, %p92
    %p94 = scmp.ne.s32.totalorder %s82, %s83
    %p95 = scmp.eq.s32.totalorder %s31, 1
    %p96 = por %p94, %p95
    %p98 = scmp.ne.s32.totalorder %s83, %s97
    %p99 = scmp.eq.s32.totalorder %s31, 0
    %p100 = por %p98, %p99
    %s102 = sadd.s32 %s101, 1
    %p105 = scmp.eq.s32.totalorder %s25, 1
    %p106 = scmp.ne.s32.totalorder %s101, %s103
    %p107 = scmp.eq.s32.totalorder %s25, 0
    %p108 = por %p106, %p107
    %p109 = scmp.ne.s32.totalorder %s101, %s103
    %p110 = scmp.eq.s32.totalorder %s30, 1
    %p111 = por %p109, %p110
    %p112 = scmp.ne.s32.totalorder %s103, %s104
    %p113 = scmp.eq.s32.totalorder %s30, 0
    %p114 = por %p112, %p113
    %p115 = scmp.ne.s32.totalorder %s103, %s104
    %p116 = scmp.eq.s32.totalorder %s31, 1
    %p117 = por %p115, %p116
    %p119 = scmp.ne.s32.totalorder %s104, %s118
    %p120 = scmp.eq.s32.totalorder %s31, 0
    %p121 = por %p119, %p120
    %s123 = sadd.s32 %s122, 1
    %p126 = scmp.eq.s32.totalorder %s25, 1
    %p127 = scmp.ne.s32.totalorder %s122, %s124
    %p128 = scmp.eq.s32.totalorder %s25, 0
    %p129 = por %p127, %p128
    %p130 = scmp.ne.s32.totalorder %s122, %s124
    %p131 = scmp.eq.s32.totalorder %s30, 1
    %p132 = por %p130, %p131
    %p133 = scmp.ne.s32.totalorder %s124, %s125
    %p134 = scmp.eq.s32.totalorder %s30, 0
    %p135 = por %p133, %p134
    %p136 = scmp.ne.s32.totalorder %s124, %s125
    %p137 = scmp.eq.s32.totalorder %s31, 1
    %p138 = por %p136, %p137
    %p140 = scmp.ne.s32.totalorder %s125, %s139
    %p141 = scmp.eq.s32.totalorder %s31, 0
    %p142 = por %p140, %p141
    %s144 = sadd.s32 %s143, 1
    %p147 = scmp.eq.s32.totalorder %s25, 1
    %p148 = scmp.ne.s32.totalorder %s143, %s145
    %p149 = scmp.eq.s32.totalorder %s25, 0
    %p150 = por %p148, %p149
    %p151 = scmp.ne.s32.totalorder %s143, %s145
    %p152 = scmp.eq.s32.totalorder %s30, 1
    %p153 = por %p151, %p152
    %p154 = scmp.ne.s32.totalorder %s145, %s146
    %p155 = scmp.eq.s32.totalorder %s30, 0
    %p156 = por %p154, %p155
    %p157 = scmp.ne.s32.totalorder %s145, %s146
    %p158 = scmp.eq.s32.totalorder %s31, 1
    %p159 = por %p157, %p158
    %p161 = scmp.ne.s32.totalorder %s146, %s160
    %p162 = scmp.eq.s32.totalorder %s31, 0
    %p163 = por %p161, %p162
    %s165 = sadd.s32 %s164, 1
    %p168 = scmp.eq.s32.totalorder %s25, 1
    %p169 = scmp.ne.s32.totalorder %s164, %s166
    %p170 = scmp.eq.s32.totalorder %s25, 0
    %p171 = por %p169, %p170
    %p172 = scmp.ne.s32.totalorder %s164, %s166
    %p173 = scmp.eq.s32.totalorder %s30, 1
    %p174 = por %p172, %p173
    %p175 = scmp.ne.s32.totalorder %s166, %s167
    %p176 = scmp.eq.s32.totalorder %s30, 0
    %p177 = por %p175, %p176
    %p178 = scmp.ne.s32.totalorder %s166, %s167
    %p179 = scmp.eq.s32.totalorder %s31, 1
    %p180 = por %p178, %p179
    %p182 = scmp.ne.s32.totalorder %s167, %s181
    %p183 = scmp.eq.s32.totalorder %s31, 0
    %p184 = por %p182, %p183
    %s186 = sadd.s32 %s185, 1
    %p189 = scmp.eq.s32.totalorder %s25, 1
    %p190 = scmp.ne.s32.totalorder %s185, %s187
    %p191 = scmp.eq.s32.totalorder %s25, 0
    %p192 = por %p190, %p191
    %p193 = scmp.ne.s32.totalorder %s185, %s187
    %p194 = scmp.eq.s32.totalorder %s30, 1
    %p195 = por %p193, %p194
    %p196 = scmp.ne.s32.totalorder %s187, %s188
    %p197 = scmp.eq.s32.totalorder %s30, 0
    %p198 = por %p196, %p197
    %p199 = scmp.ne.s32.totalorder %s187, %s188
    %p200 = scmp.eq.s32.totalorder %s31, 1
    %p201 = por %p199, %p200
    %p203 = scmp.ne.s32.totalorder %s188, %s202
    %p204 = scmp.eq.s32.totalorder %s31, 0
    %p205 = por %p203, %p204
    %s207 = sadd.s32 %s206, 1
    %p210 = scmp.eq.s32.totalorder %s25, 1
    %p211 = scmp.ne.s32.totalorder %s206, %s208
    %p212 = scmp.eq.s32.totalorder %s25, 0
    %p213 = por %p211, %p212
    %p214 = scmp.ne.s32.totalorder %s206, %s208
    %p215 = scmp.eq.s32.totalorder %s30, 1
    %p216 = por %p214, %p215
    %p217 = scmp.ne.s32.totalorder %s208, %s209
    %p218 = scmp.eq.s32.totalorder %s30, 0
    %p219 = por %p217, %p218
    %p220 = scmp.ne.s32.totalorder %s208, %s209
    %p221 = scmp.eq.s32.totalorder %s31, 1
    %p222 = por %p220, %p221
    %p224 = scmp.ne.s32.totalorder %s209, %s223
    %p225 = scmp.eq.s32.totalorder %s31, 0
    %p226 = por %p224, %p225
    %s228 = sadd.s32 %s227, 1
    %p231 = scmp.eq.s32.totalorder %s25, 1
    %p232 = scmp.ne.s32.totalorder %s227, %s229
    %p233 = scmp.eq.s32.totalorder %s25, 0
    %p234 = por %p232, %p233
    %p235 = scmp.ne.s32.totalorder %s227, %s229
    %p236 = scmp.eq.s32.totalorder %s30, 1
    %p237 = por %p235, %p236
    %p238 = scmp.ne.s32.totalorder %s229, %s230
    %p239 = scmp.eq.s32.totalorder %s30, 0
    %p240 = por %p238, %p239
    %p241 = scmp.ne.s32.totalorder %s229, %s230
    %p242 = scmp.eq.s32.totalorder %s31, 1
    %p243 = por %p241, %p242
    %p245 = scmp.ne.s32.totalorder %s230, %s244
    %p246 = scmp.eq.s32.totalorder %s31, 0
    %p247 = por %p245, %p246
    %s249 = sadd.s32 %s248, 1
    %p252 = scmp.eq.s32.totalorder %s25, 1
    %p253 = scmp.ne.s32.totalorder %s248, %s250
    %p254 = scmp.eq.s32.totalorder %s25, 0
    %p255 = por %p253, %p254
    %p256 = scmp.ne.s32.totalorder %s248, %s250
    %p257 = scmp.eq.s32.totalorder %s30, 1
    %p258 = por %p256, %p257
    %p259 = scmp.ne.s32.totalorder %s250, %s251
    %p260 = scmp.eq.s32.totalorder %s30, 0
    %p261 = por %p259, %p260
    %p262 = scmp.ne.s32.totalorder %s250, %s251
    %p263 = scmp.eq.s32.totalorder %s31, 1
    %p264 = por %p262, %p263
    %p266 = scmp.ne.s32.totalorder %s251, %s265
    %p267 = scmp.eq.s32.totalorder %s31, 0
    %p268 = por %p266, %p267
    %s270 = sadd.s32 %s269, 1
    %p273 = scmp.eq.s32.totalorder %s25, 1
    %p274 = scmp.ne.s32.totalorder %s269, %s271
    %p275 = scmp.eq.s32.totalorder %s25, 0
    %p276 = por %p274, %p275
    %p277 = scmp.ne.s32.totalorder %s269, %s271
    %p278 = scmp.eq.s32.totalorder %s30, 1
    %p279 = por %p277, %p278
    %p280 = scmp.ne.s32.totalorder %s271, %s272
    %p281 = scmp.eq.s32.totalorder %s30, 0
    %p282 = por %p280, %p281
    %p283 = scmp.ne.s32.totalorder %s271, %s272
    %p284 = scmp.eq.s32.totalorder %s31, 1
    %p285 = por %p283, %p284
    %p287 = scmp.ne.s32.totalorder %s272, %s286
    %p288 = scmp.eq.s32.totalorder %s31, 0
    %p289 = por %p287, %p288
    %s291 = sadd.s32 %s290, 1
    %p294 = scmp.eq.s32.totalorder %s25, 1
    %p295 = scmp.ne.s32.totalorder %s290, %s292
    %p296 = scmp.eq.s32.totalorder %s25, 0
    %p297 = por %p295, %p296
    %p298 = scmp.ne.s32.totalorder %s290, %s292
    %p299 = scmp.eq.s32.totalorder %s30, 1
    %p300 = por %p298, %p299
    %p301 = scmp.ne.s32.totalorder %s292, %s293
    %p302 = scmp.eq.s32.totalorder %s30, 0
    %p303 = por %p301, %p302
    %p304 = scmp.ne.s32.totalorder %s292, %s293
    %p305 = scmp.eq.s32.totalorder %s31, 1
    %p306 = por %p304, %p305
    %p308 = scmp.ne.s32.totalorder %s293, %s307
    %p309 = scmp.eq.s32.totalorder %s31, 0
    %p310 = por %p308, %p309
    %s311 = ssub.s32 %s25, %s32
    %p312 = scmp.eq.s32.totalorder %s311, 0
    %s314 = sadd.s32 %s313, 1
    %s315 = scalar_select %p312, %s313, %s314
    %p318 = pneg %p312
    %p319 = scmp.eq.s32.totalorder %s25, 1
    %p320 = por %p318, %p319
    %p321 = scmp.ne.s32.totalorder %s313, %s316
    %p322 = scmp.eq.s32.totalorder %s25, 0
    %p323 = por %p321, %p322
    %p324 = scmp.ne.s32.totalorder %s313, %s316
    %p325 = scmp.eq.s32.totalorder %s30, 1
    %p326 = por %p324, %p325
    %p327 = scmp.ne.s32.totalorder %s316, %s317
    %p328 = scmp.eq.s32.totalorder %s30, 0
    %p329 = por %p327, %p328
    %p330 = scmp.ne.s32.totalorder %s316, %s317
    %p331 = scmp.eq.s32.totalorder %s31, 1
    %p332 = por %p330, %p331
    %p334 = scmp.ne.s32.totalorder %s317, %s333
    %p335 = scmp.eq.s32.totalorder %s31, 0
    %p336 = por %p334, %p335
    %s338 = sadd.s32 %s337, 1
    %p341 = scmp.eq.s32.totalorder %s25, 1
    %p342 = scmp.ne.s32.totalorder %s337, %s339
    %p343 = scmp.eq.s32.totalorder %s25, 0
    %p344 = por %p342, %p343
    %p345 = scmp.ne.s32.totalorder %s337, %s339
    %p346 = scmp.eq.s32.totalorder %s30, 1
    %p347 = por %p345, %p346
    %p348 = scmp.ne.s32.totalorder %s339, %s340
    %p349 = scmp.eq.s32.totalorder %s30, 0
    %p350 = por %p348, %p349
    %p351 = scmp.ne.s32.totalorder %s339, %s340
    %p352 = scmp.eq.s32.totalorder %s31, 1
    %p353 = por %p351, %p352
    %p355 = scmp.ne.s32.totalorder %s340, %s354
    %p356 = scmp.eq.s32.totalorder %s31, 0
    %p357 = por %p355, %p356
    %s359 = sadd.s32 %s358, 1
    %p362 = scmp.eq.s32.totalorder %s25, 1
    %p363 = scmp.ne.s32.totalorder %s358, %s360
    %p364 = scmp.eq.s32.totalorder %s25, 0
    %p365 = por %p363, %p364
    %p366 = scmp.ne.s32.totalorder %s358, %s360
    %p367 = scmp.eq.s32.totalorder %s30, 1
    %p368 = por %p366, %p367
    %p369 = scmp.ne.s32.totalorder %s360, %s361
    %p370 = scmp.eq.s32.totalorder %s30, 0
    %p371 = por %p369, %p370
    %p372 = scmp.ne.s32.totalorder %s360, %s361
    %p373 = scmp.eq.s32.totalorder %s31, 1
    %p374 = por %p372, %p373
    %p376 = scmp.ne.s32.totalorder %s361, %s375
    %p377 = scmp.eq.s32.totalorder %s31, 0
    %p378 = por %p376, %p377
    %s380 = sadd.s32 %s379, 1
    %p383 = scmp.eq.s32.totalorder %s25, 1
    %p384 = scmp.ne.s32.totalorder %s379, %s381
    %p385 = scmp.eq.s32.totalorder %s25, 0
    %p386 = por %p384, %p385
    %p387 = scmp.ne.s32.totalorder %s379, %s381
    %p388 = scmp.eq.s32.totalorder %s30, 1
    %p389 = por %p387, %p388
    %p390 = scmp.ne.s32.totalorder %s381, %s382
    %p391 = scmp.eq.s32.totalorder %s30, 0
    %p392 = por %p390, %p391
    %p393 = scmp.ne.s32.totalorder %s381, %s382
    %p394 = scmp.eq.s32.totalorder %s31, 1
    %p395 = por %p393, %p394
    %p397 = scmp.ne.s32.totalorder %s382, %s396
    %p398 = scmp.eq.s32.totalorder %s31, 0
    %p399 = por %p397, %p398
    %s400 = ssub.s32 %s25, %s32
    %p401 = scmp.eq.s32.totalorder %s400, 0
    %s403 = sadd.s32 %s402, 1
    %s404 = scalar_select %p401, %s402, %s403
    %p407 = pneg %p401
    %p408 = scmp.eq.s32.totalorder %s25, 1
    %p409 = por %p407, %p408
    %p410 = scmp.ne.s32.totalorder %s402, %s405
    %p411 = scmp.eq.s32.totalorder %s25, 0
    %p412 = por %p410, %p411
    %p413 = scmp.ne.s32.totalorder %s402, %s405
    %p414 = scmp.eq.s32.totalorder %s30, 1
    %p415 = por %p413, %p414
    %p416 = scmp.ne.s32.totalorder %s405, %s406
    %p417 = scmp.eq.s32.totalorder %s30, 0
    %p418 = por %p416, %p417
    %p419 = scmp.ne.s32.totalorder %s405, %s406
    %p420 = scmp.eq.s32.totalorder %s31, 1
    %p421 = por %p419, %p420
    %p423 = scmp.ne.s32.totalorder %s406, %s422
    %p424 = scmp.eq.s32.totalorder %s31, 0
    %p425 = por %p423, %p424
    %p426 = scmp.le.s32.totalorder 1, %s25
    %p427 = scmp.lt.s32.totalorder %s25, 3
    %p428 = pnand %p426, %p427
    %p429 = pneg %p428
    // Predicated region
    $region9: #{_lambda_.7} parent=5 // pred_check
      _
    $region10: #{_lambda_.7} parent=5 // pred_check_branch
      %431 = sbr.rel (%p428) target = $region12
    $region11: #{_lambda_.7} parent=5 // pred_region
      %s432 = ssub.s32 %s25, 1
      // Predicated region
      $region13: #{_lambda_.7} parent=11 // pred_check
        %p433 = pneg %p72
      $region14: #{_lambda_.7} parent=11 // pred_check_branch
        %435 = sbr.rel (%p433) target = $region16
      $region15: #{_lambda_.7} parent=11 // pred_region
        _
      $region16: #{_lambda_.7} parent=11 // pred_fallthru
        _
      // Predicated region
      $region17: #{_lambda_.7} parent=11 // pred_check
        %p436 = pneg %p93
      $region18: #{_lambda_.7} parent=11 // pred_check_branch
        %438 = sbr.rel (%p436) target = $region20
      $region19: #{_lambda_.7} parent=11 // pred_region
        _
      $region20: #{_lambda_.7} parent=11 // pred_fallthru
        _
      // Predicated region
      $region21: #{_lambda_.7} parent=11 // pred_check
        %p439 = pneg %p114
      $region22: #{_lambda_.7} parent=11 // pred_check_branch
        %441 = sbr.rel (%p439) target = $region24
      $region23: #{_lambda_.7} parent=11 // pred_region
        _
      $region24: #{_lambda_.7} parent=11 // pred_fallthru
        _
      // Predicated region
      $region25: #{_lambda_.7} parent=11 // pred_check
        %p442 = pneg %p135
      $region26: #{_lambda_.7} parent=11 // pred_check_branch
        %444 = sbr.rel (%p442) target = $region28
      $region27: #{_lambda_.7} parent=11 // pred_region
        _
      $region28: #{_lambda_.7} parent=11 // pred_fallthru
        _
      // Predicated region
      $region29: #{_lambda_.7} parent=11 // pred_check
        %p445 = pneg %p156
      $region30: #{_lambda_.7} parent=11 // pred_check_branch
        %447 = sbr.rel (%p445) target = $region32
      $region31: #{_lambda_.7} parent=11 // pred_region
        _
      $region32: #{_lambda_.7} parent=11 // pred_fallthru
        _
      // Predicated region
      $region33: #{_lambda_.7} parent=11 // pred_check
        %p448 = pneg %p177
      $region34: #{_lambda_.7} parent=11 // pred_check_branch
        %450 = sbr.rel (%p448) target = $region36
      $region35: #{_lambda_.7} parent=11 // pred_region
        _
      $region36: #{_lambda_.7} parent=11 // pred_fallthru
        _
      // Predicated region
      $region37: #{_lambda_.7} parent=11 // pred_check
        %p451 = pneg %p198
      $region38: #{_lambda_.7} parent=11 // pred_check_branch
        %453 = sbr.rel (%p451) target = $region40
      $region39: #{_lambda_.7} parent=11 // pred_region
        _
      $region40: #{_lambda_.7} parent=11 // pred_fallthru
        _
      // Predicated region
      $region41: #{_lambda_.7} parent=11 // pred_check
        %p454 = pneg %p219
      $region42: #{_lambda_.7} parent=11 // pred_check_branch
        %456 = sbr.rel (%p454) target = $region44
      $region43: #{_lambda_.7} parent=11 // pred_region
        _
      $region44: #{_lambda_.7} parent=11 // pred_fallthru
        _
      // Predicated region
      $region45: #{_lambda_.7} parent=11 // pred_check
        %p457 = pneg %p240
      $region46: #{_lambda_.7} parent=11 // pred_check_branch
        %459 = sbr.rel (%p457) target = $region48
      $region47: #{_lambda_.7} parent=11 // pred_region
        _
      $region48: #{_lambda_.7} parent=11 // pred_fallthru
        _
      // Predicated region
      $region49: #{_lambda_.7} parent=11 // pred_check
        %p460 = pneg %p261
      $region50: #{_lambda_.7} parent=11 // pred_check_branch
        %462 = sbr.rel (%p460) target = $region52
      $region51: #{_lambda_.7} parent=11 // pred_region
        _
      $region52: #{_lambda_.7} parent=11 // pred_fallthru
        _
      // Predicated region
      $region53: #{_lambda_.7} parent=11 // pred_check
        %p463 = pneg %p282
      $region54: #{_lambda_.7} parent=11 // pred_check_branch
        %465 = sbr.rel (%p463) target = $region56
      $region55: #{_lambda_.7} parent=11 // pred_region
        _
      $region56: #{_lambda_.7} parent=11 // pred_fallthru
        _
      // Predicated region
      $region57: #{_lambda_.7} parent=11 // pred_check
        %p466 = pneg %p303
      $region58: #{_lambda_.7} parent=11 // pred_check_branch
        %468 = sbr.rel (%p466) target = $region60
      $region59: #{_lambda_.7} parent=11 // pred_region
        _
      $region60: #{_lambda_.7} parent=11 // pred_fallthru
        _
      // Predicated region
      $region61: #{_lambda_.7} parent=11 // pred_check
        %p469 = pneg %p350
      $region62: #{_lambda_.7} parent=11 // pred_check_branch
        %471 = sbr.rel (%p469) target = $region64
      $region63: #{_lambda_.7} parent=11 // pred_region
        _
      $region64: #{_lambda_.7} parent=11 // pred_fallthru
        _
      // Predicated region
      $region65: #{_lambda_.7} parent=11 // pred_check
        %p472 = pneg %p371
      $region66: #{_lambda_.7} parent=11 // pred_check_branch
        %474 = sbr.rel (%p472) target = $region68
      $region67: #{_lambda_.7} parent=11 // pred_region
        _
      $region68: #{_lambda_.7} parent=11 // pred_fallthru
        _
      // Predicated region
      $region69: #{_lambda_.7} parent=11 // pred_check
        %p475 = pneg %p392
      $region70: #{_lambda_.7} parent=11 // pred_check_branch
        %477 = sbr.rel (%p475) target = $region72
      $region71: #{_lambda_.7} parent=11 // pred_region
        _
      $region72: #{_lambda_.7} parent=11 // pred_fallthru
        _
    $region12: #{_lambda_.7} parent=5 // pred_fallthru
      _
    %p478 = scmp.lt.s32.totalorder %s25, 2
    // Predicated region
    $region73: #{_lambda_.7} parent=5 // pred_check
      %p479 = pneg %p478
    $region74: #{_lambda_.7} parent=5 // pred_check_branch
      %481 = sbr.rel (%p479) target = $region76
    $region75: #{_lambda_.7} parent=5 // pred_region
      // Predicated region
      $region77: #{_lambda_.7} parent=75 // pred_check
        %p482 = pneg %p45
      $region78: #{_lambda_.7} parent=75 // pred_check_branch
        %484 = sbr.rel (%p482) target = $region80
      $region79: #{_lambda_.7} parent=75 // pred_region
        %p485 = scmp.lt.s32.totalorder %s25, 1
        %s486 = scalar_select %p485, %s25, 1
        %s487 = smul.addr %s486, 5
        %s488 = smul.addr %s487, 8
        %s489 = scalar_lea.vmem %s0, %s488
      $region80: #{_lambda_.7} parent=75 // pred_fallthru
        _
      // Predicated region
      $region81: #{_lambda_.7} parent=75 // pred_check
        %p490 = pneg %p323
      $region82: #{_lambda_.7} parent=75 // pred_check_branch
        %492 = sbr.rel (%p490) target = $region84
      $region83: #{_lambda_.7} parent=75 // pred_region
        %p493 = scmp.lt.s32.totalorder %s25, 1
        %s494 = scalar_select %p493, %s25, 1
        %s495 = smul.addr %s494, 4
        %s496 = scalar_lea.vmem %s13, %s495
      $region84: #{_lambda_.7} parent=75 // pred_fallthru
        _
    $region76: #{_lambda_.7} parent=5 // pred_fallthru
      _
    %p497 = scmp.le.s32.totalorder 1, %s25
    %p498 = scmp.lt.s32.totalorder %s25, 3
    %p499 = pnand %p497, %p498
    %p500 = pneg %p499
    // Predicated region
    $region85: #{_lambda_.7} parent=5 // pred_check
      _
    $region86: #{_lambda_.7} parent=5 // pred_check_branch
      %502 = sbr.rel (%p499) target = $region88
    $region87: #{_lambda_.7} parent=5 // pred_region
      %s503 = ssub.s32 %s25, 1
      %p504 = scmp.lt.s32.totalorder %s30, 1
      %s505 = scalar_select %p504, %s30, 1
      %s506 = smul.addr %s505, 5
      %s507 = smul.addr %s506, 8
      %s508 = scalar_lea.vmem %s0, %s507
      %p509 = pneg %p51
      %p510 = pneg %p48
      %p511 = pneg %p72
      %p512 = pneg %p69
      %p513 = pneg %p93
      %p514 = pneg %p90
      %p515 = pneg %p114
      %p516 = pneg %p111
      %p517 = pneg %p135
      %p518 = pneg %p132
      %p519 = pneg %p156
      %p520 = pneg %p153
      %p521 = pneg %p177
      %p522 = pneg %p174
      %p523 = pneg %p198
      %p524 = pneg %p195
      %p525 = pneg %p219
      %p526 = pneg %p216
      %p527 = pneg %p240
      %p528 = pneg %p237
      %p529 = pneg %p261
      %p530 = pneg %p258
      %p531 = pneg %p282
      %p532 = pneg %p279
      %p533 = pneg %p303
      %p534 = pneg %p300
      %p535 = scmp.lt.s32.totalorder %s30, 1
      %s536 = scalar_select %p535, %s30, 1
      %s537 = smul.addr %s536, 4
      %s538 = scalar_lea.vmem %s13, %s537
      %p539 = pneg %p329
      %p540 = pneg %p326
      %p541 = pneg %p350
      %p542 = pneg %p347
      %p543 = pneg %p371
      %p544 = pneg %p368
      %p545 = pneg %p392
      %p546 = pneg %p389
      %p547 = pneg %p418
      %p548 = pneg %p415
      %p549 = scmp.lt.s32.totalorder %s30, 1
      %s550 = scalar_select %p549, %s30, 1
      %s551 = smul.addr %s550, 4
      %s552 = smul.addr %s551, 8
      %s553 = scalar_lea.vmem %s17, %s552
      %p554 = scmp.lt.s32.totalorder %s30, 1
      %s555 = scalar_select %p554, %s30, 1
      %s556 = smul.addr %s555, 5
      %s557 = smul.addr %s556, 8
      %s558 = scalar_lea.vmem %s0, %s557
      %p559 = scmp.lt.s32.totalorder %s30, 1
      %s560 = scalar_select %p559, %s30, 1
      %s561 = smul.addr %s560, 4
      %s562 = scalar_lea.vmem %s13, %s561
      %p563 = scmp.lt.s32.totalorder %s30, 1
      %s564 = scalar_select %p563, %s30, 1
      %s565 = smul.addr %s564, 4
      %s566 = smul.addr %s565, 8
      %s567 = scalar_lea.vmem %s17, %s566
      %v569 = vld [vmem:[%s558] sm:$0xff]
      %v570 = vld [vmem:[%s558 + $0x8] sm:$0xff]
      %v571 = vld [vmem:[%s558 + $0x10] sm:$0xff]
      %v572 = vld [vmem:[%s558 + $0x18] sm:$0xff]
      %v573 = vld [vmem:[%s558 + $0x20] sm:$0x7]
      %v574 = vlaneseq
      %v575 = vand.u32 %v574, 127
      %vm576 = vcmp.ge.s32.totalorder %v575, 0
      %vm577 = vcmp.lt.s32.totalorder %v575, 8
      %vm578 = vmand %vm576, %vm577
      %v579 = vsel %vm578, 1, 0
      %v580 = vcvt.s32.f32 %v579
      %vm581 = vcmp.ge.s32.totalorder %v575, 8
      %vm582 = vcmp.lt.s32.totalorder %v575, 16
      %vm583 = vmand %vm581, %vm582
      %v584 = vsel %vm583, 1, 0
      %v585 = vcvt.s32.f32 %v584
      %vm586 = vcmp.ge.s32.totalorder %v575, 16
      %vm587 = vcmp.lt.s32.totalorder %v575, 24
      %vm588 = vmand %vm586, %vm587
      %v589 = vsel %vm588, 1, 0
      %v590 = vcvt.s32.f32 %v589
      %vm591 = vcmp.ge.s32.totalorder %v575, 24
      %vm592 = vcmp.lt.s32.totalorder %v575, 32
      %vm593 = vmand %vm591, %vm592
      %v594 = vsel %vm593, 1, 0
      %v595 = vcvt.s32.f32 %v594
      %v596 = vld [vmem:[%s1] sm:$0xff]
      %v597 = vld [vmem:[%s1 + $0x8] sm:$0xff]
      %v598 = vld [vmem:[%s1 + $0x10] sm:$0xff]
      %v599 = vld [vmem:[%s1 + $0x18] sm:$0xff]
      %v600 = vld [vmem:[%s2] sm:$0x1]
      %v602 = vlaneseq
      %v603 = vshrl.u32 %v602, 7
      %v604 = vsub.s32 0, %v603
      %v605 = vrot.slane %v600, %v604
      %vm607 = vcmask 261120
      %v609 = vsel %vm607, %v569, 0
      %v612 = vsel %vm607, %v570, 0
      %v615 = vsel %vm607, %v571, 0
      %v618 = vsel %vm607, %v572, 0
      %v621 = vsel %vm607, %v573, 0
      %623 = vmatprep.subr.mxu0 0.0
      %624 = vmatpush1.msra.mxu0 %v596
      %625 = vmatprep.subr.mxu0 0.0
      %626 = vmatpush1.msra.mxu0 %v597
      %627 = vmatprep.subr.mxu0 0.0
      %628 = vmatpush1.msra.mxu0 %v598
      %629 = vmatprep.subr.mxu0 0.0
      %630 = vmatpush1.msra.mxu0 %v599
      %631 = vmatprep.subr.mxu0 0.0
      %632 = vmatpush1.msra.mxu0 0.0
      %633 = vmatprep.subr.mxu0 0.0
      %634 = vmatpush1.msra.mxu0 0.0
      %635 = vmatprep.subr.mxu0 0.0
      %636 = vmatpush1.msra.mxu0 0.0
      %637 = vmatprep.subr.mxu0 0.0
      %638 = vmatpush1.msra.mxu0 0.0
      %639 = vmatprep.subr.mxu0 0.0
      %640 = vmatpush1.msra.mxu0 0.0
      %641 = vmatprep.subr.mxu0 0.0
      %642 = vmatpush1.msra.mxu0 0.0
      %643 = vmatprep.subr.mxu0 0.0
      %644 = vmatpush1.msra.mxu0 0.0
      %645 = vmatprep.subr.mxu0 0.0
      %646 = vmatpush1.msra.mxu0 0.0
      %647 = vmatprep.subr.mxu0 0.0
      %648 = vmatpush1.msra.mxu0 0.0
      %649 = vmatprep.subr.mxu0 0.0
      %650 = vmatpush1.msra.mxu0 0.0
      %651 = vmatprep.subr.mxu0 0.0
      %652 = vmatpush1.msra.mxu0 0.0
      %653 = vmatprep.subr.mxu0 0.0
      %654 = vmatpush1.msra.mxu0 0.0
      %655 = vmatprep.subr.mxu0 0.0
      %656 = vmatpush1.msra.mxu0 0.0
      %657 = vmatprep.subr.mxu0 0.0
      %658 = vmatpush1.msra.mxu0 0.0
      %659 = vmatprep.subr.mxu0 0.0
      %660 = vmatpush1.msra.mxu0 0.0
      %661 = vmatprep.subr.mxu0 0.0
      %662 = vmatpush1.msra.mxu0 0.0
      %663 = vmatprep.subr.mxu0 0.0
      %664 = vmatpush1.msra.mxu0 0.0
      %665 = vmatprep.subr.mxu0 0.0
      %666 = vmatpush1.msra.mxu0 0.0
      %667 = vmatprep.subr.mxu0 0.0
      %668 = vmatpush1.msra.mxu0 0.0
      %669 = vmatprep.subr.mxu0 0.0
      %670 = vmatpush1.msra.mxu0 0.0
      %671 = vmatprep.subr.mxu0 0.0
      %672 = vmatpush1.msra.mxu0 0.0
      %673 = vmatprep.subr.mxu0 0.0
      %674 = vmatpush1.msra.mxu0 0.0
      %675 = vmatprep.subr.mxu0 0.0
      %676 = vmatpush1.msra.mxu0 0.0
      %677 = vmatprep.subr.mxu0 0.0
      %678 = vmatpush1.msra.mxu0 0.0
      %679 = vmatprep.subr.mxu0 0.0
      %680 = vmatpush1.msra.mxu0 0.0
      %681 = vmatprep.subr.mxu0 0.0
      %682 = vmatpush1.msra.mxu0 0.0
      %683 = vmatprep.subr.mxu0 0.0
      %684 = vmatpush1.msra.mxu0 0.0
      %685 = vmatprep.subr.mxu0 0.0
      %686 = vmatpush1.msra.mxu0 0.0
      %687 = vmatprep.mubr.f32.mxu0 0.0
      %688 = vmatmul.mubr.f32.gmra.mrb[0].mxu0 %v609
      %v689 = vpop.f32.mrb[0].mxu0
      %v690 = vadd.f32 %v605, %v689
      %v691 = vpop.f32.mrb[0].mxu0
      %692 = vmatprep.mubr.f32.mxu0 0.0
      %693 = vmatmul.mubr.f32.gmra.mrb[0].mxu0 %v612
      %v694 = vpop.f32.mrb[0].mxu0
      %v695 = vadd.f32 %v605, %v694
      %v696 = vpop.f32.mrb[0].mxu0
      %697 = vmatprep.mubr.f32.mxu0 0.0
      %698 = vmatmul.mubr.f32.gmra.mrb[0].mxu0 %v615
      %v699 = vpop.f32.mrb[0].mxu0
      %v700 = vadd.f32 %v605, %v699
      %v701 = vpop.f32.mrb[0].mxu0
      %702 = vmatprep.mubr.f32.mxu0 0.0
      %703 = vmatmul.mubr.f32.gmra.mrb[0].mxu0 %v618
      %v704 = vpop.f32.mrb[0].mxu0
      %v705 = vadd.f32 %v605, %v704
      %v706 = vpop.f32.mrb[0].mxu0
      %707 = vmatprep.mubr.f32.mxu0 0.0
      %708 = vmatmul.mubr.f32.gmra.mrb[0].mxu0 %v621
      %v709 = vpop.f32.mrb[0].mxu0
      %v710 = vadd.f32 %v605, %v709
      %v711 = vpop.f32.mrb[0].mxu0
      %712 = vdwg.mxu0
      %v713 = vmul.f32 %v690, %v580
      %v714 = vmul.f32 %v695, %v580
      %v715 = vmul.f32 %v700, %v580
      %v716 = vmul.f32 %v705, %v580
      %v717 = vmul.f32 %v710, %v580
      %723 = vrot.lane.b32.xlu0 %v690, 96
      %v724 = vpop.permute.xlu0 %723
      %725 = vrot.lane.b32.xlu0 %v695, 96
      %v726 = vpop.permute.xlu0 %725
      %727 = vrot.lane.b32.xlu0 %v700, 96
      %v728 = vpop.permute.xlu0 %727
      %729 = vrot.lane.b32.xlu0 %v705, 96
      %v730 = vpop.permute.xlu0 %729
      %731 = vrot.lane.b32.xlu0 %v710, 96
      %v732 = vpop.permute.xlu0 %731
      %v734 = vsel %vm607, %v713, 0
      %v737 = vsel %vm607, %v714, 0
      %v740 = vsel %vm607, %v715, 0
      %v743 = vsel %vm607, %v716, 0
      %v746 = vsel %vm607, %v717, 0
      %v748 = vsel %vm607, %v724, 0
      %v750 = vsel %vm607, %v726, 0
      %v752 = vsel %vm607, %v728, 0
      %v754 = vsel %vm607, %v730, 0
      %v756 = vsel %vm607, %v732, 0
      %758 = vmatprep.subr.mxu0 0.0
      %759 = vmatpush1.xpose.msra.mxu0 %v748
      %760 = vmatprep.subr.mxu0 0.0
      %761 = vmatpush1.xpose.msra.mxu0 %v750
      %762 = vmatprep.subr.mxu0 0.0
      %763 = vmatpush1.xpose.msra.mxu0 %v752
      %764 = vmatprep.subr.mxu0 0.0
      %765 = vmatpush1.xpose.msra.mxu0 %v754
      %766 = vmatprep.subr.mxu0 0.0
      %767 = vmatpush1.xpose.msra.mxu0 %v756
      %768 = vmatprep.subr.mxu0 0.0
      %769 = vmatpush1.xpose.msra.mxu0 0.0
      %770 = vmatprep.subr.mxu0 0.0
      %771 = vmatpush1.xpose.msra.mxu0 0.0
      %772 = vmatprep.subr.mxu0 0.0
      %773 = vmatpush1.xpose.msra.mxu0 0.0
      %774 = vmatprep.subr.mxu0 0.0
      %775 = vmatpush1.xpose.msra.mxu0 0.0
      %776 = vmatprep.subr.mxu0 0.0
      %777 = vmatpush1.xpose.msra.mxu0 0.0
      %778 = vmatprep.subr.mxu0 0.0
      %779 = vmatpush1.xpose.msra.mxu0 0.0
      %780 = vmatprep.subr.mxu0 0.0
      %781 = vmatpush1.xpose.msra.mxu0 0.0
      %782 = vmatprep.subr.mxu0 0.0
      %783 = vmatpush1.xpose.msra.mxu0 0.0
      %784 = vmatprep.subr.mxu0 0.0
      %785 = vmatpush1.xpose.msra.mxu0 0.0
      %786 = vmatprep.subr.mxu0 0.0
      %787 = vmatpush1.xpose.msra.mxu0 0.0
      %788 = vmatprep.subr.mxu0 0.0
      %789 = vmatpush1.xpose.msra.mxu0 0.0
      %790 = vmatprep.subr.mxu0 0.0
      %791 = vmatpush1.xpose.msra.mxu0 0.0
      %792 = vmatprep.subr.mxu0 0.0
      %793 = vmatpush1.xpose.msra.mxu0 0.0
      %794 = vmatprep.subr.mxu0 0.0
      %795 = vmatpush1.xpose.msra.mxu0 0.0
      %796 = vmatprep.subr.mxu0 0.0
      %797 = vmatpush1.xpose.msra.mxu0 0.0
      %798 = vmatprep.subr.mxu0 0.0
      %799 = vmatpush1.xpose.msra.mxu0 0.0
      %800 = vmatprep.subr.mxu0 0.0
      %801 = vmatpush1.xpose.msra.mxu0 0.0
      %802 = vmatprep.subr.mxu0 0.0
      %803 = vmatpush1.xpose.msra.mxu0 0.0
      %804 = vmatprep.subr.mxu0 0.0
      %805 = vmatpush1.xpose.msra.mxu0 0.0
      %806 = vmatprep.subr.mxu0 0.0
      %807 = vmatpush1.xpose.msra.mxu0 0.0
      %808 = vmatprep.subr.mxu0 0.0
      %809 = vmatpush1.xpose.msra.mxu0 0.0
      %810 = vmatprep.subr.mxu0 0.0
      %811 = vmatpush1.xpose.msra.mxu0 0.0
      %812 = vmatprep.subr.mxu0 0.0
      %813 = vmatpush1.xpose.msra.mxu0 0.0
      %814 = vmatprep.subr.mxu0 0.0
      %815 = vmatpush1.xpose.msra.mxu0 0.0
      %816 = vmatprep.subr.mxu0 0.0
      %817 = vmatpush1.xpose.msra.mxu0 0.0
      %818 = vmatprep.subr.mxu0 0.0
      %819 = vmatpush1.xpose.msra.mxu0 0.0
      %820 = vmatprep.subr.mxu0 0.0
      %821 = vmatpush1.xpose.msra.mxu0 0.0
      %822 = vmatprep.mubr.f32.mxu0 0.0
      %823 = vmatmul.mubr.f32.gmra.mrb[0].mxu0 %v734
      %v824 = vpop.f32.mrb[0].mxu0
      %v825 = vadd.f32 0.0, %v824
      %v826 = vpop.f32.mrb[0].mxu0
      %827 = vmatprep.mubr.f32.mxu0 0.0
      %828 = vmatmul.mubr.f32.gmra.mrb[0].mxu0 %v737
      %v829 = vpop.f32.mrb[0].mxu0
      %v830 = vadd.f32 0.0, %v829
      %v831 = vpop.f32.mrb[0].mxu0
      %832 = vmatprep.mubr.f32.mxu0 0.0
      %833 = vmatmul.mubr.f32.gmra.mrb[0].mxu0 %v740
      %v834 = vpop.f32.mrb[0].mxu0
      %v835 = vadd.f32 0.0, %v834
      %v836 = vpop.f32.mrb[0].mxu0
      %837 = vmatprep.mubr.f32.mxu0 0.0
      %838 = vmatmul.mubr.f32.gmra.mrb[0].mxu0 %v743
      %v839 = vpop.f32.mrb[0].mxu0
      %v840 = vadd.f32 0.0, %v839
      %v841 = vpop.f32.mrb[0].mxu0
      %842 = vmatprep.mubr.f32.mxu0 0.0
      %843 = vmatmul.mubr.f32.gmra.mrb[0].mxu0 %v746
      %v844 = vpop.f32.mrb[0].mxu0
      %v845 = vadd.f32 0.0, %v844
      %v846 = vpop.f32.mrb[0].mxu0
      %847 = vdwg.mxu0
      %v848 = vmul.f32 %v825, 0.35355338
      %v849 = vmul.f32 %v830, 0.35355338
      %v850 = vmul.f32 %v835, 0.35355338
      %v851 = vmul.f32 %v840, 0.35355338
      %v852 = vmul.f32 %v845, 0.35355338
      %vm853 = vcmask 285696
      %v854 = vsel %vm853, %v848, -inf
      %855 = vmax.xlane.f32.xlu0 %v854
      %v856 = vpop.xlane.xlu0 %855
      %v857 = vsel %vm853, %v849, -inf
      %858 = vmax.xlane.f32.xlu0 %v857
      %v859 = vpop.xlane.xlu0 %858
      %v860 = vsel %vm853, %v850, -inf
      %861 = vmax.xlane.f32.xlu0 %v860
      %v862 = vpop.xlane.xlu0 %861
      %v863 = vsel %vm853, %v851, -inf
      %864 = vmax.xlane.f32.xlu0 %v863
      %v865 = vpop.xlane.xlu0 %864
      %vm866 = vcmask 280576
      %v867 = vsel %vm866, %v852, -inf
      %868 = vmax.xlane.f32.xlu0 %v867
      %v869 = vpop.xlane.xlu0 %868
      %v870 = vsub.f32 %v848, %v856
      %v871 = vsub.f32 %v849, %v859
      %v872 = vsub.f32 %v850, %v862
      %v873 = vsub.f32 %v851, %v865
      %v874 = vsub.f32 %v852, %v869
      %v875 = vmul.f32 %v870, 1.442695
      %v876 = vpow.pop %v875
      %v877 = vmul.f32 %v871, 1.442695
      %v878 = vpow.pop %v877
      %v879 = vmul.f32 %v872, 1.442695
      %v880 = vpow.pop %v879
      %v881 = vmul.f32 %v873, 1.442695
      %v882 = vpow.pop %v881
      %v883 = vmul.f32 %v874, 1.442695
      %v884 = vpow.pop %v883
      %v885 = vsel %vm853, %v876, 0.0
      %886 = vadd.xlane.f32.xlu0 %v885
      %v887 = vpop.xlane.xlu0 %886
      %v888 = vsel %vm853, %v878, 0.0
      %889 = vadd.xlane.f32.xlu0 %v888
      %v890 = vpop.xlane.xlu0 %889
      %v891 = vsel %vm853, %v880, 0.0
      %892 = vadd.xlane.f32.xlu0 %v891
      %v893 = vpop.xlane.xlu0 %892
      %v894 = vsel %vm853, %v882, 0.0
      %895 = vadd.xlane.f32.xlu0 %v894
      %v896 = vpop.xlane.xlu0 %895
      %v897 = vsel %vm866, %v884, 0.0
      %898 = vadd.xlane.f32.xlu0 %v897
      %v899 = vpop.xlane.xlu0 %898
      %v900 = vrcp.pop %v887
      %v901 = vmul.f32 %v876, %v900
      %v902 = vrcp.pop %v890
      %v903 = vmul.f32 %v878, %v902
      %v904 = vrcp.pop %v893
      %v905 = vmul.f32 %v880, %v904
      %v906 = vrcp.pop %v896
      %v907 = vmul.f32 %v882, %v906
      %v908 = vrcp.pop %v899
      %v909 = vmul.f32 %v884, %v908
      %911 = vrot.lane.b32.xlu0 %v580, 64
      %v912 = vpop.permute.xlu0 %911
      %v914 = vmul.f32 %v690, %v912
      %v915 = vmul.f32 %v695, %v912
      %v916 = vmul.f32 %v700, %v912
      %v917 = vmul.f32 %v705, %v912
      %v918 = vmul.f32 %v710, %v912
      %v919 = vmul.f32 %v690, %v585
      %v920 = vmul.f32 %v695, %v585
      %v921 = vmul.f32 %v700, %v585
      %v922 = vmul.f32 %v705, %v585
      %v923 = vmul.f32 %v710, %v585
      %v925 = vsel %vm607, %v919, 0
      %v928 = vsel %vm607, %v920, 0
      %v931 = vsel %vm607, %v921, 0
      %v934 = vsel %vm607, %v922, 0
      %v937 = vsel %vm607, %v923, 0
      %939 = vmatprep.subr.mxu0 0.0
      %940 = vmatpush1.xpose.msra.mxu0 %v748
      %941 = vmatprep.subr.mxu0 0.0
      %942 = vmatpush1.xpose.msra.mxu0 %v750
      %943 = vmatprep.subr.mxu0 0.0
      %944 = vmatpush1.xpose.msra.mxu0 %v752
      %945 = vmatprep.subr.mxu0 0.0
      %946 = vmatpush1.xpose.msra.mxu0 %v754
      %947 = vmatprep.subr.mxu0 0.0
      %948 = vmatpush1.xpose.msra.mxu0 %v756
      %949 = vmatprep.subr.mxu0 0.0
      %950 = vmatpush1.xpose.msra.mxu0 0.0
      %951 = vmatprep.subr.mxu0 0.0
      %952 = vmatpush1.xpose.msra.mxu0 0.0
      %953 = vmatprep.subr.mxu0 0.0
      %954 = vmatpush1.xpose.msra.mxu0 0.0
      %955 = vmatprep.subr.mxu0 0.0
      %956 = vmatpush1.xpose.msra.mxu0 0.0
      %957 = vmatprep.subr.mxu0 0.0
      %958 = vmatpush1.xpose.msra.mxu0 0.0
      %959 = vmatprep.subr.mxu0 0.0
      %960 = vmatpush1.xpose.msra.mxu0 0.0
      %961 = vmatprep.subr.mxu0 0.0
      %962 = vmatpush1.xpose.msra.mxu0 0.0
      %963 = vmatprep.subr.mxu0 0.0
      %964 = vmatpush1.xpose.msra.mxu0 0.0
      %965 = vmatprep.subr.mxu0 0.0
      %966 = vmatpush1.xpose.msra.mxu0 0.0
      %967 = vmatprep.subr.mxu0 0.0
      %968 = vmatpush1.xpose.msra.mxu0 0.0
      %969 = vmatprep.subr.mxu0 0.0
      %970 = vmatpush1.xpose.msra.mxu0 0.0
      %971 = vmatprep.subr.mxu0 0.0
      %972 = vmatpush1.xpose.msra.mxu0 0.0
      %973 = vmatprep.subr.mxu0 0.0
      %974 = vmatpush1.xpose.msra.mxu0 0.0
      %975 = vmatprep.subr.mxu0 0.0
      %976 = vmatpush1.xpose.msra.mxu0 0.0
      %977 = vmatprep.subr.mxu0 0.0
      %978 = vmatpush1.xpose.msra.mxu0 0.0
      %979 = vmatprep.subr.mxu0 0.0
      %980 = vmatpush1.xpose.msra.mxu0 0.0
      %981 = vmatprep.subr.mxu0 0.0
      %982 = vmatpush1.xpose.msra.mxu0 0.0
      %983 = vmatprep.subr.mxu0 0.0
      %984 = vmatpush1.xpose.msra.mxu0 0.0
      %985 = vmatprep.subr.mxu0 0.0
      %986 = vmatpush1.xpose.msra.mxu0 0.0
      %987 = vmatprep.subr.mxu0 0.0
      %988 = vmatpush1.xpose.msra.mxu0 0.0
      %989 = vmatprep.subr.mxu0 0.0
      %990 = vmatpush1.xpose.msra.mxu0 0.0
      %991 = vmatprep.subr.mxu0 0.0
      %992 = vmatpush1.xpose.msra.mxu0 0.0
      %993 = vmatprep.subr.mxu0 0.0
      %994 = vmatpush1.xpose.msra.mxu0 0.0
      %995 = vmatprep.subr.mxu0 0.0
      %996 = vmatpush1.xpose.msra.mxu0 0.0
      %997 = vmatprep.subr.mxu0 0.0
      %998 = vmatpush1.xpose.msra.mxu0 0.0
      %999 = vmatprep.subr.mxu0 0.0
      %1000 = vmatpush1.xpose.msra.mxu0 0.0
      %1001 = vmatprep.subr.mxu0 0.0
      %1002 = vmatpush1.xpose.msra.mxu0 0.0
      %1003 = vmatprep.mubr.f32.mxu0 0.0
      %1004 = vmatmul.mubr.f32.gmra.mrb[0].mxu0 %v925
      %v1005 = vpop.f32.mrb[0].mxu0
      %v1006 = vadd.f32 0.0, %v1005
      %v1007 = vpop.f32.mrb[0].mxu0
      %1008 = vmatprep.mubr.f32.mxu0 0.0
      %1009 = vmatmul.mubr.f32.gmra.mrb[0].mxu0 %v928
      %v1010 = vpop.f32.mrb[0].mxu0
      %v1011 = vadd.f32 0.0, %v1010
      %v1012 = vpop.f32.mrb[0].mxu0
      %1013 = vmatprep.mubr.f32.mxu0 0.0
      %1014 = vmatmul.mubr.f32.gmra.mrb[0].mxu0 %v931
      %v1015 = vpop.f32.mrb[0].mxu0
      %v1016 = vadd.f32 0.0, %v1015
      %v1017 = vpop.f32.mrb[0].mxu0
      %1018 = vmatprep.mubr.f32.mxu0 0.0
      %1019 = vmatmul.mubr.f32.gmra.mrb[0].mxu0 %v934
      %v1020 = vpop.f32.mrb[0].mxu0
      %v1021 = vadd.f32 0.0, %v1020
      %v1022 = vpop.f32.mrb[0].mxu0
      %1023 = vmatprep.mubr.f32.mxu0 0.0
      %1024 = vmatmul.mubr.f32.gmra.mrb[0].mxu0 %v937
      %v1025 = vpop.f32.mrb[0].mxu0
      %v1026 = vadd.f32 0.0, %v1025
      %v1027 = vpop.f32.mrb[0].mxu0
      %1028 = vdwg.mxu0
      %v1029 = vmul.f32 %v1006, 0.35355338
      %v1030 = vmul.f32 %v1011, 0.35355338
      %v1031 = vmul.f32 %v1016, 0.35355338
      %v1032 = vmul.f32 %v1021, 0.35355338
      %v1033 = vmul.f32 %v1026, 0.35355338
      %v1034 = vsel %vm853, %v1029, -inf
      %1035 = vmax.xlane.f32.xlu0 %v1034
      %v1036 = vpop.xlane.xlu0 %1035
      %v1037 = vsel %vm853, %v1030, -inf
      %1038 = vmax.xlane.f32.xlu0 %v1037
      %v1039 = vpop.xlane.xlu0 %1038
      %v1040 = vsel %vm853, %v1031, -inf
      %1041 = vmax.xlane.f32.xlu0 %v1040
      %v1042 = vpop.xlane.xlu0 %1041
      %v1043 = vsel %vm853, %v1032, -inf
      %1044 = vmax.xlane.f32.xlu0 %v1043
      %v1045 = vpop.xlane.xlu0 %1044
      %v1046 = vsel %vm866, %v1033, -inf
      %1047 = vmax.xlane.f32.xlu0 %v1046
      %v1048 = vpop.xlane.xlu0 %1047
      %v1049 = vsub.f32 %v1029, %v1036
      %v1050 = vsub.f32 %v1030, %v1039
      %v1051 = vsub.f32 %v1031, %v1042
      %v1052 = vsub.f32 %v1032, %v1045
      %v1053 = vsub.f32 %v1033, %v1048
      %v1054 = vmul.f32 %v1049, 1.442695
      %v1055 = vpow.pop %v1054
      %v1056 = vmul.f32 %v1050, 1.442695
      %v1057 = vpow.pop %v1056
      %v1058 = vmul.f32 %v1051, 1.442695
      %v1059 = vpow.pop %v1058
      %v1060 = vmul.f32 %v1052, 1.442695
      %v1061 = vpow.pop %v1060
      %v1062 = vmul.f32 %v1053, 1.442695
      %v1063 = vpow.pop %v1062
      %v1064 = vsel %vm853, %v1055, 0.0
      %1065 = vadd.xlane.f32.xlu0 %v1064
      %v1066 = vpop.xlane.xlu0 %1065
      %v1067 = vsel %vm853, %v1057, 0.0
      %1068 = vadd.xlane.f32.xlu0 %v1067
      %v1069 = vpop.xlane.xlu0 %1068
      %v1070 = vsel %vm853, %v1059, 0.0
      %1071 = vadd.xlane.f32.xlu0 %v1070
      %v1072 = vpop.xlane.xlu0 %1071
      %v1073 = vsel %vm853, %v1061, 0.0
      %1074 = vadd.xlane.f32.xlu0 %v1073
      %v1075 = vpop.xlane.xlu0 %1074
      %v1076 = vsel %vm866, %v1063, 0.0
      %1077 = vadd.xlane.f32.xlu0 %v1076
      %v1078 = vpop.xlane.xlu0 %1077
      %v1079 = vrcp.pop %v1066
      %v1080 = vmul.f32 %v1055, %v1079
      %v1081 = vrcp.pop %v1069
      %v1082 = vmul.f32 %v1057, %v1081
      %v1083 = vrcp.pop %v1072
      %v1084 = vmul.f32 %v1059, %v1083
      %v1085 = vrcp.pop %v1075
      %v1086 = vmul.f32 %v1061, %v1085
      %v1087 = vrcp.pop %v1078
      %v1088 = vmul.f32 %v1063, %v1087
      %1090 = vrot.lane.b32.xlu0 %v585, 64
      %v1091 = vpop.permute.xlu0 %1090
      %v1093 = vmul.f32 %v690, %v1091
      %v1094 = vmul.f32 %v695, %v1091
      %v1095 = vmul.f32 %v700, %v1091
      %v1096 = vmul.f32 %v705, %v1091
      %v1097 = vmul.f32 %v710, %v1091
      %1103 = vrot.lane.b32.xlu0 %v1093, 64
      %v1104 = vpop.permute.xlu0 %1103
      %1105 = vrot.lane.b32.xlu0 %v1094, 64
      %v1106 = vpop.permute.xlu0 %1105
      %1107 = vrot.lane.b32.xlu0 %v1095, 64
      %v1108 = vpop.permute.xlu0 %1107
      %1109 = vrot.lane.b32.xlu0 %v1096, 64
      %v1110 = vpop.permute.xlu0 %1109
      %1111 = vrot.lane.b32.xlu0 %v1097, 64
      %v1112 = vpop.permute.xlu0 %1111
      %v1118 = vsel %vm853, %v1080, 0
      %v1121 = vsel %vm853, %v1082, 0
      %v1124 = vsel %vm853, %v1084, 0
      %v1127 = vsel %vm853, %v1086, 0
      %v1130 = vsel %vm853, %v1088, 0
      %vm1132 = vcmask 1042432
      %v1133 = vsel %vm1132, %v1112, 0
      %1135 = vmatprep.subr.mxu0 0.0
      %1136 = vmatpush1.msra.mxu0 %v1104
      %1137 = vmatprep.subr.mxu0 0.0
      %1138 = vmatpush1.msra.mxu0 %v1106
      %1139 = vmatprep.subr.mxu0 0.0
      %1140 = vmatpush1.msra.mxu0 %v1108
      %1141 = vmatprep.subr.mxu0 0.0
      %1142 = vmatpush1.msra.mxu0 %v1110
      %1143 = vmatprep.subr.mxu0 0.0
      %1144 = vmatpush1.msra.mxu0 %v1133
      %1145 = vmatprep.subr.mxu0 0.0
      %1146 = vmatpush1.msra.mxu0 0.0
      %1147 = vmatprep.subr.mxu0 0.0
      %1148 = vmatpush1.msra.mxu0 0.0
      %1149 = vmatprep.subr.mxu0 0.0
      %1150 = vmatpush1.msra.mxu0 0.0
      %1151 = vmatprep.subr.mxu0 0.0
      %1152 = vmatpush1.msra.mxu0 0.0
      %1153 = vmatprep.subr.mxu0 0.0
      %1154 = vmatpush1.msra.mxu0 0.0
      %1155 = vmatprep.subr.mxu0 0.0
      %1156 = vmatpush1.msra.mxu0 0.0
      %1157 = vmatprep.subr.mxu0 0.0
      %1158 = vmatpush1.msra.mxu0 0.0
      %1159 = vmatprep.subr.mxu0 0.0
      %1160 = vmatpush1.msra.mxu0 0.0
      %1161 = vmatprep.subr.mxu0 0.0
      %1162 = vmatpush1.msra.mxu0 0.0
      %1163 = vmatprep.subr.mxu0 0.0
      %1164 = vmatpush1.msra.mxu0 0.0
      %1165 = vmatprep.subr.mxu0 0.0
      %1166 = vmatpush1.msra.mxu0 0.0
      %1167 = vmatprep.subr.mxu0 0.0
      %1168 = vmatpush1.msra.mxu0 0.0
      %1169 = vmatprep.subr.mxu0 0.0
      %1170 = vmatpush1.msra.mxu0 0.0
      %1171 = vmatprep.subr.mxu0 0.0
      %1172 = vmatpush1.msra.mxu0 0.0
      %1173 = vmatprep.subr.mxu0 0.0
      %1174 = vmatpush1.msra.mxu0 0.0
      %1175 = vmatprep.subr.mxu0 0.0
      %1176 = vmatpush1.msra.mxu0 0.0
      %1177 = vmatprep.subr.mxu0 0.0
      %1178 = vmatpush1.msra.mxu0 0.0
      %1179 = vmatprep.subr.mxu0 0.0
      %1180 = vmatpush1.msra.mxu0 0.0
      %1181 = vmatprep.subr.mxu0 0.0
      %1182 = vmatpush1.msra.mxu0 0.0
      %1183 = vmatprep.subr.mxu0 0.0
      %1184 = vmatpush1.msra.mxu0 0.0
      %1185 = vmatprep.subr.mxu0 0.0
      %1186 = vmatpush1.msra.mxu0 0.0
      %1187 = vmatprep.subr.mxu0 0.0
      %1188 = vmatpush1.msra.mxu0 0.0
      %1189 = vmatprep.subr.mxu0 0.0
      %1190 = vmatpush1.msra.mxu0 0.0
      %1191 = vmatprep.subr.mxu0 0.0
      %1192 = vmatpush1.msra.mxu0 0.0
      %1193 = vmatprep.subr.mxu0 0.0
      %1194 = vmatpush1.msra.mxu0 0.0
      %1195 = vmatprep.subr.mxu0 0.0
      %1196 = vmatpush1.msra.mxu0 0.0
      %1197 = vmatprep.subr.mxu0 0.0
      %1198 = vmatpush1.msra.mxu0 0.0
      %1199 = vmatprep.mubr.f32.mxu0 0.0
      %1200 = vmatmul.mubr.f32.gmra.mrb[0].mxu0 %v1118
      %v1201 = vpop.f32.mrb[0].mxu0
      %v1202 = vadd.f32 0.0, %v1201
      %v1203 = vpop.f32.mrb[0].mxu0
      %1204 = vmatprep.mubr.f32.mxu0 0.0
      %1205 = vmatmul.mubr.f32.gmra.mrb[0].mxu0 %v1121
      %v1206 = vpop.f32.mrb[0].mxu0
      %v1207 = vadd.f32 0.0, %v1206
      %v1208 = vpop.f32.mrb[0].mxu0
      %1209 = vmatprep.mubr.f32.mxu0 0.0
      %1210 = vmatmul.mubr.f32.gmra.mrb[0].mxu0 %v1124
      %v1211 = vpop.f32.mrb[0].mxu0
      %v1212 = vadd.f32 0.0, %v1211
      %v1213 = vpop.f32.mrb[0].mxu0
      %1214 = vmatprep.mubr.f32.mxu0 0.0
      %1215 = vmatmul.mubr.f32.gmra.mrb[0].mxu0 %v1127
      %v1216 = vpop.f32.mrb[0].mxu0
      %v1217 = vadd.f32 0.0, %v1216
      %v1218 = vpop.f32.mrb[0].mxu0
      %1219 = vmatprep.mubr.f32.mxu0 0.0
      %1220 = vmatmul.mubr.f32.gmra.mrb[0].mxu0 %v1130
      %v1221 = vpop.f32.mrb[0].mxu0
      %v1222 = vadd.f32 0.0, %v1221
      %v1223 = vpop.f32.mrb[0].mxu0
      %1224 = vdwg.mxu0
      %1230 = vrot.lane.b32.xlu0 %v914, 64
      %v1231 = vpop.permute.xlu0 %1230
      %1232 = vrot.lane.b32.xlu0 %v915, 64
      %v1233 = vpop.permute.xlu0 %1232
      %1234 = vrot.lane.b32.xlu0 %v916, 64
      %v1235 = vpop.permute.xlu0 %1234
      %1236 = vrot.lane.b32.xlu0 %v917, 64
      %v1237 = vpop.permute.xlu0 %1236
      %1238 = vrot.lane.b32.xlu0 %v918, 64
      %v1239 = vpop.permute.xlu0 %1238
      %v1245 = vsel %vm853, %v901, 0
      %v1248 = vsel %vm853, %v903, 0
      %v1251 = vsel %vm853, %v905, 0
      %v1254 = vsel %vm853, %v907, 0
      %v1257 = vsel %vm853, %v909, 0
      %v1259 = vsel %vm1132, %v1239, 0
      %1261 = vmatprep.subr.mxu0 0.0
      %1262 = vmatpush1.msra.mxu0 %v1231
      %1263 = vmatprep.subr.mxu0 0.0
      %1264 = vmatpush1.msra.mxu0 %v1233
      %1265 = vmatprep.subr.mxu0 0.0
      %1266 = vmatpush1.msra.mxu0 %v1235
      %1267 = vmatprep.subr.mxu0 0.0
      %1268 = vmatpush1.msra.mxu0 %v1237
      %1269 = vmatprep.subr.mxu0 0.0
      %1270 = vmatpush1.msra.mxu0 %v1259
      %1271 = vmatprep.subr.mxu0 0.0
      %1272 = vmatpush1.msra.mxu0 0.0
      %1273 = vmatprep.subr.mxu0 0.0
      %1274 = vmatpush1.msra.mxu0 0.0
      %1275 = vmatprep.subr.mxu0 0.0
      %1276 = vmatpush1.msra.mxu0 0.0
      %1277 = vmatprep.subr.mxu0 0.0
      %1278 = vmatpush1.msra.mxu0 0.0
      %1279 = vmatprep.subr.mxu0 0.0
      %1280 = vmatpush1.msra.mxu0 0.0
      %1281 = vmatprep.subr.mxu0 0.0
      %1282 = vmatpush1.msra.mxu0 0.0
      %1283 = vmatprep.subr.mxu0 0.0
      %1284 = vmatpush1.msra.mxu0 0.0
      %1285 = vmatprep.subr.mxu0 0.0
      %1286 = vmatpush1.msra.mxu0 0.0
      %1287 = vmatprep.subr.mxu0 0.0
      %1288 = vmatpush1.msra.mxu0 0.0
      %1289 = vmatprep.subr.mxu0 0.0
      %1290 = vmatpush1.msra.mxu0 0.0
      %1291 = vmatprep.subr.mxu0 0.0
      %1292 = vmatpush1.msra.mxu0 0.0
      %1293 = vmatprep.subr.mxu0 0.0
      %1294 = vmatpush1.msra.mxu0 0.0
      %1295 = vmatprep.subr.mxu0 0.0
      %1296 = vmatpush1.msra.mxu0 0.0
      %1297 = vmatprep.subr.mxu0 0.0
      %1298 = vmatpush1.msra.mxu0 0.0
      %1299 = vmatprep.subr.mxu0 0.0
      %1300 = vmatpush1.msra.mxu0 0.0
      %1301 = vmatprep.subr.mxu0 0.0
      %1302 = vmatpush1.msra.mxu0 0.0
      %1303 = vmatprep.subr.mxu0 0.0
      %1304 = vmatpush1.msra.mxu0 0.0
      %1305 = vmatprep.subr.mxu0 0.0
      %1306 = vmatpush1.msra.mxu0 0.0
      %1307 = vmatprep.subr.mxu0 0.0
      %1308 = vmatpush1.msra.mxu0 0.0
      %1309 = vmatprep.subr.mxu0 0.0
      %1310 = vmatpush1.msra.mxu0 0.0
      %1311 = vmatprep.subr.mxu0 0.0
      %1312 = vmatpush1.msra.mxu0 0.0
      %1313 = vmatprep.subr.mxu0 0.0
      %1314 = vmatpush1.msra.mxu0 0.0
      %1315 = vmatprep.subr.mxu0 0.0
      %1316 = vmatpush1.msra.mxu0 0.0
      %1317 = vmatprep.subr.mxu0 0.0
      %1318 = vmatpush1.msra.mxu0 0.0
      %1319 = vmatprep.subr.mxu0 0.0
      %1320 = vmatpush1.msra.mxu0 0.0
      %1321 = vmatprep.subr.mxu0 0.0
      %1322 = vmatpush1.msra.mxu0 0.0
      %1323 = vmatprep.subr.mxu0 0.0
      %1324 = vmatpush1.msra.mxu0 0.0
      %1325 = vmatprep.mubr.f32.mxu0 0.0
      %1326 = vmatmul.mubr.f32.gmra.mrb[0].mxu0 %v1245
      %v1327 = vpop.f32.mrb[0].mxu0
      %v1328 = vadd.f32 %v1202, %v1327
      %v1329 = vpop.f32.mrb[0].mxu0
      %1330 = vmatprep.mubr.f32.mxu0 0.0
      %1331 = vmatmul.mubr.f32.gmra.mrb[0].mxu0 %v1248
      %v1332 = vpop.f32.mrb[0].mxu0
      %v1333 = vadd.f32 %v1207, %v1332
      %v1334 = vpop.f32.mrb[0].mxu0
      %1335 = vmatprep.mubr.f32.mxu0 0.0
      %1336 = vmatmul.mubr.f32.gmra.mrb[0].mxu0 %v1251
      %v1337 = vpop.f32.mrb[0].mxu0
      %v1338 = vadd.f32 %v1212, %v1337
      %v1339 = vpop.f32.mrb[0].mxu0
      %1340 = vmatprep.mubr.f32.mxu0 0.0
      %1341 = vmatmul.mubr.f32.gmra.mrb[0].mxu0 %v1254
      %v1342 = vpop.f32.mrb[0].mxu0
      %v1343 = vadd.f32 %v1217, %v1342
      %v1344 = vpop.f32.mrb[0].mxu0
      %1345 = vmatprep.mubr.f32.mxu0 0.0
      %1346 = vmatmul.mubr.f32.gmra.mrb[0].mxu0 %v1257
      %v1347 = vpop.f32.mrb[0].mxu0
      %v1348 = vadd.f32 %v1222, %v1347
      %v1349 = vpop.f32.mrb[0].mxu0
      %1350 = vdwg.mxu0
      %v1351 = vmul.f32 %v690, %v590
      %v1352 = vmul.f32 %v695, %v590
      %v1353 = vmul.f32 %v700, %v590
      %v1354 = vmul.f32 %v705, %v590
      %v1355 = vmul.f32 %v710, %v590
      %v1357 = vsel %vm607, %v1351, 0
      %v1360 = vsel %vm607, %v1352, 0
      %v1363 = vsel %vm607, %v1353, 0
      %v1366 = vsel %vm607, %v1354, 0
      %v1369 = vsel %vm607, %v1355, 0
      %1371 = vmatprep.subr.mxu0 0.0
      %1372 = vmatpush1.xpose.msra.mxu0 %v748
      %1373 = vmatprep.subr.mxu0 0.0
      %1374 = vmatpush1.xpose.msra.mxu0 %v750
      %1375 = vmatprep.subr.mxu0 0.0
      %1376 = vmatpush1.xpose.msra.mxu0 %v752
      %1377 = vmatprep.subr.mxu0 0.0
      %1378 = vmatpush1.xpose.msra.mxu0 %v754
      %1379 = vmatprep.subr.mxu0 0.0
      %1380 = vmatpush1.xpose.msra.mxu0 %v756
      %1381 = vmatprep.subr.mxu0 0.0
      %1382 = vmatpush1.xpose.msra.mxu0 0.0
      %1383 = vmatprep.subr.mxu0 0.0
      %1384 = vmatpush1.xpose.msra.mxu0 0.0
      %1385 = vmatprep.subr.mxu0 0.0
      %1386 = vmatpush1.xpose.msra.mxu0 0.0
      %1387 = vmatprep.subr.mxu0 0.0
      %1388 = vmatpush1.xpose.msra.mxu0 0.0
      %1389 = vmatprep.subr.mxu0 0.0
      %1390 = vmatpush1.xpose.msra.mxu0 0.0
      %1391 = vmatprep.subr.mxu0 0.0
      %1392 = vmatpush1.xpose.msra.mxu0 0.0
      %1393 = vmatprep.subr.mxu0 0.0
      %1394 = vmatpush1.xpose.msra.mxu0 0.0
      %1395 = vmatprep.subr.mxu0 0.0
      %1396 = vmatpush1.xpose.msra.mxu0 0.0
      %1397 = vmatprep.subr.mxu0 0.0
      %1398 = vmatpush1.xpose.msra.mxu0 0.0
      %1399 = vmatprep.subr.mxu0 0.0
      %1400 = vmatpush1.xpose.msra.mxu0 0.0
      %1401 = vmatprep.subr.mxu0 0.0
      %1402 = vmatpush1.xpose.msra.mxu0 0.0
      %1403 = vmatprep.subr.mxu0 0.0
      %1404 = vmatpush1.xpose.msra.mxu0 0.0
      %1405 = vmatprep.subr.mxu0 0.0
      %1406 = vmatpush1.xpose.msra.mxu0 0.0
      %1407 = vmatprep.subr.mxu0 0.0
      %1408 = vmatpush1.xpose.msra.mxu0 0.0
      %1409 = vmatprep.subr.mxu0 0.0
      %1410 = vmatpush1.xpose.msra.mxu0 0.0
      %1411 = vmatprep.subr.mxu0 0.0
      %1412 = vmatpush1.xpose.msra.mxu0 0.0
      %1413 = vmatprep.subr.mxu0 0.0
      %1414 = vmatpush1.xpose.msra.mxu0 0.0
      %1415 = vmatprep.subr.mxu0 0.0
      %1416 = vmatpush1.xpose.msra.mxu0 0.0
      %1417 = vmatprep.subr.mxu0 0.0
      %1418 = vmatpush1.xpose.msra.mxu0 0.0
      %1419 = vmatprep.subr.mxu0 0.0
      %1420 = vmatpush1.xpose.msra.mxu0 0.0
      %1421 = vmatprep.subr.mxu0 0.0
      %1422 = vmatpush1.xpose.msra.mxu0 0.0
      %1423 = vmatprep.subr.mxu0 0.0
      %1424 = vmatpush1.xpose.msra.mxu0 0.0
      %1425 = vmatprep.subr.mxu0 0.0
      %1426 = vmatpush1.xpose.msra.mxu0 0.0
      %1427 = vmatprep.subr.mxu0 0.0
      %1428 = vmatpush1.xpose.msra.mxu0 0.0
      %1429 = vmatprep.subr.mxu0 0.0
      %1430 = vmatpush1.xpose.msra.mxu0 0.0
      %1431 = vmatprep.subr.mxu0 0.0
      %1432 = vmatpush1.xpose.msra.mxu0 0.0
      %1433 = vmatprep.subr.mxu0 0.0
      %1434 = vmatpush1.xpose.msra.mxu0 0.0
      %1435 = vmatprep.mubr.f32.mxu0 0.0
      %1436 = vmatmul.mubr.f32.gmra.mrb[0].mxu0 %v1357
      %v1437 = vpop.f32.mrb[0].mxu0
      %v1438 = vadd.f32 0.0, %v1437
      %v1439 = vpop.f32.mrb[0].mxu0
      %1440 = vmatprep.mubr.f32.mxu0 0.0
      %1441 = vmatmul.mubr.f32.gmra.mrb[0].mxu0 %v1360
      %v1442 = vpop.f32.mrb[0].mxu0
      %v1443 = vadd.f32 0.0, %v1442
      %v1444 = vpop.f32.mrb[0].mxu0
      %1445 = vmatprep.mubr.f32.mxu0 0.0
      %1446 = vmatmul.mubr.f32.gmra.mrb[0].mxu0 %v1363
      %v1447 = vpop.f32.mrb[0].mxu0
      %v1448 = vadd.f32 0.0, %v1447
      %v1449 = vpop.f32.mrb[0].mxu0
      %1450 = vmatprep.mubr.f32.mxu0 0.0
      %1451 = vmatmul.mubr.f32.gmra.mrb[0].mxu0 %v1366
      %v1452 = vpop.f32.mrb[0].mxu0
      %v1453 = vadd.f32 0.0, %v1452
      %v1454 = vpop.f32.mrb[0].mxu0
      %1455 = vmatprep.mubr.f32.mxu0 0.0
      %1456 = vmatmul.mubr.f32.gmra.mrb[0].mxu0 %v1369
      %v1457 = vpop.f32.mrb[0].mxu0
      %v1458 = vadd.f32 0.0, %v1457
      %v1459 = vpop.f32.mrb[0].mxu0
      %1460 = vdwg.mxu0
      %v1461 = vmul.f32 %v1438, 0.35355338
      %v1462 = vmul.f32 %v1443, 0.35355338
      %v1463 = vmul.f32 %v1448, 0.35355338
      %v1464 = vmul.f32 %v1453, 0.35355338
      %v1465 = vmul.f32 %v1458, 0.35355338
      %v1466 = vsel %vm853, %v1461, -inf
      %1467 = vmax.xlane.f32.xlu0 %v1466
      %v1468 = vpop.xlane.xlu0 %1467
      %v1469 = vsel %vm853, %v1462, -inf
      %1470 = vmax.xlane.f32.xlu0 %v1469
      %v1471 = vpop.xlane.xlu0 %1470
      %v1472 = vsel %vm853, %v1463, -inf
      %1473 = vmax.xlane.f32.xlu0 %v1472
      %v1474 = vpop.xlane.xlu0 %1473
      %v1475 = vsel %vm853, %v1464, -inf
      %1476 = vmax.xlane.f32.xlu0 %v1475
      %v1477 = vpop.xlane.xlu0 %1476
      %v1478 = vsel %vm866, %v1465, -inf
      %1479 = vmax.xlane.f32.xlu0 %v1478
      %v1480 = vpop.xlane.xlu0 %1479
      %v1481 = vsub.f32 %v1461, %v1468
      %v1482 = vsub.f32 %v1462, %v1471
      %v1483 = vsub.f32 %v1463, %v1474
      %v1484 = vsub.f32 %v1464, %v1477
      %v1485 = vsub.f32 %v1465, %v1480
      %v1486 = vmul.f32 %v1481, 1.442695
      %v1487 = vpow.pop %v1486
      %v1488 = vmul.f32 %v1482, 1.442695
      %v1489 = vpow.pop %v1488
      %v1490 = vmul.f32 %v1483, 1.442695
      %v1491 = vpow.pop %v1490
      %v1492 = vmul.f32 %v1484, 1.442695
      %v1493 = vpow.pop %v1492
      %v1494 = vmul.f32 %v1485, 1.442695
      %v1495 = vpow.pop %v1494
      %v1496 = vsel %vm853, %v1487, 0.0
      %1497 = vadd.xlane.f32.xlu0 %v1496
      %v1498 = vpop.xlane.xlu0 %1497
      %v1499 = vsel %vm853, %v1489, 0.0
      %1500 = vadd.xlane.f32.xlu0 %v1499
      %v1501 = vpop.xlane.xlu0 %1500
      %v1502 = vsel %vm853, %v1491, 0.0
      %1503 = vadd.xlane.f32.xlu0 %v1502
      %v1504 = vpop.xlane.xlu0 %1503
      %v1505 = vsel %vm853, %v1493, 0.0
      %1506 = vadd.xlane.f32.xlu0 %v1505
      %v1507 = vpop.xlane.xlu0 %1506
      %v1508 = vsel %vm866, %v1495, 0.0
      %1509 = vadd.xlane.f32.xlu0 %v1508
      %v1510 = vpop.xlane.xlu0 %1509
      %v1511 = vrcp.pop %v1498
      %v1512 = vmul.f32 %v1487, %v1511
      %v1513 = vrcp.pop %v1501
      %v1514 = vmul.f32 %v1489, %v1513
      %v1515 = vrcp.pop %v1504
      %v1516 = vmul.f32 %v1491, %v1515
      %v1517 = vrcp.pop %v1507
      %v1518 = vmul.f32 %v1493, %v1517
      %v1519 = vrcp.pop %v1510
      %v1520 = vmul.f32 %v1495, %v1519
      %1522 = vrot.lane.b32.xlu0 %v590, 64
      %v1523 = vpop.permute.xlu0 %1522
      %v1525 = vmul.f32 %v690, %v1523
      %v1526 = vmul.f32 %v695, %v1523
      %v1527 = vmul.f32 %v700, %v1523
      %v1528 = vmul.f32 %v705, %v1523
      %v1529 = vmul.f32 %v710, %v1523
      %1535 = vrot.lane.b32.xlu0 %v1525, 64
      %v1536 = vpop.permute.xlu0 %1535
      %1537 = vrot.lane.b32.xlu0 %v1526, 64
      %v1538 = vpop.permute.xlu0 %1537
      %1539 = vrot.lane.b32.xlu0 %v1527, 64
      %v1540 = vpop.permute.xlu0 %1539
      %1541 = vrot.lane.b32.xlu0 %v1528, 64
      %v1542 = vpop.permute.xlu0 %1541
      %1543 = vrot.lane.b32.xlu0 %v1529, 64
      %v1544 = vpop.permute.xlu0 %1543
      %v1550 = vsel %vm853, %v1512, 0
      %v1553 = vsel %vm853, %v1514, 0
      %v1556 = vsel %vm853, %v1516, 0
      %v1559 = vsel %vm853, %v1518, 0
      %v1562 = vsel %vm853, %v1520, 0
      %v1564 = vsel %vm1132, %v1544, 0
      %1566 = vmatprep.subr.mxu0 0.0
      %1567 = vmatpush1.msra.mxu0 %v1536
      %1568 = vmatprep.subr.mxu0 0.0
      %1569 = vmatpush1.msra.mxu0 %v1538
      %1570 = vmatprep.subr.mxu0 0.0
      %1571 = vmatpush1.msra.mxu0 %v1540
      %1572 = vmatprep.subr.mxu0 0.0
      %1573 = vmatpush1.msra.mxu0 %v1542
      %1574 = vmatprep.subr.mxu0 0.0
      %1575 = vmatpush1.msra.mxu0 %v1564
      %1576 = vmatprep.subr.mxu0 0.0
      %1577 = vmatpush1.msra.mxu0 0.0
      %1578 = vmatprep.subr.mxu0 0.0
      %1579 = vmatpush1.msra.mxu0 0.0
      %1580 = vmatprep.subr.mxu0 0.0
      %1581 = vmatpush1.msra.mxu0 0.0
      %1582 = vmatprep.subr.mxu0 0.0
      %1583 = vmatpush1.msra.mxu0 0.0
      %1584 = vmatprep.subr.mxu0 0.0
      %1585 = vmatpush1.msra.mxu0 0.0
      %1586 = vmatprep.subr.mxu0 0.0
      %1587 = vmatpush1.msra.mxu0 0.0
      %1588 = vmatprep.subr.mxu0 0.0
      %1589 = vmatpush1.msra.mxu0 0.0
      %1590 = vmatprep.subr.mxu0 0.0
      %1591 = vmatpush1.msra.mxu0 0.0
      %1592 = vmatprep.subr.mxu0 0.0
      %1593 = vmatpush1.msra.mxu0 0.0
      %1594 = vmatprep.subr.mxu0 0.0
      %1595 = vmatpush1.msra.mxu0 0.0
      %1596 = vmatprep.subr.mxu0 0.0
      %1597 = vmatpush1.msra.mxu0 0.0
      %1598 = vmatprep.subr.mxu0 0.0
      %1599 = vmatpush1.msra.mxu0 0.0
      %1600 = vmatprep.subr.mxu0 0.0
      %1601 = vmatpush1.msra.mxu0 0.0
      %1602 = vmatprep.subr.mxu0 0.0
      %1603 = vmatpush1.msra.mxu0 0.0
      %1604 = vmatprep.subr.mxu0 0.0
      %1605 = vmatpush1.msra.mxu0 0.0
      %1606 = vmatprep.subr.mxu0 0.0
      %1607 = vmatpush1.msra.mxu0 0.0
      %1608 = vmatprep.subr.mxu0 0.0
      %1609 = vmatpush1.msra.mxu0 0.0
      %1610 = vmatprep.subr.mxu0 0.0
      %1611 = vmatpush1.msra.mxu0 0.0
      %1612 = vmatprep.subr.mxu0 0.0
      %1613 = vmatpush1.msra.mxu0 0.0
      %1614 = vmatprep.subr.mxu0 0.0
      %1615 = vmatpush1.msra.mxu0 0.0
      %1616 = vmatprep.subr.mxu0 0.0
      %1617 = vmatpush1.msra.mxu0 0.0
      %1618 = vmatprep.subr.mxu0 0.0
      %1619 = vmatpush1.msra.mxu0 0.0
      %1620 = vmatprep.subr.mxu0 0.0
      %1621 = vmatpush1.msra.mxu0 0.0
      %1622 = vmatprep.subr.mxu0 0.0
      %1623 = vmatpush1.msra.mxu0 0.0
      %1624 = vmatprep.subr.mxu0 0.0
      %1625 = vmatpush1.msra.mxu0 0.0
      %1626 = vmatprep.subr.mxu0 0.0
      %1627 = vmatpush1.msra.mxu0 0.0
      %1628 = vmatprep.subr.mxu0 0.0
      %1629 = vmatpush1.msra.mxu0 0.0
      %1630 = vmatprep.mubr.f32.mxu0 0.0
      %1631 = vmatmul.mubr.f32.gmra.mrb[0].mxu0 %v1550
      %v1632 = vpop.f32.mrb[0].mxu0
      %v1633 = vadd.f32 0.0, %v1632
      %v1634 = vpop.f32.mrb[0].mxu0
      %1635 = vmatprep.mubr.f32.mxu0 0.0
      %1636 = vmatmul.mubr.f32.gmra.mrb[0].mxu0 %v1553
      %v1637 = vpop.f32.mrb[0].mxu0
      %v1638 = vadd.f32 0.0, %v1637
      %v1639 = vpop.f32.mrb[0].mxu0
      %1640 = vmatprep.mubr.f32.mxu0 0.0
      %1641 = vmatmul.mubr.f32.gmra.mrb[0].mxu0 %v1556
      %v1642 = vpop.f32.mrb[0].mxu0
      %v1643 = vadd.f32 0.0, %v1642
      %v1644 = vpop.f32.mrb[0].mxu0
      %1645 = vmatprep.mubr.f32.mxu0 0.0
      %1646 = vmatmul.mubr.f32.gmra.mrb[0].mxu0 %v1559
      %v1647 = vpop.f32.mrb[0].mxu0
      %v1648 = vadd.f32 0.0, %v1647
      %v1649 = vpop.f32.mrb[0].mxu0
      %1650 = vmatprep.mubr.f32.mxu0 0.0
      %1651 = vmatmul.mubr.f32.gmra.mrb[0].mxu0 %v1562
      %v1652 = vpop.f32.mrb[0].mxu0
      %v1653 = vadd.f32 0.0, %v1652
      %v1654 = vpop.f32.mrb[0].mxu0
      %1655 = vdwg.mxu0
      %v1656 = vadd.f32 %v1328, %v1633
      %v1657 = vadd.f32 %v1333, %v1638
      %v1658 = vadd.f32 %v1338, %v1643
      %v1659 = vadd.f32 %v1343, %v1648
      %v1660 = vadd.f32 %v1348, %v1653
      %v1661 = vmul.f32 %v690, %v595
      %v1662 = vmul.f32 %v695, %v595
      %v1663 = vmul.f32 %v700, %v595
      %v1664 = vmul.f32 %v705, %v595
      %v1665 = vmul.f32 %v710, %v595
      %v1667 = vsel %vm607, %v1661, 0
      %v1670 = vsel %vm607, %v1662, 0
      %v1673 = vsel %vm607, %v1663, 0
      %v1676 = vsel %vm607, %v1664, 0
      %v1679 = vsel %vm607, %v1665, 0
      %1681 = vmatprep.subr.mxu0 0.0
      %1682 = vmatpush1.xpose.msra.mxu0 %v748
      %1683 = vmatprep.subr.mxu0 0.0
      %1684 = vmatpush1.xpose.msra.mxu0 %v750
      %1685 = vmatprep.subr.mxu0 0.0
      %1686 = vmatpush1.xpose.msra.mxu0 %v752
      %1687 = vmatprep.subr.mxu0 0.0
      %1688 = vmatpush1.xpose.msra.mxu0 %v754
      %1689 = vmatprep.subr.mxu0 0.0
      %1690 = vmatpush1.xpose.msra.mxu0 %v756
      %1691 = vmatprep.subr.mxu0 0.0
      %1692 = vmatpush1.xpose.msra.mxu0 0.0
      %1693 = vmatprep.subr.mxu0 0.0
      %1694 = vmatpush1.xpose.msra.mxu0 0.0
      %1695 = vmatprep.subr.mxu0 0.0
      %1696 = vmatpush1.xpose.msra.mxu0 0.0
      %1697 = vmatprep.subr.mxu0 0.0
      %1698 = vmatpush1.xpose.msra.mxu0 0.0
      %1699 = vmatprep.subr.mxu0 0.0
      %1700 = vmatpush1.xpose.msra.mxu0 0.0
      %1701 = vmatprep.subr.mxu0 0.0
      %1702 = vmatpush1.xpose.msra.mxu0 0.0
      %1703 = vmatprep.subr.mxu0 0.0
      %1704 = vmatpush1.xpose.msra.mxu0 0.0
      %1705 = vmatprep.subr.mxu0 0.0
      %1706 = vmatpush1.xpose.msra.mxu0 0.0
      %1707 = vmatprep.subr.mxu0 0.0
      %1708 = vmatpush1.xpose.msra.mxu0 0.0
      %1709 = vmatprep.subr.mxu0 0.0
      %1710 = vmatpush1.xpose.msra.mxu0 0.0
      %1711 = vmatprep.subr.mxu0 0.0
      %1712 = vmatpush1.xpose.msra.mxu0 0.0
      %1713 = vmatprep.subr.mxu0 0.0
      %1714 = vmatpush1.xpose.msra.mxu0 0.0
      %1715 = vmatprep.subr.mxu0 0.0
      %1716 = vmatpush1.xpose.msra.mxu0 0.0
      %1717 = vmatprep.subr.mxu0 0.0
      %1718 = vmatpush1.xpose.msra.mxu0 0.0
      %1719 = vmatprep.subr.mxu0 0.0
      %1720 = vmatpush1.xpose.msra.mxu0 0.0
      %1721 = vmatprep.subr.mxu0 0.0
      %1722 = vmatpush1.xpose.msra.mxu0 0.0
      %1723 = vmatprep.subr.mxu0 0.0
      %1724 = vmatpush1.xpose.msra.mxu0 0.0
      %1725 = vmatprep.subr.mxu0 0.0
      %1726 = vmatpush1.xpose.msra.mxu0 0.0
      %1727 = vmatprep.subr.mxu0 0.0
      %1728 = vmatpush1.xpose.msra.mxu0 0.0
      %1729 = vmatprep.subr.mxu0 0.0
      %1730 = vmatpush1.xpose.msra.mxu0 0.0
      %1731 = vmatprep.subr.mxu0 0.0
      %1732 = vmatpush1.xpose.msra.mxu0 0.0
      %1733 = vmatprep.subr.mxu0 0.0
      %1734 = vmatpush1.xpose.msra.mxu0 0.0
      %1735 = vmatprep.subr.mxu0 0.0
      %1736 = vmatpush1.xpose.msra.mxu0 0.0
      %1737 = vmatprep.subr.mxu0 0.0
      %1738 = vmatpush1.xpose.msra.mxu0 0.0
      %1739 = vmatprep.subr.mxu0 0.0
      %1740 = vmatpush1.xpose.msra.mxu0 0.0
      %1741 = vmatprep.subr.mxu0 0.0
      %1742 = vmatpush1.xpose.msra.mxu0 0.0
      %1743 = vmatprep.subr.mxu0 0.0
      %1744 = vmatpush1.xpose.msra.mxu0 0.0
      %1745 = vmatprep.mubr.f32.mxu0 0.0
      %1746 = vmatmul.mubr.f32.gmra.mrb[0].mxu0 %v1667
      %v1747 = vpop.f32.mrb[0].mxu0
      %v1748 = vadd.f32 0.0, %v1747
      %v1749 = vpop.f32.mrb[0].mxu0
      %1750 = vmatprep.mubr.f32.mxu0 0.0
      %1751 = vmatmul.mubr.f32.gmra.mrb[0].mxu0 %v1670
      %v1752 = vpop.f32.mrb[0].mxu0
      %v1753 = vadd.f32 0.0, %v1752
      %v1754 = vpop.f32.mrb[0].mxu0
      %1755 = vmatprep.mubr.f32.mxu0 0.0
      %1756 = vmatmul.mubr.f32.gmra.mrb[0].mxu0 %v1673
      %v1757 = vpop.f32.mrb[0].mxu0
      %v1758 = vadd.f32 0.0, %v1757
      %v1759 = vpop.f32.mrb[0].mxu0
      %1760 = vmatprep.mubr.f32.mxu0 0.0
      %1761 = vmatmul.mubr.f32.gmra.mrb[0].mxu0 %v1676
      %v1762 = vpop.f32.mrb[0].mxu0
      %v1763 = vadd.f32 0.0, %v1762
      %v1764 = vpop.f32.mrb[0].mxu0
      %1765 = vmatprep.mubr.f32.mxu0 0.0
      %1766 = vmatmul.mubr.f32.gmra.mrb[0].mxu0 %v1679
      %v1767 = vpop.f32.mrb[0].mxu0
      %v1768 = vadd.f32 0.0, %v1767
      %v1769 = vpop.f32.mrb[0].mxu0
      %1770 = vdwg.mxu0
      %v1771 = vmul.f32 %v1748, 0.35355338
      %v1772 = vmul.f32 %v1753, 0.35355338
      %v1773 = vmul.f32 %v1758, 0.35355338
      %v1774 = vmul.f32 %v1763, 0.35355338
      %v1775 = vmul.f32 %v1768, 0.35355338
      %v1776 = vsel %vm853, %v1771, -inf
      %1777 = vmax.xlane.f32.xlu0 %v1776
      %v1778 = vpop.xlane.xlu0 %1777
      %v1779 = vsel %vm853, %v1772, -inf
      %1780 = vmax.xlane.f32.xlu0 %v1779
      %v1781 = vpop.xlane.xlu0 %1780
      %v1782 = vsel %vm853, %v1773, -inf
      %1783 = vmax.xlane.f32.xlu0 %v1782
      %v1784 = vpop.xlane.xlu0 %1783
      %v1785 = vsel %vm853, %v1774, -inf
      %1786 = vmax.xlane.f32.xlu0 %v1785
      %v1787 = vpop.xlane.xlu0 %1786
      %v1788 = vsel %vm866, %v1775, -inf
      %1789 = vmax.xlane.f32.xlu0 %v1788
      %v1790 = vpop.xlane.xlu0 %1789
      %v1791 = vsub.f32 %v1771, %v1778
      %v1792 = vsub.f32 %v1772, %v1781
      %v1793 = vsub.f32 %v1773, %v1784
      %v1794 = vsub.f32 %v1774, %v1787
      %v1795 = vsub.f32 %v1775, %v1790
      %v1796 = vmul.f32 %v1791, 1.442695
      %v1797 = vpow.pop %v1796
      %v1798 = vmul.f32 %v1792, 1.442695
      %v1799 = vpow.pop %v1798
      %v1800 = vmul.f32 %v1793, 1.442695
      %v1801 = vpow.pop %v1800
      %v1802 = vmul.f32 %v1794, 1.442695
      %v1803 = vpow.pop %v1802
      %v1804 = vmul.f32 %v1795, 1.442695
      %v1805 = vpow.pop %v1804
      %v1806 = vsel %vm853, %v1797, 0.0
      %1807 = vadd.xlane.f32.xlu0 %v1806
      %v1808 = vpop.xlane.xlu0 %1807
      %v1809 = vsel %vm853, %v1799, 0.0
      %1810 = vadd.xlane.f32.xlu0 %v1809
      %v1811 = vpop.xlane.xlu0 %1810
      %v1812 = vsel %vm853, %v1801, 0.0
      %1813 = vadd.xlane.f32.xlu0 %v1812
      %v1814 = vpop.xlane.xlu0 %1813
      %v1815 = vsel %vm853, %v1803, 0.0
      %1816 = vadd.xlane.f32.xlu0 %v1815
      %v1817 = vpop.xlane.xlu0 %1816
      %v1818 = vsel %vm866, %v1805, 0.0
      %1819 = vadd.xlane.f32.xlu0 %v1818
      %v1820 = vpop.xlane.xlu0 %1819
      %v1821 = vrcp.pop %v1808
      %v1822 = vmul.f32 %v1797, %v1821
      %v1823 = vrcp.pop %v1811
      %v1824 = vmul.f32 %v1799, %v1823
      %v1825 = vrcp.pop %v1814
      %v1826 = vmul.f32 %v1801, %v1825
      %v1827 = vrcp.pop %v1817
      %v1828 = vmul.f32 %v1803, %v1827
      %v1829 = vrcp.pop %v1820
      %v1830 = vmul.f32 %v1805, %v1829
      %1832 = vrot.lane.b32.xlu0 %v595, 64
      %v1833 = vpop.permute.xlu0 %1832
      %v1835 = vmul.f32 %v690, %v1833
      %v1836 = vmul.f32 %v695, %v1833
      %v1837 = vmul.f32 %v700, %v1833
      %v1838 = vmul.f32 %v705, %v1833
      %v1839 = vmul.f32 %v710, %v1833
      %1845 = vrot.lane.b32.xlu0 %v1835, 64
      %v1846 = vpop.permute.xlu0 %1845
      %1847 = vrot.lane.b32.xlu0 %v1836, 64
      %v1848 = vpop.permute.xlu0 %1847
      %1849 = vrot.lane.b32.xlu0 %v1837, 64
      %v1850 = vpop.permute.xlu0 %1849
      %1851 = vrot.lane.b32.xlu0 %v1838, 64
      %v1852 = vpop.permute.xlu0 %1851
      %1853 = vrot.lane.b32.xlu0 %v1839, 64
      %v1854 = vpop.permute.xlu0 %1853
      %v1860 = vsel %vm853, %v1822, 0
      %v1863 = vsel %vm853, %v1824, 0
      %v1866 = vsel %vm853, %v1826, 0
      %v1869 = vsel %vm853, %v1828, 0
      %v1872 = vsel %vm853, %v1830, 0
      %v1874 = vsel %vm1132, %v1854, 0
      %1876 = vmatprep.subr.mxu0 0.0
      %1877 = vmatpush1.msra.mxu0 %v1846
      %1878 = vmatprep.subr.mxu0 0.0
      %1879 = vmatpush1.msra.mxu0 %v1848
      %1880 = vmatprep.subr.mxu0 0.0
      %1881 = vmatpush1.msra.mxu0 %v1850
      %1882 = vmatprep.subr.mxu0 0.0
      %1883 = vmatpush1.msra.mxu0 %v1852
      %1884 = vmatprep.subr.mxu0 0.0
      %1885 = vmatpush1.msra.mxu0 %v1874
      %1886 = vmatprep.subr.mxu0 0.0
      %1887 = vmatpush1.msra.mxu0 0.0
      %1888 = vmatprep.subr.mxu0 0.0
      %1889 = vmatpush1.msra.mxu0 0.0
      %1890 = vmatprep.subr.mxu0 0.0
      %1891 = vmatpush1.msra.mxu0 0.0
      %1892 = vmatprep.subr.mxu0 0.0
      %1893 = vmatpush1.msra.mxu0 0.0
      %1894 = vmatprep.subr.mxu0 0.0
      %1895 = vmatpush1.msra.mxu0 0.0
      %1896 = vmatprep.subr.mxu0 0.0
      %1897 = vmatpush1.msra.mxu0 0.0
      %1898 = vmatprep.subr.mxu0 0.0
      %1899 = vmatpush1.msra.mxu0 0.0
      %1900 = vmatprep.subr.mxu0 0.0
      %1901 = vmatpush1.msra.mxu0 0.0
      %1902 = vmatprep.subr.mxu0 0.0
      %1903 = vmatpush1.msra.mxu0 0.0
      %1904 = vmatprep.subr.mxu0 0.0
      %1905 = vmatpush1.msra.mxu0 0.0
      %1906 = vmatprep.subr.mxu0 0.0
      %1907 = vmatpush1.msra.mxu0 0.0
      %1908 = vmatprep.subr.mxu0 0.0
      %1909 = vmatpush1.msra.mxu0 0.0
      %1910 = vmatprep.subr.mxu0 0.0
      %1911 = vmatpush1.msra.mxu0 0.0
      %1912 = vmatprep.subr.mxu0 0.0
      %1913 = vmatpush1.msra.mxu0 0.0
      %1914 = vmatprep.subr.mxu0 0.0
      %1915 = vmatpush1.msra.mxu0 0.0
      %1916 = vmatprep.subr.mxu0 0.0
      %1917 = vmatpush1.msra.mxu0 0.0
      %1918 = vmatprep.subr.mxu0 0.0
      %1919 = vmatpush1.msra.mxu0 0.0
      %1920 = vmatprep.subr.mxu0 0.0
      %1921 = vmatpush1.msra.mxu0 0.0
      %1922 = vmatprep.subr.mxu0 0.0
      %1923 = vmatpush1.msra.mxu0 0.0
      %1924 = vmatprep.subr.mxu0 0.0
      %1925 = vmatpush1.msra.mxu0 0.0
      %1926 = vmatprep.subr.mxu0 0.0
      %1927 = vmatpush1.msra.mxu0 0.0
      %1928 = vmatprep.subr.mxu0 0.0
      %1929 = vmatpush1.msra.mxu0 0.0
      %1930 = vmatprep.subr.mxu0 0.0
      %1931 = vmatpush1.msra.mxu0 0.0
      %1932 = vmatprep.subr.mxu0 0.0
      %1933 = vmatpush1.msra.mxu0 0.0
      %1934 = vmatprep.subr.mxu0 0.0
      %1935 = vmatpush1.msra.mxu0 0.0
      %1936 = vmatprep.subr.mxu0 0.0
      %1937 = vmatpush1.msra.mxu0 0.0
      %1938 = vmatprep.subr.mxu0 0.0
      %1939 = vmatpush1.msra.mxu0 0.0
      %1940 = vmatprep.mubr.f32.mxu0 0.0
      %1941 = vmatmul.mubr.f32.gmra.mrb[0].mxu0 %v1860
      %v1942 = vpop.f32.mrb[0].mxu0
      %v1943 = vadd.f32 0.0, %v1942
      %v1944 = vpop.f32.mrb[0].mxu0
      %1945 = vmatprep.mubr.f32.mxu0 0.0
      %1946 = vmatmul.mubr.f32.gmra.mrb[0].mxu0 %v1863
      %v1947 = vpop.f32.mrb[0].mxu0
      %v1948 = vadd.f32 0.0, %v1947
      %v1949 = vpop.f32.mrb[0].mxu0
      %1950 = vmatprep.mubr.f32.mxu0 0.0
      %1951 = vmatmul.mubr.f32.gmra.mrb[0].mxu0 %v1866
      %v1952 = vpop.f32.mrb[0].mxu0
      %v1953 = vadd.f32 0.0, %v1952
      %v1954 = vpop.f32.mrb[0].mxu0
      %1955 = vmatprep.mubr.f32.mxu0 0.0
      %1956 = vmatmul.mubr.f32.gmra.mrb[0].mxu0 %v1869
      %v1957 = vpop.f32.mrb[0].mxu0
      %v1958 = vadd.f32 0.0, %v1957
      %v1959 = vpop.f32.mrb[0].mxu0
      %1960 = vmatprep.mubr.f32.mxu0 0.0
      %1961 = vmatmul.mubr.f32.gmra.mrb[0].mxu0 %v1872
      %v1962 = vpop.f32.mrb[0].mxu0
      %v1963 = vadd.f32 0.0, %v1962
      %v1964 = vpop.f32.mrb[0].mxu0
      %1965 = vdwg.mxu0
      %v1966 = vadd.f32 %v1656, %v1943
      %v1967 = vadd.f32 %v1657, %v1948
      %v1968 = vadd.f32 %v1658, %v1953
      %v1969 = vadd.f32 %v1659, %v1958
      %v1970 = vadd.f32 %v1660, %v1963
      %v1971 = vld [vmem:[%s3] sm:$0xff]
      %v1972 = vld [vmem:[%s3 + $0x8] sm:$0xff]
      %v1973 = vld [vmem:[%s3 + $0x10] sm:$0xff]
      %v1974 = vld [vmem:[%s3 + $0x18] sm:$0xff]
      %v1975 = vld [vmem:[%s4] sm:$0x1]
      %v1977 = vlaneseq
      %v1978 = vshrl.u32 %v1977, 7
      %v1979 = vsub.s32 0, %v1978
      %v1980 = vrot.slane %v1975, %v1979
      %v1983 = vsel %vm607, %v1966, 0
      %v1986 = vsel %vm607, %v1967, 0
      %v1989 = vsel %vm607, %v1968, 0
      %v1992 = vsel %vm607, %v1969, 0
      %v1995 = vsel %vm607, %v1970, 0
      %1997 = vmatprep.subr.mxu0 0.0
      %1998 = vmatpush1.msra.mxu0 %v1971
      %1999 = vmatprep.subr.mxu0 0.0
      %2000 = vmatpush1.msra.mxu0 %v1972
      %2001 = vmatprep.subr.mxu0 0.0
      %2002 = vmatpush1.msra.mxu0 %v1973
      %2003 = vmatprep.subr.mxu0 0.0
      %2004 = vmatpush1.msra.mxu0 %v1974
      %2005 = vmatprep.subr.mxu0 0.0
      %2006 = vmatpush1.msra.mxu0 0.0
      %2007 = vmatprep.subr.mxu0 0.0
      %2008 = vmatpush1.msra.mxu0 0.0
      %2009 = vmatprep.subr.mxu0 0.0
      %2010 = vmatpush1.msra.mxu0 0.0
      %2011 = vmatprep.subr.mxu0 0.0
      %2012 = vmatpush1.msra.mxu0 0.0
      %2013 = vmatprep.subr.mxu0 0.0
      %2014 = vmatpush1.msra.mxu0 0.0
      %2015 = vmatprep.subr.mxu0 0.0
      %2016 = vmatpush1.msra.mxu0 0.0
      %2017 = vmatprep.subr.mxu0 0.0
      %2018 = vmatpush1.msra.mxu0 0.0
      %2019 = vmatprep.subr.mxu0 0.0
      %2020 = vmatpush1.msra.mxu0 0.0
      %2021 = vmatprep.subr.mxu0 0.0
      %2022 = vmatpush1.msra.mxu0 0.0
      %2023 = vmatprep.subr.mxu0 0.0
      %2024 = vmatpush1.msra.mxu0 0.0
      %2025 = vmatprep.subr.mxu0 0.0
      %2026 = vmatpush1.msra.mxu0 0.0
      %2027 = vmatprep.subr.mxu0 0.0
      %2028 = vmatpush1.msra.mxu0 0.0
      %2029 = vmatprep.subr.mxu0 0.0
      %2030 = vmatpush1.msra.mxu0 0.0
      %2031 = vmatprep.subr.mxu0 0.0
      %2032 = vmatpush1.msra.mxu0 0.0
      %2033 = vmatprep.subr.mxu0 0.0
      %2034 = vmatpush1.msra.mxu0 0.0
      %2035 = vmatprep.subr.mxu0 0.0
      %2036 = vmatpush1.msra.mxu0 0.0
      %2037 = vmatprep.subr.mxu0 0.0
      %2038 = vmatpush1.msra.mxu0 0.0
      %2039 = vmatprep.subr.mxu0 0.0
      %2040 = vmatpush1.msra.mxu0 0.0
      %2041 = vmatprep.subr.mxu0 0.0
      %2042 = vmatpush1.msra.mxu0 0.0
      %2043 = vmatprep.subr.mxu0 0.0
      %2044 = vmatpush1.msra.mxu0 0.0
      %2045 = vmatprep.subr.mxu0 0.0
      %2046 = vmatpush1.msra.mxu0 0.0
      %2047 = vmatprep.subr.mxu0 0.0
      %2048 = vmatpush1.msra.mxu0 0.0
      %2049 = vmatprep.subr.mxu0 0.0
      %2050 = vmatpush1.msra.mxu0 0.0
      %2051 = vmatprep.subr.mxu0 0.0
      %2052 = vmatpush1.msra.mxu0 0.0
      %2053 = vmatprep.subr.mxu0 0.0
      %2054 = vmatpush1.msra.mxu0 0.0
      %2055 = vmatprep.subr.mxu0 0.0
      %2056 = vmatpush1.msra.mxu0 0.0
      %2057 = vmatprep.subr.mxu0 0.0
      %2058 = vmatpush1.msra.mxu0 0.0
      %2059 = vmatprep.subr.mxu0 0.0
      %2060 = vmatpush1.msra.mxu0 0.0
      %2061 = vmatprep.mubr.f32.mxu0 0.0
      %2062 = vmatmul.mubr.f32.gmra.mrb[0].mxu0 %v1983
      %v2063 = vpop.f32.mrb[0].mxu0
      %v2064 = vadd.f32 %v1980, %v2063
      %v2065 = vpop.f32.mrb[0].mxu0
      %2066 = vmatprep.mubr.f32.mxu0 0.0
      %2067 = vmatmul.mubr.f32.gmra.mrb[0].mxu0 %v1986
      %v2068 = vpop.f32.mrb[0].mxu0
      %v2069 = vadd.f32 %v1980, %v2068
      %v2070 = vpop.f32.mrb[0].mxu0
      %2071 = vmatprep.mubr.f32.mxu0 0.0
      %2072 = vmatmul.mubr.f32.gmra.mrb[0].mxu0 %v1989
      %v2073 = vpop.f32.mrb[0].mxu0
      %v2074 = vadd.f32 %v1980, %v2073
      %v2075 = vpop.f32.mrb[0].mxu0
      %2076 = vmatprep.mubr.f32.mxu0 0.0
      %2077 = vmatmul.mubr.f32.gmra.mrb[0].mxu0 %v1992
      %v2078 = vpop.f32.mrb[0].mxu0
      %v2079 = vadd.f32 %v1980, %v2078
      %v2080 = vpop.f32.mrb[0].mxu0
      %2081 = vmatprep.mubr.f32.mxu0 0.0
      %2082 = vmatmul.mubr.f32.gmra.mrb[0].mxu0 %v1995
      %v2083 = vpop.f32.mrb[0].mxu0
      %v2084 = vadd.f32 %v1980, %v2083
      %v2085 = vpop.f32.mrb[0].mxu0
      %2086 = vdwg.mxu0
      %v2087 = vadd.f32 %v569, %v2064
      %v2088 = vadd.f32 %v570, %v2069
      %v2089 = vadd.f32 %v571, %v2074
      %v2090 = vadd.f32 %v572, %v2079
      %v2091 = vadd.f32 %v573, %v2084
      %v2092 = vld [vmem:[%s5] sm:$0x1]
      %v2093 = vld [vmem:[%s6] sm:$0x1]
      %v2094 = vsel %vm607, %v2087, 0.0
      %2095 = vadd.xlane.f32.xlu0 %v2094
      %v2096 = vpop.xlane.xlu0 %2095
      %v2097 = vsel %vm607, %v2088, 0.0
      %2098 = vadd.xlane.f32.xlu0 %v2097
      %v2099 = vpop.xlane.xlu0 %2098
      %v2100 = vsel %vm607, %v2089, 0.0
      %2101 = vadd.xlane.f32.xlu0 %v2100
      %v2102 = vpop.xlane.xlu0 %2101
      %v2103 = vsel %vm607, %v2090, 0.0
      %2104 = vadd.xlane.f32.xlu0 %v2103
      %v2105 = vpop.xlane.xlu0 %2104
      %vm2106 = vcmask 256000
      %v2107 = vsel %vm2106, %v2091, 0.0
      %2108 = vadd.xlane.f32.xlu0 %v2107
      %v2109 = vpop.xlane.xlu0 %2108
      %v2110 = vrcp.pop 32.0
      %v2111 = vmul.f32 %v2096, %v2110
      %v2112 = vmul.f32 %v2099, %v2110
      %v2113 = vmul.f32 %v2102, %v2110
      %v2114 = vmul.f32 %v2105, %v2110
      %v2115 = vmul.f32 %v2109, %v2110
      %v2116 = vsub.f32 %v2087, %v2111
      %v2117 = vsub.f32 %v2088, %v2112
      %v2118 = vsub.f32 %v2089, %v2113
      %v2119 = vsub.f32 %v2090, %v2114
      %v2120 = vsub.f32 %v2091, %v2115
      %v2121 = vmul.f32 %v2116, %v2116
      %v2122 = vmul.f32 %v2117, %v2117
      %v2123 = vmul.f32 %v2118, %v2118
      %v2124 = vmul.f32 %v2119, %v2119
      %v2125 = vmul.f32 %v2120, %v2120
      %v2126 = vsel %vm607, %v2121, 0.0
      %2127 = vadd.xlane.f32.xlu0 %v2126
      %v2128 = vpop.xlane.xlu0 %2127
      %v2129 = vsel %vm607, %v2122, 0.0
      %2130 = vadd.xlane.f32.xlu0 %v2129
      %v2131 = vpop.xlane.xlu0 %2130
      %v2132 = vsel %vm607, %v2123, 0.0
      %2133 = vadd.xlane.f32.xlu0 %v2132
      %v2134 = vpop.xlane.xlu0 %2133
      %v2135 = vsel %vm607, %v2124, 0.0
      %2136 = vadd.xlane.f32.xlu0 %v2135
      %v2137 = vpop.xlane.xlu0 %2136
      %v2138 = vsel %vm2106, %v2125, 0.0
      %2139 = vadd.xlane.f32.xlu0 %v2138
      %v2140 = vpop.xlane.xlu0 %2139
      %v2141 = vmul.f32 %v2128, %v2110
      %v2142 = vmul.f32 %v2131, %v2110
      %v2143 = vmul.f32 %v2134, %v2110
      %v2144 = vmul.f32 %v2137, %v2110
      %v2145 = vmul.f32 %v2140, %v2110
      %v2146 = vadd.f32 %v2141, 1e-05
      %v2147 = vadd.f32 %v2142, 1e-05
      %v2148 = vadd.f32 %v2143, 1e-05
      %v2149 = vadd.f32 %v2144, 1e-05
      %v2150 = vadd.f32 %v2145, 1e-05
      %v2151 = vrsqrt.pop %v2146
      %v2152 = vrsqrt.pop %v2147
      %v2153 = vrsqrt.pop %v2148
      %v2154 = vrsqrt.pop %v2149
      %v2155 = vrsqrt.pop %v2150
      %v2156 = vmul.f32 %v2116, %v2151
      %v2157 = vmul.f32 %v2117, %v2152
      %v2158 = vmul.f32 %v2118, %v2153
      %v2159 = vmul.f32 %v2119, %v2154
      %v2160 = vmul.f32 %v2120, %v2155
      %v2162 = vlaneseq
      %v2163 = vshrl.u32 %v2162, 7
      %v2164 = vsub.s32 0, %v2163
      %v2165 = vrot.slane %v2092, %v2164
      %v2167 = vmul.f32 %v2156, %v2165
      %v2168 = vmul.f32 %v2157, %v2165
      %v2169 = vmul.f32 %v2158, %v2165
      %v2170 = vmul.f32 %v2159, %v2165
      %v2171 = vmul.f32 %v2160, %v2165
      %v2173 = vlaneseq
      %v2174 = vshrl.u32 %v2173, 7
      %v2175 = vsub.s32 0, %v2174
      %v2176 = vrot.slane %v2093, %v2175
      %v2178 = vadd.f32 %v2167, %v2176
      %v2179 = vadd.f32 %v2168, %v2176
      %v2180 = vadd.f32 %v2169, %v2176
      %v2181 = vadd.f32 %v2170, %v2176
      %v2182 = vadd.f32 %v2171, %v2176
      %v2183 = vpack.c.bf16 %v2179, %v2178
      %v2184 = vpack.c.bf16 %v2181, %v2180
      %v2185 = vpack.c.bf16 %v2182, %v2182
      %v2186 = vld [vmem:[%s7] sm:$0xff]
      %v2187 = vld [vmem:[%s7 + $0x8] sm:$0xff]
      %v2188 = vld [vmem:[%s7 + $0x40] sm:$0xff]
      %v2189 = vld [vmem:[%s7 + $0x48] sm:$0xff]
      %v2190 = vld [vmem:[%s7 + $0x80] sm:$0xff]
      %v2191 = vld [vmem:[%s7 + $0x88] sm:$0xff]
      %v2192 = vld [vmem:[%s7 + $0xc0] sm:$0xff]
      %v2193 = vld [vmem:[%s7 + $0xc8] sm:$0xff]
      %v2194 = vld [vmem:[%s8] sm:$0xf]
      %v2196 = vlaneseq
      %v2197 = vshrl.u32 %v2196, 7
      %v2198 = vsub.s32 0, %v2197
      %v2199 = vrot.slane %v2194, %v2198
      %v2200 = vlaneseq
      %v2201 = vshrl.u32 %v2200, 7
      %v2202 = vsub.s32 1, %v2201
      %v2203 = vrot.slane %v2194, %v2202
      %v2204 = vlaneseq
      %v2205 = vshrl.u32 %v2204, 7
      %v2206 = vsub.s32 2, %v2205
      %v2207 = vrot.slane %v2194, %v2206
      %v2208 = vlaneseq
      %v2209 = vshrl.u32 %v2208, 7
      %v2210 = vsub.s32 3, %v2209
      %v2211 = vrot.slane %v2194, %v2210
      %v2224 = vunpack.c.l.b16 %v2186
      %v2225 = vunpack.c.h.b16 %v2186
      %v2226 = vunpack.c.l.b16 %v2187
      %v2227 = vunpack.c.h.b16 %v2187
      %v2228 = vunpack.c.l.b16 %v2188
      %v2229 = vunpack.c.h.b16 %v2188
      %v2230 = vunpack.c.l.b16 %v2189
      %v2231 = vunpack.c.h.b16 %v2189
      %v2232 = vunpack.c.l.b16 %v2190
      %v2233 = vunpack.c.h.b16 %v2190
      %v2234 = vunpack.c.l.b16 %v2191
      %v2235 = vunpack.c.h.b16 %v2191
      %v2236 = vunpack.c.l.b16 %v2192
      %v2237 = vunpack.c.h.b16 %v2192
      %v2238 = vunpack.c.l.b16 %v2193
      %v2239 = vunpack.c.h.b16 %v2193
      %v2240 = vpack.c.b16 %v2228, %v2224
      %v2241 = vpack.c.b16 %v2229, %v2225
      %v2242 = vpack.c.b16 %v2230, %v2226
      %v2243 = vpack.c.b16 %v2231, %v2227
      %v2244 = vpack.c.b16 %v2236, %v2232
      %v2245 = vpack.c.b16 %v2237, %v2233
      %v2246 = vpack.c.b16 %v2238, %v2234
      %v2247 = vpack.c.b16 %v2239, %v2235
      %v2257 = vsel %vm607, %v2183, 0
      %v2260 = vsel %vm607, %v2184, 0
      %v2263 = vsel %vm607, %v2185, 0
      %2265 = vmatprep.subr.bf16.mxu0 %v2241
      %2266 = vmatpush1.bf16.msra.mxu0 %v2240
      %2267 = vmatprep.subr.bf16.mxu0 %v2245
      %2268 = vmatpush1.bf16.msra.mxu0 %v2244
      %2269 = vmatprep.subr.bf16.mxu0 0
      %2270 = vmatpush1.bf16.msra.mxu0 0
      %2271 = vmatprep.subr.bf16.mxu0 0
      %2272 = vmatpush1.bf16.msra.mxu0 0
      %2273 = vmatprep.subr.bf16.mxu0 0
      %2274 = vmatpush1.bf16.msra.mxu0 0
      %2275 = vmatprep.subr.bf16.mxu0 0
      %2276 = vmatpush1.bf16.msra.mxu0 0
      %2277 = vmatprep.subr.bf16.mxu0 0
      %2278 = vmatpush1.bf16.msra.mxu0 0
      %2279 = vmatprep.subr.bf16.mxu0 0
      %2280 = vmatpush1.bf16.msra.mxu0 0
      %2281 = vmatprep.subr.bf16.mxu0 0
      %2282 = vmatpush1.bf16.msra.mxu0 0
      %2283 = vmatprep.subr.bf16.mxu0 0
      %2284 = vmatpush1.bf16.msra.mxu0 0
      %2285 = vmatprep.subr.bf16.mxu0 0
      %2286 = vmatpush1.bf16.msra.mxu0 0
      %2287 = vmatprep.subr.bf16.mxu0 0
      %2288 = vmatpush1.bf16.msra.mxu0 0
      %2289 = vmatprep.subr.bf16.mxu0 0
      %2290 = vmatpush1.bf16.msra.mxu0 0
      %2291 = vmatprep.subr.bf16.mxu0 0
      %2292 = vmatpush1.bf16.msra.mxu0 0
      %2293 = vmatprep.subr.bf16.mxu0 0
      %2294 = vmatpush1.bf16.msra.mxu0 0
      %2295 = vmatprep.subr.bf16.mxu0 0
      %2296 = vmatpush1.bf16.msra.mxu0 0
      %2297 = vmatprep.mubr.bf16.mxu0 0
      %2298 = vmatmul.mubr.bf16.gmra.mrb[0].mxu0 %v2257
      %v2299 = vpop.f32.mrb[0].mxu0
      %v2300 = vadd.f32 %v2199, %v2299
      %v2301 = vpop.f32.mrb[0].mxu0
      %v2302 = vadd.f32 %v2203, %v2301
      %v2303 = vpop.f32.mrb[0].mxu0
      %v2304 = vadd.f32 %v2199, %v2303
      %v2305 = vpop.f32.mrb[0].mxu0
      %v2306 = vadd.f32 %v2203, %v2305
      %2307 = vmatprep.mubr.bf16.mxu0 0
      %2308 = vmatmul.mubr.bf16.gmra.mrb[0].mxu0 %v2260
      %v2309 = vpop.f32.mrb[0].mxu0
      %v2310 = vadd.f32 %v2199, %v2309
      %v2311 = vpop.f32.mrb[0].mxu0
      %v2312 = vadd.f32 %v2203, %v2311
      %v2313 = vpop.f32.mrb[0].mxu0
      %v2314 = vadd.f32 %v2199, %v2313
      %v2315 = vpop.f32.mrb[0].mxu0
      %v2316 = vadd.f32 %v2203, %v2315
      %2317 = vmatprep.mubr.bf16.mxu0 0
      %2318 = vmatmul.mubr.bf16.gmra.mrb[0].mxu0 %v2263
      %v2319 = vpop.f32.mrb[0].mxu0
      %v2320 = vadd.f32 %v2199, %v2319
      %v2321 = vpop.f32.mrb[0].mxu0
      %v2322 = vadd.f32 %v2203, %v2321
      %v2323 = vpop.f32.mrb[0].mxu0
      %v2324 = vpop.f32.mrb[0].mxu0
      %2325 = vdwg.mxu0
      %2326 = vmatprep.subr.bf16.mxu0 %v2243
      %2327 = vmatpush1.bf16.msra.mxu0 %v2242
      %2328 = vmatprep.subr.bf16.mxu0 %v2247
      %2329 = vmatpush1.bf16.msra.mxu0 %v2246
      %2330 = vmatprep.subr.bf16.mxu0 0
      %2331 = vmatpush1.bf16.msra.mxu0 0
      %2332 = vmatprep.subr.bf16.mxu0 0
      %2333 = vmatpush1.bf16.msra.mxu0 0
      %2334 = vmatprep.subr.bf16.mxu0 0
      %2335 = vmatpush1.bf16.msra.mxu0 0
      %2336 = vmatprep.subr.bf16.mxu0 0
      %2337 = vmatpush1.bf16.msra.mxu0 0
      %2338 = vmatprep.subr.bf16.mxu0 0
      %2339 = vmatpush1.bf16.msra.mxu0 0
      %2340 = vmatprep.subr.bf16.mxu0 0
      %2341 = vmatpush1.bf16.msra.mxu0 0
      %2342 = vmatprep.subr.bf16.mxu0 0
      %2343 = vmatpush1.bf16.msra.mxu0 0
      %2344 = vmatprep.subr.bf16.mxu0 0
      %2345 = vmatpush1.bf16.msra.mxu0 0
      %2346 = vmatprep.subr.bf16.mxu0 0
      %2347 = vmatpush1.bf16.msra.mxu0 0
      %2348 = vmatprep.subr.bf16.mxu0 0
      %2349 = vmatpush1.bf16.msra.mxu0 0
      %2350 = vmatprep.subr.bf16.mxu0 0
      %2351 = vmatpush1.bf16.msra.mxu0 0
      %2352 = vmatprep.subr.bf16.mxu0 0
      %2353 = vmatpush1.bf16.msra.mxu0 0
      %2354 = vmatprep.subr.bf16.mxu0 0
      %2355 = vmatpush1.bf16.msra.mxu0 0
      %2356 = vmatprep.subr.bf16.mxu0 0
      %2357 = vmatpush1.bf16.msra.mxu0 0
      %2358 = vmatprep.mubr.bf16.mxu0 0
      %2359 = vmatmul.mubr.bf16.gmra.mrb[0].mxu0 %v2257
      %v2360 = vpop.f32.mrb[0].mxu0
      %v2361 = vadd.f32 %v2207, %v2360
      %v2362 = vpop.f32.mrb[0].mxu0
      %v2363 = vadd.f32 %v2211, %v2362
      %v2364 = vpop.f32.mrb[0].mxu0
      %v2365 = vadd.f32 %v2207, %v2364
      %v2366 = vpop.f32.mrb[0].mxu0
      %v2367 = vadd.f32 %v2211, %v2366
      %2368 = vmatprep.mubr.bf16.mxu0 0
      %2369 = vmatmul.mubr.bf16.gmra.mrb[0].mxu0 %v2260
      %v2370 = vpop.f32.mrb[0].mxu0
      %v2371 = vadd.f32 %v2207, %v2370
      %v2372 = vpop.f32.mrb[0].mxu0
      %v2373 = vadd.f32 %v2211, %v2372
      %v2374 = vpop.f32.mrb[0].mxu0
      %v2375 = vadd.f32 %v2207, %v2374
      %v2376 = vpop.f32.mrb[0].mxu0
      %v2377 = vadd.f32 %v2211, %v2376
      %2378 = vmatprep.mubr.bf16.mxu0 0
      %2379 = vmatmul.mubr.bf16.gmra.mrb[0].mxu0 %v2263
      %v2380 = vpop.f32.mrb[0].mxu0
      %v2381 = vadd.f32 %v2207, %v2380
      %v2382 = vpop.f32.mrb[0].mxu0
      %v2383 = vadd.f32 %v2211, %v2382
      %v2384 = vpop.f32.mrb[0].mxu0
      %v2385 = vpop.f32.mrb[0].mxu0
      %2386 = vdwg.mxu0
      %v2387 = vmul.f32 %v2300, 0.5
      %v2388 = vmul.f32 %v2302, 0.5
      %v2389 = vmul.f32 %v2361, 0.5
      %v2390 = vmul.f32 %v2363, 0.5
      %v2391 = vmul.f32 %v2304, 0.5
      %v2392 = vmul.f32 %v2306, 0.5
      %v2393 = vmul.f32 %v2365, 0.5
      %v2394 = vmul.f32 %v2367, 0.5
      %v2395 = vmul.f32 %v2310, 0.5
      %v2396 = vmul.f32 %v2312, 0.5
      %v2397 = vmul.f32 %v2371, 0.5
      %v2398 = vmul.f32 %v2373, 0.5
      %v2399 = vmul.f32 %v2314, 0.5
      %v2400 = vmul.f32 %v2316, 0.5
      %v2401 = vmul.f32 %v2375, 0.5
      %v2402 = vmul.f32 %v2377, 0.5
      %v2403 = vmul.f32 %v2320, 0.5
      %v2404 = vmul.f32 %v2322, 0.5
      %v2405 = vmul.f32 %v2381, 0.5
      %v2406 = vmul.f32 %v2383, 0.5
      %v2407 = vmul.f32 %v2300, 0.70710677
      %v2408 = vmul.f32 %v2302, 0.70710677
      %v2409 = vmul.f32 %v2361, 0.70710677
      %v2410 = vmul.f32 %v2363, 0.70710677
      %v2411 = vmul.f32 %v2304, 0.70710677
      %v2412 = vmul.f32 %v2306, 0.70710677
      %v2413 = vmul.f32 %v2365, 0.70710677
      %v2414 = vmul.f32 %v2367, 0.70710677
      %v2415 = vmul.f32 %v2310, 0.70710677
      %v2416 = vmul.f32 %v2312, 0.70710677
      %v2417 = vmul.f32 %v2371, 0.70710677
      %v2418 = vmul.f32 %v2373, 0.70710677
      %v2419 = vmul.f32 %v2314, 0.70710677
      %v2420 = vmul.f32 %v2316, 0.70710677
      %v2421 = vmul.f32 %v2375, 0.70710677
      %v2422 = vmul.f32 %v2377, 0.70710677
      %v2423 = vmul.f32 %v2320, 0.70710677
      %v2424 = vmul.f32 %v2322, 0.70710677
      %v2425 = vmul.f32 %v2381, 0.70710677
      %v2426 = vmul.f32 %v2383, 0.70710677
      %v2427 = verf.f32.pop %v2407
      %v2428 = verf.f32.pop %v2408
      %v2429 = verf.f32.pop %v2409
      %v2430 = verf.f32.pop %v2410
      %v2431 = verf.f32.pop %v2411
      %v2432 = verf.f32.pop %v2412
      %v2433 = verf.f32.pop %v2413
      %v2434 = verf.f32.pop %v2414
      %v2435 = verf.f32.pop %v2415
      %v2436 = verf.f32.pop %v2416
      %v2437 = verf.f32.pop %v2417
      %v2438 = verf.f32.pop %v2418
      %v2439 = verf.f32.pop %v2419
      %v2440 = verf.f32.pop %v2420
      %v2441 = verf.f32.pop %v2421
      %v2442 = verf.f32.pop %v2422
      %v2443 = verf.f32.pop %v2423
      %v2444 = verf.f32.pop %v2424
      %v2445 = verf.f32.pop %v2425
      %v2446 = verf.f32.pop %v2426
      %v2447 = vadd.f32 %v2427, 1.0
      %v2448 = vadd.f32 %v2428, 1.0
      %v2449 = vadd.f32 %v2429, 1.0
      %v2450 = vadd.f32 %v2430, 1.0
      %v2451 = vadd.f32 %v2431, 1.0
      %v2452 = vadd.f32 %v2432, 1.0
      %v2453 = vadd.f32 %v2433, 1.0
      %v2454 = vadd.f32 %v2434, 1.0
      %v2455 = vadd.f32 %v2435, 1.0
      %v2456 = vadd.f32 %v2436, 1.0
      %v2457 = vadd.f32 %v2437, 1.0
      %v2458 = vadd.f32 %v2438, 1.0
      %v2459 = vadd.f32 %v2439, 1.0
      %v2460 = vadd.f32 %v2440, 1.0
      %v2461 = vadd.f32 %v2441, 1.0
      %v2462 = vadd.f32 %v2442, 1.0
      %v2463 = vadd.f32 %v2443, 1.0
      %v2464 = vadd.f32 %v2444, 1.0
      %v2465 = vadd.f32 %v2445, 1.0
      %v2466 = vadd.f32 %v2446, 1.0
      %v2467 = vmul.f32 %v2387, %v2447
      %v2468 = vmul.f32 %v2388, %v2448
      %v2469 = vmul.f32 %v2389, %v2449
      %v2470 = vmul.f32 %v2390, %v2450
      %v2471 = vmul.f32 %v2391, %v2451
      %v2472 = vmul.f32 %v2392, %v2452
      %v2473 = vmul.f32 %v2393, %v2453
      %v2474 = vmul.f32 %v2394, %v2454
      %v2475 = vmul.f32 %v2395, %v2455
      %v2476 = vmul.f32 %v2396, %v2456
      %v2477 = vmul.f32 %v2397, %v2457
      %v2478 = vmul.f32 %v2398, %v2458
      %v2479 = vmul.f32 %v2399, %v2459
      %v2480 = vmul.f32 %v2400, %v2460
      %v2481 = vmul.f32 %v2401, %v2461
      %v2482 = vmul.f32 %v2402, %v2462
      %v2483 = vmul.f32 %v2403, %v2463
      %v2484 = vmul.f32 %v2404, %v2464
      %v2485 = vmul.f32 %v2405, %v2465
      %v2486 = vmul.f32 %v2406, %v2466
      %v2487 = vpack.c.bf16 %v2471, %v2467
      %v2488 = vpack.c.bf16 %v2472, %v2468
      %v2489 = vpack.c.bf16 %v2473, %v2469
      %v2490 = vpack.c.bf16 %v2474, %v2470
      %v2491 = vpack.c.bf16 %v2479, %v2475
      %v2492 = vpack.c.bf16 %v2480, %v2476
      %v2493 = vpack.c.bf16 %v2481, %v2477
      %v2494 = vpack.c.bf16 %v2482, %v2478
      %v2495 = vpack.c.bf16 %v2483, %v2483
      %v2496 = vpack.c.bf16 %v2484, %v2484
      %v2497 = vpack.c.bf16 %v2485, %v2485
      %v2498 = vpack.c.bf16 %v2486, %v2486
      %v2499 = vld [vmem:[%s9] sm:$0xf]
      %v2500 = vld [vmem:[%s9 + $0x4] sm:$0xf]
      %v2501 = vld [vmem:[%s9 + $0x8] sm:$0xf]
      %v2502 = vld [vmem:[%s9 + $0xc] sm:$0xf]
      %v2503 = vld [vmem:[%s9 + $0x10] sm:$0xf]
      %v2504 = vld [vmem:[%s9 + $0x14] sm:$0xf]
      %v2505 = vld [vmem:[%s9 + $0x18] sm:$0xf]
      %v2506 = vld [vmem:[%s9 + $0x1c] sm:$0xf]
      %v2507 = vld [vmem:[%s9 + $0x20] sm:$0xf]
      %v2508 = vld [vmem:[%s9 + $0x24] sm:$0xf]
      %v2509 = vld [vmem:[%s9 + $0x28] sm:$0xf]
      %v2510 = vld [vmem:[%s9 + $0x2c] sm:$0xf]
      %v2511 = vld [vmem:[%s9 + $0x30] sm:$0xf]
      %v2512 = vld [vmem:[%s9 + $0x34] sm:$0xf]
      %v2513 = vld [vmem:[%s9 + $0x38] sm:$0xf]
      %v2514 = vld [vmem:[%s9 + $0x3c] sm:$0xf]
      %v2515 = vld [vmem:[%s9 + $0x40] sm:$0xf]
      %v2516 = vld [vmem:[%s9 + $0x44] sm:$0xf]
      %v2517 = vld [vmem:[%s9 + $0x48] sm:$0xf]
      %v2518 = vld [vmem:[%s9 + $0x4c] sm:$0xf]
      %v2519 = vld [vmem:[%s9 + $0x50] sm:$0xf]
      %v2520 = vld [vmem:[%s9 + $0x54] sm:$0xf]
      %v2521 = vld [vmem:[%s9 + $0x58] sm:$0xf]
      %v2522 = vld [vmem:[%s9 + $0x5c] sm:$0xf]
      %v2523 = vld [vmem:[%s9 + $0x60] sm:$0xf]
      %v2524 = vld [vmem:[%s9 + $0x64] sm:$0xf]
      %v2525 = vld [vmem:[%s9 + $0x68] sm:$0xf]
      %v2526 = vld [vmem:[%s9 + $0x6c] sm:$0xf]
      %v2527 = vld [vmem:[%s9 + $0x70] sm:$0xf]
      %v2528 = vld [vmem:[%s9 + $0x74] sm:$0xf]
      %v2529 = vld [vmem:[%s9 + $0x78] sm:$0xf]
      %v2530 = vld [vmem:[%s9 + $0x7c] sm:$0xf]
      %v2531 = vld [vmem:[%s9 + $0x80] sm:$0xf]
      %v2532 = vld [vmem:[%s9 + $0x84] sm:$0xf]
      %v2533 = vld [vmem:[%s9 + $0x88] sm:$0xf]
      %v2534 = vld [vmem:[%s9 + $0x8c] sm:$0xf]
      %v2535 = vld [vmem:[%s9 + $0x90] sm:$0xf]
      %v2536 = vld [vmem:[%s9 + $0x94] sm:$0xf]
      %v2537 = vld [vmem:[%s9 + $0x98] sm:$0xf]
      %v2538 = vld [vmem:[%s9 + $0x9c] sm:$0xf]
      %v2539 = vld [vmem:[%s9 + $0xa0] sm:$0xf]
      %v2540 = vld [vmem:[%s9 + $0xa4] sm:$0xf]
      %v2541 = vld [vmem:[%s9 + $0xa8] sm:$0xf]
      %v2542 = vld [vmem:[%s9 + $0xac] sm:$0xf]
      %v2543 = vld [vmem:[%s9 + $0xb0] sm:$0xf]
      %v2544 = vld [vmem:[%s9 + $0xb4] sm:$0xf]
      %v2545 = vld [vmem:[%s9 + $0xb8] sm:$0xf]
      %v2546 = vld [vmem:[%s9 + $0xbc] sm:$0xf]
      %v2547 = vld [vmem:[%s9 + $0xc0] sm:$0xf]
      %v2548 = vld [vmem:[%s9 + $0xc4] sm:$0xf]
      %v2549 = vld [vmem:[%s9 + $0xc8] sm:$0xf]
      %v2550 = vld [vmem:[%s9 + $0xcc] sm:$0xf]
      %v2551 = vld [vmem:[%s9 + $0xd0] sm:$0xf]
      %v2552 = vld [vmem:[%s9 + $0xd4] sm:$0xf]
      %v2553 = vld [vmem:[%s9 + $0xd8] sm:$0xf]
      %v2554 = vld [vmem:[%s9 + $0xdc] sm:$0xf]
      %v2555 = vld [vmem:[%s9 + $0xe0] sm:$0xf]
      %v2556 = vld [vmem:[%s9 + $0xe4] sm:$0xf]
      %v2557 = vld [vmem:[%s9 + $0xe8] sm:$0xf]
      %v2558 = vld [vmem:[%s9 + $0xec] sm:$0xf]
      %v2559 = vld [vmem:[%s9 + $0xf0] sm:$0xf]
      %v2560 = vld [vmem:[%s9 + $0xf4] sm:$0xf]
      %v2561 = vld [vmem:[%s9 + $0xf8] sm:$0xf]
      %v2562 = vld [vmem:[%s9 + $0xfc] sm:$0xf]
      %v2563 = vld [vmem:[%s7 + $0x10] sm:$0xff]
      %v2564 = vld [vmem:[%s7 + $0x18] sm:$0xff]
      %v2565 = vld [vmem:[%s7 + $0x50] sm:$0xff]
      %v2566 = vld [vmem:[%s7 + $0x58] sm:$0xff]
      %v2567 = vld [vmem:[%s7 + $0x90] sm:$0xff]
      %v2568 = vld [vmem:[%s7 + $0x98] sm:$0xff]
      %v2569 = vld [vmem:[%s7 + $0xd0] sm:$0xff]
      %v2570 = vld [vmem:[%s7 + $0xd8] sm:$0xff]
      %v2571 = vld [vmem:[%s8 + $0x4] sm:$0xf]
      %v2573 = vlaneseq
      %v2574 = vshrl.u32 %v2573, 7
      %v2575 = vsub.s32 0, %v2574
      %v2576 = vrot.slane %v2571, %v2575
      %v2577 = vlaneseq
      %v2578 = vshrl.u32 %v2577, 7
      %v2579 = vsub.s32 1, %v2578
      %v2580 = vrot.slane %v2571, %v2579
      %v2581 = vlaneseq
      %v2582 = vshrl.u32 %v2581, 7
      %v2583 = vsub.s32 2, %v2582
      %v2584 = vrot.slane %v2571, %v2583
      %v2585 = vlaneseq
      %v2586 = vshrl.u32 %v2585, 7
      %v2587 = vsub.s32 3, %v2586
      %v2588 = vrot.slane %v2571, %v2587
      %v2601 = vunpack.c.l.b16 %v2563
      %v2602 = vunpack.c.h.b16 %v2563
      %v2603 = vunpack.c.l.b16 %v2564
      %v2604 = vunpack.c.h.b16 %v2564
      %v2605 = vunpack.c.l.b16 %v2565
      %v2606 = vunpack.c.h.b16 %v2565
      %v2607 = vunpack.c.l.b16 %v2566
      %v2608 = vunpack.c.h.b16 %v2566
      %v2609 = vunpack.c.l.b16 %v2567
      %v2610 = vunpack.c.h.b16 %v2567
      %v2611 = vunpack.c.l.b16 %v2568
      %v2612 = vunpack.c.h.b16 %v2568
      %v2613 = vunpack.c.l.b16 %v2569
      %v2614 = vunpack.c.h.b16 %v2569
      %v2615 = vunpack.c.l.b16 %v2570
      %v2616 = vunpack.c.h.b16 %v2570
      %v2617 = vpack.c.b16 %v2605, %v2601
      %v2618 = vpack.c.b16 %v2606, %v2602
      %v2619 = vpack.c.b16 %v2607, %v2603
      %v2620 = vpack.c.b16 %v2608, %v2604
      %v2621 = vpack.c.b16 %v2613, %v2609
      %v2622 = vpack.c.b16 %v2614, %v2610
      %v2623 = vpack.c.b16 %v2615, %v2611
      %v2624 = vpack.c.b16 %v2616, %v2612
      %2633 = vmatprep.subr.bf16.mxu0 %v2618
      %2634 = vmatpush1.bf16.msra.mxu0 %v2617
      %2635 = vmatprep.subr.bf16.mxu0 %v2622
      %2636 = vmatpush1.bf16.msra.mxu0 %v2621
      %2637 = vmatprep.subr.bf16.mxu0 0
      %2638 = vmatpush1.bf16.msra.mxu0 0
      %2639 = vmatprep.subr.bf16.mxu0 0
      %2640 = vmatpush1.bf16.msra.mxu0 0
      %2641 = vmatprep.subr.bf16.mxu0 0
      %2642 = vmatpush1.bf16.msra.mxu0 0
      %2643 = vmatprep.subr.bf16.mxu0 0
      %2644 = vmatpush1.bf16.msra.mxu0 0
      %2645 = vmatprep.subr.bf16.mxu0 0
      %2646 = vmatpush1.bf16.msra.mxu0 0
      %2647 = vmatprep.subr.bf16.mxu0 0
      %2648 = vmatpush1.bf16.msra.mxu0 0
      %2649 = vmatprep.subr.bf16.mxu0 0
      %2650 = vmatpush1.bf16.msra.mxu0 0
      %2651 = vmatprep.subr.bf16.mxu0 0
      %2652 = vmatpush1.bf16.msra.mxu0 0
      %2653 = vmatprep.subr.bf16.mxu0 0
      %2654 = vmatpush1.bf16.msra.mxu0 0
      %2655 = vmatprep.subr.bf16.mxu0 0
      %2656 = vmatpush1.bf16.msra.mxu0 0
      %2657 = vmatprep.subr.bf16.mxu0 0
      %2658 = vmatpush1.bf16.msra.mxu0 0
      %2659 = vmatprep.subr.bf16.mxu0 0
      %2660 = vmatpush1.bf16.msra.mxu0 0
      %2661 = vmatprep.subr.bf16.mxu0 0
      %2662 = vmatpush1.bf16.msra.mxu0 0
      %2663 = vmatprep.subr.bf16.mxu0 0
      %2664 = vmatpush1.bf16.msra.mxu0 0
      %2665 = vmatprep.mubr.bf16.mxu0 0
      %2666 = vmatmul.mubr.bf16.gmra.mrb[0].mxu0 %v2257
      %v2667 = vpop.f32.mrb[0].mxu0
      %v2668 = vadd.f32 %v2576, %v2667
      %v2669 = vpop.f32.mrb[0].mxu0
      %v2670 = vadd.f32 %v2580, %v2669
      %v2671 = vpop.f32.mrb[0].mxu0
      %v2672 = vadd.f32 %v2576, %v2671
      %v2673 = vpop.f32.mrb[0].mxu0
      %v2674 = vadd.f32 %v2580, %v2673
      %2675 = vmatprep.mubr.bf16.mxu0 0
      %2676 = vmatmul.mubr.bf16.gmra.mrb[0].mxu0 %v2260
      %v2677 = vpop.f32.mrb[0].mxu0
      %v2678 = vadd.f32 %v2576, %v2677
      %v2679 = vpop.f32.mrb[0].mxu0
      %v2680 = vadd.f32 %v2580, %v2679
      %v2681 = vpop.f32.mrb[0].mxu0
      %v2682 = vadd.f32 %v2576, %v2681
      %v2683 = vpop.f32.mrb[0].mxu0
      %v2684 = vadd.f32 %v2580, %v2683
      %2685 = vmatprep.mubr.bf16.mxu0 0
      %2686 = vmatmul.mubr.bf16.gmra.mrb[0].mxu0 %v2263
      %v2687 = vpop.f32.mrb[0].mxu0
      %v2688 = vadd.f32 %v2576, %v2687
      %v2689 = vpop.f32.mrb[0].mxu0
      %v2690 = vadd.f32 %v2580, %v2689
      %v2691 = vpop.f32.mrb[0].mxu0
      %v2692 = vpop.f32.mrb[0].mxu0
      %2693 = vdwg.mxu0
      %2694 = vmatprep.subr.bf16.mxu0 %v2620
      %2695 = vmatpush1.bf16.msra.mxu0 %v2619
      %2696 = vmatprep.subr.bf16.mxu0 %v2624
      %2697 = vmatpush1.bf16.msra.mxu0 %v2623
      %2698 = vmatprep.subr.bf16.mxu0 0
      %2699 = vmatpush1.bf16.msra.mxu0 0
      %2700 = vmatprep.subr.bf16.mxu0 0
      %2701 = vmatpush1.bf16.msra.mxu0 0
      %2702 = vmatprep.subr.bf16.mxu0 0
      %2703 = vmatpush1.bf16.msra.mxu0 0
      %2704 = vmatprep.subr.bf16.mxu0 0
      %2705 = vmatpush1.bf16.msra.mxu0 0
      %2706 = vmatprep.subr.bf16.mxu0 0
      %2707 = vmatpush1.bf16.msra.mxu0 0
      %2708 = vmatprep.subr.bf16.mxu0 0
      %2709 = vmatpush1.bf16.msra.mxu0 0
      %2710 = vmatprep.subr.bf16.mxu0 0
      %2711 = vmatpush1.bf16.msra.mxu0 0
      %2712 = vmatprep.subr.bf16.mxu0 0
      %2713 = vmatpush1.bf16.msra.mxu0 0
      %2714 = vmatprep.subr.bf16.mxu0 0
      %2715 = vmatpush1.bf16.msra.mxu0 0
      %2716 = vmatprep.subr.bf16.mxu0 0
      %2717 = vmatpush1.bf16.msra.mxu0 0
      %2718 = vmatprep.subr.bf16.mxu0 0
      %2719 = vmatpush1.bf16.msra.mxu0 0
      %2720 = vmatprep.subr.bf16.mxu0 0
      %2721 = vmatpush1.bf16.msra.mxu0 0
      %2722 = vmatprep.subr.bf16.mxu0 0
      %2723 = vmatpush1.bf16.msra.mxu0 0
      %2724 = vmatprep.subr.bf16.mxu0 0
      %2725 = vmatpush1.bf16.msra.mxu0 0
      %2726 = vmatprep.mubr.bf16.mxu0 0
      %2727 = vmatmul.mubr.bf16.gmra.mrb[0].mxu0 %v2257
      %v2728 = vpop.f32.mrb[0].mxu0
      %v2729 = vadd.f32 %v2584, %v2728
      %v2730 = vpop.f32.mrb[0].mxu0
      %v2731 = vadd.f32 %v2588, %v2730
      %v2732 = vpop.f32.mrb[0].mxu0
      %v2733 = vadd.f32 %v2584, %v2732
      %v2734 = vpop.f32.mrb[0].mxu0
      %v2735 = vadd.f32 %v2588, %v2734
      %2736 = vmatprep.mubr.bf16.mxu0 0
      %2737 = vmatmul.mubr.bf16.gmra.mrb[0].mxu0 %v2260
      %v2738 = vpop.f32.mrb[0].mxu0
      %v2739 = vadd.f32 %v2584, %v2738
      %v2740 = vpop.f32.mrb[0].mxu0
      %v2741 = vadd.f32 %v2588, %v2740
      %v2742 = vpop.f32.mrb[0].mxu0
      %v2743 = vadd.f32 %v2584, %v2742
      %v2744 = vpop.f32.mrb[0].mxu0
      %v2745 = vadd.f32 %v2588, %v2744
      %2746 = vmatprep.mubr.bf16.mxu0 0
      %2747 = vmatmul.mubr.bf16.gmra.mrb[0].mxu0 %v2263
      %v2748 = vpop.f32.mrb[0].mxu0
      %v2749 = vadd.f32 %v2584, %v2748
      %v2750 = vpop.f32.mrb[0].mxu0
      %v2751 = vadd.f32 %v2588, %v2750
      %v2752 = vpop.f32.mrb[0].mxu0
      %v2753 = vpop.f32.mrb[0].mxu0
      %2754 = vdwg.mxu0
      %v2755 = vmul.f32 %v2668, 0.5
      %v2756 = vmul.f32 %v2670, 0.5
      %v2757 = vmul.f32 %v2729, 0.5
      %v2758 = vmul.f32 %v2731, 0.5
      %v2759 = vmul.f32 %v2672, 0.5
      %v2760 = vmul.f32 %v2674, 0.5
      %v2761 = vmul.f32 %v2733, 0.5
      %v2762 = vmul.f32 %v2735, 0.5
      %v2763 = vmul.f32 %v2678, 0.5
      %v2764 = vmul.f32 %v2680, 0.5
      %v2765 = vmul.f32 %v2739, 0.5
      %v2766 = vmul.f32 %v2741, 0.5
      %v2767 = vmul.f32 %v2682, 0.5
      %v2768 = vmul.f32 %v2684, 0.5
      %v2769 = vmul.f32 %v2743, 0.5
      %v2770 = vmul.f32 %v2745, 0.5
      %v2771 = vmul.f32 %v2688, 0.5
      %v2772 = vmul.f32 %v2690, 0.5
      %v2773 = vmul.f32 %v2749, 0.5
      %v2774 = vmul.f32 %v2751, 0.5
      %v2775 = vmul.f32 %v2668, 0.70710677
      %v2776 = vmul.f32 %v2670, 0.70710677
      %v2777 = vmul.f32 %v2729, 0.70710677
      %v2778 = vmul.f32 %v2731, 0.70710677
      %v2779 = vmul.f32 %v2672, 0.70710677
      %v2780 = vmul.f32 %v2674, 0.70710677
      %v2781 = vmul.f32 %v2733, 0.70710677
      %v2782 = vmul.f32 %v2735, 0.70710677
      %v2783 = vmul.f32 %v2678, 0.70710677
      %v2784 = vmul.f32 %v2680, 0.70710677
      %v2785 = vmul.f32 %v2739, 0.70710677
      %v2786 = vmul.f32 %v2741, 0.70710677
      %v2787 = vmul.f32 %v2682, 0.70710677
      %v2788 = vmul.f32 %v2684, 0.70710677
      %v2789 = vmul.f32 %v2743, 0.70710677
      %v2790 = vmul.f32 %v2745, 0.70710677
      %v2791 = vmul.f32 %v2688, 0.70710677
      %v2792 = vmul.f32 %v2690, 0.70710677
      %v2793 = vmul.f32 %v2749, 0.70710677
      %v2794 = vmul.f32 %v2751, 0.70710677
      %v2795 = verf.f32.pop %v2775
      %v2796 = verf.f32.pop %v2776
      %v2797 = verf.f32.pop %v2777
      %v2798 = verf.f32.pop %v2778
      %v2799 = verf.f32.pop %v2779
      %v2800 = verf.f32.pop %v2780
      %v2801 = verf.f32.pop %v2781
      %v2802 = verf.f32.pop %v2782
      %v2803 = verf.f32.pop %v2783
      %v2804 = verf.f32.pop %v2784
      %v2805 = verf.f32.pop %v2785
      %v2806 = verf.f32.pop %v2786
      %v2807 = verf.f32.pop %v2787
      %v2808 = verf.f32.pop %v2788
      %v2809 = verf.f32.pop %v2789
      %v2810 = verf.f32.pop %v2790
      %v2811 = verf.f32.pop %v2791
      %v2812 = verf.f32.pop %v2792
      %v2813 = verf.f32.pop %v2793
      %v2814 = verf.f32.pop %v2794
      %v2815 = vadd.f32 %v2795, 1.0
      %v2816 = vadd.f32 %v2796, 1.0
      %v2817 = vadd.f32 %v2797, 1.0
      %v2818 = vadd.f32 %v2798, 1.0
      %v2819 = vadd.f32 %v2799, 1.0
      %v2820 = vadd.f32 %v2800, 1.0
      %v2821 = vadd.f32 %v2801, 1.0
      %v2822 = vadd.f32 %v2802, 1.0
      %v2823 = vadd.f32 %v2803, 1.0
      %v2824 = vadd.f32 %v2804, 1.0
      %v2825 = vadd.f32 %v2805, 1.0
      %v2826 = vadd.f32 %v2806, 1.0
      %v2827 = vadd.f32 %v2807, 1.0
      %v2828 = vadd.f32 %v2808, 1.0
      %v2829 = vadd.f32 %v2809, 1.0
      %v2830 = vadd.f32 %v2810, 1.0
      %v2831 = vadd.f32 %v2811, 1.0
      %v2832 = vadd.f32 %v2812, 1.0
      %v2833 = vadd.f32 %v2813, 1.0
      %v2834 = vadd.f32 %v2814, 1.0
      %v2835 = vmul.f32 %v2755, %v2815
      %v2836 = vmul.f32 %v2756, %v2816
      %v2837 = vmul.f32 %v2757, %v2817
      %v2838 = vmul.f32 %v2758, %v2818
      %v2839 = vmul.f32 %v2759, %v2819
      %v2840 = vmul.f32 %v2760, %v2820
      %v2841 = vmul.f32 %v2761, %v2821
      %v2842 = vmul.f32 %v2762, %v2822
      %v2843 = vmul.f32 %v2763, %v2823
      %v2844 = vmul.f32 %v2764, %v2824
      %v2845 = vmul.f32 %v2765, %v2825
      %v2846 = vmul.f32 %v2766, %v2826
      %v2847 = vmul.f32 %v2767, %v2827
      %v2848 = vmul.f32 %v2768, %v2828
      %v2849 = vmul.f32 %v2769, %v2829
      %v2850 = vmul.f32 %v2770, %v2830
      %v2851 = vmul.f32 %v2771, %v2831
      %v2852 = vmul.f32 %v2772, %v2832
      %v2853 = vmul.f32 %v2773, %v2833
      %v2854 = vmul.f32 %v2774, %v2834
      %v2855 = vpack.c.bf16 %v2839, %v2835
      %v2856 = vpack.c.bf16 %v2840, %v2836
      %v2857 = vpack.c.bf16 %v2841, %v2837
      %v2858 = vpack.c.bf16 %v2842, %v2838
      %v2859 = vpack.c.bf16 %v2847, %v2843
      %v2860 = vpack.c.bf16 %v2848, %v2844
      %v2861 = vpack.c.bf16 %v2849, %v2845
      %v2862 = vpack.c.bf16 %v2850, %v2846
      %v2863 = vpack.c.bf16 %v2851, %v2851
      %v2864 = vpack.c.bf16 %v2852, %v2852
      %v2865 = vpack.c.bf16 %v2853, %v2853
      %v2866 = vpack.c.bf16 %v2854, %v2854
      %v2867 = vld [vmem:[%s9 + $0x100] sm:$0xf]
      %v2868 = vld [vmem:[%s9 + $0x104] sm:$0xf]
      %v2869 = vld [vmem:[%s9 + $0x108] sm:$0xf]
      %v2870 = vld [vmem:[%s9 + $0x10c] sm:$0xf]
      %v2871 = vld [vmem:[%s9 + $0x110] sm:$0xf]
      %v2872 = vld [vmem:[%s9 + $0x114] sm:$0xf]
      %v2873 = vld [vmem:[%s9 + $0x118] sm:$0xf]
      %v2874 = vld [vmem:[%s9 + $0x11c] sm:$0xf]
      %v2875 = vld [vmem:[%s9 + $0x120] sm:$0xf]
      %v2876 = vld [vmem:[%s9 + $0x124] sm:$0xf]
      %v2877 = vld [vmem:[%s9 + $0x128] sm:$0xf]
      %v2878 = vld [vmem:[%s9 + $0x12c] sm:$0xf]
      %v2879 = vld [vmem:[%s9 + $0x130] sm:$0xf]
      %v2880 = vld [vmem:[%s9 + $0x134] sm:$0xf]
      %v2881 = vld [vmem:[%s9 + $0x138] sm:$0xf]
      %v2882 = vld [vmem:[%s9 + $0x13c] sm:$0xf]
      %v2883 = vld [vmem:[%s9 + $0x140] sm:$0xf]
      %v2884 = vld [vmem:[%s9 + $0x144] sm:$0xf]
      %v2885 = vld [vmem:[%s9 + $0x148] sm:$0xf]
      %v2886 = vld [vmem:[%s9 + $0x14c] sm:$0xf]
      %v2887 = vld [vmem:[%s9 + $0x150] sm:$0xf]
      %v2888 = vld [vmem:[%s9 + $0x154] sm:$0xf]
      %v2889 = vld [vmem:[%s9 + $0x158] sm:$0xf]
      %v2890 = vld [vmem:[%s9 + $0x15c] sm:$0xf]
      %v2891 = vld [vmem:[%s9 + $0x160] sm:$0xf]
      %v2892 = vld [vmem:[%s9 + $0x164] sm:$0xf]
      %v2893 = vld [vmem:[%s9 + $0x168] sm:$0xf]
      %v2894 = vld [vmem:[%s9 + $0x16c] sm:$0xf]
      %v2895 = vld [vmem:[%s9 + $0x170] sm:$0xf]
      %v2896 = vld [vmem:[%s9 + $0x174] sm:$0xf]
      %v2897 = vld [vmem:[%s9 + $0x178] sm:$0xf]
      %v2898 = vld [vmem:[%s9 + $0x17c] sm:$0xf]
      %v2899 = vld [vmem:[%s9 + $0x180] sm:$0xf]
      %v2900 = vld [vmem:[%s9 + $0x184] sm:$0xf]
      %v2901 = vld [vmem:[%s9 + $0x188] sm:$0xf]
      %v2902 = vld [vmem:[%s9 + $0x18c] sm:$0xf]
      %v2903 = vld [vmem:[%s9 + $0x190] sm:$0xf]
      %v2904 = vld [vmem:[%s9 + $0x194] sm:$0xf]
      %v2905 = vld [vmem:[%s9 + $0x198] sm:$0xf]
      %v2906 = vld [vmem:[%s9 + $0x19c] sm:$0xf]
      %v2907 = vld [vmem:[%s9 + $0x1a0] sm:$0xf]
      %v2908 = vld [vmem:[%s9 + $0x1a4] sm:$0xf]
      %v2909 = vld [vmem:[%s9 + $0x1a8] sm:$0xf]
      %v2910 = vld [vmem:[%s9 + $0x1ac] sm:$0xf]
      %v2911 = vld [vmem:[%s9 + $0x1b0] sm:$0xf]
      %v2912 = vld [vmem:[%s9 + $0x1b4] sm:$0xf]
      %v2913 = vld [vmem:[%s9 + $0x1b8] sm:$0xf]
      %v2914 = vld [vmem:[%s9 + $0x1bc] sm:$0xf]
      %v2915 = vld [vmem:[%s9 + $0x1c0] sm:$0xf]
      %v2916 = vld [vmem:[%s9 + $0x1c4] sm:$0xf]
      %v2917 = vld [vmem:[%s9 + $0x1c8] sm:$0xf]
      %v2918 = vld [vmem:[%s9 + $0x1cc] sm:$0xf]
      %v2919 = vld [vmem:[%s9 + $0x1d0] sm:$0xf]
      %v2920 = vld [vmem:[%s9 + $0x1d4] sm:$0xf]
      %v2921 = vld [vmem:[%s9 + $0x1d8] sm:$0xf]
      %v2922 = vld [vmem:[%s9 + $0x1dc] sm:$0xf]
      %v2923 = vld [vmem:[%s9 + $0x1e0] sm:$0xf]
      %v2924 = vld [vmem:[%s9 + $0x1e4] sm:$0xf]
      %v2925 = vld [vmem:[%s9 + $0x1e8] sm:$0xf]
      %v2926 = vld [vmem:[%s9 + $0x1ec] sm:$0xf]
      %v2927 = vld [vmem:[%s9 + $0x1f0] sm:$0xf]
      %v2928 = vld [vmem:[%s9 + $0x1f4] sm:$0xf]
      %v2929 = vld [vmem:[%s9 + $0x1f8] sm:$0xf]
      %v2930 = vld [vmem:[%s9 + $0x1fc] sm:$0xf]
      %v2995 = vunpack.c.l.b16 %v2867
      %v2996 = vunpack.c.l.b16 %v2868
      %v2997 = vunpack.c.l.b16 %v2869
      %v2998 = vunpack.c.l.b16 %v2870
      %v2999 = vunpack.c.l.b16 %v2871
      %v3000 = vunpack.c.l.b16 %v2872
      %v3001 = vunpack.c.l.b16 %v2873
      %v3002 = vunpack.c.l.b16 %v2874
      %v3003 = vunpack.c.l.b16 %v2875
      %v3004 = vunpack.c.l.b16 %v2876
      %v3005 = vunpack.c.l.b16 %v2877
      %v3006 = vunpack.c.l.b16 %v2878
      %v3007 = vunpack.c.l.b16 %v2879
      %v3008 = vunpack.c.l.b16 %v2880
      %v3009 = vunpack.c.l.b16 %v2881
      %v3010 = vunpack.c.l.b16 %v2882
      %v3011 = vunpack.c.l.b16 %v2883
      %v3012 = vunpack.c.l.b16 %v2884
      %v3013 = vunpack.c.l.b16 %v2885
      %v3014 = vunpack.c.l.b16 %v2886
      %v3015 = vunpack.c.l.b16 %v2887
      %v3016 = vunpack.c.l.b16 %v2888
      %v3017 = vunpack.c.l.b16 %v2889
      %v3018 = vunpack.c.l.b16 %v2890
      %v3019 = vunpack.c.l.b16 %v2891
      %v3020 = vunpack.c.l.b16 %v2892
      %v3021 = vunpack.c.l.b16 %v2893
      %v3022 = vunpack.c.l.b16 %v2894
      %v3023 = vunpack.c.l.b16 %v2895
      %v3024 = vunpack.c.l.b16 %v2896
      %v3025 = vunpack.c.l.b16 %v2897
      %v3026 = vunpack.c.l.b16 %v2898
      %v3027 = vunpack.c.l.b16 %v2899
      %v3028 = vunpack.c.l.b16 %v2900
      %v3029 = vunpack.c.l.b16 %v2901
      %v3030 = vunpack.c.l.b16 %v2902
      %v3031 = vunpack.c.l.b16 %v2903
      %v3032 = vunpack.c.l.b16 %v2904
      %v3033 = vunpack.c.l.b16 %v2905
      %v3034 = vunpack.c.l.b16 %v2906
      %v3035 = vunpack.c.l.b16 %v2907
      %v3036 = vunpack.c.l.b16 %v2908
      %v3037 = vunpack.c.l.b16 %v2909
      %v3038 = vunpack.c.l.b16 %v2910
      %v3039 = vunpack.c.l.b16 %v2911
      %v3040 = vunpack.c.l.b16 %v2912
      %v3041 = vunpack.c.l.b16 %v2913
      %v3042 = vunpack.c.l.b16 %v2914
      %v3043 = vunpack.c.l.b16 %v2915
      %v3044 = vunpack.c.l.b16 %v2916
      %v3045 = vunpack.c.l.b16 %v2917
      %v3046 = vunpack.c.l.b16 %v2918
      %v3047 = vunpack.c.l.b16 %v2919
      %v3048 = vunpack.c.l.b16 %v2920
      %v3049 = vunpack.c.l.b16 %v2921
      %v3050 = vunpack.c.l.b16 %v2922
      %v3051 = vunpack.c.l.b16 %v2923
      %v3052 = vunpack.c.l.b16 %v2924
      %v3053 = vunpack.c.l.b16 %v2925
      %v3054 = vunpack.c.l.b16 %v2926
      %v3055 = vunpack.c.l.b16 %v2927
      %v3056 = vunpack.c.l.b16 %v2928
      %v3057 = vunpack.c.l.b16 %v2929
      %v3058 = vunpack.c.l.b16 %v2930
      %v3059 = vpack.c.b16 %v2996, %v2995
      %v3060 = vpack.c.b16 %v2998, %v2997
      %v3061 = vpack.c.b16 %v3000, %v2999
      %v3062 = vpack.c.b16 %v3002, %v3001
      %v3063 = vpack.c.b16 %v3004, %v3003
      %v3064 = vpack.c.b16 %v3006, %v3005
      %v3065 = vpack.c.b16 %v3008, %v3007
      %v3066 = vpack.c.b16 %v3010, %v3009
      %v3067 = vpack.c.b16 %v3012, %v3011
      %v3068 = vpack.c.b16 %v3014, %v3013
      %v3069 = vpack.c.b16 %v3016, %v3015
      %v3070 = vpack.c.b16 %v3018, %v3017
      %v3071 = vpack.c.b16 %v3020, %v3019
      %v3072 = vpack.c.b16 %v3022, %v3021
      %v3073 = vpack.c.b16 %v3024, %v3023
      %v3074 = vpack.c.b16 %v3026, %v3025
      %v3075 = vpack.c.b16 %v3028, %v3027
      %v3076 = vpack.c.b16 %v3030, %v3029
      %v3077 = vpack.c.b16 %v3032, %v3031
      %v3078 = vpack.c.b16 %v3034, %v3033
      %v3079 = vpack.c.b16 %v3036, %v3035
      %v3080 = vpack.c.b16 %v3038, %v3037
      %v3081 = vpack.c.b16 %v3040, %v3039
      %v3082 = vpack.c.b16 %v3042, %v3041
      %v3083 = vpack.c.b16 %v3044, %v3043
      %v3084 = vpack.c.b16 %v3046, %v3045
      %v3085 = vpack.c.b16 %v3048, %v3047
      %v3086 = vpack.c.b16 %v3050, %v3049
      %v3087 = vpack.c.b16 %v3052, %v3051
      %v3088 = vpack.c.b16 %v3054, %v3053
      %v3089 = vpack.c.b16 %v3056, %v3055
      %v3090 = vpack.c.b16 %v3058, %v3057
      %3123 = vmatprep.subr.bf16.mxu0 0
      %3124 = vmatpush1.bf16.msra.mxu0 %v3059
      %3125 = vmatprep.subr.bf16.mxu0 0
      %3126 = vmatpush1.bf16.msra.mxu0 %v3060
      %3127 = vmatprep.subr.bf16.mxu0 0
      %3128 = vmatpush1.bf16.msra.mxu0 %v3061
      %3129 = vmatprep.subr.bf16.mxu0 0
      %3130 = vmatpush1.bf16.msra.mxu0 %v3062
      %3131 = vmatprep.subr.bf16.mxu0 0
      %3132 = vmatpush1.bf16.msra.mxu0 %v3063
      %3133 = vmatprep.subr.bf16.mxu0 0
      %3134 = vmatpush1.bf16.msra.mxu0 %v3064
      %3135 = vmatprep.subr.bf16.mxu0 0
      %3136 = vmatpush1.bf16.msra.mxu0 %v3065
      %3137 = vmatprep.subr.bf16.mxu0 0
      %3138 = vmatpush1.bf16.msra.mxu0 %v3066
      %3139 = vmatprep.subr.bf16.mxu0 0
      %3140 = vmatpush1.bf16.msra.mxu0 %v3067
      %3141 = vmatprep.subr.bf16.mxu0 0
      %3142 = vmatpush1.bf16.msra.mxu0 %v3068
      %3143 = vmatprep.subr.bf16.mxu0 0
      %3144 = vmatpush1.bf16.msra.mxu0 %v3069
      %3145 = vmatprep.subr.bf16.mxu0 0
      %3146 = vmatpush1.bf16.msra.mxu0 %v3070
      %3147 = vmatprep.subr.bf16.mxu0 0
      %3148 = vmatpush1.bf16.msra.mxu0 %v3071
      %3149 = vmatprep.subr.bf16.mxu0 0
      %3150 = vmatpush1.bf16.msra.mxu0 %v3072
      %3151 = vmatprep.subr.bf16.mxu0 0
      %3152 = vmatpush1.bf16.msra.mxu0 %v3073
      %3153 = vmatprep.subr.bf16.mxu0 0
      %3154 = vmatpush1.bf16.msra.mxu0 %v3074
      %3155 = vmatprep.mubr.bf16.mxu0 %v2856
      %3156 = vmatmul.mubr.bf16.gmra.mrb[0].mxu0 %v2855
      %v3157 = vpop.f32.mrb[0].mxu0
      %v3158 = vadd.f32 0.0, %v3157
      %v3159 = vpop.f32.mrb[0].mxu0
      %v3160 = vpop.f32.mrb[0].mxu0
      %v3161 = vadd.f32 0.0, %v3160
      %v3162 = vpop.f32.mrb[0].mxu0
      %3163 = vmatprep.mubr.bf16.mxu0 %v2860
      %3164 = vmatmul.mubr.bf16.gmra.mrb[0].mxu0 %v2859
      %v3165 = vpop.f32.mrb[0].mxu0
      %v3166 = vadd.f32 0.0, %v3165
      %v3167 = vpop.f32.mrb[0].mxu0
      %v3168 = vpop.f32.mrb[0].mxu0
      %v3169 = vadd.f32 0.0, %v3168
      %v3170 = vpop.f32.mrb[0].mxu0
      %3171 = vmatprep.mubr.bf16.mxu0 %v2864
      %3172 = vmatmul.mubr.bf16.gmra.mrb[0].mxu0 %v2863
      %v3173 = vpop.f32.mrb[0].mxu0
      %v3174 = vadd.f32 0.0, %v3173
      %v3175 = vpop.f32.mrb[0].mxu0
      %v3176 = vpop.f32.mrb[0].mxu0
      %v3177 = vpop.f32.mrb[0].mxu0
      %3178 = vdwg.mxu0
      %3179 = vmatprep.subr.bf16.mxu0 0
      %3180 = vmatpush1.bf16.msra.mxu0 %v3075
      %3181 = vmatprep.subr.bf16.mxu0 0
      %3182 = vmatpush1.bf16.msra.mxu0 %v3076
      %3183 = vmatprep.subr.bf16.mxu0 0
      %3184 = vmatpush1.bf16.msra.mxu0 %v3077
      %3185 = vmatprep.subr.bf16.mxu0 0
      %3186 = vmatpush1.bf16.msra.mxu0 %v3078
      %3187 = vmatprep.subr.bf16.mxu0 0
      %3188 = vmatpush1.bf16.msra.mxu0 %v3079
      %3189 = vmatprep.subr.bf16.mxu0 0
      %3190 = vmatpush1.bf16.msra.mxu0 %v3080
      %3191 = vmatprep.subr.bf16.mxu0 0
      %3192 = vmatpush1.bf16.msra.mxu0 %v3081
      %3193 = vmatprep.subr.bf16.mxu0 0
      %3194 = vmatpush1.bf16.msra.mxu0 %v3082
      %3195 = vmatprep.subr.bf16.mxu0 0
      %3196 = vmatpush1.bf16.msra.mxu0 %v3083
      %3197 = vmatprep.subr.bf16.mxu0 0
      %3198 = vmatpush1.bf16.msra.mxu0 %v3084
      %3199 = vmatprep.subr.bf16.mxu0 0
      %3200 = vmatpush1.bf16.msra.mxu0 %v3085
      %3201 = vmatprep.subr.bf16.mxu0 0
      %3202 = vmatpush1.bf16.msra.mxu0 %v3086
      %3203 = vmatprep.subr.bf16.mxu0 0
      %3204 = vmatpush1.bf16.msra.mxu0 %v3087
      %3205 = vmatprep.subr.bf16.mxu0 0
      %3206 = vmatpush1.bf16.msra.mxu0 %v3088
      %3207 = vmatprep.subr.bf16.mxu0 0
      %3208 = vmatpush1.bf16.msra.mxu0 %v3089
      %3209 = vmatprep.subr.bf16.mxu0 0
      %3210 = vmatpush1.bf16.msra.mxu0 %v3090
      %3211 = vmatprep.mubr.bf16.mxu0 %v2858
      %3212 = vmatmul.mubr.bf16.gmra.mrb[0].mxu0 %v2857
      %v3213 = vpop.f32.mrb[0].mxu0
      %v3214 = vadd.f32 %v3158, %v3213
      %v3215 = vpop.f32.mrb[0].mxu0
      %v3216 = vpop.f32.mrb[0].mxu0
      %v3217 = vadd.f32 %v3161, %v3216
      %v3218 = vpop.f32.mrb[0].mxu0
      %3219 = vmatprep.mubr.bf16.mxu0 %v2862
      %3220 = vmatmul.mubr.bf16.gmra.mrb[0].mxu0 %v2861
      %v3221 = vpop.f32.mrb[0].mxu0
      %v3222 = vadd.f32 %v3166, %v3221
      %v3223 = vpop.f32.mrb[0].mxu0
      %v3224 = vpop.f32.mrb[0].mxu0
      %v3225 = vadd.f32 %v3169, %v3224
      %v3226 = vpop.f32.mrb[0].mxu0
      %3227 = vmatprep.mubr.bf16.mxu0 %v2866
      %3228 = vmatmul.mubr.bf16.gmra.mrb[0].mxu0 %v2865
      %v3229 = vpop.f32.mrb[0].mxu0
      %v3230 = vadd.f32 %v3174, %v3229
      %v3231 = vpop.f32.mrb[0].mxu0
      %v3232 = vpop.f32.mrb[0].mxu0
      %v3233 = vpop.f32.mrb[0].mxu0
      %3234 = vdwg.mxu0
      %v3299 = vunpack.c.l.b16 %v2499
      %v3300 = vunpack.c.l.b16 %v2500
      %v3301 = vunpack.c.l.b16 %v2501
      %v3302 = vunpack.c.l.b16 %v2502
      %v3303 = vunpack.c.l.b16 %v2503
      %v3304 = vunpack.c.l.b16 %v2504
      %v3305 = vunpack.c.l.b16 %v2505
      %v3306 = vunpack.c.l.b16 %v2506
      %v3307 = vunpack.c.l.b16 %v2507
      %v3308 = vunpack.c.l.b16 %v2508
      %v3309 = vunpack.c.l.b16 %v2509
      %v3310 = vunpack.c.l.b16 %v2510
      %v3311 = vunpack.c.l.b16 %v2511
      %v3312 = vunpack.c.l.b16 %v2512
      %v3313 = vunpack.c.l.b16 %v2513
      %v3314 = vunpack.c.l.b16 %v2514
      %v3315 = vunpack.c.l.b16 %v2515
      %v3316 = vunpack.c.l.b16 %v2516
      %v3317 = vunpack.c.l.b16 %v2517
      %v3318 = vunpack.c.l.b16 %v2518
      %v3319 = vunpack.c.l.b16 %v2519
      %v3320 = vunpack.c.l.b16 %v2520
      %v3321 = vunpack.c.l.b16 %v2521
      %v3322 = vunpack.c.l.b16 %v2522
      %v3323 = vunpack.c.l.b16 %v2523
      %v3324 = vunpack.c.l.b16 %v2524
      %v3325 = vunpack.c.l.b16 %v2525
      %v3326 = vunpack.c.l.b16 %v2526
      %v3327 = vunpack.c.l.b16 %v2527
      %v3328 = vunpack.c.l.b16 %v2528
      %v3329 = vunpack.c.l.b16 %v2529
      %v3330 = vunpack.c.l.b16 %v2530
      %v3331 = vunpack.c.l.b16 %v2531
      %v3332 = vunpack.c.l.b16 %v2532
      %v3333 = vunpack.c.l.b16 %v2533
      %v3334 = vunpack.c.l.b16 %v2534
      %v3335 = vunpack.c.l.b16 %v2535
      %v3336 = vunpack.c.l.b16 %v2536
      %v3337 = vunpack.c.l.b16 %v2537
      %v3338 = vunpack.c.l.b16 %v2538
      %v3339 = vunpack.c.l.b16 %v2539
      %v3340 = vunpack.c.l.b16 %v2540
      %v3341 = vunpack.c.l.b16 %v2541
      %v3342 = vunpack.c.l.b16 %v2542
      %v3343 = vunpack.c.l.b16 %v2543
      %v3344 = vunpack.c.l.b16 %v2544
      %v3345 = vunpack.c.l.b16 %v2545
      %v3346 = vunpack.c.l.b16 %v2546
      %v3347 = vunpack.c.l.b16 %v2547
      %v3348 = vunpack.c.l.b16 %v2548
      %v3349 = vunpack.c.l.b16 %v2549
      %v3350 = vunpack.c.l.b16 %v2550
      %v3351 = vunpack.c.l.b16 %v2551
      %v3352 = vunpack.c.l.b16 %v2552
      %v3353 = vunpack.c.l.b16 %v2553
      %v3354 = vunpack.c.l.b16 %v2554
      %v3355 = vunpack.c.l.b16 %v2555
      %v3356 = vunpack.c.l.b16 %v2556
      %v3357 = vunpack.c.l.b16 %v2557
      %v3358 = vunpack.c.l.b16 %v2558
      %v3359 = vunpack.c.l.b16 %v2559
      %v3360 = vunpack.c.l.b16 %v2560
      %v3361 = vunpack.c.l.b16 %v2561
      %v3362 = vunpack.c.l.b16 %v2562
      %v3363 = vpack.c.b16 %v3300, %v3299
      %v3364 = vpack.c.b16 %v3302, %v3301
      %v3365 = vpack.c.b16 %v3304, %v3303
      %v3366 = vpack.c.b16 %v3306, %v3305
      %v3367 = vpack.c.b16 %v3308, %v3307
      %v3368 = vpack.c.b16 %v3310, %v3309
      %v3369 = vpack.c.b16 %v3312, %v3311
      %v3370 = vpack.c.b16 %v3314, %v3313
      %v3371 = vpack.c.b16 %v3316, %v3315
      %v3372 = vpack.c.b16 %v3318, %v3317
      %v3373 = vpack.c.b16 %v3320, %v3319
      %v3374 = vpack.c.b16 %v3322, %v3321
      %v3375 = vpack.c.b16 %v3324, %v3323
      %v3376 = vpack.c.b16 %v3326, %v3325
      %v3377 = vpack.c.b16 %v3328, %v3327
      %v3378 = vpack.c.b16 %v3330, %v3329
      %v3379 = vpack.c.b16 %v3332, %v3331
      %v3380 = vpack.c.b16 %v3334, %v3333
      %v3381 = vpack.c.b16 %v3336, %v3335
      %v3382 = vpack.c.b16 %v3338, %v3337
      %v3383 = vpack.c.b16 %v3340, %v3339
      %v3384 = vpack.c.b16 %v3342, %v3341
      %v3385 = vpack.c.b16 %v3344, %v3343
      %v3386 = vpack.c.b16 %v3346, %v3345
      %v3387 = vpack.c.b16 %v3348, %v3347
      %v3388 = vpack.c.b16 %v3350, %v3349
      %v3389 = vpack.c.b16 %v3352, %v3351
      %v3390 = vpack.c.b16 %v3354, %v3353
      %v3391 = vpack.c.b16 %v3356, %v3355
      %v3392 = vpack.c.b16 %v3358, %v3357
      %v3393 = vpack.c.b16 %v3360, %v3359
      %v3394 = vpack.c.b16 %v3362, %v3361
      %3427 = vmatprep.subr.bf16.mxu0 0
      %3428 = vmatpush1.bf16.msra.mxu0 %v3363
      %3429 = vmatprep.subr.bf16.mxu0 0
      %3430 = vmatpush1.bf16.msra.mxu0 %v3364
      %3431 = vmatprep.subr.bf16.mxu0 0
      %3432 = vmatpush1.bf16.msra.mxu0 %v3365
      %3433 = vmatprep.subr.bf16.mxu0 0
      %3434 = vmatpush1.bf16.msra.mxu0 %v3366
      %3435 = vmatprep.subr.bf16.mxu0 0
      %3436 = vmatpush1.bf16.msra.mxu0 %v3367
      %3437 = vmatprep.subr.bf16.mxu0 0
      %3438 = vmatpush1.bf16.msra.mxu0 %v3368
      %3439 = vmatprep.subr.bf16.mxu0 0
      %3440 = vmatpush1.bf16.msra.mxu0 %v3369
      %3441 = vmatprep.subr.bf16.mxu0 0
      %3442 = vmatpush1.bf16.msra.mxu0 %v3370
      %3443 = vmatprep.subr.bf16.mxu0 0
      %3444 = vmatpush1.bf16.msra.mxu0 %v3371
      %3445 = vmatprep.subr.bf16.mxu0 0
      %3446 = vmatpush1.bf16.msra.mxu0 %v3372
      %3447 = vmatprep.subr.bf16.mxu0 0
      %3448 = vmatpush1.bf16.msra.mxu0 %v3373
      %3449 = vmatprep.subr.bf16.mxu0 0
      %3450 = vmatpush1.bf16.msra.mxu0 %v3374
      %3451 = vmatprep.subr.bf16.mxu0 0
      %3452 = vmatpush1.bf16.msra.mxu0 %v3375
      %3453 = vmatprep.subr.bf16.mxu0 0
      %3454 = vmatpush1.bf16.msra.mxu0 %v3376
      %3455 = vmatprep.subr.bf16.mxu0 0
      %3456 = vmatpush1.bf16.msra.mxu0 %v3377
      %3457 = vmatprep.subr.bf16.mxu0 0
      %3458 = vmatpush1.bf16.msra.mxu0 %v3378
      %3459 = vmatprep.mubr.bf16.mxu0 %v2488
      %3460 = vmatmul.mubr.bf16.gmra.mrb[0].mxu0 %v2487
      %v3461 = vpop.f32.mrb[0].mxu0
      %v3462 = vadd.f32 %v3214, %v3461
      %v3463 = vpop.f32.mrb[0].mxu0
      %v3464 = vpop.f32.mrb[0].mxu0
      %v3465 = vadd.f32 %v3217, %v3464
      %v3466 = vpop.f32.mrb[0].mxu0
      %3467 = vmatprep.mubr.bf16.mxu0 %v2492
      %3468 = vmatmul.mubr.bf16.gmra.mrb[0].mxu0 %v2491
      %v3469 = vpop.f32.mrb[0].mxu0
      %v3470 = vadd.f32 %v3222, %v3469
      %v3471 = vpop.f32.mrb[0].mxu0
      %v3472 = vpop.f32.mrb[0].mxu0
      %v3473 = vadd.f32 %v3225, %v3472
      %v3474 = vpop.f32.mrb[0].mxu0
      %3475 = vmatprep.mubr.bf16.mxu0 %v2496
      %3476 = vmatmul.mubr.bf16.gmra.mrb[0].mxu0 %v2495
      %v3477 = vpop.f32.mrb[0].mxu0
      %v3478 = vadd.f32 %v3230, %v3477
      %v3479 = vpop.f32.mrb[0].mxu0
      %v3480 = vpop.f32.mrb[0].mxu0
      %v3481 = vpop.f32.mrb[0].mxu0
      %3482 = vdwg.mxu0
      %3483 = vmatprep.subr.bf16.mxu0 0
      %3484 = vmatpush1.bf16.msra.mxu0 %v3379
      %3485 = vmatprep.subr.bf16.mxu0 0
      %3486 = vmatpush1.bf16.msra.mxu0 %v3380
      %3487 = vmatprep.subr.bf16.mxu0 0
      %3488 = vmatpush1.bf16.msra.mxu0 %v3381
      %3489 = vmatprep.subr.bf16.mxu0 0
      %3490 = vmatpush1.bf16.msra.mxu0 %v3382
      %3491 = vmatprep.subr.bf16.mxu0 0
      %3492 = vmatpush1.bf16.msra.mxu0 %v3383
      %3493 = vmatprep.subr.bf16.mxu0 0
      %3494 = vmatpush1.bf16.msra.mxu0 %v3384
      %3495 = vmatprep.subr.bf16.mxu0 0
      %3496 = vmatpush1.bf16.msra.mxu0 %v3385
      %3497 = vmatprep.subr.bf16.mxu0 0
      %3498 = vmatpush1.bf16.msra.mxu0 %v3386
      %3499 = vmatprep.subr.bf16.mxu0 0
      %3500 = vmatpush1.bf16.msra.mxu0 %v3387
      %3501 = vmatprep.subr.bf16.mxu0 0
      %3502 = vmatpush1.bf16.msra.mxu0 %v3388
      %3503 = vmatprep.subr.bf16.mxu0 0
      %3504 = vmatpush1.bf16.msra.mxu0 %v3389
      %3505 = vmatprep.subr.bf16.mxu0 0
      %3506 = vmatpush1.bf16.msra.mxu0 %v3390
      %3507 = vmatprep.subr.bf16.mxu0 0
      %3508 = vmatpush1.bf16.msra.mxu0 %v3391
      %3509 = vmatprep.subr.bf16.mxu0 0
      %3510 = vmatpush1.bf16.msra.mxu0 %v3392
      %3511 = vmatprep.subr.bf16.mxu0 0
      %3512 = vmatpush1.bf16.msra.mxu0 %v3393
      %3513 = vmatprep.subr.bf16.mxu0 0
      %3514 = vmatpush1.bf16.msra.mxu0 %v3394
      %3515 = vmatprep.mubr.bf16.mxu0 %v2490
      %3516 = vmatmul.mubr.bf16.gmra.mrb[0].mxu0 %v2489
      %v3517 = vpop.f32.mrb[0].mxu0
      %v3518 = vadd.f32 %v3462, %v3517
      %v3519 = vpop.f32.mrb[0].mxu0
      %v3520 = vpop.f32.mrb[0].mxu0
      %v3521 = vadd.f32 %v3465, %v3520
      %v3522 = vpop.f32.mrb[0].mxu0
      %3523 = vmatprep.mubr.bf16.mxu0 %v2494
      %3524 = vmatmul.mubr.bf16.gmra.mrb[0].mxu0 %v2493
      %v3525 = vpop.f32.mrb[0].mxu0
      %v3526 = vadd.f32 %v3470, %v3525
      %v3527 = vpop.f32.mrb[0].mxu0
      %v3528 = vpop.f32.mrb[0].mxu0
      %v3529 = vadd.f32 %v3473, %v3528
      %v3530 = vpop.f32.mrb[0].mxu0
      %3531 = vmatprep.mubr.bf16.mxu0 %v2498
      %3532 = vmatmul.mubr.bf16.gmra.mrb[0].mxu0 %v2497
      %v3533 = vpop.f32.mrb[0].mxu0
      %v3534 = vadd.f32 %v3478, %v3533
      %v3535 = vpop.f32.mrb[0].mxu0
      %v3536 = vpop.f32.mrb[0].mxu0
      %v3537 = vpop.f32.mrb[0].mxu0
      %3538 = vdwg.mxu0
      %v3539 = vld [vmem:[%s7 + $0x20] sm:$0xff]
      %v3540 = vld [vmem:[%s7 + $0x28] sm:$0xff]
      %v3541 = vld [vmem:[%s7 + $0x60] sm:$0xff]
      %v3542 = vld [vmem:[%s7 + $0x68] sm:$0xff]
      %v3543 = vld [vmem:[%s7 + $0xa0] sm:$0xff]
      %v3544 = vld [vmem:[%s7 + $0xa8] sm:$0xff]
      %v3545 = vld [vmem:[%s7 + $0xe0] sm:$0xff]
      %v3546 = vld [vmem:[%s7 + $0xe8] sm:$0xff]
      %v3547 = vld [vmem:[%s8 + $0x8] sm:$0xf]
      %v3549 = vlaneseq
      %v3550 = vshrl.u32 %v3549, 7
      %v3551 = vsub.s32 0, %v3550
      %v3552 = vrot.slane %v3547, %v3551
      %v3553 = vlaneseq
      %v3554 = vshrl.u32 %v3553, 7
      %v3555 = vsub.s32 1, %v3554
      %v3556 = vrot.slane %v3547, %v3555
      %v3557 = vlaneseq
      %v3558 = vshrl.u32 %v3557, 7
      %v3559 = vsub.s32 2, %v3558
      %v3560 = vrot.slane %v3547, %v3559
      %v3561 = vlaneseq
      %v3562 = vshrl.u32 %v3561, 7
      %v3563 = vsub.s32 3, %v3562
      %v3564 = vrot.slane %v3547, %v3563
      %v3577 = vunpack.c.l.b16 %v3539
      %v3578 = vunpack.c.h.b16 %v3539
      %v3579 = vunpack.c.l.b16 %v3540
      %v3580 = vunpack.c.h.b16 %v3540
      %v3581 = vunpack.c.l.b16 %v3541
      %v3582 = vunpack.c.h.b16 %v3541
      %v3583 = vunpack.c.l.b16 %v3542
      %v3584 = vunpack.c.h.b16 %v3542
      %v3585 = vunpack.c.l.b16 %v3543
      %v3586 = vunpack.c.h.b16 %v3543
      %v3587 = vunpack.c.l.b16 %v3544
      %v3588 = vunpack.c.h.b16 %v3544
      %v3589 = vunpack.c.l.b16 %v3545
      %v3590 = vunpack.c.h.b16 %v3545
      %v3591 = vunpack.c.l.b16 %v3546
      %v3592 = vunpack.c.h.b16 %v3546
      %v3593 = vpack.c.b16 %v3581, %v3577
      %v3594 = vpack.c.b16 %v3582, %v3578
      %v3595 = vpack.c.b16 %v3583, %v3579
      %v3596 = vpack.c.b16 %v3584, %v3580
      %v3597 = vpack.c.b16 %v3589, %v3585
      %v3598 = vpack.c.b16 %v3590, %v3586
      %v3599 = vpack.c.b16 %v3591, %v3587
      %v3600 = vpack.c.b16 %v3592, %v3588
      %3609 = vmatprep.subr.bf16.mxu0 %v3594
      %3610 = vmatpush1.bf16.msra.mxu0 %v3593
      %3611 = vmatprep.subr.bf16.mxu0 %v3598
      %3612 = vmatpush1.bf16.msra.mxu0 %v3597
      %3613 = vmatprep.subr.bf16.mxu0 0
      %3614 = vmatpush1.bf16.msra.mxu0 0
      %3615 = vmatprep.subr.bf16.mxu0 0
      %3616 = vmatpush1.bf16.msra.mxu0 0
      %3617 = vmatprep.subr.bf16.mxu0 0
      %3618 = vmatpush1.bf16.msra.mxu0 0
      %3619 = vmatprep.subr.bf16.mxu0 0
      %3620 = vmatpush1.bf16.msra.mxu0 0
      %3621 = vmatprep.subr.bf16.mxu0 0
      %3622 = vmatpush1.bf16.msra.mxu0 0
      %3623 = vmatprep.subr.bf16.mxu0 0
      %3624 = vmatpush1.bf16.msra.mxu0 0
      %3625 = vmatprep.subr.bf16.mxu0 0
      %3626 = vmatpush1.bf16.msra.mxu0 0
      %3627 = vmatprep.subr.bf16.mxu0 0
      %3628 = vmatpush1.bf16.msra.mxu0 0
      %3629 = vmatprep.subr.bf16.mxu0 0
      %3630 = vmatpush1.bf16.msra.mxu0 0
      %3631 = vmatprep.subr.bf16.mxu0 0
      %3632 = vmatpush1.bf16.msra.mxu0 0
      %3633 = vmatprep.subr.bf16.mxu0 0
      %3634 = vmatpush1.bf16.msra.mxu0 0
      %3635 = vmatprep.subr.bf16.mxu0 0
      %3636 = vmatpush1.bf16.msra.mxu0 0
      %3637 = vmatprep.subr.bf16.mxu0 0
      %3638 = vmatpush1.bf16.msra.mxu0 0
      %3639 = vmatprep.subr.bf16.mxu0 0
      %3640 = vmatpush1.bf16.msra.mxu0 0
      %3641 = vmatprep.mubr.bf16.mxu0 0
      %3642 = vmatmul.mubr.bf16.gmra.mrb[0].mxu0 %v2257
      %v3643 = vpop.f32.mrb[0].mxu0
      %v3644 = vadd.f32 %v3552, %v3643
      %v3645 = vpop.f32.mrb[0].mxu0
      %v3646 = vadd.f32 %v3556, %v3645
      %v3647 = vpop.f32.mrb[0].mxu0
      %v3648 = vadd.f32 %v3552, %v3647
      %v3649 = vpop.f32.mrb[0].mxu0
      %v3650 = vadd.f32 %v3556, %v3649
      %3651 = vmatprep.mubr.bf16.mxu0 0
      %3652 = vmatmul.mubr.bf16.gmra.mrb[0].mxu0 %v2260
      %v3653 = vpop.f32.mrb[0].mxu0
      %v3654 = vadd.f32 %v3552, %v3653
      %v3655 = vpop.f32.mrb[0].mxu0
      %v3656 = vadd.f32 %v3556, %v3655
      %v3657 = vpop.f32.mrb[0].mxu0
      %v3658 = vadd.f32 %v3552, %v3657
      %v3659 = vpop.f32.mrb[0].mxu0
      %v3660 = vadd.f32 %v3556, %v3659
      %3661 = vmatprep.mubr.bf16.mxu0 0
      %3662 = vmatmul.mubr.bf16.gmra.mrb[0].mxu0 %v2263
      %v3663 = vpop.f32.mrb[0].mxu0
      %v3664 = vadd.f32 %v3552, %v3663
      %v3665 = vpop.f32.mrb[0].mxu0
      %v3666 = vadd.f32 %v3556, %v3665
      %v3667 = vpop.f32.mrb[0].mxu0
      %v3668 = vpop.f32.mrb[0].mxu0
      %3669 = vdwg.mxu0
      %3670 = vmatprep.subr.bf16.mxu0 %v3596
      %3671 = vmatpush1.bf16.msra.mxu0 %v3595
      %3672 = vmatprep.subr.bf16.mxu0 %v3600
      %3673 = vmatpush1.bf16.msra.mxu0 %v3599
      %3674 = vmatprep.subr.bf16.mxu0 0
      %3675 = vmatpush1.bf16.msra.mxu0 0
      %3676 = vmatprep.subr.bf16.mxu0 0
      %3677 = vmatpush1.bf16.msra.mxu0 0
      %3678 = vmatprep.subr.bf16.mxu0 0
      %3679 = vmatpush1.bf16.msra.mxu0 0
      %3680 = vmatprep.subr.bf16.mxu0 0
      %3681 = vmatpush1.bf16.msra.mxu0 0
      %3682 = vmatprep.subr.bf16.mxu0 0
      %3683 = vmatpush1.bf16.msra.mxu0 0
      %3684 = vmatprep.subr.bf16.mxu0 0
      %3685 = vmatpush1.bf16.msra.mxu0 0
      %3686 = vmatprep.subr.bf16.mxu0 0
      %3687 = vmatpush1.bf16.msra.mxu0 0
      %3688 = vmatprep.subr.bf16.mxu0 0
      %3689 = vmatpush1.bf16.msra.mxu0 0
      %3690 = vmatprep.subr.bf16.mxu0 0
      %3691 = vmatpush1.bf16.msra.mxu0 0
      %3692 = vmatprep.subr.bf16.mxu0 0
      %3693 = vmatpush1.bf16.msra.mxu0 0
      %3694 = vmatprep.subr.bf16.mxu0 0
      %3695 = vmatpush1.bf16.msra.mxu0 0
      %3696 = vmatprep.subr.bf16.mxu0 0
      %3697 = vmatpush1.bf16.msra.mxu0 0
      %3698 = vmatprep.subr.bf16.mxu0 0
      %3699 = vmatpush1.bf16.msra.mxu0 0
      %3700 = vmatprep.subr.bf16.mxu0 0
      %3701 = vmatpush1.bf16.msra.mxu0 0
      %3702 = vmatprep.mubr.bf16.mxu0 0
      %3703 = vmatmul.mubr.bf16.gmra.mrb[0].mxu0 %v2257
      %v3704 = vpop.f32.mrb[0].mxu0
      %v3705 = vadd.f32 %v3560, %v3704
      %v3706 = vpop.f32.mrb[0].mxu0
      %v3707 = vadd.f32 %v3564, %v3706
      %v3708 = vpop.f32.mrb[0].mxu0
      %v3709 = vadd.f32 %v3560, %v3708
      %v3710 = vpop.f32.mrb[0].mxu0
      %v3711 = vadd.f32 %v3564, %v3710
      %3712 = vmatprep.mubr.bf16.mxu0 0
      %3713 = vmatmul.mubr.bf16.gmra.mrb[0].mxu0 %v2260
      %v3714 = vpop.f32.mrb[0].mxu0
      %v3715 = vadd.f32 %v3560, %v3714
      %v3716 = vpop.f32.mrb[0].mxu0
      %v3717 = vadd.f32 %v3564, %v3716
      %v3718 = vpop.f32.mrb[0].mxu0
      %v3719 = vadd.f32 %v3560, %v3718
      %v3720 = vpop.f32.mrb[0].mxu0
      %v3721 = vadd.f32 %v3564, %v3720
      %3722 = vmatprep.mubr.bf16.mxu0 0
      %3723 = vmatmul.mubr.bf16.gmra.mrb[0].mxu0 %v2263
      %v3724 = vpop.f32.mrb[0].mxu0
      %v3725 = vadd.f32 %v3560, %v3724
      %v3726 = vpop.f32.mrb[0].mxu0
      %v3727 = vadd.f32 %v3564, %v3726
      %v3728 = vpop.f32.mrb[0].mxu0
      %v3729 = vpop.f32.mrb[0].mxu0
      %3730 = vdwg.mxu0
      %v3731 = vmul.f32 %v3644, 0.5
      %v3732 = vmul.f32 %v3646, 0.5
      %v3733 = vmul.f32 %v3705, 0.5
      %v3734 = vmul.f32 %v3707, 0.5
      %v3735 = vmul.f32 %v3648, 0.5
      %v3736 = vmul.f32 %v3650, 0.5
      %v3737 = vmul.f32 %v3709, 0.5
      %v3738 = vmul.f32 %v3711, 0.5
      %v3739 = vmul.f32 %v3654, 0.5
      %v3740 = vmul.f32 %v3656, 0.5
      %v3741 = vmul.f32 %v3715, 0.5
      %v3742 = vmul.f32 %v3717, 0.5
      %v3743 = vmul.f32 %v3658, 0.5
      %v3744 = vmul.f32 %v3660, 0.5
      %v3745 = vmul.f32 %v3719, 0.5
      %v3746 = vmul.f32 %v3721, 0.5
      %v3747 = vmul.f32 %v3664, 0.5
      %v3748 = vmul.f32 %v3666, 0.5
      %v3749 = vmul.f32 %v3725, 0.5
      %v3750 = vmul.f32 %v3727, 0.5
      %v3751 = vmul.f32 %v3644, 0.70710677
      %v3752 = vmul.f32 %v3646, 0.70710677
      %v3753 = vmul.f32 %v3705, 0.70710677
      %v3754 = vmul.f32 %v3707, 0.70710677
      %v3755 = vmul.f32 %v3648, 0.70710677
      %v3756 = vmul.f32 %v3650, 0.70710677
      %v3757 = vmul.f32 %v3709, 0.70710677
      %v3758 = vmul.f32 %v3711, 0.70710677
      %v3759 = vmul.f32 %v3654, 0.70710677
      %v3760 = vmul.f32 %v3656, 0.70710677
      %v3761 = vmul.f32 %v3715, 0.70710677
      %v3762 = vmul.f32 %v3717, 0.70710677
      %v3763 = vmul.f32 %v3658, 0.70710677
      %v3764 = vmul.f32 %v3660, 0.70710677
      %v3765 = vmul.f32 %v3719, 0.70710677
      %v3766 = vmul.f32 %v3721, 0.70710677
      %v3767 = vmul.f32 %v3664, 0.70710677
      %v3768 = vmul.f32 %v3666, 0.70710677
      %v3769 = vmul.f32 %v3725, 0.70710677
      %v3770 = vmul.f32 %v3727, 0.70710677
      %v3771 = verf.f32.pop %v3751
      %v3772 = verf.f32.pop %v3752
      %v3773 = verf.f32.pop %v3753
      %v3774 = verf.f32.pop %v3754
      %v3775 = verf.f32.pop %v3755
      %v3776 = verf.f32.pop %v3756
      %v3777 = verf.f32.pop %v3757
      %v3778 = verf.f32.pop %v3758
      %v3779 = verf.f32.pop %v3759
      %v3780 = verf.f32.pop %v3760
      %v3781 = verf.f32.pop %v3761
      %v3782 = verf.f32.pop %v3762
      %v3783 = verf.f32.pop %v3763
      %v3784 = verf.f32.pop %v3764
      %v3785 = verf.f32.pop %v3765
      %v3786 = verf.f32.pop %v3766
      %v3787 = verf.f32.pop %v3767
      %v3788 = verf.f32.pop %v3768
      %v3789 = verf.f32.pop %v3769
      %v3790 = verf.f32.pop %v3770
      %v3791 = vadd.f32 %v3771, 1.0
      %v3792 = vadd.f32 %v3772, 1.0
      %v3793 = vadd.f32 %v3773, 1.0
      %v3794 = vadd.f32 %v3774, 1.0
      %v3795 = vadd.f32 %v3775, 1.0
      %v3796 = vadd.f32 %v3776, 1.0
      %v3797 = vadd.f32 %v3777, 1.0
      %v3798 = vadd.f32 %v3778, 1.0
      %v3799 = vadd.f32 %v3779, 1.0
      %v3800 = vadd.f32 %v3780, 1.0
      %v3801 = vadd.f32 %v3781, 1.0
      %v3802 = vadd.f32 %v3782, 1.0
      %v3803 = vadd.f32 %v3783, 1.0
      %v3804 = vadd.f32 %v3784, 1.0
      %v3805 = vadd.f32 %v3785, 1.0
      %v3806 = vadd.f32 %v3786, 1.0
      %v3807 = vadd.f32 %v3787, 1.0
      %v3808 = vadd.f32 %v3788, 1.0
      %v3809 = vadd.f32 %v3789, 1.0
      %v3810 = vadd.f32 %v3790, 1.0
      %v3811 = vmul.f32 %v3731, %v3791
      %v3812 = vmul.f32 %v3732, %v3792
      %v3813 = vmul.f32 %v3733, %v3793
      %v3814 = vmul.f32 %v3734, %v3794
      %v3815 = vmul.f32 %v3735, %v3795
      %v3816 = vmul.f32 %v3736, %v3796
      %v3817 = vmul.f32 %v3737, %v3797
      %v3818 = vmul.f32 %v3738, %v3798
      %v3819 = vmul.f32 %v3739, %v3799
      %v3820 = vmul.f32 %v3740, %v3800
      %v3821 = vmul.f32 %v3741, %v3801
      %v3822 = vmul.f32 %v3742, %v3802
      %v3823 = vmul.f32 %v3743, %v3803
      %v3824 = vmul.f32 %v3744, %v3804
      %v3825 = vmul.f32 %v3745, %v3805
      %v3826 = vmul.f32 %v3746, %v3806
      %v3827 = vmul.f32 %v3747, %v3807
      %v3828 = vmul.f32 %v3748, %v3808
      %v3829 = vmul.f32 %v3749, %v3809
      %v3830 = vmul.f32 %v3750, %v3810
      %v3831 = vpack.c.bf16 %v3815, %v3811
      %v3832 = vpack.c.bf16 %v3816, %v3812
      %v3833 = vpack.c.bf16 %v3817, %v3813
      %v3834 = vpack.c.bf16 %v3818, %v3814
      %v3835 = vpack.c.bf16 %v3823, %v3819
      %v3836 = vpack.c.bf16 %v3824, %v3820
      %v3837 = vpack.c.bf16 %v3825, %v3821
      %v3838 = vpack.c.bf16 %v3826, %v3822
      %v3839 = vpack.c.bf16 %v3827, %v3827
      %v3840 = vpack.c.bf16 %v3828, %v3828
      %v3841 = vpack.c.bf16 %v3829, %v3829
      %v3842 = vpack.c.bf16 %v3830, %v3830
      %v3843 = vld [vmem:[%s9 + $0x200] sm:$0xf]
      %v3844 = vld [vmem:[%s9 + $0x204] sm:$0xf]
      %v3845 = vld [vmem:[%s9 + $0x208] sm:$0xf]
      %v3846 = vld [vmem:[%s9 + $0x20c] sm:$0xf]
      %v3847 = vld [vmem:[%s9 + $0x210] sm:$0xf]
      %v3848 = vld [vmem:[%s9 + $0x214] sm:$0xf]
      %v3849 = vld [vmem:[%s9 + $0x218] sm:$0xf]
      %v3850 = vld [vmem:[%s9 + $0x21c] sm:$0xf]
      %v3851 = vld [vmem:[%s9 + $0x220] sm:$0xf]
      %v3852 = vld [vmem:[%s9 + $0x224] sm:$0xf]
      %v3853 = vld [vmem:[%s9 + $0x228] sm:$0xf]
      %v3854 = vld [vmem:[%s9 + $0x22c] sm:$0xf]
      %v3855 = vld [vmem:[%s9 + $0x230] sm:$0xf]
      %v3856 = vld [vmem:[%s9 + $0x234] sm:$0xf]
      %v3857 = vld [vmem:[%s9 + $0x238] sm:$0xf]
      %v3858 = vld [vmem:[%s9 + $0x23c] sm:$0xf]
      %v3859 = vld [vmem:[%s9 + $0x240] sm:$0xf]
      %v3860 = vld [vmem:[%s9 + $0x244] sm:$0xf]
      %v3861 = vld [vmem:[%s9 + $0x248] sm:$0xf]
      %v3862 = vld [vmem:[%s9 + $0x24c] sm:$0xf]
      %v3863 = vld [vmem:[%s9 + $0x250] sm:$0xf]
      %v3864 = vld [vmem:[%s9 + $0x254] sm:$0xf]
      %v3865 = vld [vmem:[%s9 + $0x258] sm:$0xf]
      %v3866 = vld [vmem:[%s9 + $0x25c] sm:$0xf]
      %v3867 = vld [vmem:[%s9 + $0x260] sm:$0xf]
      %v3868 = vld [vmem:[%s9 + $0x264] sm:$0xf]
      %v3869 = vld [vmem:[%s9 + $0x268] sm:$0xf]
      %v3870 = vld [vmem:[%s9 + $0x26c] sm:$0xf]
      %v3871 = vld [vmem:[%s9 + $0x270] sm:$0xf]
      %v3872 = vld [vmem:[%s9 + $0x274] sm:$0xf]
      %v3873 = vld [vmem:[%s9 + $0x278] sm:$0xf]
      %v3874 = vld [vmem:[%s9 + $0x27c] sm:$0xf]
      %v3875 = vld [vmem:[%s9 + $0x280] sm:$0xf]
      %v3876 = vld [vmem:[%s9 + $0x284] sm:$0xf]
      %v3877 = vld [vmem:[%s9 + $0x288] sm:$0xf]
      %v3878 = vld [vmem:[%s9 + $0x28c] sm:$0xf]
      %v3879 = vld [vmem:[%s9 + $0x290] sm:$0xf]
      %v3880 = vld [vmem:[%s9 + $0x294] sm:$0xf]
      %v3881 = vld [vmem:[%s9 + $0x298] sm:$0xf]
      %v3882 = vld [vmem:[%s9 + $0x29c] sm:$0xf]
      %v3883 = vld [vmem:[%s9 + $0x2a0] sm:$0xf]
      %v3884 = vld [vmem:[%s9 + $0x2a4] sm:$0xf]
      %v3885 = vld [vmem:[%s9 + $0x2a8] sm:$0xf]
      %v3886 = vld [vmem:[%s9 + $0x2ac] sm:$0xf]
      %v3887 = vld [vmem:[%s9 + $0x2b0] sm:$0xf]
      %v3888 = vld [vmem:[%s9 + $0x2b4] sm:$0xf]
      %v3889 = vld [vmem:[%s9 + $0x2b8] sm:$0xf]
      %v3890 = vld [vmem:[%s9 + $0x2bc] sm:$0xf]
      %v3891 = vld [vmem:[%s9 + $0x2c0] sm:$0xf]
      %v3892 = vld [vmem:[%s9 + $0x2c4] sm:$0xf]
      %v3893 = vld [vmem:[%s9 + $0x2c8] sm:$0xf]
      %v3894 = vld [vmem:[%s9 + $0x2cc] sm:$0xf]
      %v3895 = vld [vmem:[%s9 + $0x2d0] sm:$0xf]
      %v3896 = vld [vmem:[%s9 + $0x2d4] sm:$0xf]
      %v3897 = vld [vmem:[%s9 + $0x2d8] sm:$0xf]
      %v3898 = vld [vmem:[%s9 + $0x2dc] sm:$0xf]
      %v3899 = vld [vmem:[%s9 + $0x2e0] sm:$0xf]
      %v3900 = vld [vmem:[%s9 + $0x2e4] sm:$0xf]
      %v3901 = vld [vmem:[%s9 + $0x2e8] sm:$0xf]
      %v3902 = vld [vmem:[%s9 + $0x2ec] sm:$0xf]
      %v3903 = vld [vmem:[%s9 + $0x2f0] sm:$0xf]
      %v3904 = vld [vmem:[%s9 + $0x2f4] sm:$0xf]
      %v3905 = vld [vmem:[%s9 + $0x2f8] sm:$0xf]
      %v3906 = vld [vmem:[%s9 + $0x2fc] sm:$0xf]
      %v3971 = vunpack.c.l.b16 %v3843
      %v3972 = vunpack.c.l.b16 %v3844
      %v3973 = vunpack.c.l.b16 %v3845
      %v3974 = vunpack.c.l.b16 %v3846
      %v3975 = vunpack.c.l.b16 %v3847
      %v3976 = vunpack.c.l.b16 %v3848
      %v3977 = vunpack.c.l.b16 %v3849
      %v3978 = vunpack.c.l.b16 %v3850
      %v3979 = vunpack.c.l.b16 %v3851
      %v3980 = vunpack.c.l.b16 %v3852
      %v3981 = vunpack.c.l.b16 %v3853
      %v3982 = vunpack.c.l.b16 %v3854
      %v3983 = vunpack.c.l.b16 %v3855
      %v3984 = vunpack.c.l.b16 %v3856
      %v3985 = vunpack.c.l.b16 %v3857
      %v3986 = vunpack.c.l.b16 %v3858
      %v3987 = vunpack.c.l.b16 %v3859
      %v3988 = vunpack.c.l.b16 %v3860
      %v3989 = vunpack.c.l.b16 %v3861
      %v3990 = vunpack.c.l.b16 %v3862
      %v3991 = vunpack.c.l.b16 %v3863
      %v3992 = vunpack.c.l.b16 %v3864
      %v3993 = vunpack.c.l.b16 %v3865
      %v3994 = vunpack.c.l.b16 %v3866
      %v3995 = vunpack.c.l.b16 %v3867
      %v3996 = vunpack.c.l.b16 %v3868
      %v3997 = vunpack.c.l.b16 %v3869
      %v3998 = vunpack.c.l.b16 %v3870
      %v3999 = vunpack.c.l.b16 %v3871
      %v4000 = vunpack.c.l.b16 %v3872
      %v4001 = vunpack.c.l.b16 %v3873
      %v4002 = vunpack.c.l.b16 %v3874
      %v4003 = vunpack.c.l.b16 %v3875
      %v4004 = vunpack.c.l.b16 %v3876
      %v4005 = vunpack.c.l.b16 %v3877
      %v4006 = vunpack.c.l.b16 %v3878
      %v4007 = vunpack.c.l.b16 %v3879
      %v4008 = vunpack.c.l.b16 %v3880
      %v4009 = vunpack.c.l.b16 %v3881
      %v4010 = vunpack.c.l.b16 %v3882
      %v4011 = vunpack.c.l.b16 %v3883
      %v4012 = vunpack.c.l.b16 %v3884
      %v4013 = vunpack.c.l.b16 %v3885
      %v4014 = vunpack.c.l.b16 %v3886
      %v4015 = vunpack.c.l.b16 %v3887
      %v4016 = vunpack.c.l.b16 %v3888
      %v4017 = vunpack.c.l.b16 %v3889
      %v4018 = vunpack.c.l.b16 %v3890
      %v4019 = vunpack.c.l.b16 %v3891
      %v4020 = vunpack.c.l.b16 %v3892
      %v4021 = vunpack.c.l.b16 %v3893
      %v4022 = vunpack.c.l.b16 %v3894
      %v4023 = vunpack.c.l.b16 %v3895
      %v4024 = vunpack.c.l.b16 %v3896
      %v4025 = vunpack.c.l.b16 %v3897
      %v4026 = vunpack.c.l.b16 %v3898
      %v4027 = vunpack.c.l.b16 %v3899
      %v4028 = vunpack.c.l.b16 %v3900
      %v4029 = vunpack.c.l.b16 %v3901
      %v4030 = vunpack.c.l.b16 %v3902
      %v4031 = vunpack.c.l.b16 %v3903
      %v4032 = vunpack.c.l.b16 %v3904
      %v4033 = vunpack.c.l.b16 %v3905
      %v4034 = vunpack.c.l.b16 %v3906
      %v4035 = vpack.c.b16 %v3972, %v3971
      %v4036 = vpack.c.b16 %v3974, %v3973
      %v4037 = vpack.c.b16 %v3976, %v3975
      %v4038 = vpack.c.b16 %v3978, %v3977
      %v4039 = vpack.c.b16 %v3980, %v3979
      %v4040 = vpack.c.b16 %v3982, %v3981
      %v4041 = vpack.c.b16 %v3984, %v3983
      %v4042 = vpack.c.b16 %v3986, %v3985
      %v4043 = vpack.c.b16 %v3988, %v3987
      %v4044 = vpack.c.b16 %v3990, %v3989
      %v4045 = vpack.c.b16 %v3992, %v3991
      %v4046 = vpack.c.b16 %v3994, %v3993
      %v4047 = vpack.c.b16 %v3996, %v3995
      %v4048 = vpack.c.b16 %v3998, %v3997
      %v4049 = vpack.c.b16 %v4000, %v3999
      %v4050 = vpack.c.b16 %v4002, %v4001
      %v4051 = vpack.c.b16 %v4004, %v4003
      %v4052 = vpack.c.b16 %v4006, %v4005
      %v4053 = vpack.c.b16 %v4008, %v4007
      %v4054 = vpack.c.b16 %v4010, %v4009
      %v4055 = vpack.c.b16 %v4012, %v4011
      %v4056 = vpack.c.b16 %v4014, %v4013
      %v4057 = vpack.c.b16 %v4016, %v4015
      %v4058 = vpack.c.b16 %v4018, %v4017
      %v4059 = vpack.c.b16 %v4020, %v4019
      %v4060 = vpack.c.b16 %v4022, %v4021
      %v4061 = vpack.c.b16 %v4024, %v4023
      %v4062 = vpack.c.b16 %v4026, %v4025
      %v4063 = vpack.c.b16 %v4028, %v4027
      %v4064 = vpack.c.b16 %v4030, %v4029
      %v4065 = vpack.c.b16 %v4032, %v4031
      %v4066 = vpack.c.b16 %v4034, %v4033
      %4099 = vmatprep.subr.bf16.mxu0 0
      %4100 = vmatpush1.bf16.msra.mxu0 %v4035
      %4101 = vmatprep.subr.bf16.mxu0 0
      %4102 = vmatpush1.bf16.msra.mxu0 %v4036
      %4103 = vmatprep.subr.bf16.mxu0 0
      %4104 = vmatpush1.bf16.msra.mxu0 %v4037
      %4105 = vmatprep.subr.bf16.mxu0 0
      %4106 = vmatpush1.bf16.msra.mxu0 %v4038
      %4107 = vmatprep.subr.bf16.mxu0 0
      %4108 = vmatpush1.bf16.msra.mxu0 %v4039
      %4109 = vmatprep.subr.bf16.mxu0 0
      %4110 = vmatpush1.bf16.msra.mxu0 %v4040
      %4111 = vmatprep.subr.bf16.mxu0 0
      %4112 = vmatpush1.bf16.msra.mxu0 %v4041
      %4113 = vmatprep.subr.bf16.mxu0 0
      %4114 = vmatpush1.bf16.msra.mxu0 %v4042
      %4115 = vmatprep.subr.bf16.mxu0 0
      %4116 = vmatpush1.bf16.msra.mxu0 %v4043
      %4117 = vmatprep.subr.bf16.mxu0 0
      %4118 = vmatpush1.bf16.msra.mxu0 %v4044
      %4119 = vmatprep.subr.bf16.mxu0 0
      %4120 = vmatpush1.bf16.msra.mxu0 %v4045
      %4121 = vmatprep.subr.bf16.mxu0 0
      %4122 = vmatpush1.bf16.msra.mxu0 %v4046
      %4123 = vmatprep.subr.bf16.mxu0 0
      %4124 = vmatpush1.bf16.msra.mxu0 %v4047
      %4125 = vmatprep.subr.bf16.mxu0 0
      %4126 = vmatpush1.bf16.msra.mxu0 %v4048
      %4127 = vmatprep.subr.bf16.mxu0 0
      %4128 = vmatpush1.bf16.msra.mxu0 %v4049
      %4129 = vmatprep.subr.bf16.mxu0 0
      %4130 = vmatpush1.bf16.msra.mxu0 %v4050
      %4131 = vmatprep.mubr.bf16.mxu0 %v3832
      %4132 = vmatmul.mubr.bf16.gmra.mrb[0].mxu0 %v3831
      %v4133 = vpop.f32.mrb[0].mxu0
      %v4134 = vadd.f32 0.0, %v4133
      %v4135 = vpop.f32.mrb[0].mxu0
      %v4136 = vpop.f32.mrb[0].mxu0
      %v4137 = vadd.f32 0.0, %v4136
      %v4138 = vpop.f32.mrb[0].mxu0
      %4139 = vmatprep.mubr.bf16.mxu0 %v3836
      %4140 = vmatmul.mubr.bf16.gmra.mrb[0].mxu0 %v3835
      %v4141 = vpop.f32.mrb[0].mxu0
      %v4142 = vadd.f32 0.0, %v4141
      %v4143 = vpop.f32.mrb[0].mxu0
      %v4144 = vpop.f32.mrb[0].mxu0
      %v4145 = vadd.f32 0.0, %v4144
      %v4146 = vpop.f32.mrb[0].mxu0
      %4147 = vmatprep.mubr.bf16.mxu0 %v3840
      %4148 = vmatmul.mubr.bf16.gmra.mrb[0].mxu0 %v3839
      %v4149 = vpop.f32.mrb[0].mxu0
      %v4150 = vadd.f32 0.0, %v4149
      %v4151 = vpop.f32.mrb[0].mxu0
      %v4152 = vpop.f32.mrb[0].mxu0
      %v4153 = vpop.f32.mrb[0].mxu0
      %4154 = vdwg.mxu0
      %4155 = vmatprep.subr.bf16.mxu0 0
      %4156 = vmatpush1.bf16.msra.mxu0 %v4051
      %4157 = vmatprep.subr.bf16.mxu0 0
      %4158 = vmatpush1.bf16.msra.mxu0 %v4052
      %4159 = vmatprep.subr.bf16.mxu0 0
      %4160 = vmatpush1.bf16.msra.mxu0 %v4053
      %4161 = vmatprep.subr.bf16.mxu0 0
      %4162 = vmatpush1.bf16.msra.mxu0 %v4054
      %4163 = vmatprep.subr.bf16.mxu0 0
      %4164 = vmatpush1.bf16.msra.mxu0 %v4055
      %4165 = vmatprep.subr.bf16.mxu0 0
      %4166 = vmatpush1.bf16.msra.mxu0 %v4056
      %4167 = vmatprep.subr.bf16.mxu0 0
      %4168 = vmatpush1.bf16.msra.mxu0 %v4057
      %4169 = vmatprep.subr.bf16.mxu0 0
      %4170 = vmatpush1.bf16.msra.mxu0 %v4058
      %4171 = vmatprep.subr.bf16.mxu0 0
      %4172 = vmatpush1.bf16.msra.mxu0 %v4059
      %4173 = vmatprep.subr.bf16.mxu0 0
      %4174 = vmatpush1.bf16.msra.mxu0 %v4060
      %4175 = vmatprep.subr.bf16.mxu0 0
      %4176 = vmatpush1.bf16.msra.mxu0 %v4061
      %4177 = vmatprep.subr.bf16.mxu0 0
      %4178 = vmatpush1.bf16.msra.mxu0 %v4062
      %4179 = vmatprep.subr.bf16.mxu0 0
      %4180 = vmatpush1.bf16.msra.mxu0 %v4063
      %4181 = vmatprep.subr.bf16.mxu0 0
      %4182 = vmatpush1.bf16.msra.mxu0 %v4064
      %4183 = vmatprep.subr.bf16.mxu0 0
      %4184 = vmatpush1.bf16.msra.mxu0 %v4065
      %4185 = vmatprep.subr.bf16.mxu0 0
      %4186 = vmatpush1.bf16.msra.mxu0 %v4066
      %4187 = vmatprep.mubr.bf16.mxu0 %v3834
      %4188 = vmatmul.mubr.bf16.gmra.mrb[0].mxu0 %v3833
      %v4189 = vpop.f32.mrb[0].mxu0
      %v4190 = vadd.f32 %v4134, %v4189
      %v4191 = vpop.f32.mrb[0].mxu0
      %v4192 = vpop.f32.mrb[0].mxu0
      %v4193 = vadd.f32 %v4137, %v4192
      %v4194 = vpop.f32.mrb[0].mxu0
      %4195 = vmatprep.mubr.bf16.mxu0 %v3838
      %4196 = vmatmul.mubr.bf16.gmra.mrb[0].mxu0 %v3837
      %v4197 = vpop.f32.mrb[0].mxu0
      %v4198 = vadd.f32 %v4142, %v4197
      %v4199 = vpop.f32.mrb[0].mxu0
      %v4200 = vpop.f32.mrb[0].mxu0
      %v4201 = vadd.f32 %v4145, %v4200
      %v4202 = vpop.f32.mrb[0].mxu0
      %4203 = vmatprep.mubr.bf16.mxu0 %v3842
      %4204 = vmatmul.mubr.bf16.gmra.mrb[0].mxu0 %v3841
      %v4205 = vpop.f32.mrb[0].mxu0
      %v4206 = vadd.f32 %v4150, %v4205
      %v4207 = vpop.f32.mrb[0].mxu0
      %v4208 = vpop.f32.mrb[0].mxu0
      %v4209 = vpop.f32.mrb[0].mxu0
      %4210 = vdwg.mxu0
      %v4211 = vadd.f32 %v3518, %v4190
      %v4212 = vadd.f32 %v3521, %v4193
      %v4213 = vadd.f32 %v3526, %v4198
      %v4214 = vadd.f32 %v3529, %v4201
      %v4215 = vadd.f32 %v3534, %v4206
      %v4216 = vld [vmem:[%s7 + $0x30] sm:$0xff]
      %v4217 = vld [vmem:[%s7 + $0x38] sm:$0xff]
      %v4218 = vld [vmem:[%s7 + $0x70] sm:$0xff]
      %v4219 = vld [vmem:[%s7 + $0x78] sm:$0xff]
      %v4220 = vld [vmem:[%s7 + $0xb0] sm:$0xff]
      %v4221 = vld [vmem:[%s7 + $0xb8] sm:$0xff]
      %v4222 = vld [vmem:[%s7 + $0xf0] sm:$0xff]
      %v4223 = vld [vmem:[%s7 + $0xf8] sm:$0xff]
      %v4224 = vld [vmem:[%s8 + $0xc] sm:$0xf]
      %v4226 = vlaneseq
      %v4227 = vshrl.u32 %v4226, 7
      %v4228 = vsub.s32 0, %v4227
      %v4229 = vrot.slane %v4224, %v4228
      %v4230 = vlaneseq
      %v4231 = vshrl.u32 %v4230, 7
      %v4232 = vsub.s32 1, %v4231
      %v4233 = vrot.slane %v4224, %v4232
      %v4234 = vlaneseq
      %v4235 = vshrl.u32 %v4234, 7
      %v4236 = vsub.s32 2, %v4235
      %v4237 = vrot.slane %v4224, %v4236
      %v4238 = vlaneseq
      %v4239 = vshrl.u32 %v4238, 7
      %v4240 = vsub.s32 3, %v4239
      %v4241 = vrot.slane %v4224, %v4240
      %v4254 = vunpack.c.l.b16 %v4216
      %v4255 = vunpack.c.h.b16 %v4216
      %v4256 = vunpack.c.l.b16 %v4217
      %v4257 = vunpack.c.h.b16 %v4217
      %v4258 = vunpack.c.l.b16 %v4218
      %v4259 = vunpack.c.h.b16 %v4218
      %v4260 = vunpack.c.l.b16 %v4219
      %v4261 = vunpack.c.h.b16 %v4219
      %v4262 = vunpack.c.l.b16 %v4220
      %v4263 = vunpack.c.h.b16 %v4220
      %v4264 = vunpack.c.l.b16 %v4221
      %v4265 = vunpack.c.h.b16 %v4221
      %v4266 = vunpack.c.l.b16 %v4222
      %v4267 = vunpack.c.h.b16 %v4222
      %v4268 = vunpack.c.l.b16 %v4223
      %v4269 = vunpack.c.h.b16 %v4223
      %v4270 = vpack.c.b16 %v4258, %v4254
      %v4271 = vpack.c.b16 %v4259, %v4255
      %v4272 = vpack.c.b16 %v4260, %v4256
      %v4273 = vpack.c.b16 %v4261, %v4257
      %v4274 = vpack.c.b16 %v4266, %v4262
      %v4275 = vpack.c.b16 %v4267, %v4263
      %v4276 = vpack.c.b16 %v4268, %v4264
      %v4277 = vpack.c.b16 %v4269, %v4265
      %4286 = vmatprep.subr.bf16.mxu0 %v4271
      %4287 = vmatpush1.bf16.msra.mxu0 %v4270
      %4288 = vmatprep.subr.bf16.mxu0 %v4275
      %4289 = vmatpush1.bf16.msra.mxu0 %v4274
      %4290 = vmatprep.subr.bf16.mxu0 0
      %4291 = vmatpush1.bf16.msra.mxu0 0
      %4292 = vmatprep.subr.bf16.mxu0 0
      %4293 = vmatpush1.bf16.msra.mxu0 0
      %4294 = vmatprep.subr.bf16.mxu0 0
      %4295 = vmatpush1.bf16.msra.mxu0 0
      %4296 = vmatprep.subr.bf16.mxu0 0
      %4297 = vmatpush1.bf16.msra.mxu0 0
      %4298 = vmatprep.subr.bf16.mxu0 0
      %4299 = vmatpush1.bf16.msra.mxu0 0
      %4300 = vmatprep.subr.bf16.mxu0 0
      %4301 = vmatpush1.bf16.msra.mxu0 0
      %4302 = vmatprep.subr.bf16.mxu0 0
      %4303 = vmatpush1.bf16.msra.mxu0 0
      %4304 = vmatprep.subr.bf16.mxu0 0
      %4305 = vmatpush1.bf16.msra.mxu0 0
      %4306 = vmatprep.subr.bf16.mxu0 0
      %4307 = vmatpush1.bf16.msra.mxu0 0
      %4308 = vmatprep.subr.bf16.mxu0 0
      %4309 = vmatpush1.bf16.msra.mxu0 0
      %4310 = vmatprep.subr.bf16.mxu0 0
      %4311 = vmatpush1.bf16.msra.mxu0 0
      %4312 = vmatprep.subr.bf16.mxu0 0
      %4313 = vmatpush1.bf16.msra.mxu0 0
      %4314 = vmatprep.subr.bf16.mxu0 0
      %4315 = vmatpush1.bf16.msra.mxu0 0
      %4316 = vmatprep.subr.bf16.mxu0 0
      %4317 = vmatpush1.bf16.msra.mxu0 0
      %4318 = vmatprep.mubr.bf16.mxu0 0
      %4319 = vmatmul.mubr.bf16.gmra.mrb[0].mxu0 %v2257
      %v4320 = vpop.f32.mrb[0].mxu0
      %v4321 = vadd.f32 %v4229, %v4320
      %v4322 = vpop.f32.mrb[0].mxu0
      %v4323 = vadd.f32 %v4233, %v4322
      %v4324 = vpop.f32.mrb[0].mxu0
      %v4325 = vadd.f32 %v4229, %v4324
      %v4326 = vpop.f32.mrb[0].mxu0
      %v4327 = vadd.f32 %v4233, %v4326
      %4328 = vmatprep.mubr.bf16.mxu0 0
      %4329 = vmatmul.mubr.bf16.gmra.mrb[0].mxu0 %v2260
      %v4330 = vpop.f32.mrb[0].mxu0
      %v4331 = vadd.f32 %v4229, %v4330
      %v4332 = vpop.f32.mrb[0].mxu0
      %v4333 = vadd.f32 %v4233, %v4332
      %v4334 = vpop.f32.mrb[0].mxu0
      %v4335 = vadd.f32 %v4229, %v4334
      %v4336 = vpop.f32.mrb[0].mxu0
      %v4337 = vadd.f32 %v4233, %v4336
      %4338 = vmatprep.mubr.bf16.mxu0 0
      %4339 = vmatmul.mubr.bf16.gmra.mrb[0].mxu0 %v2263
      %v4340 = vpop.f32.mrb[0].mxu0
      %v4341 = vadd.f32 %v4229, %v4340
      %v4342 = vpop.f32.mrb[0].mxu0
      %v4343 = vadd.f32 %v4233, %v4342
      %v4344 = vpop.f32.mrb[0].mxu0
      %v4345 = vpop.f32.mrb[0].mxu0
      %4346 = vdwg.mxu0
      %4347 = vmatprep.subr.bf16.mxu0 %v4273
      %4348 = vmatpush1.bf16.msra.mxu0 %v4272
      %4349 = vmatprep.subr.bf16.mxu0 %v4277
      %4350 = vmatpush1.bf16.msra.mxu0 %v4276
      %4351 = vmatprep.subr.bf16.mxu0 0
      %4352 = vmatpush1.bf16.msra.mxu0 0
      %4353 = vmatprep.subr.bf16.mxu0 0
      %4354 = vmatpush1.bf16.msra.mxu0 0
      %4355 = vmatprep.subr.bf16.mxu0 0
      %4356 = vmatpush1.bf16.msra.mxu0 0
      %4357 = vmatprep.subr.bf16.mxu0 0
      %4358 = vmatpush1.bf16.msra.mxu0 0
      %4359 = vmatprep.subr.bf16.mxu0 0
      %4360 = vmatpush1.bf16.msra.mxu0 0
      %4361 = vmatprep.subr.bf16.mxu0 0
      %4362 = vmatpush1.bf16.msra.mxu0 0
      %4363 = vmatprep.subr.bf16.mxu0 0
      %4364 = vmatpush1.bf16.msra.mxu0 0
      %4365 = vmatprep.subr.bf16.mxu0 0
      %4366 = vmatpush1.bf16.msra.mxu0 0
      %4367 = vmatprep.subr.bf16.mxu0 0
      %4368 = vmatpush1.bf16.msra.mxu0 0
      %4369 = vmatprep.subr.bf16.mxu0 0
      %4370 = vmatpush1.bf16.msra.mxu0 0
      %4371 = vmatprep.subr.bf16.mxu0 0
      %4372 = vmatpush1.bf16.msra.mxu0 0
      %4373 = vmatprep.subr.bf16.mxu0 0
      %4374 = vmatpush1.bf16.msra.mxu0 0
      %4375 = vmatprep.subr.bf16.mxu0 0
      %4376 = vmatpush1.bf16.msra.mxu0 0
      %4377 = vmatprep.subr.bf16.mxu0 0
      %4378 = vmatpush1.bf16.msra.mxu0 0
      %4379 = vmatprep.mubr.bf16.mxu0 0
      %4380 = vmatmul.mubr.bf16.gmra.mrb[0].mxu0 %v2257
      %v4381 = vpop.f32.mrb[0].mxu0
      %v4382 = vadd.f32 %v4237, %v4381
      %v4383 = vpop.f32.mrb[0].mxu0
      %v4384 = vadd.f32 %v4241, %v4383
      %v4385 = vpop.f32.mrb[0].mxu0
      %v4386 = vadd.f32 %v4237, %v4385
      %v4387 = vpop.f32.mrb[0].mxu0
      %v4388 = vadd.f32 %v4241, %v4387
      %4389 = vmatprep.mubr.bf16.mxu0 0
      %4390 = vmatmul.mubr.bf16.gmra.mrb[0].mxu0 %v2260
      %v4391 = vpop.f32.mrb[0].mxu0
      %v4392 = vadd.f32 %v4237, %v4391
      %v4393 = vpop.f32.mrb[0].mxu0
      %v4394 = vadd.f32 %v4241, %v4393
      %v4395 = vpop.f32.mrb[0].mxu0
      %v4396 = vadd.f32 %v4237, %v4395
      %v4397 = vpop.f32.mrb[0].mxu0
      %v4398 = vadd.f32 %v4241, %v4397
      %4399 = vmatprep.mubr.bf16.mxu0 0
      %4400 = vmatmul.mubr.bf16.gmra.mrb[0].mxu0 %v2263
      %v4401 = vpop.f32.mrb[0].mxu0
      %v4402 = vadd.f32 %v4237, %v4401
      %v4403 = vpop.f32.mrb[0].mxu0
      %v4404 = vadd.f32 %v4241, %v4403
      %v4405 = vpop.f32.mrb[0].mxu0
      %v4406 = vpop.f32.mrb[0].mxu0
      %4407 = vdwg.mxu0
      %v4408 = vmul.f32 %v4321, 0.5
      %v4409 = vmul.f32 %v4323, 0.5
      %v4410 = vmul.f32 %v4382, 0.5
      %v4411 = vmul.f32 %v4384, 0.5
      %v4412 = vmul.f32 %v4325, 0.5
      %v4413 = vmul.f32 %v4327, 0.5
      %v4414 = vmul.f32 %v4386, 0.5
      %v4415 = vmul.f32 %v4388, 0.5
      %v4416 = vmul.f32 %v4331, 0.5
      %v4417 = vmul.f32 %v4333, 0.5
      %v4418 = vmul.f32 %v4392, 0.5
      %v4419 = vmul.f32 %v4394, 0.5
      %v4420 = vmul.f32 %v4335, 0.5
      %v4421 = vmul.f32 %v4337, 0.5
      %v4422 = vmul.f32 %v4396, 0.5
      %v4423 = vmul.f32 %v4398, 0.5
      %v4424 = vmul.f32 %v4341, 0.5
      %v4425 = vmul.f32 %v4343, 0.5
      %v4426 = vmul.f32 %v4402, 0.5
      %v4427 = vmul.f32 %v4404, 0.5
      %v4428 = vmul.f32 %v4321, 0.70710677
      %v4429 = vmul.f32 %v4323, 0.70710677
      %v4430 = vmul.f32 %v4382, 0.70710677
      %v4431 = vmul.f32 %v4384, 0.70710677
      %v4432 = vmul.f32 %v4325, 0.70710677
      %v4433 = vmul.f32 %v4327, 0.70710677
      %v4434 = vmul.f32 %v4386, 0.70710677
      %v4435 = vmul.f32 %v4388, 0.70710677
      %v4436 = vmul.f32 %v4331, 0.70710677
      %v4437 = vmul.f32 %v4333, 0.70710677
      %v4438 = vmul.f32 %v4392, 0.70710677
      %v4439 = vmul.f32 %v4394, 0.70710677
      %v4440 = vmul.f32 %v4335, 0.70710677
      %v4441 = vmul.f32 %v4337, 0.70710677
      %v4442 = vmul.f32 %v4396, 0.70710677
      %v4443 = vmul.f32 %v4398, 0.70710677
      %v4444 = vmul.f32 %v4341, 0.70710677
      %v4445 = vmul.f32 %v4343, 0.70710677
      %v4446 = vmul.f32 %v4402, 0.70710677
      %v4447 = vmul.f32 %v4404, 0.70710677
      %v4448 = verf.f32.pop %v4428
      %v4449 = verf.f32.pop %v4429
      %v4450 = verf.f32.pop %v4430
      %v4451 = verf.f32.pop %v4431
      %v4452 = verf.f32.pop %v4432
      %v4453 = verf.f32.pop %v4433
      %v4454 = verf.f32.pop %v4434
      %v4455 = verf.f32.pop %v4435
      %v4456 = verf.f32.pop %v4436
      %v4457 = verf.f32.pop %v4437
      %v4458 = verf.f32.pop %v4438
      %v4459 = verf.f32.pop %v4439
      %v4460 = verf.f32.pop %v4440
      %v4461 = verf.f32.pop %v4441
      %v4462 = verf.f32.pop %v4442
      %v4463 = verf.f32.pop %v4443
      %v4464 = verf.f32.pop %v4444
      %v4465 = verf.f32.pop %v4445
      %v4466 = verf.f32.pop %v4446
      %v4467 = verf.f32.pop %v4447
      %v4468 = vadd.f32 %v4448, 1.0
      %v4469 = vadd.f32 %v4449, 1.0
      %v4470 = vadd.f32 %v4450, 1.0
      %v4471 = vadd.f32 %v4451, 1.0
      %v4472 = vadd.f32 %v4452, 1.0
      %v4473 = vadd.f32 %v4453, 1.0
      %v4474 = vadd.f32 %v4454, 1.0
      %v4475 = vadd.f32 %v4455, 1.0
      %v4476 = vadd.f32 %v4456, 1.0
      %v4477 = vadd.f32 %v4457, 1.0
      %v4478 = vadd.f32 %v4458, 1.0
      %v4479 = vadd.f32 %v4459, 1.0
      %v4480 = vadd.f32 %v4460, 1.0
      %v4481 = vadd.f32 %v4461, 1.0
      %v4482 = vadd.f32 %v4462, 1.0
      %v4483 = vadd.f32 %v4463, 1.0
      %v4484 = vadd.f32 %v4464, 1.0
      %v4485 = vadd.f32 %v4465, 1.0
      %v4486 = vadd.f32 %v4466, 1.0
      %v4487 = vadd.f32 %v4467, 1.0
      %v4488 = vmul.f32 %v4408, %v4468
      %v4489 = vmul.f32 %v4409, %v4469
      %v4490 = vmul.f32 %v4410, %v4470
      %v4491 = vmul.f32 %v4411, %v4471
      %v4492 = vmul.f32 %v4412, %v4472
      %v4493 = vmul.f32 %v4413, %v4473
      %v4494 = vmul.f32 %v4414, %v4474
      %v4495 = vmul.f32 %v4415, %v4475
      %v4496 = vmul.f32 %v4416, %v4476
      %v4497 = vmul.f32 %v4417, %v4477
      %v4498 = vmul.f32 %v4418, %v4478
      %v4499 = vmul.f32 %v4419, %v4479
      %v4500 = vmul.f32 %v4420, %v4480
      %v4501 = vmul.f32 %v4421, %v4481
      %v4502 = vmul.f32 %v4422, %v4482
      %v4503 = vmul.f32 %v4423, %v4483
      %v4504 = vmul.f32 %v4424, %v4484
      %v4505 = vmul.f32 %v4425, %v4485
      %v4506 = vmul.f32 %v4426, %v4486
      %v4507 = vmul.f32 %v4427, %v4487
      %v4508 = vpack.c.bf16 %v4492, %v4488
      %v4509 = vpack.c.bf16 %v4493, %v4489
      %v4510 = vpack.c.bf16 %v4494, %v4490
      %v4511 = vpack.c.bf16 %v4495, %v4491
      %v4512 = vpack.c.bf16 %v4500, %v4496
      %v4513 = vpack.c.bf16 %v4501, %v4497
      %v4514 = vpack.c.bf16 %v4502, %v4498
      %v4515 = vpack.c.bf16 %v4503, %v4499
      %v4516 = vpack.c.bf16 %v4504, %v4504
      %v4517 = vpack.c.bf16 %v4505, %v4505
      %v4518 = vpack.c.bf16 %v4506, %v4506
      %v4519 = vpack.c.bf16 %v4507, %v4507
      %v4520 = vld [vmem:[%s9 + $0x300] sm:$0xf]
      %v4521 = vld [vmem:[%s9 + $0x304] sm:$0xf]
      %v4522 = vld [vmem:[%s9 + $0x308] sm:$0xf]
      %v4523 = vld [vmem:[%s9 + $0x30c] sm:$0xf]
      %v4524 = vld [vmem:[%s9 + $0x310] sm:$0xf]
      %v4525 = vld [vmem:[%s9 + $0x314] sm:$0xf]
      %v4526 = vld [vmem:[%s9 + $0x318] sm:$0xf]
      %v4527 = vld [vmem:[%s9 + $0x31c] sm:$0xf]
      %v4528 = vld [vmem:[%s9 + $0x320] sm:$0xf]
      %v4529 = vld [vmem:[%s9 + $0x324] sm:$0xf]
      %v4530 = vld [vmem:[%s9 + $0x328] sm:$0xf]
      %v4531 = vld [vmem:[%s9 + $0x32c] sm:$0xf]
      %v4532 = vld [vmem:[%s9 + $0x330] sm:$0xf]
      %v4533 = vld [vmem:[%s9 + $0x334] sm:$0xf]
      %v4534 = vld [vmem:[%s9 + $0x338] sm:$0xf]
      %v4535 = vld [vmem:[%s9 + $0x33c] sm:$0xf]
      %v4536 = vld [vmem:[%s9 + $0x340] sm:$0xf]
      %v4537 = vld [vmem:[%s9 + $0x344] sm:$0xf]
      %v4538 = vld [vmem:[%s9 + $0x348] sm:$0xf]
      %v4539 = vld [vmem:[%s9 + $0x34c] sm:$0xf]
      %v4540 = vld [vmem:[%s9 + $0x350] sm:$0xf]
      %v4541 = vld [vmem:[%s9 + $0x354] sm:$0xf]
      %v4542 = vld [vmem:[%s9 + $0x358] sm:$0xf]
      %v4543 = vld [vmem:[%s9 + $0x35c] sm:$0xf]
      %v4544 = vld [vmem:[%s9 + $0x360] sm:$0xf]
      %v4545 = vld [vmem:[%s9 + $0x364] sm:$0xf]
      %v4546 = vld [vmem:[%s9 + $0x368] sm:$0xf]
      %v4547 = vld [vmem:[%s9 + $0x36c] sm:$0xf]
      %v4548 = vld [vmem:[%s9 + $0x370] sm:$0xf]
      %v4549 = vld [vmem:[%s9 + $0x374] sm:$0xf]
      %v4550 = vld [vmem:[%s9 + $0x378] sm:$0xf]
      %v4551 = vld [vmem:[%s9 + $0x37c] sm:$0xf]
      %v4552 = vld [vmem:[%s9 + $0x380] sm:$0xf]
      %v4553 = vld [vmem:[%s9 + $0x384] sm:$0xf]
      %v4554 = vld [vmem:[%s9 + $0x388] sm:$0xf]
      %v4555 = vld [vmem:[%s9 + $0x38c] sm:$0xf]
      %v4556 = vld [vmem:[%s9 + $0x390] sm:$0xf]
      %v4557 = vld [vmem:[%s9 + $0x394] sm:$0xf]
      %v4558 = vld [vmem:[%s9 + $0x398] sm:$0xf]
      %v4559 = vld [vmem:[%s9 + $0x39c] sm:$0xf]
      %v4560 = vld [vmem:[%s9 + $0x3a0] sm:$0xf]
      %v4561 = vld [vmem:[%s9 + $0x3a4] sm:$0xf]
      %v4562 = vld [vmem:[%s9 + $0x3a8] sm:$0xf]
      %v4563 = vld [vmem:[%s9 + $0x3ac] sm:$0xf]
      %v4564 = vld [vmem:[%s9 + $0x3b0] sm:$0xf]
      %v4565 = vld [vmem:[%s9 + $0x3b4] sm:$0xf]
      %v4566 = vld [vmem:[%s9 + $0x3b8] sm:$0xf]
      %v4567 = vld [vmem:[%s9 + $0x3bc] sm:$0xf]
      %v4568 = vld [vmem:[%s9 + $0x3c0] sm:$0xf]
      %v4569 = vld [vmem:[%s9 + $0x3c4] sm:$0xf]
      %v4570 = vld [vmem:[%s9 + $0x3c8] sm:$0xf]
      %v4571 = vld [vmem:[%s9 + $0x3cc] sm:$0xf]
      %v4572 = vld [vmem:[%s9 + $0x3d0] sm:$0xf]
      %v4573 = vld [vmem:[%s9 + $0x3d4] sm:$0xf]
      %v4574 = vld [vmem:[%s9 + $0x3d8] sm:$0xf]
      %v4575 = vld [vmem:[%s9 + $0x3dc] sm:$0xf]
      %v4576 = vld [vmem:[%s9 + $0x3e0] sm:$0xf]
      %v4577 = vld [vmem:[%s9 + $0x3e4] sm:$0xf]
      %v4578 = vld [vmem:[%s9 + $0x3e8] sm:$0xf]
      %v4579 = vld [vmem:[%s9 + $0x3ec] sm:$0xf]
      %v4580 = vld [vmem:[%s9 + $0x3f0] sm:$0xf]
      %v4581 = vld [vmem:[%s9 + $0x3f4] sm:$0xf]
      %v4582 = vld [vmem:[%s9 + $0x3f8] sm:$0xf]
      %v4583 = vld [vmem:[%s9 + $0x3fc] sm:$0xf]
      %v4648 = vunpack.c.l.b16 %v4520
      %v4649 = vunpack.c.l.b16 %v4521
      %v4650 = vunpack.c.l.b16 %v4522
      %v4651 = vunpack.c.l.b16 %v4523
      %v4652 = vunpack.c.l.b16 %v4524
      %v4653 = vunpack.c.l.b16 %v4525
      %v4654 = vunpack.c.l.b16 %v4526
      %v4655 = vunpack.c.l.b16 %v4527
      %v4656 = vunpack.c.l.b16 %v4528
      %v4657 = vunpack.c.l.b16 %v4529
      %v4658 = vunpack.c.l.b16 %v4530
      %v4659 = vunpack.c.l.b16 %v4531
      %v4660 = vunpack.c.l.b16 %v4532
      %v4661 = vunpack.c.l.b16 %v4533
      %v4662 = vunpack.c.l.b16 %v4534
      %v4663 = vunpack.c.l.b16 %v4535
      %v4664 = vunpack.c.l.b16 %v4536
      %v4665 = vunpack.c.l.b16 %v4537
      %v4666 = vunpack.c.l.b16 %v4538
      %v4667 = vunpack.c.l.b16 %v4539
      %v4668 = vunpack.c.l.b16 %v4540
      %v4669 = vunpack.c.l.b16 %v4541
      %v4670 = vunpack.c.l.b16 %v4542
      %v4671 = vunpack.c.l.b16 %v4543
      %v4672 = vunpack.c.l.b16 %v4544
      %v4673 = vunpack.c.l.b16 %v4545
      %v4674 = vunpack.c.l.b16 %v4546
      %v4675 = vunpack.c.l.b16 %v4547
      %v4676 = vunpack.c.l.b16 %v4548
      %v4677 = vunpack.c.l.b16 %v4549
      %v4678 = vunpack.c.l.b16 %v4550
      %v4679 = vunpack.c.l.b16 %v4551
      %v4680 = vunpack.c.l.b16 %v4552
      %v4681 = vunpack.c.l.b16 %v4553
      %v4682 = vunpack.c.l.b16 %v4554
      %v4683 = vunpack.c.l.b16 %v4555
      %v4684 = vunpack.c.l.b16 %v4556
      %v4685 = vunpack.c.l.b16 %v4557
      %v4686 = vunpack.c.l.b16 %v4558
      %v4687 = vunpack.c.l.b16 %v4559
      %v4688 = vunpack.c.l.b16 %v4560
      %v4689 = vunpack.c.l.b16 %v4561
      %v4690 = vunpack.c.l.b16 %v4562
      %v4691 = vunpack.c.l.b16 %v4563
      %v4692 = vunpack.c.l.b16 %v4564
      %v4693 = vunpack.c.l.b16 %v4565
      %v4694 = vunpack.c.l.b16 %v4566
      %v4695 = vunpack.c.l.b16 %v4567
      %v4696 = vunpack.c.l.b16 %v4568
      %v4697 = vunpack.c.l.b16 %v4569
      %v4698 = vunpack.c.l.b16 %v4570
      %v4699 = vunpack.c.l.b16 %v4571
      %v4700 = vunpack.c.l.b16 %v4572
      %v4701 = vunpack.c.l.b16 %v4573
      %v4702 = vunpack.c.l.b16 %v4574
      %v4703 = vunpack.c.l.b16 %v4575
      %v4704 = vunpack.c.l.b16 %v4576
      %v4705 = vunpack.c.l.b16 %v4577
      %v4706 = vunpack.c.l.b16 %v4578
      %v4707 = vunpack.c.l.b16 %v4579
      %v4708 = vunpack.c.l.b16 %v4580
      %v4709 = vunpack.c.l.b16 %v4581
      %v4710 = vunpack.c.l.b16 %v4582
      %v4711 = vunpack.c.l.b16 %v4583
      %v4712 = vpack.c.b16 %v4649, %v4648
      %v4713 = vpack.c.b16 %v4651, %v4650
      %v4714 = vpack.c.b16 %v4653, %v4652
      %v4715 = vpack.c.b16 %v4655, %v4654
      %v4716 = vpack.c.b16 %v4657, %v4656
      %v4717 = vpack.c.b16 %v4659, %v4658
      %v4718 = vpack.c.b16 %v4661, %v4660
      %v4719 = vpack.c.b16 %v4663, %v4662
      %v4720 = vpack.c.b16 %v4665, %v4664
      %v4721 = vpack.c.b16 %v4667, %v4666
      %v4722 = vpack.c.b16 %v4669, %v4668
      %v4723 = vpack.c.b16 %v4671, %v4670
      %v4724 = vpack.c.b16 %v4673, %v4672
      %v4725 = vpack.c.b16 %v4675, %v4674
      %v4726 = vpack.c.b16 %v4677, %v4676
      %v4727 = vpack.c.b16 %v4679, %v4678
      %v4728 = vpack.c.b16 %v4681, %v4680
      %v4729 = vpack.c.b16 %v4683, %v4682
      %v4730 = vpack.c.b16 %v4685, %v4684
      %v4731 = vpack.c.b16 %v4687, %v4686
      %v4732 = vpack.c.b16 %v4689, %v4688
      %v4733 = vpack.c.b16 %v4691, %v4690
      %v4734 = vpack.c.b16 %v4693, %v4692
      %v4735 = vpack.c.b16 %v4695, %v4694
      %v4736 = vpack.c.b16 %v4697, %v4696
      %v4737 = vpack.c.b16 %v4699, %v4698
      %v4738 = vpack.c.b16 %v4701, %v4700
      %v4739 = vpack.c.b16 %v4703, %v4702
      %v4740 = vpack.c.b16 %v4705, %v4704
      %v4741 = vpack.c.b16 %v4707, %v4706
      %v4742 = vpack.c.b16 %v4709, %v4708
      %v4743 = vpack.c.b16 %v4711, %v4710
      %4776 = vmatprep.subr.bf16.mxu0 0
      %4777 = vmatpush1.bf16.msra.mxu0 %v4712
      %4778 = vmatprep.subr.bf16.mxu0 0
      %4779 = vmatpush1.bf16.msra.mxu0 %v4713
      %4780 = vmatprep.subr.bf16.mxu0 0
      %4781 = vmatpush1.bf16.msra.mxu0 %v4714
      %4782 = vmatprep.subr.bf16.mxu0 0
      %4783 = vmatpush1.bf16.msra.mxu0 %v4715
      %4784 = vmatprep.subr.bf16.mxu0 0
      %4785 = vmatpush1.bf16.msra.mxu0 %v4716
      %4786 = vmatprep.subr.bf16.mxu0 0
      %4787 = vmatpush1.bf16.msra.mxu0 %v4717
      %4788 = vmatprep.subr.bf16.mxu0 0
      %4789 = vmatpush1.bf16.msra.mxu0 %v4718
      %4790 = vmatprep.subr.bf16.mxu0 0
      %4791 = vmatpush1.bf16.msra.mxu0 %v4719
      %4792 = vmatprep.subr.bf16.mxu0 0
      %4793 = vmatpush1.bf16.msra.mxu0 %v4720
      %4794 = vmatprep.subr.bf16.mxu0 0
      %4795 = vmatpush1.bf16.msra.mxu0 %v4721
      %4796 = vmatprep.subr.bf16.mxu0 0
      %4797 = vmatpush1.bf16.msra.mxu0 %v4722
      %4798 = vmatprep.subr.bf16.mxu0 0
      %4799 = vmatpush1.bf16.msra.mxu0 %v4723
      %4800 = vmatprep.subr.bf16.mxu0 0
      %4801 = vmatpush1.bf16.msra.mxu0 %v4724
      %4802 = vmatprep.subr.bf16.mxu0 0
      %4803 = vmatpush1.bf16.msra.mxu0 %v4725
      %4804 = vmatprep.subr.bf16.mxu0 0
      %4805 = vmatpush1.bf16.msra.mxu0 %v4726
      %4806 = vmatprep.subr.bf16.mxu0 0
      %4807 = vmatpush1.bf16.msra.mxu0 %v4727
      %4808 = vmatprep.mubr.bf16.mxu0 %v4509
      %4809 = vmatmul.mubr.bf16.gmra.mrb[0].mxu0 %v4508
      %v4810 = vpop.f32.mrb[0].mxu0
      %v4811 = vadd.f32 0.0, %v4810
      %v4812 = vpop.f32.mrb[0].mxu0
      %v4813 = vpop.f32.mrb[0].mxu0
      %v4814 = vadd.f32 0.0, %v4813
      %v4815 = vpop.f32.mrb[0].mxu0
      %4816 = vmatprep.mubr.bf16.mxu0 %v4513
      %4817 = vmatmul.mubr.bf16.gmra.mrb[0].mxu0 %v4512
      %v4818 = vpop.f32.mrb[0].mxu0
      %v4819 = vadd.f32 0.0, %v4818
      %v4820 = vpop.f32.mrb[0].mxu0
      %v4821 = vpop.f32.mrb[0].mxu0
      %v4822 = vadd.f32 0.0, %v4821
      %v4823 = vpop.f32.mrb[0].mxu0
      %4824 = vmatprep.mubr.bf16.mxu0 %v4517
      %4825 = vmatmul.mubr.bf16.gmra.mrb[0].mxu0 %v4516
      %v4826 = vpop.f32.mrb[0].mxu0
      %v4827 = vadd.f32 0.0, %v4826
      %v4828 = vpop.f32.mrb[0].mxu0
      %v4829 = vpop.f32.mrb[0].mxu0
      %v4830 = vpop.f32.mrb[0].mxu0
      %4831 = vdwg.mxu0
      %4832 = vmatprep.subr.bf16.mxu0 0
      %4833 = vmatpush1.bf16.msra.mxu0 %v4728
      %4834 = vmatprep.subr.bf16.mxu0 0
      %4835 = vmatpush1.bf16.msra.mxu0 %v4729
      %4836 = vmatprep.subr.bf16.mxu0 0
      %4837 = vmatpush1.bf16.msra.mxu0 %v4730
      %4838 = vmatprep.subr.bf16.mxu0 0
      %4839 = vmatpush1.bf16.msra.mxu0 %v4731
      %4840 = vmatprep.subr.bf16.mxu0 0
      %4841 = vmatpush1.bf16.msra.mxu0 %v4732
      %4842 = vmatprep.subr.bf16.mxu0 0
      %4843 = vmatpush1.bf16.msra.mxu0 %v4733
      %4844 = vmatprep.subr.bf16.mxu0 0
      %4845 = vmatpush1.bf16.msra.mxu0 %v4734
      %4846 = vmatprep.subr.bf16.mxu0 0
      %4847 = vmatpush1.bf16.msra.mxu0 %v4735
      %4848 = vmatprep.subr.bf16.mxu0 0
      %4849 = vmatpush1.bf16.msra.mxu0 %v4736
      %4850 = vmatprep.subr.bf16.mxu0 0
      %4851 = vmatpush1.bf16.msra.mxu0 %v4737
      %4852 = vmatprep.subr.bf16.mxu0 0
      %4853 = vmatpush1.bf16.msra.mxu0 %v4738
      %4854 = vmatprep.subr.bf16.mxu0 0
      %4855 = vmatpush1.bf16.msra.mxu0 %v4739
      %4856 = vmatprep.subr.bf16.mxu0 0
      %4857 = vmatpush1.bf16.msra.mxu0 %v4740
      %4858 = vmatprep.subr.bf16.mxu0 0
      %4859 = vmatpush1.bf16.msra.mxu0 %v4741
      %4860 = vmatprep.subr.bf16.mxu0 0
      %4861 = vmatpush1.bf16.msra.mxu0 %v4742
      %4862 = vmatprep.subr.bf16.mxu0 0
      %4863 = vmatpush1.bf16.msra.mxu0 %v4743
      %4864 = vmatprep.mubr.bf16.mxu0 %v4511
      %4865 = vmatmul.mubr.bf16.gmra.mrb[0].mxu0 %v4510
      %v4866 = vpop.f32.mrb[0].mxu0
      %v4867 = vadd.f32 %v4811, %v4866
      %v4868 = vpop.f32.mrb[0].mxu0
      %v4869 = vpop.f32.mrb[0].mxu0
      %v4870 = vadd.f32 %v4814, %v4869
      %v4871 = vpop.f32.mrb[0].mxu0
      %4872 = vmatprep.mubr.bf16.mxu0 %v4515
      %4873 = vmatmul.mubr.bf16.gmra.mrb[0].mxu0 %v4514
      %v4874 = vpop.f32.mrb[0].mxu0
      %v4875 = vadd.f32 %v4819, %v4874
      %v4876 = vpop.f32.mrb[0].mxu0
      %v4877 = vpop.f32.mrb[0].mxu0
      %v4878 = vadd.f32 %v4822, %v4877
      %v4879 = vpop.f32.mrb[0].mxu0
      %4880 = vmatprep.mubr.bf16.mxu0 %v4519
      %4881 = vmatmul.mubr.bf16.gmra.mrb[0].mxu0 %v4518
      %v4882 = vpop.f32.mrb[0].mxu0
      %v4883 = vadd.f32 %v4827, %v4882
      %v4884 = vpop.f32.mrb[0].mxu0
      %v4885 = vpop.f32.mrb[0].mxu0
      %v4886 = vpop.f32.mrb[0].mxu0
      %4887 = vdwg.mxu0
      %v4888 = vadd.f32 %v4211, %v4867
      %v4889 = vadd.f32 %v4212, %v4870
      %v4890 = vadd.f32 %v4213, %v4875
      %v4891 = vadd.f32 %v4214, %v4878
      %v4892 = vadd.f32 %v4215, %v4883
      %v4893 = vadd.f32 %v2178, %v4888
      %v4894 = vadd.f32 %v2179, %v4889
      %v4895 = vadd.f32 %v2180, %v4890
      %v4896 = vadd.f32 %v2181, %v4891
      %v4897 = vadd.f32 %v2182, %v4892
      %v4898 = vld [vmem:[%s10] sm:$0x1]
      %v4900 = vlaneseq
      %v4901 = vshrl.u32 %v4900, 7
      %v4902 = vsub.s32 0, %v4901
      %v4903 = vrot.slane %v4898, %v4902
      %v4905 = vadd.f32 %v4893, %v4903
      %v4906 = vadd.f32 %v4894, %v4903
      %v4907 = vadd.f32 %v4895, %v4903
      %v4908 = vadd.f32 %v4896, %v4903
      %v4909 = vadd.f32 %v4897, %v4903
      %v4910 = vld [vmem:[%s11] sm:$0x1]
      %v4911 = vld [vmem:[%s12] sm:$0x1]
      %v4912 = vsel %vm607, %v4905, 0.0
      %4913 = vadd.xlane.f32.xlu0 %v4912
      %v4914 = vpop.xlane.xlu0 %4913
      %v4915 = vsel %vm607, %v4906, 0.0
      %4916 = vadd.xlane.f32.xlu0 %v4915
      %v4917 = vpop.xlane.xlu0 %4916
      %v4918 = vsel %vm607, %v4907, 0.0
      %4919 = vadd.xlane.f32.xlu0 %v4918
      %v4920 = vpop.xlane.xlu0 %4919
      %v4921 = vsel %vm607, %v4908, 0.0
      %4922 = vadd.xlane.f32.xlu0 %v4921
      %v4923 = vpop.xlane.xlu0 %4922
      %v4924 = vsel %vm2106, %v4909, 0.0
      %4925 = vadd.xlane.f32.xlu0 %v4924
      %v4926 = vpop.xlane.xlu0 %4925
      %v4927 = vmul.f32 %v4914, %v2110
      %v4928 = vmul.f32 %v4917, %v2110
      %v4929 = vmul.f32 %v4920, %v2110
      %v4930 = vmul.f32 %v4923, %v2110
      %v4931 = vmul.f32 %v4926, %v2110
      %v4932 = vsub.f32 %v4905, %v4927
      %v4933 = vsub.f32 %v4906, %v4928
      %v4934 = vsub.f32 %v4907, %v4929
      %v4935 = vsub.f32 %v4908, %v4930
      %v4936 = vsub.f32 %v4909, %v4931
      %v4937 = vmul.f32 %v4932, %v4932
      %v4938 = vmul.f32 %v4933, %v4933
      %v4939 = vmul.f32 %v4934, %v4934
      %v4940 = vmul.f32 %v4935, %v4935
      %v4941 = vmul.f32 %v4936, %v4936
      %v4942 = vsel %vm607, %v4937, 0.0
      %4943 = vadd.xlane.f32.xlu0 %v4942
      %v4944 = vpop.xlane.xlu0 %4943
      %v4945 = vsel %vm607, %v4938, 0.0
      %4946 = vadd.xlane.f32.xlu0 %v4945
      %v4947 = vpop.xlane.xlu0 %4946
      %v4948 = vsel %vm607, %v4939, 0.0
      %4949 = vadd.xlane.f32.xlu0 %v4948
      %v4950 = vpop.xlane.xlu0 %4949
      %v4951 = vsel %vm607, %v4940, 0.0
      %4952 = vadd.xlane.f32.xlu0 %v4951
      %v4953 = vpop.xlane.xlu0 %4952
      %v4954 = vsel %vm2106, %v4941, 0.0
      %4955 = vadd.xlane.f32.xlu0 %v4954
      %v4956 = vpop.xlane.xlu0 %4955
      %v4957 = vmul.f32 %v4944, %v2110
      %v4958 = vmul.f32 %v4947, %v2110
      %v4959 = vmul.f32 %v4950, %v2110
      %v4960 = vmul.f32 %v4953, %v2110
      %v4961 = vmul.f32 %v4956, %v2110
      %v4962 = vadd.f32 %v4957, 1e-05
      %v4963 = vadd.f32 %v4958, 1e-05
      %v4964 = vadd.f32 %v4959, 1e-05
      %v4965 = vadd.f32 %v4960, 1e-05
      %v4966 = vadd.f32 %v4961, 1e-05
      %v4967 = vrsqrt.pop %v4962
      %v4968 = vrsqrt.pop %v4963
      %v4969 = vrsqrt.pop %v4964
      %v4970 = vrsqrt.pop %v4965
      %v4971 = vrsqrt.pop %v4966
      %v4972 = vmul.f32 %v4932, %v4967
      %v4973 = vmul.f32 %v4933, %v4968
      %v4974 = vmul.f32 %v4934, %v4969
      %v4975 = vmul.f32 %v4935, %v4970
      %v4976 = vmul.f32 %v4936, %v4971
      %v4978 = vlaneseq
      %v4979 = vshrl.u32 %v4978, 7
      %v4980 = vsub.s32 0, %v4979
      %v4981 = vrot.slane %v4910, %v4980
      %v4983 = vmul.f32 %v4972, %v4981
      %v4984 = vmul.f32 %v4973, %v4981
      %v4985 = vmul.f32 %v4974, %v4981
      %v4986 = vmul.f32 %v4975, %v4981
      %v4987 = vmul.f32 %v4976, %v4981
      %v4989 = vlaneseq
      %v4990 = vshrl.u32 %v4989, 7
      %v4991 = vsub.s32 0, %v4990
      %v4992 = vrot.slane %v4911, %v4991
      %v4994 = vadd.f32 %v4983, %v4992
      %v4995 = vadd.f32 %v4984, %v4992
      %v4996 = vadd.f32 %v4985, %v4992
      %v4997 = vadd.f32 %v4986, %v4992
      %v4998 = vadd.f32 %v4987, %v4992
      %s4999 = scalar_lea.vmem %s1, 32
      %v5000 = vld [vmem:[%s4999] sm:$0xff]
      %v5001 = vld [vmem:[%s4999 + $0x8] sm:$0xff]
      %v5002 = vld [vmem:[%s4999 + $0x10] sm:$0xff]
      %v5003 = vld [vmem:[%s4999 + $0x18] sm:$0xff]
      %s5004 = scalar_lea.vmem %s2, 1
      %v5005 = vld [vmem:[%s5004] sm:$0x1]
      %v5007 = vlaneseq
      %v5008 = vshrl.u32 %v5007, 7
      %v5009 = vsub.s32 0, %v5008
      %v5010 = vrot.slane %v5005, %v5009
      %v5013 = vsel %vm607, %v4994, 0
      %v5016 = vsel %vm607, %v4995, 0
      %v5019 = vsel %vm607, %v4996, 0
      %v5022 = vsel %vm607, %v4997, 0
      %v5025 = vsel %vm607, %v4998, 0
      %5027 = vmatprep.subr.mxu0 0.0
      %5028 = vmatpush1.msra.mxu0 %v5000
      %5029 = vmatprep.subr.mxu0 0.0
      %5030 = vmatpush1.msra.mxu0 %v5001
      %5031 = vmatprep.subr.mxu0 0.0
      %5032 = vmatpush1.msra.mxu0 %v5002
      %5033 = vmatprep.subr.mxu0 0.0
      %5034 = vmatpush1.msra.mxu0 %v5003
      %5035 = vmatprep.subr.mxu0 0.0
      %5036 = vmatpush1.msra.mxu0 0.0
      %5037 = vmatprep.subr.mxu0 0.0
      %5038 = vmatpush1.msra.mxu0 0.0
      %5039 = vmatprep.subr.mxu0 0.0
      %5040 = vmatpush1.msra.mxu0 0.0
      %5041 = vmatprep.subr.mxu0 0.0
      %5042 = vmatpush1.msra.mxu0 0.0
      %5043 = vmatprep.subr.mxu0 0.0
      %5044 = vmatpush1.msra.mxu0 0.0
      %5045 = vmatprep.subr.mxu0 0.0
      %5046 = vmatpush1.msra.mxu0 0.0
      %5047 = vmatprep.subr.mxu0 0.0
      %5048 = vmatpush1.msra.mxu0 0.0
      %5049 = vmatprep.subr.mxu0 0.0
      %5050 = vmatpush1.msra.mxu0 0.0
      %5051 = vmatprep.subr.mxu0 0.0
      %5052 = vmatpush1.msra.mxu0 0.0
      %5053 = vmatprep.subr.mxu0 0.0
      %5054 = vmatpush1.msra.mxu0 0.0
      %5055 = vmatprep.subr.mxu0 0.0
      %5056 = vmatpush1.msra.mxu0 0.0
      %5057 = vmatprep.subr.mxu0 0.0
      %5058 = vmatpush1.msra.mxu0 0.0
      %5059 = vmatprep.subr.mxu0 0.0
      %5060 = vmatpush1.msra.mxu0 0.0
      %5061 = vmatprep.subr.mxu0 0.0
      %5062 = vmatpush1.msra.mxu0 0.0
      %5063 = vmatprep.subr.mxu0 0.0
      %5064 = vmatpush1.msra.mxu0 0.0
      %5065 = vmatprep.subr.mxu0 0.0
      %5066 = vmatpush1.msra.mxu0 0.0
      %5067 = vmatprep.subr.mxu0 0.0
      %5068 = vmatpush1.msra.mxu0 0.0
      %5069 = vmatprep.subr.mxu0 0.0
      %5070 = vmatpush1.msra.mxu0 0.0
      %5071 = vmatprep.subr.mxu0 0.0
      %5072 = vmatpush1.msra.mxu0 0.0
      %5073 = vmatprep.subr.mxu0 0.0
      %5074 = vmatpush1.msra.mxu0 0.0
      %5075 = vmatprep.subr.mxu0 0.0
      %5076 = vmatpush1.msra.mxu0 0.0
      %5077 = vmatprep.subr.mxu0 0.0
      %5078 = vmatpush1.msra.mxu0 0.0
      %5079 = vmatprep.subr.mxu0 0.0
      %5080 = vmatpush1.msra.mxu0 0.0
      %5081 = vmatprep.subr.mxu0 0.0
      %5082 = vmatpush1.msra.mxu0 0.0
      %5083 = vmatprep.subr.mxu0 0.0
      %5084 = vmatpush1.msra.mxu0 0.0
      %5085 = vmatprep.subr.mxu0 0.0
      %5086 = vmatpush1.msra.mxu0 0.0
      %5087 = vmatprep.subr.mxu0 0.0
      %5088 = vmatpush1.msra.mxu0 0.0
      %5089 = vmatprep.subr.mxu0 0.0
      %5090 = vmatpush1.msra.mxu0 0.0
      %5091 = vmatprep.mubr.f32.mxu0 0.0
      %5092 = vmatmul.mubr.f32.gmra.mrb[0].mxu0 %v5013
      %v5093 = vpop.f32.mrb[0].mxu0
      %v5094 = vadd.f32 %v5010, %v5093
      %v5095 = vpop.f32.mrb[0].mxu0
      %5096 = vmatprep.mubr.f32.mxu0 0.0
      %5097 = vmatmul.mubr.f32.gmra.mrb[0].mxu0 %v5016
      %v5098 = vpop.f32.mrb[0].mxu0
      %v5099 = vadd.f32 %v5010, %v5098
      %v5100 = vpop.f32.mrb[0].mxu0
      %5101 = vmatprep.mubr.f32.mxu0 0.0
      %5102 = vmatmul.mubr.f32.gmra.mrb[0].mxu0 %v5019
      %v5103 = vpop.f32.mrb[0].mxu0
      %v5104 = vadd.f32 %v5010, %v5103
      %v5105 = vpop.f32.mrb[0].mxu0
      %5106 = vmatprep.mubr.f32.mxu0 0.0
      %5107 = vmatmul.mubr.f32.gmra.mrb[0].mxu0 %v5022
      %v5108 = vpop.f32.mrb[0].mxu0
      %v5109 = vadd.f32 %v5010, %v5108
      %v5110 = vpop.f32.mrb[0].mxu0
      %5111 = vmatprep.mubr.f32.mxu0 0.0
      %5112 = vmatmul.mubr.f32.gmra.mrb[0].mxu0 %v5025
      %v5113 = vpop.f32.mrb[0].mxu0
      %v5114 = vadd.f32 %v5010, %v5113
      %v5115 = vpop.f32.mrb[0].mxu0
      %5116 = vdwg.mxu0
      %v5117 = vmul.f32 %v5094, %v580
      %v5118 = vmul.f32 %v5099, %v580
      %v5119 = vmul.f32 %v5104, %v580
      %v5120 = vmul.f32 %v5109, %v580
      %v5121 = vmul.f32 %v5114, %v580
      %5127 = vrot.lane.b32.xlu0 %v5094, 96
      %v5128 = vpop.permute.xlu0 %5127
      %5129 = vrot.lane.b32.xlu0 %v5099, 96
      %v5130 = vpop.permute.xlu0 %5129
      %5131 = vrot.lane.b32.xlu0 %v5104, 96
      %v5132 = vpop.permute.xlu0 %5131
      %5133 = vrot.lane.b32.xlu0 %v5109, 96
      %v5134 = vpop.permute.xlu0 %5133
      %5135 = vrot.lane.b32.xlu0 %v5114, 96
      %v5136 = vpop.permute.xlu0 %5135
      %v5138 = vsel %vm607, %v5117, 0
      %v5141 = vsel %vm607, %v5118, 0
      %v5144 = vsel %vm607, %v5119, 0
      %v5147 = vsel %vm607, %v5120, 0
      %v5150 = vsel %vm607, %v5121, 0
      %v5152 = vsel %vm607, %v5128, 0
      %v5154 = vsel %vm607, %v5130, 0
      %v5156 = vsel %vm607, %v5132, 0
      %v5158 = vsel %vm607, %v5134, 0
      %v5160 = vsel %vm607, %v5136, 0
      %5162 = vmatprep.subr.mxu0 0.0
      %5163 = vmatpush1.xpose.msra.mxu0 %v5152
      %5164 = vmatprep.subr.mxu0 0.0
      %5165 = vmatpush1.xpose.msra.mxu0 %v5154
      %5166 = vmatprep.subr.mxu0 0.0
      %5167 = vmatpush1.xpose.msra.mxu0 %v5156
      %5168 = vmatprep.subr.mxu0 0.0
      %5169 = vmatpush1.xpose.msra.mxu0 %v5158
      %5170 = vmatprep.subr.mxu0 0.0
      %5171 = vmatpush1.xpose.msra.mxu0 %v5160
      %5172 = vmatprep.subr.mxu0 0.0
      %5173 = vmatpush1.xpose.msra.mxu0 0.0
      %5174 = vmatprep.subr.mxu0 0.0
      %5175 = vmatpush1.xpose.msra.mxu0 0.0
      %5176 = vmatprep.subr.mxu0 0.0
      %5177 = vmatpush1.xpose.msra.mxu0 0.0
      %5178 = vmatprep.subr.mxu0 0.0
      %5179 = vmatpush1.xpose.msra.mxu0 0.0
      %5180 = vmatprep.subr.mxu0 0.0
      %5181 = vmatpush1.xpose.msra.mxu0 0.0
      %5182 = vmatprep.subr.mxu0 0.0
      %5183 = vmatpush1.xpose.msra.mxu0 0.0
      %5184 = vmatprep.subr.mxu0 0.0
      %5185 = vmatpush1.xpose.msra.mxu0 0.0
      %5186 = vmatprep.subr.mxu0 0.0
      %5187 = vmatpush1.xpose.msra.mxu0 0.0
      %5188 = vmatprep.subr.mxu0 0.0
      %5189 = vmatpush1.xpose.msra.mxu0 0.0
      %5190 = vmatprep.subr.mxu0 0.0
      %5191 = vmatpush1.xpose.msra.mxu0 0.0
      %5192 = vmatprep.subr.mxu0 0.0
      %5193 = vmatpush1.xpose.msra.mxu0 0.0
      %5194 = vmatprep.subr.mxu0 0.0
      %5195 = vmatpush1.xpose.msra.mxu0 0.0
      %5196 = vmatprep.subr.mxu0 0.0
      %5197 = vmatpush1.xpose.msra.mxu0 0.0
      %5198 = vmatprep.subr.mxu0 0.0
      %5199 = vmatpush1.xpose.msra.mxu0 0.0
      %5200 = vmatprep.subr.mxu0 0.0
      %5201 = vmatpush1.xpose.msra.mxu0 0.0
      %5202 = vmatprep.subr.mxu0 0.0
      %5203 = vmatpush1.xpose.msra.mxu0 0.0
      %5204 = vmatprep.subr.mxu0 0.0
      %5205 = vmatpush1.xpose.msra.mxu0 0.0
      %5206 = vmatprep.subr.mxu0 0.0
      %5207 = vmatpush1.xpose.msra.mxu0 0.0
      %5208 = vmatprep.subr.mxu0 0.0
      %5209 = vmatpush1.xpose.msra.mxu0 0.0
      %5210 = vmatprep.subr.mxu0 0.0
      %5211 = vmatpush1.xpose.msra.mxu0 0.0
      %5212 = vmatprep.subr.mxu0 0.0
      %5213 = vmatpush1.xpose.msra.mxu0 0.0
      %5214 = vmatprep.subr.mxu0 0.0
      %5215 = vmatpush1.xpose.msra.mxu0 0.0
      %5216 = vmatprep.subr.mxu0 0.0
      %5217 = vmatpush1.xpose.msra.mxu0 0.0
      %5218 = vmatprep.subr.mxu0 0.0
      %5219 = vmatpush1.xpose.msra.mxu0 0.0
      %5220 = vmatprep.subr.mxu0 0.0
      %5221 = vmatpush1.xpose.msra.mxu0 0.0
      %5222 = vmatprep.subr.mxu0 0.0
      %5223 = vmatpush1.xpose.msra.mxu0 0.0
      %5224 = vmatprep.subr.mxu0 0.0
      %5225 = vmatpush1.xpose.msra.mxu0 0.0
      %5226 = vmatprep.mubr.f32.mxu0 0.0
      %5227 = vmatmul.mubr.f32.gmra.mrb[0].mxu0 %v5138
      %v5228 = vpop.f32.mrb[0].mxu0
      %v5229 = vadd.f32 0.0, %v5228
      %v5230 = vpop.f32.mrb[0].mxu0
      %5231 = vmatprep.mubr.f32.mxu0 0.0
      %5232 = vmatmul.mubr.f32.gmra.mrb[0].mxu0 %v5141
      %v5233 = vpop.f32.mrb[0].mxu0
      %v5234 = vadd.f32 0.0, %v5233
      %v5235 = vpop.f32.mrb[0].mxu0
      %5236 = vmatprep.mubr.f32.mxu0 0.0
      %5237 = vmatmul.mubr.f32.gmra.mrb[0].mxu0 %v5144
      %v5238 = vpop.f32.mrb[0].mxu0
      %v5239 = vadd.f32 0.0, %v5238
      %v5240 = vpop.f32.mrb[0].mxu0
      %5241 = vmatprep.mubr.f32.mxu0 0.0
      %5242 = vmatmul.mubr.f32.gmra.mrb[0].mxu0 %v5147
      %v5243 = vpop.f32.mrb[0].mxu0
      %v5244 = vadd.f32 0.0, %v5243
      %v5245 = vpop.f32.mrb[0].mxu0
      %5246 = vmatprep.mubr.f32.mxu0 0.0
      %5247 = vmatmul.mubr.f32.gmra.mrb[0].mxu0 %v5150
      %v5248 = vpop.f32.mrb[0].mxu0
      %v5249 = vadd.f32 0.0, %v5248
      %v5250 = vpop.f32.mrb[0].mxu0
      %5251 = vdwg.mxu0
      %v5252 = vmul.f32 %v5229, 0.35355338
      %v5253 = vmul.f32 %v5234, 0.35355338
      %v5254 = vmul.f32 %v5239, 0.35355338
      %v5255 = vmul.f32 %v5244, 0.35355338
      %v5256 = vmul.f32 %v5249, 0.35355338
      %v5257 = vsel %vm853, %v5252, -inf
      %5258 = vmax.xlane.f32.xlu0 %v5257
      %v5259 = vpop.xlane.xlu0 %5258
      %v5260 = vsel %vm853, %v5253, -inf
      %5261 = vmax.xlane.f32.xlu0 %v5260
      %v5262 = vpop.xlane.xlu0 %5261
      %v5263 = vsel %vm853, %v5254, -inf
      %5264 = vmax.xlane.f32.xlu0 %v5263
      %v5265 = vpop.xlane.xlu0 %5264
      %v5266 = vsel %vm853, %v5255, -inf
      %5267 = vmax.xlane.f32.xlu0 %v5266
      %v5268 = vpop.xlane.xlu0 %5267
      %v5269 = vsel %vm866, %v5256, -inf
      %5270 = vmax.xlane.f32.xlu0 %v5269
      %v5271 = vpop.xlane.xlu0 %5270
      %v5272 = vsub.f32 %v5252, %v5259
      %v5273 = vsub.f32 %v5253, %v5262
      %v5274 = vsub.f32 %v5254, %v5265
      %v5275 = vsub.f32 %v5255, %v5268
      %v5276 = vsub.f32 %v5256, %v5271
      %v5277 = vmul.f32 %v5272, 1.442695
      %v5278 = vpow.pop %v5277
      %v5279 = vmul.f32 %v5273, 1.442695
      %v5280 = vpow.pop %v5279
      %v5281 = vmul.f32 %v5274, 1.442695
      %v5282 = vpow.pop %v5281
      %v5283 = vmul.f32 %v5275, 1.442695
      %v5284 = vpow.pop %v5283
      %v5285 = vmul.f32 %v5276, 1.442695
      %v5286 = vpow.pop %v5285
      %v5287 = vsel %vm853, %v5278, 0.0
      %5288 = vadd.xlane.f32.xlu0 %v5287
      %v5289 = vpop.xlane.xlu0 %5288
      %v5290 = vsel %vm853, %v5280, 0.0
      %5291 = vadd.xlane.f32.xlu0 %v5290
      %v5292 = vpop.xlane.xlu0 %5291
      %v5293 = vsel %vm853, %v5282, 0.0
      %5294 = vadd.xlane.f32.xlu0 %v5293
      %v5295 = vpop.xlane.xlu0 %5294
      %v5296 = vsel %vm853, %v5284, 0.0
      %5297 = vadd.xlane.f32.xlu0 %v5296
      %v5298 = vpop.xlane.xlu0 %5297
      %v5299 = vsel %vm866, %v5286, 0.0
      %5300 = vadd.xlane.f32.xlu0 %v5299
      %v5301 = vpop.xlane.xlu0 %5300
      %v5302 = vrcp.pop %v5289
      %v5303 = vmul.f32 %v5278, %v5302
      %v5304 = vrcp.pop %v5292
      %v5305 = vmul.f32 %v5280, %v5304
      %v5306 = vrcp.pop %v5295
      %v5307 = vmul.f32 %v5282, %v5306
      %v5308 = vrcp.pop %v5298
      %v5309 = vmul.f32 %v5284, %v5308
      %v5310 = vrcp.pop %v5301
      %v5311 = vmul.f32 %v5286, %v5310
      %v5312 = vmul.f32 %v5094, %v912
      %v5313 = vmul.f32 %v5099, %v912
      %v5314 = vmul.f32 %v5104, %v912
      %v5315 = vmul.f32 %v5109, %v912
      %v5316 = vmul.f32 %v5114, %v912
      %v5317 = vmul.f32 %v5094, %v585
      %v5318 = vmul.f32 %v5099, %v585
      %v5319 = vmul.f32 %v5104, %v585
      %v5320 = vmul.f32 %v5109, %v585
      %v5321 = vmul.f32 %v5114, %v585
      %v5323 = vsel %vm607, %v5317, 0
      %v5326 = vsel %vm607, %v5318, 0
      %v5329 = vsel %vm607, %v5319, 0
      %v5332 = vsel %vm607, %v5320, 0
      %v5335 = vsel %vm607, %v5321, 0
      %5337 = vmatprep.subr.mxu0 0.0
      %5338 = vmatpush1.xpose.msra.mxu0 %v5152
      %5339 = vmatprep.subr.mxu0 0.0
      %5340 = vmatpush1.xpose.msra.mxu0 %v5154
      %5341 = vmatprep.subr.mxu0 0.0
      %5342 = vmatpush1.xpose.msra.mxu0 %v5156
      %5343 = vmatprep.subr.mxu0 0.0
      %5344 = vmatpush1.xpose.msra.mxu0 %v5158
      %5345 = vmatprep.subr.mxu0 0.0
      %5346 = vmatpush1.xpose.msra.mxu0 %v5160
      %5347 = vmatprep.subr.mxu0 0.0
      %5348 = vmatpush1.xpose.msra.mxu0 0.0
      %5349 = vmatprep.subr.mxu0 0.0
      %5350 = vmatpush1.xpose.msra.mxu0 0.0
      %5351 = vmatprep.subr.mxu0 0.0
      %5352 = vmatpush1.xpose.msra.mxu0 0.0
      %5353 = vmatprep.subr.mxu0 0.0
      %5354 = vmatpush1.xpose.msra.mxu0 0.0
      %5355 = vmatprep.subr.mxu0 0.0
      %5356 = vmatpush1.xpose.msra.mxu0 0.0
      %5357 = vmatprep.subr.mxu0 0.0
      %5358 = vmatpush1.xpose.msra.mxu0 0.0
      %5359 = vmatprep.subr.mxu0 0.0
      %5360 = vmatpush1.xpose.msra.mxu0 0.0
      %5361 = vmatprep.subr.mxu0 0.0
      %5362 = vmatpush1.xpose.msra.mxu0 0.0
      %5363 = vmatprep.subr.mxu0 0.0
      %5364 = vmatpush1.xpose.msra.mxu0 0.0
      %5365 = vmatprep.subr.mxu0 0.0
      %5366 = vmatpush1.xpose.msra.mxu0 0.0
      %5367 = vmatprep.subr.mxu0 0.0
      %5368 = vmatpush1.xpose.msra.mxu0 0.0
      %5369 = vmatprep.subr.mxu0 0.0
      %5370 = vmatpush1.xpose.msra.mxu0 0.0
      %5371 = vmatprep.subr.mxu0 0.0
      %5372 = vmatpush1.xpose.msra.mxu0 0.0
      %5373 = vmatprep.subr.mxu0 0.0
      %5374 = vmatpush1.xpose.msra.mxu0 0.0
      %5375 = vmatprep.subr.mxu0 0.0
      %5376 = vmatpush1.xpose.msra.mxu0 0.0
      %5377 = vmatprep.subr.mxu0 0.0
      %5378 = vmatpush1.xpose.msra.mxu0 0.0
      %5379 = vmatprep.subr.mxu0 0.0
      %5380 = vmatpush1.xpose.msra.mxu0 0.0
      %5381 = vmatprep.subr.mxu0 0.0
      %5382 = vmatpush1.xpose.msra.mxu0 0.0
      %5383 = vmatprep.subr.mxu0 0.0
      %5384 = vmatpush1.xpose.msra.mxu0 0.0
      %5385 = vmatprep.subr.mxu0 0.0
      %5386 = vmatpush1.xpose.msra.mxu0 0.0
      %5387 = vmatprep.subr.mxu0 0.0
      %5388 = vmatpush1.xpose.msra.mxu0 0.0
      %5389 = vmatprep.subr.mxu0 0.0
      %5390 = vmatpush1.xpose.msra.mxu0 0.0
      %5391 = vmatprep.subr.mxu0 0.0
      %5392 = vmatpush1.xpose.msra.mxu0 0.0
      %5393 = vmatprep.subr.mxu0 0.0
      %5394 = vmatpush1.xpose.msra.mxu0 0.0
      %5395 = vmatprep.subr.mxu0 0.0
      %5396 = vmatpush1.xpose.msra.mxu0 0.0
      %5397 = vmatprep.subr.mxu0 0.0
      %5398 = vmatpush1.xpose.msra.mxu0 0.0
      %5399 = vmatprep.subr.mxu0 0.0
      %5400 = vmatpush1.xpose.msra.mxu0 0.0
      %5401 = vmatprep.mubr.f32.mxu0 0.0
      %5402 = vmatmul.mubr.f32.gmra.mrb[0].mxu0 %v5323
      %v5403 = vpop.f32.mrb[0].mxu0
      %v5404 = vadd.f32 0.0, %v5403
      %v5405 = vpop.f32.mrb[0].mxu0
      %5406 = vmatprep.mubr.f32.mxu0 0.0
      %5407 = vmatmul.mubr.f32.gmra.mrb[0].mxu0 %v5326
      %v5408 = vpop.f32.mrb[0].mxu0
      %v5409 = vadd.f32 0.0, %v5408
      %v5410 = vpop.f32.mrb[0].mxu0
      %5411 = vmatprep.mubr.f32.mxu0 0.0
      %5412 = vmatmul.mubr.f32.gmra.mrb[0].mxu0 %v5329
      %v5413 = vpop.f32.mrb[0].mxu0
      %v5414 = vadd.f32 0.0, %v5413
      %v5415 = vpop.f32.mrb[0].mxu0
      %5416 = vmatprep.mubr.f32.mxu0 0.0
      %5417 = vmatmul.mubr.f32.gmra.mrb[0].mxu0 %v5332
      %v5418 = vpop.f32.mrb[0].mxu0
      %v5419 = vadd.f32 0.0, %v5418
      %v5420 = vpop.f32.mrb[0].mxu0
      %5421 = vmatprep.mubr.f32.mxu0 0.0
      %5422 = vmatmul.mubr.f32.gmra.mrb[0].mxu0 %v5335
      %v5423 = vpop.f32.mrb[0].mxu0
      %v5424 = vadd.f32 0.0, %v5423
      %v5425 = vpop.f32.mrb[0].mxu0
      %5426 = vdwg.mxu0
      %v5427 = vmul.f32 %v5404, 0.35355338
      %v5428 = vmul.f32 %v5409, 0.35355338
      %v5429 = vmul.f32 %v5414, 0.35355338
      %v5430 = vmul.f32 %v5419, 0.35355338
      %v5431 = vmul.f32 %v5424, 0.35355338
      %v5432 = vsel %vm853, %v5427, -inf
      %5433 = vmax.xlane.f32.xlu0 %v5432
      %v5434 = vpop.xlane.xlu0 %5433
      %v5435 = vsel %vm853, %v5428, -inf
      %5436 = vmax.xlane.f32.xlu0 %v5435
      %v5437 = vpop.xlane.xlu0 %5436
      %v5438 = vsel %vm853, %v5429, -inf
      %5439 = vmax.xlane.f32.xlu0 %v5438
      %v5440 = vpop.xlane.xlu0 %5439
      %v5441 = vsel %vm853, %v5430, -inf
      %5442 = vmax.xlane.f32.xlu0 %v5441
      %v5443 = vpop.xlane.xlu0 %5442
      %v5444 = vsel %vm866, %v5431, -inf
      %5445 = vmax.xlane.f32.xlu0 %v5444
      %v5446 = vpop.xlane.xlu0 %5445
      %v5447 = vsub.f32 %v5427, %v5434
      %v5448 = vsub.f32 %v5428, %v5437
      %v5449 = vsub.f32 %v5429, %v5440
      %v5450 = vsub.f32 %v5430, %v5443
      %v5451 = vsub.f32 %v5431, %v5446
      %v5452 = vmul.f32 %v5447, 1.442695
      %v5453 = vpow.pop %v5452
      %v5454 = vmul.f32 %v5448, 1.442695
      %v5455 = vpow.pop %v5454
      %v5456 = vmul.f32 %v5449, 1.442695
      %v5457 = vpow.pop %v5456
      %v5458 = vmul.f32 %v5450, 1.442695
      %v5459 = vpow.pop %v5458
      %v5460 = vmul.f32 %v5451, 1.442695
      %v5461 = vpow.pop %v5460
      %v5462 = vsel %vm853, %v5453, 0.0
      %5463 = vadd.xlane.f32.xlu0 %v5462
      %v5464 = vpop.xlane.xlu0 %5463
      %v5465 = vsel %vm853, %v5455, 0.0
      %5466 = vadd.xlane.f32.xlu0 %v5465
      %v5467 = vpop.xlane.xlu0 %5466
      %v5468 = vsel %vm853, %v5457, 0.0
      %5469 = vadd.xlane.f32.xlu0 %v5468
      %v5470 = vpop.xlane.xlu0 %5469
      %v5471 = vsel %vm853, %v5459, 0.0
      %5472 = vadd.xlane.f32.xlu0 %v5471
      %v5473 = vpop.xlane.xlu0 %5472
      %v5474 = vsel %vm866, %v5461, 0.0
      %5475 = vadd.xlane.f32.xlu0 %v5474
      %v5476 = vpop.xlane.xlu0 %5475
      %v5477 = vrcp.pop %v5464
      %v5478 = vmul.f32 %v5453, %v5477
      %v5479 = vrcp.pop %v5467
      %v5480 = vmul.f32 %v5455, %v5479
      %v5481 = vrcp.pop %v5470
      %v5482 = vmul.f32 %v5457, %v5481
      %v5483 = vrcp.pop %v5473
      %v5484 = vmul.f32 %v5459, %v5483
      %v5485 = vrcp.pop %v5476
      %v5486 = vmul.f32 %v5461, %v5485
      %v5487 = vmul.f32 %v5094, %v1091
      %v5488 = vmul.f32 %v5099, %v1091
      %v5489 = vmul.f32 %v5104, %v1091
      %v5490 = vmul.f32 %v5109, %v1091
      %v5491 = vmul.f32 %v5114, %v1091
      %5497 = vrot.lane.b32.xlu0 %v5487, 64
      %v5498 = vpop.permute.xlu0 %5497
      %5499 = vrot.lane.b32.xlu0 %v5488, 64
      %v5500 = vpop.permute.xlu0 %5499
      %5501 = vrot.lane.b32.xlu0 %v5489, 64
      %v5502 = vpop.permute.xlu0 %5501
      %5503 = vrot.lane.b32.xlu0 %v5490, 64
      %v5504 = vpop.permute.xlu0 %5503
      %5505 = vrot.lane.b32.xlu0 %v5491, 64
      %v5506 = vpop.permute.xlu0 %5505
      %v5512 = vsel %vm853, %v5478, 0
      %v5515 = vsel %vm853, %v5480, 0
      %v5518 = vsel %vm853, %v5482, 0
      %v5521 = vsel %vm853, %v5484, 0
      %v5524 = vsel %vm853, %v5486, 0
      %v5526 = vsel %vm1132, %v5506, 0
      %5528 = vmatprep.subr.mxu0 0.0
      %5529 = vmatpush1.msra.mxu0 %v5498
      %5530 = vmatprep.subr.mxu0 0.0
      %5531 = vmatpush1.msra.mxu0 %v5500
      %5532 = vmatprep.subr.mxu0 0.0
      %5533 = vmatpush1.msra.mxu0 %v5502
      %5534 = vmatprep.subr.mxu0 0.0
      %5535 = vmatpush1.msra.mxu0 %v5504
      %5536 = vmatprep.subr.mxu0 0.0
      %5537 = vmatpush1.msra.mxu0 %v5526
      %5538 = vmatprep.subr.mxu0 0.0
      %5539 = vmatpush1.msra.mxu0 0.0
      %5540 = vmatprep.subr.mxu0 0.0
      %5541 = vmatpush1.msra.mxu0 0.0
      %5542 = vmatprep.subr.mxu0 0.0
      %5543 = vmatpush1.msra.mxu0 0.0
      %5544 = vmatprep.subr.mxu0 0.0
      %5545 = vmatpush1.msra.mxu0 0.0
      %5546 = vmatprep.subr.mxu0 0.0
      %5547 = vmatpush1.msra.mxu0 0.0
      %5548 = vmatprep.subr.mxu0 0.0
      %5549 = vmatpush1.msra.mxu0 0.0
      %5550 = vmatprep.subr.mxu0 0.0
      %5551 = vmatpush1.msra.mxu0 0.0
      %5552 = vmatprep.subr.mxu0 0.0
      %5553 = vmatpush1.msra.mxu0 0.0
      %5554 = vmatprep.subr.mxu0 0.0
      %5555 = vmatpush1.msra.mxu0 0.0
      %5556 = vmatprep.subr.mxu0 0.0
      %5557 = vmatpush1.msra.mxu0 0.0
      %5558 = vmatprep.subr.mxu0 0.0
      %5559 = vmatpush1.msra.mxu0 0.0
      %5560 = vmatprep.subr.mxu0 0.0
      %5561 = vmatpush1.msra.mxu0 0.0
      %5562 = vmatprep.subr.mxu0 0.0
      %5563 = vmatpush1.msra.mxu0 0.0
      %5564 = vmatprep.subr.mxu0 0.0
      %5565 = vmatpush1.msra.mxu0 0.0
      %5566 = vmatprep.subr.mxu0 0.0
      %5567 = vmatpush1.msra.mxu0 0.0
      %5568 = vmatprep.subr.mxu0 0.0
      %5569 = vmatpush1.msra.mxu0 0.0
      %5570 = vmatprep.subr.mxu0 0.0
      %5571 = vmatpush1.msra.mxu0 0.0
      %5572 = vmatprep.subr.mxu0 0.0
      %5573 = vmatpush1.msra.mxu0 0.0
      %5574 = vmatprep.subr.mxu0 0.0
      %5575 = vmatpush1.msra.mxu0 0.0
      %5576 = vmatprep.subr.mxu0 0.0
      %5577 = vmatpush1.msra.mxu0 0.0
      %5578 = vmatprep.subr.mxu0 0.0
      %5579 = vmatpush1.msra.mxu0 0.0
      %5580 = vmatprep.subr.mxu0 0.0
      %5581 = vmatpush1.msra.mxu0 0.0
      %5582 = vmatprep.subr.mxu0 0.0
      %5583 = vmatpush1.msra.mxu0 0.0
      %5584 = vmatprep.subr.mxu0 0.0
      %5585 = vmatpush1.msra.mxu0 0.0
      %5586 = vmatprep.subr.mxu0 0.0
      %5587 = vmatpush1.msra.mxu0 0.0
      %5588 = vmatprep.subr.mxu0 0.0
      %5589 = vmatpush1.msra.mxu0 0.0
      %5590 = vmatprep.subr.mxu0 0.0
      %5591 = vmatpush1.msra.mxu0 0.0
      %5592 = vmatprep.mubr.f32.mxu0 0.0
      %5593 = vmatmul.mubr.f32.gmra.mrb[0].mxu0 %v5512
      %v5594 = vpop.f32.mrb[0].mxu0
      %v5595 = vadd.f32 0.0, %v5594
      %v5596 = vpop.f32.mrb[0].mxu0
      %5597 = vmatprep.mubr.f32.mxu0 0.0
      %5598 = vmatmul.mubr.f32.gmra.mrb[0].mxu0 %v5515
      %v5599 = vpop.f32.mrb[0].mxu0
      %v5600 = vadd.f32 0.0, %v5599
      %v5601 = vpop.f32.mrb[0].mxu0
      %5602 = vmatprep.mubr.f32.mxu0 0.0
      %5603 = vmatmul.mubr.f32.gmra.mrb[0].mxu0 %v5518
      %v5604 = vpop.f32.mrb[0].mxu0
      %v5605 = vadd.f32 0.0, %v5604
      %v5606 = vpop.f32.mrb[0].mxu0
      %5607 = vmatprep.mubr.f32.mxu0 0.0
      %5608 = vmatmul.mubr.f32.gmra.mrb[0].mxu0 %v5521
      %v5609 = vpop.f32.mrb[0].mxu0
      %v5610 = vadd.f32 0.0, %v5609
      %v5611 = vpop.f32.mrb[0].mxu0
      %5612 = vmatprep.mubr.f32.mxu0 0.0
      %5613 = vmatmul.mubr.f32.gmra.mrb[0].mxu0 %v5524
      %v5614 = vpop.f32.mrb[0].mxu0
      %v5615 = vadd.f32 0.0, %v5614
      %v5616 = vpop.f32.mrb[0].mxu0
      %5617 = vdwg.mxu0
      %5623 = vrot.lane.b32.xlu0 %v5312, 64
      %v5624 = vpop.permute.xlu0 %5623
      %5625 = vrot.lane.b32.xlu0 %v5313, 64
      %v5626 = vpop.permute.xlu0 %5625
      %5627 = vrot.lane.b32.xlu0 %v5314, 64
      %v5628 = vpop.permute.xlu0 %5627
      %5629 = vrot.lane.b32.xlu0 %v5315, 64
      %v5630 = vpop.permute.xlu0 %5629
      %5631 = vrot.lane.b32.xlu0 %v5316, 64
      %v5632 = vpop.permute.xlu0 %5631
      %v5638 = vsel %vm853, %v5303, 0
      %v5641 = vsel %vm853, %v5305, 0
      %v5644 = vsel %vm853, %v5307, 0
      %v5647 = vsel %vm853, %v5309, 0
      %v5650 = vsel %vm853, %v5311, 0
      %v5652 = vsel %vm1132, %v5632, 0
      %5654 = vmatprep.subr.mxu0 0.0
      %5655 = vmatpush1.msra.mxu0 %v5624
      %5656 = vmatprep.subr.mxu0 0.0
      %5657 = vmatpush1.msra.mxu0 %v5626
      %5658 = vmatprep.subr.mxu0 0.0
      %5659 = vmatpush1.msra.mxu0 %v5628
      %5660 = vmatprep.subr.mxu0 0.0
      %5661 = vmatpush1.msra.mxu0 %v5630
      %5662 = vmatprep.subr.mxu0 0.0
      %5663 = vmatpush1.msra.mxu0 %v5652
      %5664 = vmatprep.subr.mxu0 0.0
      %5665 = vmatpush1.msra.mxu0 0.0
      %5666 = vmatprep.subr.mxu0 0.0
      %5667 = vmatpush1.msra.mxu0 0.0
      %5668 = vmatprep.subr.mxu0 0.0
      %5669 = vmatpush1.msra.mxu0 0.0
      %5670 = vmatprep.subr.mxu0 0.0
      %5671 = vmatpush1.msra.mxu0 0.0
      %5672 = vmatprep.subr.mxu0 0.0
      %5673 = vmatpush1.msra.mxu0 0.0
      %5674 = vmatprep.subr.mxu0 0.0
      %5675 = vmatpush1.msra.mxu0 0.0
      %5676 = vmatprep.subr.mxu0 0.0
      %5677 = vmatpush1.msra.mxu0 0.0
      %5678 = vmatprep.subr.mxu0 0.0
      %5679 = vmatpush1.msra.mxu0 0.0
      %5680 = vmatprep.subr.mxu0 0.0
      %5681 = vmatpush1.msra.mxu0 0.0
      %5682 = vmatprep.subr.mxu0 0.0
      %5683 = vmatpush1.msra.mxu0 0.0
      %5684 = vmatprep.subr.mxu0 0.0
      %5685 = vmatpush1.msra.mxu0 0.0
      %5686 = vmatprep.subr.mxu0 0.0
      %5687 = vmatpush1.msra.mxu0 0.0
      %5688 = vmatprep.subr.mxu0 0.0
      %5689 = vmatpush1.msra.mxu0 0.0
      %5690 = vmatprep.subr.mxu0 0.0
      %5691 = vmatpush1.msra.mxu0 0.0
      %5692 = vmatprep.subr.mxu0 0.0
      %5693 = vmatpush1.msra.mxu0 0.0
      %5694 = vmatprep.subr.mxu0 0.0
      %5695 = vmatpush1.msra.mxu0 0.0
      %5696 = vmatprep.subr.mxu0 0.0
      %5697 = vmatpush1.msra.mxu0 0.0
      %5698 = vmatprep.subr.mxu0 0.0
      %5699 = vmatpush1.msra.mxu0 0.0
      %5700 = vmatprep.subr.mxu0 0.0
      %5701 = vmatpush1.msra.mxu0 0.0
      %5702 = vmatprep.subr.mxu0 0.0
      %5703 = vmatpush1.msra.mxu0 0.0
      %5704 = vmatprep.subr.mxu0 0.0
      %5705 = vmatpush1.msra.mxu0 0.0
      %5706 = vmatprep.subr.mxu0 0.0
      %5707 = vmatpush1.msra.mxu0 0.0
      %5708 = vmatprep.subr.mxu0 0.0
      %5709 = vmatpush1.msra.mxu0 0.0
      %5710 = vmatprep.subr.mxu0 0.0
      %5711 = vmatpush1.msra.mxu0 0.0
      %5712 = vmatprep.subr.mxu0 0.0
      %5713 = vmatpush1.msra.mxu0 0.0
      %5714 = vmatprep.subr.mxu0 0.0
      %5715 = vmatpush1.msra.mxu0 0.0
      %5716 = vmatprep.subr.mxu0 0.0
      %5717 = vmatpush1.msra.mxu0 0.0
      %5718 = vmatprep.mubr.f32.mxu0 0.0
      %5719 = vmatmul.mubr.f32.gmra.mrb[0].mxu0 %v5638
      %v5720 = vpop.f32.mrb[0].mxu0
      %v5721 = vadd.f32 %v5595, %v5720
      %v5722 = vpop.f32.mrb[0].mxu0
      %5723 = vmatprep.mubr.f32.mxu0 0.0
      %5724 = vmatmul.mubr.f32.gmra.mrb[0].mxu0 %v5641
      %v5725 = vpop.f32.mrb[0].mxu0
      %v5726 = vadd.f32 %v5600, %v5725
      %v5727 = vpop.f32.mrb[0].mxu0
      %5728 = vmatprep.mubr.f32.mxu0 0.0
      %5729 = vmatmul.mubr.f32.gmra.mrb[0].mxu0 %v5644
      %v5730 = vpop.f32.mrb[0].mxu0
      %v5731 = vadd.f32 %v5605, %v5730
      %v5732 = vpop.f32.mrb[0].mxu0
      %5733 = vmatprep.mubr.f32.mxu0 0.0
      %5734 = vmatmul.mubr.f32.gmra.mrb[0].mxu0 %v5647
      %v5735 = vpop.f32.mrb[0].mxu0
      %v5736 = vadd.f32 %v5610, %v5735
      %v5737 = vpop.f32.mrb[0].mxu0
      %5738 = vmatprep.mubr.f32.mxu0 0.0
      %5739 = vmatmul.mubr.f32.gmra.mrb[0].mxu0 %v5650
      %v5740 = vpop.f32.mrb[0].mxu0
      %v5741 = vadd.f32 %v5615, %v5740
      %v5742 = vpop.f32.mrb[0].mxu0
      %5743 = vdwg.mxu0
      %v5744 = vmul.f32 %v5094, %v590
      %v5745 = vmul.f32 %v5099, %v590
      %v5746 = vmul.f32 %v5104, %v590
      %v5747 = vmul.f32 %v5109, %v590
      %v5748 = vmul.f32 %v5114, %v590
      %v5750 = vsel %vm607, %v5744, 0
      %v5753 = vsel %vm607, %v5745, 0
      %v5756 = vsel %vm607, %v5746, 0
      %v5759 = vsel %vm607, %v5747, 0
      %v5762 = vsel %vm607, %v5748, 0
      %5764 = vmatprep.subr.mxu0 0.0
      %5765 = vmatpush1.xpose.msra.mxu0 %v5152
      %5766 = vmatprep.subr.mxu0 0.0
      %5767 = vmatpush1.xpose.msra.mxu0 %v5154
      %5768 = vmatprep.subr.mxu0 0.0
      %5769 = vmatpush1.xpose.msra.mxu0 %v5156
      %5770 = vmatprep.subr.mxu0 0.0
      %5771 = vmatpush1.xpose.msra.mxu0 %v5158
      %5772 = vmatprep.subr.mxu0 0.0
      %5773 = vmatpush1.xpose.msra.mxu0 %v5160
      %5774 = vmatprep.subr.mxu0 0.0
      %5775 = vmatpush1.xpose.msra.mxu0 0.0
      %5776 = vmatprep.subr.mxu0 0.0
      %5777 = vmatpush1.xpose.msra.mxu0 0.0
      %5778 = vmatprep.subr.mxu0 0.0
      %5779 = vmatpush1.xpose.msra.mxu0 0.0
      %5780 = vmatprep.subr.mxu0 0.0
      %5781 = vmatpush1.xpose.msra.mxu0 0.0
      %5782 = vmatprep.subr.mxu0 0.0
      %5783 = vmatpush1.xpose.msra.mxu0 0.0
      %5784 = vmatprep.subr.mxu0 0.0
      %5785 = vmatpush1.xpose.msra.mxu0 0.0
      %5786 = vmatprep.subr.mxu0 0.0
      %5787 = vmatpush1.xpose.msra.mxu0 0.0
      %5788 = vmatprep.subr.mxu0 0.0
      %5789 = vmatpush1.xpose.msra.mxu0 0.0
      %5790 = vmatprep.subr.mxu0 0.0
      %5791 = vmatpush1.xpose.msra.mxu0 0.0
      %5792 = vmatprep.subr.mxu0 0.0
      %5793 = vmatpush1.xpose.msra.mxu0 0.0
      %5794 = vmatprep.subr.mxu0 0.0
      %5795 = vmatpush1.xpose.msra.mxu0 0.0
      %5796 = vmatprep.subr.mxu0 0.0
      %5797 = vmatpush1.xpose.msra.mxu0 0.0
      %5798 = vmatprep.subr.mxu0 0.0
      %5799 = vmatpush1.xpose.msra.mxu0 0.0
      %5800 = vmatprep.subr.mxu0 0.0
      %5801 = vmatpush1.xpose.msra.mxu0 0.0
      %5802 = vmatprep.subr.mxu0 0.0
      %5803 = vmatpush1.xpose.msra.mxu0 0.0
      %5804 = vmatprep.subr.mxu0 0.0
      %5805 = vmatpush1.xpose.msra.mxu0 0.0
      %5806 = vmatprep.subr.mxu0 0.0
      %5807 = vmatpush1.xpose.msra.mxu0 0.0
      %5808 = vmatprep.subr.mxu0 0.0
      %5809 = vmatpush1.xpose.msra.mxu0 0.0
      %5810 = vmatprep.subr.mxu0 0.0
      %5811 = vmatpush1.xpose.msra.mxu0 0.0
      %5812 = vmatprep.subr.mxu0 0.0
      %5813 = vmatpush1.xpose.msra.mxu0 0.0
      %5814 = vmatprep.subr.mxu0 0.0
      %5815 = vmatpush1.xpose.msra.mxu0 0.0
      %5816 = vmatprep.subr.mxu0 0.0
      %5817 = vmatpush1.xpose.msra.mxu0 0.0
      %5818 = vmatprep.subr.mxu0 0.0
      %5819 = vmatpush1.xpose.msra.mxu0 0.0
      %5820 = vmatprep.subr.mxu0 0.0
      %5821 = vmatpush1.xpose.msra.mxu0 0.0
      %5822 = vmatprep.subr.mxu0 0.0
      %5823 = vmatpush1.xpose.msra.mxu0 0.0
      %5824 = vmatprep.subr.mxu0 0.0
      %5825 = vmatpush1.xpose.msra.mxu0 0.0
      %5826 = vmatprep.subr.mxu0 0.0
      %5827 = vmatpush1.xpose.msra.mxu0 0.0
      %5828 = vmatprep.mubr.f32.mxu0 0.0
      %5829 = vmatmul.mubr.f32.gmra.mrb[0].mxu0 %v5750
      %v5830 = vpop.f32.mrb[0].mxu0
      %v5831 = vadd.f32 0.0, %v5830
      %v5832 = vpop.f32.mrb[0].mxu0
      %5833 = vmatprep.mubr.f32.mxu0 0.0
      %5834 = vmatmul.mubr.f32.gmra.mrb[0].mxu0 %v5753
      %v5835 = vpop.f32.mrb[0].mxu0
      %v5836 = vadd.f32 0.0, %v5835
      %v5837 = vpop.f32.mrb[0].mxu0
      %5838 = vmatprep.mubr.f32.mxu0 0.0
      %5839 = vmatmul.mubr.f32.gmra.mrb[0].mxu0 %v5756
      %v5840 = vpop.f32.mrb[0].mxu0
      %v5841 = vadd.f32 0.0, %v5840
      %v5842 = vpop.f32.mrb[0].mxu0
      %5843 = vmatprep.mubr.f32.mxu0 0.0
      %5844 = vmatmul.mubr.f32.gmra.mrb[0].mxu0 %v5759
      %v5845 = vpop.f32.mrb[0].mxu0
      %v5846 = vadd.f32 0.0, %v5845
      %v5847 = vpop.f32.mrb[0].mxu0
      %5848 = vmatprep.mubr.f32.mxu0 0.0
      %5849 = vmatmul.mubr.f32.gmra.mrb[0].mxu0 %v5762
      %v5850 = vpop.f32.mrb[0].mxu0
      %v5851 = vadd.f32 0.0, %v5850
      %v5852 = vpop.f32.mrb[0].mxu0
      %5853 = vdwg.mxu0
      %v5854 = vmul.f32 %v5831, 0.35355338
      %v5855 = vmul.f32 %v5836, 0.35355338
      %v5856 = vmul.f32 %v5841, 0.35355338
      %v5857 = vmul.f32 %v5846, 0.35355338
      %v5858 = vmul.f32 %v5851, 0.35355338
      %v5859 = vsel %vm853, %v5854, -inf
      %5860 = vmax.xlane.f32.xlu0 %v5859
      %v5861 = vpop.xlane.xlu0 %5860
      %v5862 = vsel %vm853, %v5855, -inf
      %5863 = vmax.xlane.f32.xlu0 %v5862
      %v5864 = vpop.xlane.xlu0 %5863
      %v5865 = vsel %vm853, %v5856, -inf
      %5866 = vmax.xlane.f32.xlu0 %v5865
      %v5867 = vpop.xlane.xlu0 %5866
      %v5868 = vsel %vm853, %v5857, -inf
      %5869 = vmax.xlane.f32.xlu0 %v5868
      %v5870 = vpop.xlane.xlu0 %5869
      %v5871 = vsel %vm866, %v5858, -inf
      %5872 = vmax.xlane.f32.xlu0 %v5871
      %v5873 = vpop.xlane.xlu0 %5872
      %v5874 = vsub.f32 %v5854, %v5861
      %v5875 = vsub.f32 %v5855, %v5864
      %v5876 = vsub.f32 %v5856, %v5867
      %v5877 = vsub.f32 %v5857, %v5870
      %v5878 = vsub.f32 %v5858, %v5873
      %v5879 = vmul.f32 %v5874, 1.442695
      %v5880 = vpow.pop %v5879
      %v5881 = vmul.f32 %v5875, 1.442695
      %v5882 = vpow.pop %v5881
      %v5883 = vmul.f32 %v5876, 1.442695
      %v5884 = vpow.pop %v5883
      %v5885 = vmul.f32 %v5877, 1.442695
      %v5886 = vpow.pop %v5885
      %v5887 = vmul.f32 %v5878, 1.442695
      %v5888 = vpow.pop %v5887
      %v5889 = vsel %vm853, %v5880, 0.0
      %5890 = vadd.xlane.f32.xlu0 %v5889
      %v5891 = vpop.xlane.xlu0 %5890
      %v5892 = vsel %vm853, %v5882, 0.0
      %5893 = vadd.xlane.f32.xlu0 %v5892
      %v5894 = vpop.xlane.xlu0 %5893
      %v5895 = vsel %vm853, %v5884, 0.0
      %5896 = vadd.xlane.f32.xlu0 %v5895
      %v5897 = vpop.xlane.xlu0 %5896
      %v5898 = vsel %vm853, %v5886, 0.0
      %5899 = vadd.xlane.f32.xlu0 %v5898
      %v5900 = vpop.xlane.xlu0 %5899
      %v5901 = vsel %vm866, %v5888, 0.0
      %5902 = vadd.xlane.f32.xlu0 %v5901
      %v5903 = vpop.xlane.xlu0 %5902
      %v5904 = vrcp.pop %v5891
      %v5905 = vmul.f32 %v5880, %v5904
      %v5906 = vrcp.pop %v5894
      %v5907 = vmul.f32 %v5882, %v5906
      %v5908 = vrcp.pop %v5897
      %v5909 = vmul.f32 %v5884, %v5908
      %v5910 = vrcp.pop %v5900
      %v5911 = vmul.f32 %v5886, %v5910
      %v5912 = vrcp.pop %v5903
      %v5913 = vmul.f32 %v5888, %v5912
      %v5914 = vmul.f32 %v5094, %v1523
      %v5915 = vmul.f32 %v5099, %v1523
      %v5916 = vmul.f32 %v5104, %v1523
      %v5917 = vmul.f32 %v5109, %v1523
      %v5918 = vmul.f32 %v5114, %v1523
      %5924 = vrot.lane.b32.xlu0 %v5914, 64
      %v5925 = vpop.permute.xlu0 %5924
      %5926 = vrot.lane.b32.xlu0 %v5915, 64
      %v5927 = vpop.permute.xlu0 %5926
      %5928 = vrot.lane.b32.xlu0 %v5916, 64
      %v5929 = vpop.permute.xlu0 %5928
      %5930 = vrot.lane.b32.xlu0 %v5917, 64
      %v5931 = vpop.permute.xlu0 %5930
      %5932 = vrot.lane.b32.xlu0 %v5918, 64
      %v5933 = vpop.permute.xlu0 %5932
      %v5939 = vsel %vm853, %v5905, 0
      %v5942 = vsel %vm853, %v5907, 0
      %v5945 = vsel %vm853, %v5909, 0
      %v5948 = vsel %vm853, %v5911, 0
      %v5951 = vsel %vm853, %v5913, 0
      %v5953 = vsel %vm1132, %v5933, 0
      %5955 = vmatprep.subr.mxu0 0.0
      %5956 = vmatpush1.msra.mxu0 %v5925
      %5957 = vmatprep.subr.mxu0 0.0
      %5958 = vmatpush1.msra.mxu0 %v5927
      %5959 = vmatprep.subr.mxu0 0.0
      %5960 = vmatpush1.msra.mxu0 %v5929
      %5961 = vmatprep.subr.mxu0 0.0
      %5962 = vmatpush1.msra.mxu0 %v5931
      %5963 = vmatprep.subr.mxu0 0.0
      %5964 = vmatpush1.msra.mxu0 %v5953
      %5965 = vmatprep.subr.mxu0 0.0
      %5966 = vmatpush1.msra.mxu0 0.0
      %5967 = vmatprep.subr.mxu0 0.0
      %5968 = vmatpush1.msra.mxu0 0.0
      %5969 = vmatprep.subr.mxu0 0.0
      %5970 = vmatpush1.msra.mxu0 0.0
      %5971 = vmatprep.subr.mxu0 0.0
      %5972 = vmatpush1.msra.mxu0 0.0
      %5973 = vmatprep.subr.mxu0 0.0
      %5974 = vmatpush1.msra.mxu0 0.0
      %5975 = vmatprep.subr.mxu0 0.0
      %5976 = vmatpush1.msra.mxu0 0.0
      %5977 = vmatprep.subr.mxu0 0.0
      %5978 = vmatpush1.msra.mxu0 0.0
      %5979 = vmatprep.subr.mxu0 0.0
      %5980 = vmatpush1.msra.mxu0 0.0
      %5981 = vmatprep.subr.mxu0 0.0
      %5982 = vmatpush1.msra.mxu0 0.0
      %5983 = vmatprep.subr.mxu0 0.0
      %5984 = vmatpush1.msra.mxu0 0.0
      %5985 = vmatprep.subr.mxu0 0.0
      %5986 = vmatpush1.msra.mxu0 0.0
      %5987 = vmatprep.subr.mxu0 0.0
      %5988 = vmatpush1.msra.mxu0 0.0
      %5989 = vmatprep.subr.mxu0 0.0
      %5990 = vmatpush1.msra.mxu0 0.0
      %5991 = vmatprep.subr.mxu0 0.0
      %5992 = vmatpush1.msra.mxu0 0.0
      %5993 = vmatprep.subr.mxu0 0.0
      %5994 = vmatpush1.msra.mxu0 0.0
      %5995 = vmatprep.subr.mxu0 0.0
      %5996 = vmatpush1.msra.mxu0 0.0
      %5997 = vmatprep.subr.mxu0 0.0
      %5998 = vmatpush1.msra.mxu0 0.0
      %5999 = vmatprep.subr.mxu0 0.0
      %6000 = vmatpush1.msra.mxu0 0.0
      %6001 = vmatprep.subr.mxu0 0.0
      %6002 = vmatpush1.msra.mxu0 0.0
      %6003 = vmatprep.subr.mxu0 0.0
      %6004 = vmatpush1.msra.mxu0 0.0
      %6005 = vmatprep.subr.mxu0 0.0
      %6006 = vmatpush1.msra.mxu0 0.0
      %6007 = vmatprep.subr.mxu0 0.0
      %6008 = vmatpush1.msra.mxu0 0.0
      %6009 = vmatprep.subr.mxu0 0.0
      %6010 = vmatpush1.msra.mxu0 0.0
      %6011 = vmatprep.subr.mxu0 0.0
      %6012 = vmatpush1.msra.mxu0 0.0
      %6013 = vmatprep.subr.mxu0 0.0
      %6014 = vmatpush1.msra.mxu0 0.0
      %6015 = vmatprep.subr.mxu0 0.0
      %6016 = vmatpush1.msra.mxu0 0.0
      %6017 = vmatprep.subr.mxu0 0.0
      %6018 = vmatpush1.msra.mxu0 0.0
      %6019 = vmatprep.mubr.f32.mxu0 0.0
      %6020 = vmatmul.mubr.f32.gmra.mrb[0].mxu0 %v5939
      %v6021 = vpop.f32.mrb[0].mxu0
      %v6022 = vadd.f32 0.0, %v6021
      %v6023 = vpop.f32.mrb[0].mxu0
      %6024 = vmatprep.mubr.f32.mxu0 0.0
      %6025 = vmatmul.mubr.f32.gmra.mrb[0].mxu0 %v5942
      %v6026 = vpop.f32.mrb[0].mxu0
      %v6027 = vadd.f32 0.0, %v6026
      %v6028 = vpop.f32.mrb[0].mxu0
      %6029 = vmatprep.mubr.f32.mxu0 0.0
      %6030 = vmatmul.mubr.f32.gmra.mrb[0].mxu0 %v5945
      %v6031 = vpop.f32.mrb[0].mxu0
      %v6032 = vadd.f32 0.0, %v6031
      %v6033 = vpop.f32.mrb[0].mxu0
      %6034 = vmatprep.mubr.f32.mxu0 0.0
      %6035 = vmatmul.mubr.f32.gmra.mrb[0].mxu0 %v5948
      %v6036 = vpop.f32.mrb[0].mxu0
      %v6037 = vadd.f32 0.0, %v6036
      %v6038 = vpop.f32.mrb[0].mxu0
      %6039 = vmatprep.mubr.f32.mxu0 0.0
      %6040 = vmatmul.mubr.f32.gmra.mrb[0].mxu0 %v5951
      %v6041 = vpop.f32.mrb[0].mxu0
      %v6042 = vadd.f32 0.0, %v6041
      %v6043 = vpop.f32.mrb[0].mxu0
      %6044 = vdwg.mxu0
      %v6045 = vadd.f32 %v5721, %v6022
      %v6046 = vadd.f32 %v5726, %v6027
      %v6047 = vadd.f32 %v5731, %v6032
      %v6048 = vadd.f32 %v5736, %v6037
      %v6049 = vadd.f32 %v5741, %v6042
      %v6050 = vmul.f32 %v5094, %v595
      %v6051 = vmul.f32 %v5099, %v595
      %v6052 = vmul.f32 %v5104, %v595
      %v6053 = vmul.f32 %v5109, %v595
      %v6054 = vmul.f32 %v5114, %v595
      %v6056 = vsel %vm607, %v6050, 0
      %v6059 = vsel %vm607, %v6051, 0
      %v6062 = vsel %vm607, %v6052, 0
      %v6065 = vsel %vm607, %v6053, 0
      %v6068 = vsel %vm607, %v6054, 0
      %6070 = vmatprep.subr.mxu0 0.0
      %6071 = vmatpush1.xpose.msra.mxu0 %v5152
      %6072 = vmatprep.subr.mxu0 0.0
      %6073 = vmatpush1.xpose.msra.mxu0 %v5154
      %6074 = vmatprep.subr.mxu0 0.0
      %6075 = vmatpush1.xpose.msra.mxu0 %v5156
      %6076 = vmatprep.subr.mxu0 0.0
      %6077 = vmatpush1.xpose.msra.mxu0 %v5158
      %6078 = vmatprep.subr.mxu0 0.0
      %6079 = vmatpush1.xpose.msra.mxu0 %v5160
      %6080 = vmatprep.subr.mxu0 0.0
      %6081 = vmatpush1.xpose.msra.mxu0 0.0
      %6082 = vmatprep.subr.mxu0 0.0
      %6083 = vmatpush1.xpose.msra.mxu0 0.0
      %6084 = vmatprep.subr.mxu0 0.0
      %6085 = vmatpush1.xpose.msra.mxu0 0.0
      %6086 = vmatprep.subr.mxu0 0.0
      %6087 = vmatpush1.xpose.msra.mxu0 0.0
      %6088 = vmatprep.subr.mxu0 0.0
      %6089 = vmatpush1.xpose.msra.mxu0 0.0
      %6090 = vmatprep.subr.mxu0 0.0
      %6091 = vmatpush1.xpose.msra.mxu0 0.0
      %6092 = vmatprep.subr.mxu0 0.0
      %6093 = vmatpush1.xpose.msra.mxu0 0.0
      %6094 = vmatprep.subr.mxu0 0.0
      %6095 = vmatpush1.xpose.msra.mxu0 0.0
      %6096 = vmatprep.subr.mxu0 0.0
      %6097 = vmatpush1.xpose.msra.mxu0 0.0
      %6098 = vmatprep.subr.mxu0 0.0
      %6099 = vmatpush1.xpose.msra.mxu0 0.0
      %6100 = vmatprep.subr.mxu0 0.0
      %6101 = vmatpush1.xpose.msra.mxu0 0.0
      %6102 = vmatprep.subr.mxu0 0.0
      %6103 = vmatpush1.xpose.msra.mxu0 0.0
      %6104 = vmatprep.subr.mxu0 0.0
      %6105 = vmatpush1.xpose.msra.mxu0 0.0
      %6106 = vmatprep.subr.mxu0 0.0
      %6107 = vmatpush1.xpose.msra.mxu0 0.0
      %6108 = vmatprep.subr.mxu0 0.0
      %6109 = vmatpush1.xpose.msra.mxu0 0.0
      %6110 = vmatprep.subr.mxu0 0.0
      %6111 = vmatpush1.xpose.msra.mxu0 0.0
      %6112 = vmatprep.subr.mxu0 0.0
      %6113 = vmatpush1.xpose.msra.mxu0 0.0
      %6114 = vmatprep.subr.mxu0 0.0
      %6115 = vmatpush1.xpose.msra.mxu0 0.0
      %6116 = vmatprep.subr.mxu0 0.0
      %6117 = vmatpush1.xpose.msra.mxu0 0.0
      %6118 = vmatprep.subr.mxu0 0.0
      %6119 = vmatpush1.xpose.msra.mxu0 0.0
      %6120 = vmatprep.subr.mxu0 0.0
      %6121 = vmatpush1.xpose.msra.mxu0 0.0
      %6122 = vmatprep.subr.mxu0 0.0
      %6123 = vmatpush1.xpose.msra.mxu0 0.0
      %6124 = vmatprep.subr.mxu0 0.0
      %6125 = vmatpush1.xpose.msra.mxu0 0.0
      %6126 = vmatprep.subr.mxu0 0.0
      %6127 = vmatpush1.xpose.msra.mxu0 0.0
      %6128 = vmatprep.subr.mxu0 0.0
      %6129 = vmatpush1.xpose.msra.mxu0 0.0
      %6130 = vmatprep.subr.mxu0 0.0
      %6131 = vmatpush1.xpose.msra.mxu0 0.0
      %6132 = vmatprep.subr.mxu0 0.0
      %6133 = vmatpush1.xpose.msra.mxu0 0.0
      %6134 = vmatprep.mubr.f32.mxu0 0.0
      %6135 = vmatmul.mubr.f32.gmra.mrb[0].mxu0 %v6056
      %v6136 = vpop.f32.mrb[0].mxu0
      %v6137 = vadd.f32 0.0, %v6136
      %v6138 = vpop.f32.mrb[0].mxu0
      %6139 = vmatprep.mubr.f32.mxu0 0.0
      %6140 = vmatmul.mubr.f32.gmra.mrb[0].mxu0 %v6059
      %v6141 = vpop.f32.mrb[0].mxu0
      %v6142 = vadd.f32 0.0, %v6141
      %v6143 = vpop.f32.mrb[0].mxu0
      %6144 = vmatprep.mubr.f32.mxu0 0.0
      %6145 = vmatmul.mubr.f32.gmra.mrb[0].mxu0 %v6062
      %v6146 = vpop.f32.mrb[0].mxu0
      %v6147 = vadd.f32 0.0, %v6146
      %v6148 = vpop.f32.mrb[0].mxu0
      %6149 = vmatprep.mubr.f32.mxu0 0.0
      %6150 = vmatmul.mubr.f32.gmra.mrb[0].mxu0 %v6065
      %v6151 = vpop.f32.mrb[0].mxu0
      %v6152 = vadd.f32 0.0, %v6151
      %v6153 = vpop.f32.mrb[0].mxu0
      %6154 = vmatprep.mubr.f32.mxu0 0.0
      %6155 = vmatmul.mubr.f32.gmra.mrb[0].mxu0 %v6068
      %v6156 = vpop.f32.mrb[0].mxu0
      %v6157 = vadd.f32 0.0, %v6156
      %v6158 = vpop.f32.mrb[0].mxu0
      %6159 = vdwg.mxu0
      %v6160 = vmul.f32 %v6137, 0.35355338
      %v6161 = vmul.f32 %v6142, 0.35355338
      %v6162 = vmul.f32 %v6147, 0.35355338
      %v6163 = vmul.f32 %v6152, 0.35355338
      %v6164 = vmul.f32 %v6157, 0.35355338
      %v6165 = vsel %vm853, %v6160, -inf
      %6166 = vmax.xlane.f32.xlu0 %v6165
      %v6167 = vpop.xlane.xlu0 %6166
      %v6168 = vsel %vm853, %v6161, -inf
      %6169 = vmax.xlane.f32.xlu0 %v6168
      %v6170 = vpop.xlane.xlu0 %6169
      %v6171 = vsel %vm853, %v6162, -inf
      %6172 = vmax.xlane.f32.xlu0 %v6171
      %v6173 = vpop.xlane.xlu0 %6172
      %v6174 = vsel %vm853, %v6163, -inf
      %6175 = vmax.xlane.f32.xlu0 %v6174
      %v6176 = vpop.xlane.xlu0 %6175
      %v6177 = vsel %vm866, %v6164, -inf
      %6178 = vmax.xlane.f32.xlu0 %v6177
      %v6179 = vpop.xlane.xlu0 %6178
      %v6180 = vsub.f32 %v6160, %v6167
      %v6181 = vsub.f32 %v6161, %v6170
      %v6182 = vsub.f32 %v6162, %v6173
      %v6183 = vsub.f32 %v6163, %v6176
      %v6184 = vsub.f32 %v6164, %v6179
      %v6185 = vmul.f32 %v6180, 1.442695
      %v6186 = vpow.pop %v6185
      %v6187 = vmul.f32 %v6181, 1.442695
      %v6188 = vpow.pop %v6187
      %v6189 = vmul.f32 %v6182, 1.442695
      %v6190 = vpow.pop %v6189
      %v6191 = vmul.f32 %v6183, 1.442695
      %v6192 = vpow.pop %v6191
      %v6193 = vmul.f32 %v6184, 1.442695
      %v6194 = vpow.pop %v6193
      %v6195 = vsel %vm853, %v6186, 0.0
      %6196 = vadd.xlane.f32.xlu0 %v6195
      %v6197 = vpop.xlane.xlu0 %6196
      %v6198 = vsel %vm853, %v6188, 0.0
      %6199 = vadd.xlane.f32.xlu0 %v6198
      %v6200 = vpop.xlane.xlu0 %6199
      %v6201 = vsel %vm853, %v6190, 0.0
      %6202 = vadd.xlane.f32.xlu0 %v6201
      %v6203 = vpop.xlane.xlu0 %6202
      %v6204 = vsel %vm853, %v6192, 0.0
      %6205 = vadd.xlane.f32.xlu0 %v6204
      %v6206 = vpop.xlane.xlu0 %6205
      %v6207 = vsel %vm866, %v6194, 0.0
      %6208 = vadd.xlane.f32.xlu0 %v6207
      %v6209 = vpop.xlane.xlu0 %6208
      %v6210 = vrcp.pop %v6197
      %v6211 = vmul.f32 %v6186, %v6210
      %v6212 = vrcp.pop %v6200
      %v6213 = vmul.f32 %v6188, %v6212
      %v6214 = vrcp.pop %v6203
      %v6215 = vmul.f32 %v6190, %v6214
      %v6216 = vrcp.pop %v6206
      %v6217 = vmul.f32 %v6192, %v6216
      %v6218 = vrcp.pop %v6209
      %v6219 = vmul.f32 %v6194, %v6218
      %v6220 = vmul.f32 %v5094, %v1833
      %v6221 = vmul.f32 %v5099, %v1833
      %v6222 = vmul.f32 %v5104, %v1833
      %v6223 = vmul.f32 %v5109, %v1833
      %v6224 = vmul.f32 %v5114, %v1833
      %6230 = vrot.lane.b32.xlu0 %v6220, 64
      %v6231 = vpop.permute.xlu0 %6230
      %6232 = vrot.lane.b32.xlu0 %v6221, 64
      %v6233 = vpop.permute.xlu0 %6232
      %6234 = vrot.lane.b32.xlu0 %v6222, 64
      %v6235 = vpop.permute.xlu0 %6234
      %6236 = vrot.lane.b32.xlu0 %v6223, 64
      %v6237 = vpop.permute.xlu0 %6236
      %6238 = vrot.lane.b32.xlu0 %v6224, 64
      %v6239 = vpop.permute.xlu0 %6238
      %v6245 = vsel %vm853, %v6211, 0
      %v6248 = vsel %vm853, %v6213, 0
      %v6251 = vsel %vm853, %v6215, 0
      %v6254 = vsel %vm853, %v6217, 0
      %v6257 = vsel %vm853, %v6219, 0
      %v6259 = vsel %vm1132, %v6239, 0
      %6261 = vmatprep.subr.mxu0 0.0
      %6262 = vmatpush1.msra.mxu0 %v6231
      %6263 = vmatprep.subr.mxu0 0.0
      %6264 = vmatpush1.msra.mxu0 %v6233
      %6265 = vmatprep.subr.mxu0 0.0
      %6266 = vmatpush1.msra.mxu0 %v6235
      %6267 = vmatprep.subr.mxu0 0.0
      %6268 = vmatpush1.msra.mxu0 %v6237
      %6269 = vmatprep.subr.mxu0 0.0
      %6270 = vmatpush1.msra.mxu0 %v6259
      %6271 = vmatprep.subr.mxu0 0.0
      %6272 = vmatpush1.msra.mxu0 0.0
      %6273 = vmatprep.subr.mxu0 0.0
      %6274 = vmatpush1.msra.mxu0 0.0
      %6275 = vmatprep.subr.mxu0 0.0
      %6276 = vmatpush1.msra.mxu0 0.0
      %6277 = vmatprep.subr.mxu0 0.0
      %6278 = vmatpush1.msra.mxu0 0.0
      %6279 = vmatprep.subr.mxu0 0.0
      %6280 = vmatpush1.msra.mxu0 0.0
      %6281 = vmatprep.subr.mxu0 0.0
      %6282 = vmatpush1.msra.mxu0 0.0
      %6283 = vmatprep.subr.mxu0 0.0
      %6284 = vmatpush1.msra.mxu0 0.0
      %6285 = vmatprep.subr.mxu0 0.0
      %6286 = vmatpush1.msra.mxu0 0.0
      %6287 = vmatprep.subr.mxu0 0.0
      %6288 = vmatpush1.msra.mxu0 0.0
      %6289 = vmatprep.subr.mxu0 0.0
      %6290 = vmatpush1.msra.mxu0 0.0
      %6291 = vmatprep.subr.mxu0 0.0
      %6292 = vmatpush1.msra.mxu0 0.0
      %6293 = vmatprep.subr.mxu0 0.0
      %6294 = vmatpush1.msra.mxu0 0.0
      %6295 = vmatprep.subr.mxu0 0.0
      %6296 = vmatpush1.msra.mxu0 0.0
      %6297 = vmatprep.subr.mxu0 0.0
      %6298 = vmatpush1.msra.mxu0 0.0
      %6299 = vmatprep.subr.mxu0 0.0
      %6300 = vmatpush1.msra.mxu0 0.0
      %6301 = vmatprep.subr.mxu0 0.0
      %6302 = vmatpush1.msra.mxu0 0.0
      %6303 = vmatprep.subr.mxu0 0.0
      %6304 = vmatpush1.msra.mxu0 0.0
      %6305 = vmatprep.subr.mxu0 0.0
      %6306 = vmatpush1.msra.mxu0 0.0
      %6307 = vmatprep.subr.mxu0 0.0
      %6308 = vmatpush1.msra.mxu0 0.0
      %6309 = vmatprep.subr.mxu0 0.0
      %6310 = vmatpush1.msra.mxu0 0.0
      %6311 = vmatprep.subr.mxu0 0.0
      %6312 = vmatpush1.msra.mxu0 0.0
      %6313 = vmatprep.subr.mxu0 0.0
      %6314 = vmatpush1.msra.mxu0 0.0
      %6315 = vmatprep.subr.mxu0 0.0
      %6316 = vmatpush1.msra.mxu0 0.0
      %6317 = vmatprep.subr.mxu0 0.0
      %6318 = vmatpush1.msra.mxu0 0.0
      %6319 = vmatprep.subr.mxu0 0.0
      %6320 = vmatpush1.msra.mxu0 0.0
      %6321 = vmatprep.subr.mxu0 0.0
      %6322 = vmatpush1.msra.mxu0 0.0
      %6323 = vmatprep.subr.mxu0 0.0
      %6324 = vmatpush1.msra.mxu0 0.0
      %6325 = vmatprep.mubr.f32.mxu0 0.0
      %6326 = vmatmul.mubr.f32.gmra.mrb[0].mxu0 %v6245
      %v6327 = vpop.f32.mrb[0].mxu0
      %v6328 = vadd.f32 0.0, %v6327
      %v6329 = vpop.f32.mrb[0].mxu0
      %6330 = vmatprep.mubr.f32.mxu0 0.0
      %6331 = vmatmul.mubr.f32.gmra.mrb[0].mxu0 %v6248
      %v6332 = vpop.f32.mrb[0].mxu0
      %v6333 = vadd.f32 0.0, %v6332
      %v6334 = vpop.f32.mrb[0].mxu0
      %6335 = vmatprep.mubr.f32.mxu0 0.0
      %6336 = vmatmul.mubr.f32.gmra.mrb[0].mxu0 %v6251
      %v6337 = vpop.f32.mrb[0].mxu0
      %v6338 = vadd.f32 0.0, %v6337
      %v6339 = vpop.f32.mrb[0].mxu0
      %6340 = vmatprep.mubr.f32.mxu0 0.0
      %6341 = vmatmul.mubr.f32.gmra.mrb[0].mxu0 %v6254
      %v6342 = vpop.f32.mrb[0].mxu0
      %v6343 = vadd.f32 0.0, %v6342
      %v6344 = vpop.f32.mrb[0].mxu0
      %6345 = vmatprep.mubr.f32.mxu0 0.0
      %6346 = vmatmul.mubr.f32.gmra.mrb[0].mxu0 %v6257
      %v6347 = vpop.f32.mrb[0].mxu0
      %v6348 = vadd.f32 0.0, %v6347
      %v6349 = vpop.f32.mrb[0].mxu0
      %6350 = vdwg.mxu0
      %v6351 = vadd.f32 %v6045, %v6328
      %v6352 = vadd.f32 %v6046, %v6333
      %v6353 = vadd.f32 %v6047, %v6338
      %v6354 = vadd.f32 %v6048, %v6343
      %v6355 = vadd.f32 %v6049, %v6348
      %s6356 = scalar_lea.vmem %s3, 32
      %v6357 = vld [vmem:[%s6356] sm:$0xff]
      %v6358 = vld [vmem:[%s6356 + $0x8] sm:$0xff]
      %v6359 = vld [vmem:[%s6356 + $0x10] sm:$0xff]
      %v6360 = vld [vmem:[%s6356 + $0x18] sm:$0xff]
      %s6361 = scalar_lea.vmem %s4, 1
      %v6362 = vld [vmem:[%s6361] sm:$0x1]
      %v6364 = vlaneseq
      %v6365 = vshrl.u32 %v6364, 7
      %v6366 = vsub.s32 0, %v6365
      %v6367 = vrot.slane %v6362, %v6366
      %v6370 = vsel %vm607, %v6351, 0
      %v6373 = vsel %vm607, %v6352, 0
      %v6376 = vsel %vm607, %v6353, 0
      %v6379 = vsel %vm607, %v6354, 0
      %v6382 = vsel %vm607, %v6355, 0
      %6384 = vmatprep.subr.mxu0 0.0
      %6385 = vmatpush1.msra.mxu0 %v6357
      %6386 = vmatprep.subr.mxu0 0.0
      %6387 = vmatpush1.msra.mxu0 %v6358
      %6388 = vmatprep.subr.mxu0 0.0
      %6389 = vmatpush1.msra.mxu0 %v6359
      %6390 = vmatprep.subr.mxu0 0.0
      %6391 = vmatpush1.msra.mxu0 %v6360
      %6392 = vmatprep.subr.mxu0 0.0
      %6393 = vmatpush1.msra.mxu0 0.0
      %6394 = vmatprep.subr.mxu0 0.0
      %6395 = vmatpush1.msra.mxu0 0.0
      %6396 = vmatprep.subr.mxu0 0.0
      %6397 = vmatpush1.msra.mxu0 0.0
      %6398 = vmatprep.subr.mxu0 0.0
      %6399 = vmatpush1.msra.mxu0 0.0
      %6400 = vmatprep.subr.mxu0 0.0
      %6401 = vmatpush1.msra.mxu0 0.0
      %6402 = vmatprep.subr.mxu0 0.0
      %6403 = vmatpush1.msra.mxu0 0.0
      %6404 = vmatprep.subr.mxu0 0.0
      %6405 = vmatpush1.msra.mxu0 0.0
      %6406 = vmatprep.subr.mxu0 0.0
      %6407 = vmatpush1.msra.mxu0 0.0
      %6408 = vmatprep.subr.mxu0 0.0
      %6409 = vmatpush1.msra.mxu0 0.0
      %6410 = vmatprep.subr.mxu0 0.0
      %6411 = vmatpush1.msra.mxu0 0.0
      %6412 = vmatprep.subr.mxu0 0.0
      %6413 = vmatpush1.msra.mxu0 0.0
      %6414 = vmatprep.subr.mxu0 0.0
      %6415 = vmatpush1.msra.mxu0 0.0
      %6416 = vmatprep.subr.mxu0 0.0
      %6417 = vmatpush1.msra.mxu0 0.0
      %6418 = vmatprep.subr.mxu0 0.0
      %6419 = vmatpush1.msra.mxu0 0.0
      %6420 = vmatprep.subr.mxu0 0.0
      %6421 = vmatpush1.msra.mxu0 0.0
      %6422 = vmatprep.subr.mxu0 0.0
      %6423 = vmatpush1.msra.mxu0 0.0
      %6424 = vmatprep.subr.mxu0 0.0
      %6425 = vmatpush1.msra.mxu0 0.0
      %6426 = vmatprep.subr.mxu0 0.0
      %6427 = vmatpush1.msra.mxu0 0.0
      %6428 = vmatprep.subr.mxu0 0.0
      %6429 = vmatpush1.msra.mxu0 0.0
      %6430 = vmatprep.subr.mxu0 0.0
      %6431 = vmatpush1.msra.mxu0 0.0
      %6432 = vmatprep.subr.mxu0 0.0
      %6433 = vmatpush1.msra.mxu0 0.0
      %6434 = vmatprep.subr.mxu0 0.0
      %6435 = vmatpush1.msra.mxu0 0.0
      %6436 = vmatprep.subr.mxu0 0.0
      %6437 = vmatpush1.msra.mxu0 0.0
      %6438 = vmatprep.subr.mxu0 0.0
      %6439 = vmatpush1.msra.mxu0 0.0
      %6440 = vmatprep.subr.mxu0 0.0
      %6441 = vmatpush1.msra.mxu0 0.0
      %6442 = vmatprep.subr.mxu0 0.0
      %6443 = vmatpush1.msra.mxu0 0.0
      %6444 = vmatprep.subr.mxu0 0.0
      %6445 = vmatpush1.msra.mxu0 0.0
      %6446 = vmatprep.subr.mxu0 0.0
      %6447 = vmatpush1.msra.mxu0 0.0
      %6448 = vmatprep.mubr.f32.mxu0 0.0
      %6449 = vmatmul.mubr.f32.gmra.mrb[0].mxu0 %v6370
      %v6450 = vpop.f32.mrb[0].mxu0
      %v6451 = vadd.f32 %v6367, %v6450
      %v6452 = vpop.f32.mrb[0].mxu0
      %6453 = vmatprep.mubr.f32.mxu0 0.0
      %6454 = vmatmul.mubr.f32.gmra.mrb[0].mxu0 %v6373
      %v6455 = vpop.f32.mrb[0].mxu0
      %v6456 = vadd.f32 %v6367, %v6455
      %v6457 = vpop.f32.mrb[0].mxu0
      %6458 = vmatprep.mubr.f32.mxu0 0.0
      %6459 = vmatmul.mubr.f32.gmra.mrb[0].mxu0 %v6376
      %v6460 = vpop.f32.mrb[0].mxu0
      %v6461 = vadd.f32 %v6367, %v6460
      %v6462 = vpop.f32.mrb[0].mxu0
      %6463 = vmatprep.mubr.f32.mxu0 0.0
      %6464 = vmatmul.mubr.f32.gmra.mrb[0].mxu0 %v6379
      %v6465 = vpop.f32.mrb[0].mxu0
      %v6466 = vadd.f32 %v6367, %v6465
      %v6467 = vpop.f32.mrb[0].mxu0
      %6468 = vmatprep.mubr.f32.mxu0 0.0
      %6469 = vmatmul.mubr.f32.gmra.mrb[0].mxu0 %v6382
      %v6470 = vpop.f32.mrb[0].mxu0
      %v6471 = vadd.f32 %v6367, %v6470
      %v6472 = vpop.f32.mrb[0].mxu0
      %6473 = vdwg.mxu0
      %v6474 = vadd.f32 %v4994, %v6451
      %v6475 = vadd.f32 %v4995, %v6456
      %v6476 = vadd.f32 %v4996, %v6461
      %v6477 = vadd.f32 %v4997, %v6466
      %v6478 = vadd.f32 %v4998, %v6471
      %s6479 = scalar_lea.vmem %s5, 1
      %v6480 = vld [vmem:[%s6479] sm:$0x1]
      %s6481 = scalar_lea.vmem %s6, 1
      %v6482 = vld [vmem:[%s6481] sm:$0x1]
      %v6483 = vsel %vm607, %v6474, 0.0
      %6484 = vadd.xlane.f32.xlu0 %v6483
      %v6485 = vpop.xlane.xlu0 %6484
      %v6486 = vsel %vm607, %v6475, 0.0
      %6487 = vadd.xlane.f32.xlu0 %v6486
      %v6488 = vpop.xlane.xlu0 %6487
      %v6489 = vsel %vm607, %v6476, 0.0
      %6490 = vadd.xlane.f32.xlu0 %v6489
      %v6491 = vpop.xlane.xlu0 %6490
      %v6492 = vsel %vm607, %v6477, 0.0
      %6493 = vadd.xlane.f32.xlu0 %v6492
      %v6494 = vpop.xlane.xlu0 %6493
      %v6495 = vsel %vm2106, %v6478, 0.0
      %6496 = vadd.xlane.f32.xlu0 %v6495
      %v6497 = vpop.xlane.xlu0 %6496
      %v6498 = vmul.f32 %v6485, %v2110
      %v6499 = vmul.f32 %v6488, %v2110
      %v6500 = vmul.f32 %v6491, %v2110
      %v6501 = vmul.f32 %v6494, %v2110
      %v6502 = vmul.f32 %v6497, %v2110
      %v6503 = vsub.f32 %v6474, %v6498
      %v6504 = vsub.f32 %v6475, %v6499
      %v6505 = vsub.f32 %v6476, %v6500
      %v6506 = vsub.f32 %v6477, %v6501
      %v6507 = vsub.f32 %v6478, %v6502
      %v6508 = vmul.f32 %v6503, %v6503
      %v6509 = vmul.f32 %v6504, %v6504
      %v6510 = vmul.f32 %v6505, %v6505
      %v6511 = vmul.f32 %v6506, %v6506
      %v6512 = vmul.f32 %v6507, %v6507
      %v6513 = vsel %vm607, %v6508, 0.0
      %6514 = vadd.xlane.f32.xlu0 %v6513
      %v6515 = vpop.xlane.xlu0 %6514
      %v6516 = vsel %vm607, %v6509, 0.0
      %6517 = vadd.xlane.f32.xlu0 %v6516
      %v6518 = vpop.xlane.xlu0 %6517
      %v6519 = vsel %vm607, %v6510, 0.0
      %6520 = vadd.xlane.f32.xlu0 %v6519
      %v6521 = vpop.xlane.xlu0 %6520
      %v6522 = vsel %vm607, %v6511, 0.0
      %6523 = vadd.xlane.f32.xlu0 %v6522
      %v6524 = vpop.xlane.xlu0 %6523
      %v6525 = vsel %vm2106, %v6512, 0.0
      %6526 = vadd.xlane.f32.xlu0 %v6525
      %v6527 = vpop.xlane.xlu0 %6526
      %v6528 = vmul.f32 %v6515, %v2110
      %v6529 = vmul.f32 %v6518, %v2110
      %v6530 = vmul.f32 %v6521, %v2110
      %v6531 = vmul.f32 %v6524, %v2110
      %v6532 = vmul.f32 %v6527, %v2110
      %v6533 = vadd.f32 %v6528, 1e-05
      %v6534 = vadd.f32 %v6529, 1e-05
      %v6535 = vadd.f32 %v6530, 1e-05
      %v6536 = vadd.f32 %v6531, 1e-05
      %v6537 = vadd.f32 %v6532, 1e-05
      %v6538 = vrsqrt.pop %v6533
      %v6539 = vrsqrt.pop %v6534
      %v6540 = vrsqrt.pop %v6535
      %v6541 = vrsqrt.pop %v6536
      %v6542 = vrsqrt.pop %v6537
      %v6543 = vmul.f32 %v6503, %v6538
      %v6544 = vmul.f32 %v6504, %v6539
      %v6545 = vmul.f32 %v6505, %v6540
      %v6546 = vmul.f32 %v6506, %v6541
      %v6547 = vmul.f32 %v6507, %v6542
      %v6549 = vlaneseq
      %v6550 = vshrl.u32 %v6549, 7
      %v6551 = vsub.s32 0, %v6550
      %v6552 = vrot.slane %v6480, %v6551
      %v6554 = vmul.f32 %v6543, %v6552
      %v6555 = vmul.f32 %v6544, %v6552
      %v6556 = vmul.f32 %v6545, %v6552
      %v6557 = vmul.f32 %v6546, %v6552
      %v6558 = vmul.f32 %v6547, %v6552
      %v6560 = vlaneseq
      %v6561 = vshrl.u32 %v6560, 7
      %v6562 = vsub.s32 0, %v6561
      %v6563 = vrot.slane %v6482, %v6562
      %v6565 = vadd.f32 %v6554, %v6563
      %v6566 = vadd.f32 %v6555, %v6563
      %v6567 = vadd.f32 %v6556, %v6563
      %v6568 = vadd.f32 %v6557, %v6563
      %v6569 = vadd.f32 %v6558, %v6563
      %v6570 = vpack.c.bf16 %v6566, %v6565
      %v6571 = vpack.c.bf16 %v6568, %v6567
      %v6572 = vpack.c.bf16 %v6569, %v6569
      %s6573 = scalar_lea.vmem %s7, 256
      %v6574 = vld [vmem:[%s6573] sm:$0xff]
      %v6575 = vld [vmem:[%s6573 + $0x8] sm:$0xff]
      %v6576 = vld [vmem:[%s6573 + $0x40] sm:$0xff]
      %v6577 = vld [vmem:[%s6573 + $0x48] sm:$0xff]
      %v6578 = vld [vmem:[%s6573 + $0x80] sm:$0xff]
      %v6579 = vld [vmem:[%s6573 + $0x88] sm:$0xff]
      %v6580 = vld [vmem:[%s6573 + $0xc0] sm:$0xff]
      %v6581 = vld [vmem:[%s6573 + $0xc8] sm:$0xff]
      %s6582 = scalar_lea.vmem %s8, 16
      %v6583 = vld [vmem:[%s6582] sm:$0xf]
      %v6585 = vlaneseq
      %v6586 = vshrl.u32 %v6585, 7
      %v6587 = vsub.s32 0, %v6586
      %v6588 = vrot.slane %v6583, %v6587
      %v6589 = vlaneseq
      %v6590 = vshrl.u32 %v6589, 7
      %v6591 = vsub.s32 1, %v6590
      %v6592 = vrot.slane %v6583, %v6591
      %v6593 = vlaneseq
      %v6594 = vshrl.u32 %v6593, 7
      %v6595 = vsub.s32 2, %v6594
      %v6596 = vrot.slane %v6583, %v6595
      %v6597 = vlaneseq
      %v6598 = vshrl.u32 %v6597, 7
      %v6599 = vsub.s32 3, %v6598
      %v6600 = vrot.slane %v6583, %v6599
      %v6613 = vunpack.c.l.b16 %v6574
      %v6614 = vunpack.c.h.b16 %v6574
      %v6615 = vunpack.c.l.b16 %v6575
      %v6616 = vunpack.c.h.b16 %v6575
      %v6617 = vunpack.c.l.b16 %v6576
      %v6618 = vunpack.c.h.b16 %v6576
      %v6619 = vunpack.c.l.b16 %v6577
      %v6620 = vunpack.c.h.b16 %v6577
      %v6621 = vunpack.c.l.b16 %v6578
      %v6622 = vunpack.c.h.b16 %v6578
      %v6623 = vunpack.c.l.b16 %v6579
      %v6624 = vunpack.c.h.b16 %v6579
      %v6625 = vunpack.c.l.b16 %v6580
      %v6626 = vunpack.c.h.b16 %v6580
      %v6627 = vunpack.c.l.b16 %v6581
      %v6628 = vunpack.c.h.b16 %v6581
      %v6629 = vpack.c.b16 %v6617, %v6613
      %v6630 = vpack.c.b16 %v6618, %v6614
      %v6631 = vpack.c.b16 %v6619, %v6615
      %v6632 = vpack.c.b16 %v6620, %v6616
      %v6633 = vpack.c.b16 %v6625, %v6621
      %v6634 = vpack.c.b16 %v6626, %v6622
      %v6635 = vpack.c.b16 %v6627, %v6623
      %v6636 = vpack.c.b16 %v6628, %v6624
      %v6646 = vsel %vm607, %v6570, 0
      %v6649 = vsel %vm607, %v6571, 0
      %v6652 = vsel %vm607, %v6572, 0
      %6654 = vmatprep.subr.bf16.mxu0 %v6630
      %6655 = vmatpush1.bf16.msra.mxu0 %v6629
      %6656 = vmatprep.subr.bf16.mxu0 %v6634
      %6657 = vmatpush1.bf16.msra.mxu0 %v6633
      %6658 = vmatprep.subr.bf16.mxu0 0
      %6659 = vmatpush1.bf16.msra.mxu0 0
      %6660 = vmatprep.subr.bf16.mxu0 0
      %6661 = vmatpush1.bf16.msra.mxu0 0
      %6662 = vmatprep.subr.bf16.mxu0 0
      %6663 = vmatpush1.bf16.msra.mxu0 0
      %6664 = vmatprep.subr.bf16.mxu0 0
      %6665 = vmatpush1.bf16.msra.mxu0 0
      %6666 = vmatprep.subr.bf16.mxu0 0
      %6667 = vmatpush1.bf16.msra.mxu0 0
      %6668 = vmatprep.subr.bf16.mxu0 0
      %6669 = vmatpush1.bf16.msra.mxu0 0
      %6670 = vmatprep.subr.bf16.mxu0 0
      %6671 = vmatpush1.bf16.msra.mxu0 0
      %6672 = vmatprep.subr.bf16.mxu0 0
      %6673 = vmatpush1.bf16.msra.mxu0 0
      %6674 = vmatprep.subr.bf16.mxu0 0
      %6675 = vmatpush1.bf16.msra.mxu0 0
      %6676 = vmatprep.subr.bf16.mxu0 0
      %6677 = vmatpush1.bf16.msra.mxu0 0
      %6678 = vmatprep.subr.bf16.mxu0 0
      %6679 = vmatpush1.bf16.msra.mxu0 0
      %6680 = vmatprep.subr.bf16.mxu0 0
      %6681 = vmatpush1.bf16.msra.mxu0 0
      %6682 = vmatprep.subr.bf16.mxu0 0
      %6683 = vmatpush1.bf16.msra.mxu0 0
      %6684 = vmatprep.subr.bf16.mxu0 0
      %6685 = vmatpush1.bf16.msra.mxu0 0
      %6686 = vmatprep.mubr.bf16.mxu0 0
      %6687 = vmatmul.mubr.bf16.gmra.mrb[0].mxu0 %v6646
      %v6688 = vpop.f32.mrb[0].mxu0
      %v6689 = vadd.f32 %v6588, %v6688
      %v6690 = vpop.f32.mrb[0].mxu0
      %v6691 = vadd.f32 %v6592, %v6690
      %v6692 = vpop.f32.mrb[0].mxu0
      %v6693 = vadd.f32 %v6588, %v6692
      %v6694 = vpop.f32.mrb[0].mxu0
      %v6695 = vadd.f32 %v6592, %v6694
      %6696 = vmatprep.mubr.bf16.mxu0 0
      %6697 = vmatmul.mubr.bf16.gmra.mrb[0].mxu0 %v6649
      %v6698 = vpop.f32.mrb[0].mxu0
      %v6699 = vadd.f32 %v6588, %v6698
      %v6700 = vpop.f32.mrb[0].mxu0
      %v6701 = vadd.f32 %v6592, %v6700
      %v6702 = vpop.f32.mrb[0].mxu0
      %v6703 = vadd.f32 %v6588, %v6702
      %v6704 = vpop.f32.mrb[0].mxu0
      %v6705 = vadd.f32 %v6592, %v6704
      %6706 = vmatprep.mubr.bf16.mxu0 0
      %6707 = vmatmul.mubr.bf16.gmra.mrb[0].mxu0 %v6652
      %v6708 = vpop.f32.mrb[0].mxu0
      %v6709 = vadd.f32 %v6588, %v6708
      %v6710 = vpop.f32.mrb[0].mxu0
      %v6711 = vadd.f32 %v6592, %v6710
      %v6712 = vpop.f32.mrb[0].mxu0
      %v6713 = vpop.f32.mrb[0].mxu0
      %6714 = vdwg.mxu0
      %6715 = vmatprep.subr.bf16.mxu0 %v6632
      %6716 = vmatpush1.bf16.msra.mxu0 %v6631
      %6717 = vmatprep.subr.bf16.mxu0 %v6636
      %6718 = vmatpush1.bf16.msra.mxu0 %v6635
      %6719 = vmatprep.subr.bf16.mxu0 0
      %6720 = vmatpush1.bf16.msra.mxu0 0
      %6721 = vmatprep.subr.bf16.mxu0 0
      %6722 = vmatpush1.bf16.msra.mxu0 0
      %6723 = vmatprep.subr.bf16.mxu0 0
      %6724 = vmatpush1.bf16.msra.mxu0 0
      %6725 = vmatprep.subr.bf16.mxu0 0
      %6726 = vmatpush1.bf16.msra.mxu0 0
      %6727 = vmatprep.subr.bf16.mxu0 0
      %6728 = vmatpush1.bf16.msra.mxu0 0
      %6729 = vmatprep.subr.bf16.mxu0 0
      %6730 = vmatpush1.bf16.msra.mxu0 0
      %6731 = vmatprep.subr.bf16.mxu0 0
      %6732 = vmatpush1.bf16.msra.mxu0 0
      %6733 = vmatprep.subr.bf16.mxu0 0
      %6734 = vmatpush1.bf16.msra.mxu0 0
      %6735 = vmatprep.subr.bf16.mxu0 0
      %6736 = vmatpush1.bf16.msra.mxu0 0
      %6737 = vmatprep.subr.bf16.mxu0 0
      %6738 = vmatpush1.bf16.msra.mxu0 0
      %6739 = vmatprep.subr.bf16.mxu0 0
      %6740 = vmatpush1.bf16.msra.mxu0 0
      %6741 = vmatprep.subr.bf16.mxu0 0
      %6742 = vmatpush1.bf16.msra.mxu0 0
      %6743 = vmatprep.subr.bf16.mxu0 0
      %6744 = vmatpush1.bf16.msra.mxu0 0
      %6745 = vmatprep.subr.bf16.mxu0 0
      %6746 = vmatpush1.bf16.msra.mxu0 0
      %6747 = vmatprep.mubr.bf16.mxu0 0
      %6748 = vmatmul.mubr.bf16.gmra.mrb[0].mxu0 %v6646
      %v6749 = vpop.f32.mrb[0].mxu0
      %v6750 = vadd.f32 %v6596, %v6749
      %v6751 = vpop.f32.mrb[0].mxu0
      %v6752 = vadd.f32 %v6600, %v6751
      %v6753 = vpop.f32.mrb[0].mxu0
      %v6754 = vadd.f32 %v6596, %v6753
      %v6755 = vpop.f32.mrb[0].mxu0
      %v6756 = vadd.f32 %v6600, %v6755
      %6757 = vmatprep.mubr.bf16.mxu0 0
      %6758 = vmatmul.mubr.bf16.gmra.mrb[0].mxu0 %v6649
      %v6759 = vpop.f32.mrb[0].mxu0
      %v6760 = vadd.f32 %v6596, %v6759
      %v6761 = vpop.f32.mrb[0].mxu0
      %v6762 = vadd.f32 %v6600, %v6761
      %v6763 = vpop.f32.mrb[0].mxu0
      %v6764 = vadd.f32 %v6596, %v6763
      %v6765 = vpop.f32.mrb[0].mxu0
      %v6766 = vadd.f32 %v6600, %v6765
      %6767 = vmatprep.mubr.bf16.mxu0 0
      %6768 = vmatmul.mubr.bf16.gmra.mrb[0].mxu0 %v6652
      %v6769 = vpop.f32.mrb[0].mxu0
      %v6770 = vadd.f32 %v6596, %v6769
      %v6771 = vpop.f32.mrb[0].mxu0
      %v6772 = vadd.f32 %v6600, %v6771
      %v6773 = vpop.f32.mrb[0].mxu0
      %v6774 = vpop.f32.mrb[0].mxu0
      %6775 = vdwg.mxu0
      %v6776 = vmul.f32 %v6689, 0.5
      %v6777 = vmul.f32 %v6691, 0.5
      %v6778 = vmul.f32 %v6750, 0.5
      %v6779 = vmul.f32 %v6752, 0.5
      %v6780 = vmul.f32 %v6693, 0.5
      %v6781 = vmul.f32 %v6695, 0.5
      %v6782 = vmul.f32 %v6754, 0.5
      %v6783 = vmul.f32 %v6756, 0.5
      %v6784 = vmul.f32 %v6699, 0.5
      %v6785 = vmul.f32 %v6701, 0.5
      %v6786 = vmul.f32 %v6760, 0.5
      %v6787 = vmul.f32 %v6762, 0.5
      %v6788 = vmul.f32 %v6703, 0.5
      %v6789 = vmul.f32 %v6705, 0.5
      %v6790 = vmul.f32 %v6764, 0.5
      %v6791 = vmul.f32 %v6766, 0.5
      %v6792 = vmul.f32 %v6709, 0.5
      %v6793 = vmul.f32 %v6711, 0.5
      %v6794 = vmul.f32 %v6770, 0.5
      %v6795 = vmul.f32 %v6772, 0.5
      %v6796 = vmul.f32 %v6689, 0.70710677
      %v6797 = vmul.f32 %v6691, 0.70710677
      %v6798 = vmul.f32 %v6750, 0.70710677
      %v6799 = vmul.f32 %v6752, 0.70710677
      %v6800 = vmul.f32 %v6693, 0.70710677
      %v6801 = vmul.f32 %v6695, 0.70710677
      %v6802 = vmul.f32 %v6754, 0.70710677
      %v6803 = vmul.f32 %v6756, 0.70710677
      %v6804 = vmul.f32 %v6699, 0.70710677
      %v6805 = vmul.f32 %v6701, 0.70710677
      %v6806 = vmul.f32 %v6760, 0.70710677
      %v6807 = vmul.f32 %v6762, 0.70710677
      %v6808 = vmul.f32 %v6703, 0.70710677
      %v6809 = vmul.f32 %v6705, 0.70710677
      %v6810 = vmul.f32 %v6764, 0.70710677
      %v6811 = vmul.f32 %v6766, 0.70710677
      %v6812 = vmul.f32 %v6709, 0.70710677
      %v6813 = vmul.f32 %v6711, 0.70710677
      %v6814 = vmul.f32 %v6770, 0.70710677
      %v6815 = vmul.f32 %v6772, 0.70710677
      %v6816 = verf.f32.pop %v6796
      %v6817 = verf.f32.pop %v6797
      %v6818 = verf.f32.pop %v6798
      %v6819 = verf.f32.pop %v6799
      %v6820 = verf.f32.pop %v6800
      %v6821 = verf.f32.pop %v6801
      %v6822 = verf.f32.pop %v6802
      %v6823 = verf.f32.pop %v6803
      %v6824 = verf.f32.pop %v6804
      %v6825 = verf.f32.pop %v6805
      %v6826 = verf.f32.pop %v6806
      %v6827 = verf.f32.pop %v6807
      %v6828 = verf.f32.pop %v6808
      %v6829 = verf.f32.pop %v6809
      %v6830 = verf.f32.pop %v6810
      %v6831 = verf.f32.pop %v6811
      %v6832 = verf.f32.pop %v6812
      %v6833 = verf.f32.pop %v6813
      %v6834 = verf.f32.pop %v6814
      %v6835 = verf.f32.pop %v6815
      %v6836 = vadd.f32 %v6816, 1.0
      %v6837 = vadd.f32 %v6817, 1.0
      %v6838 = vadd.f32 %v6818, 1.0
      %v6839 = vadd.f32 %v6819, 1.0
      %v6840 = vadd.f32 %v6820, 1.0
      %v6841 = vadd.f32 %v6821, 1.0
      %v6842 = vadd.f32 %v6822, 1.0
      %v6843 = vadd.f32 %v6823, 1.0
      %v6844 = vadd.f32 %v6824, 1.0
      %v6845 = vadd.f32 %v6825, 1.0
      %v6846 = vadd.f32 %v6826, 1.0
      %v6847 = vadd.f32 %v6827, 1.0
      %v6848 = vadd.f32 %v6828, 1.0
      %v6849 = vadd.f32 %v6829, 1.0
      %v6850 = vadd.f32 %v6830, 1.0
      %v6851 = vadd.f32 %v6831, 1.0
      %v6852 = vadd.f32 %v6832, 1.0
      %v6853 = vadd.f32 %v6833, 1.0
      %v6854 = vadd.f32 %v6834, 1.0
      %v6855 = vadd.f32 %v6835, 1.0
      %v6856 = vmul.f32 %v6776, %v6836
      %v6857 = vmul.f32 %v6777, %v6837
      %v6858 = vmul.f32 %v6778, %v6838
      %v6859 = vmul.f32 %v6779, %v6839
      %v6860 = vmul.f32 %v6780, %v6840
      %v6861 = vmul.f32 %v6781, %v6841
      %v6862 = vmul.f32 %v6782, %v6842
      %v6863 = vmul.f32 %v6783, %v6843
      %v6864 = vmul.f32 %v6784, %v6844
      %v6865 = vmul.f32 %v6785, %v6845
      %v6866 = vmul.f32 %v6786, %v6846
      %v6867 = vmul.f32 %v6787, %v6847
      %v6868 = vmul.f32 %v6788, %v6848
      %v6869 = vmul.f32 %v6789, %v6849
      %v6870 = vmul.f32 %v6790, %v6850
      %v6871 = vmul.f32 %v6791, %v6851
      %v6872 = vmul.f32 %v6792, %v6852
      %v6873 = vmul.f32 %v6793, %v6853
      %v6874 = vmul.f32 %v6794, %v6854
      %v6875 = vmul.f32 %v6795, %v6855
      %v6876 = vpack.c.bf16 %v6860, %v6856
      %v6877 = vpack.c.bf16 %v6861, %v6857
      %v6878 = vpack.c.bf16 %v6862, %v6858
      %v6879 = vpack.c.bf16 %v6863, %v6859
      %v6880 = vpack.c.bf16 %v6868, %v6864
      %v6881 = vpack.c.bf16 %v6869, %v6865
      %v6882 = vpack.c.bf16 %v6870, %v6866
      %v6883 = vpack.c.bf16 %v6871, %v6867
      %v6884 = vpack.c.bf16 %v6872, %v6872
      %v6885 = vpack.c.bf16 %v6873, %v6873
      %v6886 = vpack.c.bf16 %v6874, %v6874
      %v6887 = vpack.c.bf16 %v6875, %v6875
      %s6888 = scalar_lea.vmem %s9, 1024
      %v6889 = vld [vmem:[%s6888] sm:$0xf]
      %v6890 = vld [vmem:[%s6888 + $0x4] sm:$0xf]
      %v6891 = vld [vmem:[%s6888 + $0x8] sm:$0xf]
      %v6892 = vld [vmem:[%s6888 + $0xc] sm:$0xf]
      %v6893 = vld [vmem:[%s6888 + $0x10] sm:$0xf]
      %v6894 = vld [vmem:[%s6888 + $0x14] sm:$0xf]
      %v6895 = vld [vmem:[%s6888 + $0x18] sm:$0xf]
      %v6896 = vld [vmem:[%s6888 + $0x1c] sm:$0xf]
      %v6897 = vld [vmem:[%s6888 + $0x20] sm:$0xf]
      %v6898 = vld [vmem:[%s6888 + $0x24] sm:$0xf]
      %v6899 = vld [vmem:[%s6888 + $0x28] sm:$0xf]
      %v6900 = vld [vmem:[%s6888 + $0x2c] sm:$0xf]
      %v6901 = vld [vmem:[%s6888 + $0x30] sm:$0xf]
      %v6902 = vld [vmem:[%s6888 + $0x34] sm:$0xf]
      %v6903 = vld [vmem:[%s6888 + $0x38] sm:$0xf]
      %v6904 = vld [vmem:[%s6888 + $0x3c] sm:$0xf]
      %v6905 = vld [vmem:[%s6888 + $0x40] sm:$0xf]
      %v6906 = vld [vmem:[%s6888 + $0x44] sm:$0xf]
      %v6907 = vld [vmem:[%s6888 + $0x48] sm:$0xf]
      %v6908 = vld [vmem:[%s6888 + $0x4c] sm:$0xf]
      %v6909 = vld [vmem:[%s6888 + $0x50] sm:$0xf]
      %v6910 = vld [vmem:[%s6888 + $0x54] sm:$0xf]
      %v6911 = vld [vmem:[%s6888 + $0x58] sm:$0xf]
      %v6912 = vld [vmem:[%s6888 + $0x5c] sm:$0xf]
      %v6913 = vld [vmem:[%s6888 + $0x60] sm:$0xf]
      %v6914 = vld [vmem:[%s6888 + $0x64] sm:$0xf]
      %v6915 = vld [vmem:[%s6888 + $0x68] sm:$0xf]
      %v6916 = vld [vmem:[%s6888 + $0x6c] sm:$0xf]
      %v6917 = vld [vmem:[%s6888 + $0x70] sm:$0xf]
      %v6918 = vld [vmem:[%s6888 + $0x74] sm:$0xf]
      %v6919 = vld [vmem:[%s6888 + $0x78] sm:$0xf]
      %v6920 = vld [vmem:[%s6888 + $0x7c] sm:$0xf]
      %v6921 = vld [vmem:[%s6888 + $0x80] sm:$0xf]
      %v6922 = vld [vmem:[%s6888 + $0x84] sm:$0xf]
      %v6923 = vld [vmem:[%s6888 + $0x88] sm:$0xf]
      %v6924 = vld [vmem:[%s6888 + $0x8c] sm:$0xf]
      %v6925 = vld [vmem:[%s6888 + $0x90] sm:$0xf]
      %v6926 = vld [vmem:[%s6888 + $0x94] sm:$0xf]
      %v6927 = vld [vmem:[%s6888 + $0x98] sm:$0xf]
      %v6928 = vld [vmem:[%s6888 + $0x9c] sm:$0xf]
      %v6929 = vld [vmem:[%s6888 + $0xa0] sm:$0xf]
      %v6930 = vld [vmem:[%s6888 + $0xa4] sm:$0xf]
      %v6931 = vld [vmem:[%s6888 + $0xa8] sm:$0xf]
      %v6932 = vld [vmem:[%s6888 + $0xac] sm:$0xf]
      %v6933 = vld [vmem:[%s6888 + $0xb0] sm:$0xf]
      %v6934 = vld [vmem:[%s6888 + $0xb4] sm:$0xf]
      %v6935 = vld [vmem:[%s6888 + $0xb8] sm:$0xf]
      %v6936 = vld [vmem:[%s6888 + $0xbc] sm:$0xf]
      %v6937 = vld [vmem:[%s6888 + $0xc0] sm:$0xf]
      %v6938 = vld [vmem:[%s6888 + $0xc4] sm:$0xf]
      %v6939 = vld [vmem:[%s6888 + $0xc8] sm:$0xf]
      %v6940 = vld [vmem:[%s6888 + $0xcc] sm:$0xf]
      %v6941 = vld [vmem:[%s6888 + $0xd0] sm:$0xf]
      %v6942 = vld [vmem:[%s6888 + $0xd4] sm:$0xf]
      %v6943 = vld [vmem:[%s6888 + $0xd8] sm:$0xf]
      %v6944 = vld [vmem:[%s6888 + $0xdc] sm:$0xf]
      %v6945 = vld [vmem:[%s6888 + $0xe0] sm:$0xf]
      %v6946 = vld [vmem:[%s6888 + $0xe4] sm:$0xf]
      %v6947 = vld [vmem:[%s6888 + $0xe8] sm:$0xf]
      %v6948 = vld [vmem:[%s6888 + $0xec] sm:$0xf]
      %v6949 = vld [vmem:[%s6888 + $0xf0] sm:$0xf]
      %v6950 = vld [vmem:[%s6888 + $0xf4] sm:$0xf]
      %v6951 = vld [vmem:[%s6888 + $0xf8] sm:$0xf]
      %v6952 = vld [vmem:[%s6888 + $0xfc] sm:$0xf]
      %v6953 = vld [vmem:[%s6573 + $0x10] sm:$0xff]
      %v6954 = vld [vmem:[%s6573 + $0x18] sm:$0xff]
      %v6955 = vld [vmem:[%s6573 + $0x50] sm:$0xff]
      %v6956 = vld [vmem:[%s6573 + $0x58] sm:$0xff]
      %v6957 = vld [vmem:[%s6573 + $0x90] sm:$0xff]
      %v6958 = vld [vmem:[%s6573 + $0x98] sm:$0xff]
      %v6959 = vld [vmem:[%s6573 + $0xd0] sm:$0xff]
      %v6960 = vld [vmem:[%s6573 + $0xd8] sm:$0xff]
      %v6961 = vld [vmem:[%s6582 + $0x4] sm:$0xf]
      %v6963 = vlaneseq
      %v6964 = vshrl.u32 %v6963, 7
      %v6965 = vsub.s32 0, %v6964
      %v6966 = vrot.slane %v6961, %v6965
      %v6967 = vlaneseq
      %v6968 = vshrl.u32 %v6967, 7
      %v6969 = vsub.s32 1, %v6968
      %v6970 = vrot.slane %v6961, %v6969
      %v6971 = vlaneseq
      %v6972 = vshrl.u32 %v6971, 7
      %v6973 = vsub.s32 2, %v6972
      %v6974 = vrot.slane %v6961, %v6973
      %v6975 = vlaneseq
      %v6976 = vshrl.u32 %v6975, 7
      %v6977 = vsub.s32 3, %v6976
      %v6978 = vrot.slane %v6961, %v6977
      %v6991 = vunpack.c.l.b16 %v6953
      %v6992 = vunpack.c.h.b16 %v6953
      %v6993 = vunpack.c.l.b16 %v6954
      %v6994 = vunpack.c.h.b16 %v6954
      %v6995 = vunpack.c.l.b16 %v6955
      %v6996 = vunpack.c.h.b16 %v6955
      %v6997 = vunpack.c.l.b16 %v6956
      %v6998 = vunpack.c.h.b16 %v6956
      %v6999 = vunpack.c.l.b16 %v6957
      %v7000 = vunpack.c.h.b16 %v6957
      %v7001 = vunpack.c.l.b16 %v6958
      %v7002 = vunpack.c.h.b16 %v6958
      %v7003 = vunpack.c.l.b16 %v6959
      %v7004 = vunpack.c.h.b16 %v6959
      %v7005 = vunpack.c.l.b16 %v6960
      %v7006 = vunpack.c.h.b16 %v6960
      %v7007 = vpack.c.b16 %v6995, %v6991
      %v7008 = vpack.c.b16 %v6996, %v6992
      %v7009 = vpack.c.b16 %v6997, %v6993
      %v7010 = vpack.c.b16 %v6998, %v6994
      %v7011 = vpack.c.b16 %v7003, %v6999
      %v7012 = vpack.c.b16 %v7004, %v7000
      %v7013 = vpack.c.b16 %v7005, %v7001
      %v7014 = vpack.c.b16 %v7006, %v7002
      %7023 = vmatprep.subr.bf16.mxu0 %v7008
      %7024 = vmatpush1.bf16.msra.mxu0 %v7007
      %7025 = vmatprep.subr.bf16.mxu0 %v7012
      %7026 = vmatpush1.bf16.msra.mxu0 %v7011
      %7027 = vmatprep.subr.bf16.mxu0 0
      %7028 = vmatpush1.bf16.msra.mxu0 0
      %7029 = vmatprep.subr.bf16.mxu0 0
      %7030 = vmatpush1.bf16.msra.mxu0 0
      %7031 = vmatprep.subr.bf16.mxu0 0
      %7032 = vmatpush1.bf16.msra.mxu0 0
      %7033 = vmatprep.subr.bf16.mxu0 0
      %7034 = vmatpush1.bf16.msra.mxu0 0
      %7035 = vmatprep.subr.bf16.mxu0 0
      %7036 = vmatpush1.bf16.msra.mxu0 0
      %7037 = vmatprep.subr.bf16.mxu0 0
      %7038 = vmatpush1.bf16.msra.mxu0 0
      %7039 = vmatprep.subr.bf16.mxu0 0
      %7040 = vmatpush1.bf16.msra.mxu0 0
      %7041 = vmatprep.subr.bf16.mxu0 0
      %7042 = vmatpush1.bf16.msra.mxu0 0
      %7043 = vmatprep.subr.bf16.mxu0 0
      %7044 = vmatpush1.bf16.msra.mxu0 0
      %7045 = vmatprep.subr.bf16.mxu0 0
      %7046 = vmatpush1.bf16.msra.mxu0 0
      %7047 = vmatprep.subr.bf16.mxu0 0
      %7048 = vmatpush1.bf16.msra.mxu0 0
      %7049 = vmatprep.subr.bf16.mxu0 0
      %7050 = vmatpush1.bf16.msra.mxu0 0
      %7051 = vmatprep.subr.bf16.mxu0 0
      %7052 = vmatpush1.bf16.msra.mxu0 0
      %7053 = vmatprep.subr.bf16.mxu0 0
      %7054 = vmatpush1.bf16.msra.mxu0 0
      %7055 = vmatprep.mubr.bf16.mxu0 0
      %7056 = vmatmul.mubr.bf16.gmra.mrb[0].mxu0 %v6646
      %v7057 = vpop.f32.mrb[0].mxu0
      %v7058 = vadd.f32 %v6966, %v7057
      %v7059 = vpop.f32.mrb[0].mxu0
      %v7060 = vadd.f32 %v6970, %v7059
      %v7061 = vpop.f32.mrb[0].mxu0
      %v7062 = vadd.f32 %v6966, %v7061
      %v7063 = vpop.f32.mrb[0].mxu0
      %v7064 = vadd.f32 %v6970, %v7063
      %7065 = vmatprep.mubr.bf16.mxu0 0
      %7066 = vmatmul.mubr.bf16.gmra.mrb[0].mxu0 %v6649
      %v7067 = vpop.f32.mrb[0].mxu0
      %v7068 = vadd.f32 %v6966, %v7067
      %v7069 = vpop.f32.mrb[0].mxu0
      %v7070 = vadd.f32 %v6970, %v7069
      %v7071 = vpop.f32.mrb[0].mxu0
      %v7072 = vadd.f32 %v6966, %v7071
      %v7073 = vpop.f32.mrb[0].mxu0
      %v7074 = vadd.f32 %v6970, %v7073
      %7075 = vmatprep.mubr.bf16.mxu0 0
      %7076 = vmatmul.mubr.bf16.gmra.mrb[0].mxu0 %v6652
      %v7077 = vpop.f32.mrb[0].mxu0
      %v7078 = vadd.f32 %v6966, %v7077
      %v7079 = vpop.f32.mrb[0].mxu0
      %v7080 = vadd.f32 %v6970, %v7079
      %v7081 = vpop.f32.mrb[0].mxu0
      %v7082 = vpop.f32.mrb[0].mxu0
      %7083 = vdwg.mxu0
      %7084 = vmatprep.subr.bf16.mxu0 %v7010
      %7085 = vmatpush1.bf16.msra.mxu0 %v7009
      %7086 = vmatprep.subr.bf16.mxu0 %v7014
      %7087 = vmatpush1.bf16.msra.mxu0 %v7013
      %7088 = vmatprep.subr.bf16.mxu0 0
      %7089 = vmatpush1.bf16.msra.mxu0 0
      %7090 = vmatprep.subr.bf16.mxu0 0
      %7091 = vmatpush1.bf16.msra.mxu0 0
      %7092 = vmatprep.subr.bf16.mxu0 0
      %7093 = vmatpush1.bf16.msra.mxu0 0
      %7094 = vmatprep.subr.bf16.mxu0 0
      %7095 = vmatpush1.bf16.msra.mxu0 0
      %7096 = vmatprep.subr.bf16.mxu0 0
      %7097 = vmatpush1.bf16.msra.mxu0 0
      %7098 = vmatprep.subr.bf16.mxu0 0
      %7099 = vmatpush1.bf16.msra.mxu0 0
      %7100 = vmatprep.subr.bf16.mxu0 0
      %7101 = vmatpush1.bf16.msra.mxu0 0
      %7102 = vmatprep.subr.bf16.mxu0 0
      %7103 = vmatpush1.bf16.msra.mxu0 0
      %7104 = vmatprep.subr.bf16.mxu0 0
      %7105 = vmatpush1.bf16.msra.mxu0 0
      %7106 = vmatprep.subr.bf16.mxu0 0
      %7107 = vmatpush1.bf16.msra.mxu0 0
      %7108 = vmatprep.subr.bf16.mxu0 0
      %7109 = vmatpush1.bf16.msra.mxu0 0
      %7110 = vmatprep.subr.bf16.mxu0 0
      %7111 = vmatpush1.bf16.msra.mxu0 0
      %7112 = vmatprep.subr.bf16.mxu0 0
      %7113 = vmatpush1.bf16.msra.mxu0 0
      %7114 = vmatprep.subr.bf16.mxu0 0
      %7115 = vmatpush1.bf16.msra.mxu0 0
      %7116 = vmatprep.mubr.bf16.mxu0 0
      %7117 = vmatmul.mubr.bf16.gmra.mrb[0].mxu0 %v6646
      %v7118 = vpop.f32.mrb[0].mxu0
      %v7119 = vadd.f32 %v6974, %v7118
      %v7120 = vpop.f32.mrb[0].mxu0
      %v7121 = vadd.f32 %v6978, %v7120
      %v7122 = vpop.f32.mrb[0].mxu0
      %v7123 = vadd.f32 %v6974, %v7122
      %v7124 = vpop.f32.mrb[0].mxu0
      %v7125 = vadd.f32 %v6978, %v7124
      %7126 = vmatprep.mubr.bf16.mxu0 0
      %7127 = vmatmul.mubr.bf16.gmra.mrb[0].mxu0 %v6649
      %v7128 = vpop.f32.mrb[0].mxu0
      %v7129 = vadd.f32 %v6974, %v7128
      %v7130 = vpop.f32.mrb[0].mxu0
      %v7131 = vadd.f32 %v6978, %v7130
      %v7132 = vpop.f32.mrb[0].mxu0
      %v7133 = vadd.f32 %v6974, %v7132
      %v7134 = vpop.f32.mrb[0].mxu0
      %v7135 = vadd.f32 %v6978, %v7134
      %7136 = vmatprep.mubr.bf16.mxu0 0
      %7137 = vmatmul.mubr.bf16.gmra.mrb[0].mxu0 %v6652
      %v7138 = vpop.f32.mrb[0].mxu0
      %v7139 = vadd.f32 %v6974, %v7138
      %v7140 = vpop.f32.mrb[0].mxu0
      %v7141 = vadd.f32 %v6978, %v7140
      %v7142 = vpop.f32.mrb[0].mxu0
      %v7143 = vpop.f32.mrb[0].mxu0
      %7144 = vdwg.mxu0
      %v7145 = vmul.f32 %v7058, 0.5
      %v7146 = vmul.f32 %v7060, 0.5
      %v7147 = vmul.f32 %v7119, 0.5
      %v7148 = vmul.f32 %v7121, 0.5
      %v7149 = vmul.f32 %v7062, 0.5
      %v7150 = vmul.f32 %v7064, 0.5
      %v7151 = vmul.f32 %v7123, 0.5
      %v7152 = vmul.f32 %v7125, 0.5
      %v7153 = vmul.f32 %v7068, 0.5
      %v7154 = vmul.f32 %v7070, 0.5
      %v7155 = vmul.f32 %v7129, 0.5
      %v7156 = vmul.f32 %v7131, 0.5
      %v7157 = vmul.f32 %v7072, 0.5
      %v7158 = vmul.f32 %v7074, 0.5
      %v7159 = vmul.f32 %v7133, 0.5
      %v7160 = vmul.f32 %v7135, 0.5
      %v7161 = vmul.f32 %v7078, 0.5
      %v7162 = vmul.f32 %v7080, 0.5
      %v7163 = vmul.f32 %v7139, 0.5
      %v7164 = vmul.f32 %v7141, 0.5
      %v7165 = vmul.f32 %v7058, 0.70710677
      %v7166 = vmul.f32 %v7060, 0.70710677
      %v7167 = vmul.f32 %v7119, 0.70710677
      %v7168 = vmul.f32 %v7121, 0.70710677
      %v7169 = vmul.f32 %v7062, 0.70710677
      %v7170 = vmul.f32 %v7064, 0.70710677
      %v7171 = vmul.f32 %v7123, 0.70710677
      %v7172 = vmul.f32 %v7125, 0.70710677
      %v7173 = vmul.f32 %v7068, 0.70710677
      %v7174 = vmul.f32 %v7070, 0.70710677
      %v7175 = vmul.f32 %v7129, 0.70710677
      %v7176 = vmul.f32 %v7131, 0.70710677
      %v7177 = vmul.f32 %v7072, 0.70710677
      %v7178 = vmul.f32 %v7074, 0.70710677
      %v7179 = vmul.f32 %v7133, 0.70710677
      %v7180 = vmul.f32 %v7135, 0.70710677
      %v7181 = vmul.f32 %v7078, 0.70710677
      %v7182 = vmul.f32 %v7080, 0.70710677
      %v7183 = vmul.f32 %v7139, 0.70710677
      %v7184 = vmul.f32 %v7141, 0.70710677
      %v7185 = verf.f32.pop %v7165
      %v7186 = verf.f32.pop %v7166
      %v7187 = verf.f32.pop %v7167
      %v7188 = verf.f32.pop %v7168
      %v7189 = verf.f32.pop %v7169
      %v7190 = verf.f32.pop %v7170
      %v7191 = verf.f32.pop %v7171
      %v7192 = verf.f32.pop %v7172
      %v7193 = verf.f32.pop %v7173
      %v7194 = verf.f32.pop %v7174
      %v7195 = verf.f32.pop %v7175
      %v7196 = verf.f32.pop %v7176
      %v7197 = verf.f32.pop %v7177
      %v7198 = verf.f32.pop %v7178
      %v7199 = verf.f32.pop %v7179
      %v7200 = verf.f32.pop %v7180
      %v7201 = verf.f32.pop %v7181
      %v7202 = verf.f32.pop %v7182
      %v7203 = verf.f32.pop %v7183
      %v7204 = verf.f32.pop %v7184
      %v7205 = vadd.f32 %v7185, 1.0
      %v7206 = vadd.f32 %v7186, 1.0
      %v7207 = vadd.f32 %v7187, 1.0
      %v7208 = vadd.f32 %v7188, 1.0
      %v7209 = vadd.f32 %v7189, 1.0
      %v7210 = vadd.f32 %v7190, 1.0
      %v7211 = vadd.f32 %v7191, 1.0
      %v7212 = vadd.f32 %v7192, 1.0
      %v7213 = vadd.f32 %v7193, 1.0
      %v7214 = vadd.f32 %v7194, 1.0
      %v7215 = vadd.f32 %v7195, 1.0
      %v7216 = vadd.f32 %v7196, 1.0
      %v7217 = vadd.f32 %v7197, 1.0
      %v7218 = vadd.f32 %v7198, 1.0
      %v7219 = vadd.f32 %v7199, 1.0
      %v7220 = vadd.f32 %v7200, 1.0
      %v7221 = vadd.f32 %v7201, 1.0
      %v7222 = vadd.f32 %v7202, 1.0
      %v7223 = vadd.f32 %v7203, 1.0
      %v7224 = vadd.f32 %v7204, 1.0
      %v7225 = vmul.f32 %v7145, %v7205
      %v7226 = vmul.f32 %v7146, %v7206
      %v7227 = vmul.f32 %v7147, %v7207
      %v7228 = vmul.f32 %v7148, %v7208
      %v7229 = vmul.f32 %v7149, %v7209
      %v7230 = vmul.f32 %v7150, %v7210
      %v7231 = vmul.f32 %v7151, %v7211
      %v7232 = vmul.f32 %v7152, %v7212
      %v7233 = vmul.f32 %v7153, %v7213
      %v7234 = vmul.f32 %v7154, %v7214
      %v7235 = vmul.f32 %v7155, %v7215
      %v7236 = vmul.f32 %v7156, %v7216
      %v7237 = vmul.f32 %v7157, %v7217
      %v7238 = vmul.f32 %v7158, %v7218
      %v7239 = vmul.f32 %v7159, %v7219
      %v7240 = vmul.f32 %v7160, %v7220
      %v7241 = vmul.f32 %v7161, %v7221
      %v7242 = vmul.f32 %v7162, %v7222
      %v7243 = vmul.f32 %v7163, %v7223
      %v7244 = vmul.f32 %v7164, %v7224
      %v7245 = vpack.c.bf16 %v7229, %v7225
      %v7246 = vpack.c.bf16 %v7230, %v7226
      %v7247 = vpack.c.bf16 %v7231, %v7227
      %v7248 = vpack.c.bf16 %v7232, %v7228
      %v7249 = vpack.c.bf16 %v7237, %v7233
      %v7250 = vpack.c.bf16 %v7238, %v7234
      %v7251 = vpack.c.bf16 %v7239, %v7235
      %v7252 = vpack.c.bf16 %v7240, %v7236
      %v7253 = vpack.c.bf16 %v7241, %v7241
      %v7254 = vpack.c.bf16 %v7242, %v7242
      %v7255 = vpack.c.bf16 %v7243, %v7243
      %v7256 = vpack.c.bf16 %v7244, %v7244
      %v7257 = vld [vmem:[%s6888 + $0x100] sm:$0xf]
      %v7258 = vld [vmem:[%s6888 + $0x104] sm:$0xf]
      %v7259 = vld [vmem:[%s6888 + $0x108] sm:$0xf]
      %v7260 = vld [vmem:[%s6888 + $0x10c] sm:$0xf]
      %v7261 = vld [vmem:[%s6888 + $0x110] sm:$0xf]
      %v7262 = vld [vmem:[%s6888 + $0x114] sm:$0xf]
      %v7263 = vld [vmem:[%s6888 + $0x118] sm:$0xf]
      %v7264 = vld [vmem:[%s6888 + $0x11c] sm:$0xf]
      %v7265 = vld [vmem:[%s6888 + $0x120] sm:$0xf]
      %v7266 = vld [vmem:[%s6888 + $0x124] sm:$0xf]
      %v7267 = vld [vmem:[%s6888 + $0x128] sm:$0xf]
      %v7268 = vld [vmem:[%s6888 + $0x12c] sm:$0xf]
      %v7269 = vld [vmem:[%s6888 + $0x130] sm:$0xf]
      %v7270 = vld [vmem:[%s6888 + $0x134] sm:$0xf]
      %v7271 = vld [vmem:[%s6888 + $0x138] sm:$0xf]
      %v7272 = vld [vmem:[%s6888 + $0x13c] sm:$0xf]
      %v7273 = vld [vmem:[%s6888 + $0x140] sm:$0xf]
      %v7274 = vld [vmem:[%s6888 + $0x144] sm:$0xf]
      %v7275 = vld [vmem:[%s6888 + $0x148] sm:$0xf]
      %v7276 = vld [vmem:[%s6888 + $0x14c] sm:$0xf]
      %v7277 = vld [vmem:[%s6888 + $0x150] sm:$0xf]
      %v7278 = vld [vmem:[%s6888 + $0x154] sm:$0xf]
      %v7279 = vld [vmem:[%s6888 + $0x158] sm:$0xf]
      %v7280 = vld [vmem:[%s6888 + $0x15c] sm:$0xf]
      %v7281 = vld [vmem:[%s6888 + $0x160] sm:$0xf]
      %v7282 = vld [vmem:[%s6888 + $0x164] sm:$0xf]
      %v7283 = vld [vmem:[%s6888 + $0x168] sm:$0xf]
      %v7284 = vld [vmem:[%s6888 + $0x16c] sm:$0xf]
      %v7285 = vld [vmem:[%s6888 + $0x170] sm:$0xf]
      %v7286 = vld [vmem:[%s6888 + $0x174] sm:$0xf]
      %v7287 = vld [vmem:[%s6888 + $0x178] sm:$0xf]
      %v7288 = vld [vmem:[%s6888 + $0x17c] sm:$0xf]
      %v7289 = vld [vmem:[%s6888 + $0x180] sm:$0xf]
      %v7290 = vld [vmem:[%s6888 + $0x184] sm:$0xf]
      %v7291 = vld [vmem:[%s6888 + $0x188] sm:$0xf]
      %v7292 = vld [vmem:[%s6888 + $0x18c] sm:$0xf]
      %v7293 = vld [vmem:[%s6888 + $0x190] sm:$0xf]
      %v7294 = vld [vmem:[%s6888 + $0x194] sm:$0xf]
      %v7295 = vld [vmem:[%s6888 + $0x198] sm:$0xf]
      %v7296 = vld [vmem:[%s6888 + $0x19c] sm:$0xf]
      %v7297 = vld [vmem:[%s6888 + $0x1a0] sm:$0xf]
      %v7298 = vld [vmem:[%s6888 + $0x1a4] sm:$0xf]
      %v7299 = vld [vmem:[%s6888 + $0x1a8] sm:$0xf]
      %v7300 = vld [vmem:[%s6888 + $0x1ac] sm:$0xf]
      %v7301 = vld [vmem:[%s6888 + $0x1b0] sm:$0xf]
      %v7302 = vld [vmem:[%s6888 + $0x1b4] sm:$0xf]
      %v7303 = vld [vmem:[%s6888 + $0x1b8] sm:$0xf]
      %v7304 = vld [vmem:[%s6888 + $0x1bc] sm:$0xf]
      %v7305 = vld [vmem:[%s6888 + $0x1c0] sm:$0xf]
      %v7306 = vld [vmem:[%s6888 + $0x1c4] sm:$0xf]
      %v7307 = vld [vmem:[%s6888 + $0x1c8] sm:$0xf]
      %v7308 = vld [vmem:[%s6888 + $0x1cc] sm:$0xf]
      %v7309 = vld [vmem:[%s6888 + $0x1d0] sm:$0xf]
      %v7310 = vld [vmem:[%s6888 + $0x1d4] sm:$0xf]
      %v7311 = vld [vmem:[%s6888 + $0x1d8] sm:$0xf]
      %v7312 = vld [vmem:[%s6888 + $0x1dc] sm:$0xf]
      %v7313 = vld [vmem:[%s6888 + $0x1e0] sm:$0xf]
      %v7314 = vld [vmem:[%s6888 + $0x1e4] sm:$0xf]
      %v7315 = vld [vmem:[%s6888 + $0x1e8] sm:$0xf]
      %v7316 = vld [vmem:[%s6888 + $0x1ec] sm:$0xf]
      %v7317 = vld [vmem:[%s6888 + $0x1f0] sm:$0xf]
      %v7318 = vld [vmem:[%s6888 + $0x1f4] sm:$0xf]
      %v7319 = vld [vmem:[%s6888 + $0x1f8] sm:$0xf]
      %v7320 = vld [vmem:[%s6888 + $0x1fc] sm:$0xf]
      %v7385 = vunpack.c.l.b16 %v7257
      %v7386 = vunpack.c.l.b16 %v7258
      %v7387 = vunpack.c.l.b16 %v7259
      %v7388 = vunpack.c.l.b16 %v7260
      %v7389 = vunpack.c.l.b16 %v7261
      %v7390 = vunpack.c.l.b16 %v7262
      %v7391 = vunpack.c.l.b16 %v7263
      %v7392 = vunpack.c.l.b16 %v7264
      %v7393 = vunpack.c.l.b16 %v7265
      %v7394 = vunpack.c.l.b16 %v7266
      %v7395 = vunpack.c.l.b16 %v7267
      %v7396 = vunpack.c.l.b16 %v7268
      %v7397 = vunpack.c.l.b16 %v7269
      %v7398 = vunpack.c.l.b16 %v7270
      %v7399 = vunpack.c.l.b16 %v7271
      %v7400 = vunpack.c.l.b16 %v7272
      %v7401 = vunpack.c.l.b16 %v7273
      %v7402 = vunpack.c.l.b16 %v7274
      %v7403 = vunpack.c.l.b16 %v7275
      %v7404 = vunpack.c.l.b16 %v7276
      %v7405 = vunpack.c.l.b16 %v7277
      %v7406 = vunpack.c.l.b16 %v7278
      %v7407 = vunpack.c.l.b16 %v7279
      %v7408 = vunpack.c.l.b16 %v7280
      %v7409 = vunpack.c.l.b16 %v7281
      %v7410 = vunpack.c.l.b16 %v7282
      %v7411 = vunpack.c.l.b16 %v7283
      %v7412 = vunpack.c.l.b16 %v7284
      %v7413 = vunpack.c.l.b16 %v7285
      %v7414 = vunpack.c.l.b16 %v7286
      %v7415 = vunpack.c.l.b16 %v7287
      %v7416 = vunpack.c.l.b16 %v7288
      %v7417 = vunpack.c.l.b16 %v7289
      %v7418 = vunpack.c.l.b16 %v7290
      %v7419 = vunpack.c.l.b16 %v7291
      %v7420 = vunpack.c.l.b16 %v7292
      %v7421 = vunpack.c.l.b16 %v7293
      %v7422 = vunpack.c.l.b16 %v7294
      %v7423 = vunpack.c.l.b16 %v7295
      %v7424 = vunpack.c.l.b16 %v7296
      %v7425 = vunpack.c.l.b16 %v7297
      %v7426 = vunpack.c.l.b16 %v7298
      %v7427 = vunpack.c.l.b16 %v7299
      %v7428 = vunpack.c.l.b16 %v7300
      %v7429 = vunpack.c.l.b16 %v7301
      %v7430 = vunpack.c.l.b16 %v7302
      %v7431 = vunpack.c.l.b16 %v7303
      %v7432 = vunpack.c.l.b16 %v7304
      %v7433 = vunpack.c.l.b16 %v7305
      %v7434 = vunpack.c.l.b16 %v7306
      %v7435 = vunpack.c.l.b16 %v7307
      %v7436 = vunpack.c.l.b16 %v7308
      %v7437 = vunpack.c.l.b16 %v7309
      %v7438 = vunpack.c.l.b16 %v7310
      %v7439 = vunpack.c.l.b16 %v7311
      %v7440 = vunpack.c.l.b16 %v7312
      %v7441 = vunpack.c.l.b16 %v7313
      %v7442 = vunpack.c.l.b16 %v7314
      %v7443 = vunpack.c.l.b16 %v7315
      %v7444 = vunpack.c.l.b16 %v7316
      %v7445 = vunpack.c.l.b16 %v7317
      %v7446 = vunpack.c.l.b16 %v7318
      %v7447 = vunpack.c.l.b16 %v7319
      %v7448 = vunpack.c.l.b16 %v7320
      %v7449 = vpack.c.b16 %v7386, %v7385
      %v7450 = vpack.c.b16 %v7388, %v7387
      %v7451 = vpack.c.b16 %v7390, %v7389
      %v7452 = vpack.c.b16 %v7392, %v7391
      %v7453 = vpack.c.b16 %v7394, %v7393
      %v7454 = vpack.c.b16 %v7396, %v7395
      %v7455 = vpack.c.b16 %v7398, %v7397
      %v7456 = vpack.c.b16 %v7400, %v7399
      %v7457 = vpack.c.b16 %v7402, %v7401
      %v7458 = vpack.c.b16 %v7404, %v7403
      %v7459 = vpack.c.b16 %v7406, %v7405
      %v7460 = vpack.c.b16 %v7408, %v7407
      %v7461 = vpack.c.b16 %v7410, %v7409
      %v7462 = vpack.c.b16 %v7412, %v7411
      %v7463 = vpack.c.b16 %v7414, %v7413
      %v7464 = vpack.c.b16 %v7416, %v7415
      %v7465 = vpack.c.b16 %v7418, %v7417
      %v7466 = vpack.c.b16 %v7420, %v7419
      %v7467 = vpack.c.b16 %v7422, %v7421
      %v7468 = vpack.c.b16 %v7424, %v7423
      %v7469 = vpack.c.b16 %v7426, %v7425
      %v7470 = vpack.c.b16 %v7428, %v7427
      %v7471 = vpack.c.b16 %v7430, %v7429
      %v7472 = vpack.c.b16 %v7432, %v7431
      %v7473 = vpack.c.b16 %v7434, %v7433
      %v7474 = vpack.c.b16 %v7436, %v7435
      %v7475 = vpack.c.b16 %v7438, %v7437
      %v7476 = vpack.c.b16 %v7440, %v7439
      %v7477 = vpack.c.b16 %v7442, %v7441
      %v7478 = vpack.c.b16 %v7444, %v7443
      %v7479 = vpack.c.b16 %v7446, %v7445
      %v7480 = vpack.c.b16 %v7448, %v7447
      %7513 = vmatprep.subr.bf16.mxu0 0
      %7514 = vmatpush1.bf16.msra.mxu0 %v7449
      %7515 = vmatprep.subr.bf16.mxu0 0
      %7516 = vmatpush1.bf16.msra.mxu0 %v7450
      %7517 = vmatprep.subr.bf16.mxu0 0
      %7518 = vmatpush1.bf16.msra.mxu0 %v7451
      %7519 = vmatprep.subr.bf16.mxu0 0
      %7520 = vmatpush1.bf16.msra.mxu0 %v7452
      %7521 = vmatprep.subr.bf16.mxu0 0
      %7522 = vmatpush1.bf16.msra.mxu0 %v7453
      %7523 = vmatprep.subr.bf16.mxu0 0
      %7524 = vmatpush1.bf16.msra.mxu0 %v7454
      %7525 = vmatprep.subr.bf16.mxu0 0
      %7526 = vmatpush1.bf16.msra.mxu0 %v7455
      %7527 = vmatprep.subr.bf16.mxu0 0
      %7528 = vmatpush1.bf16.msra.mxu0 %v7456
      %7529 = vmatprep.subr.bf16.mxu0 0
      %7530 = vmatpush1.bf16.msra.mxu0 %v7457
      %7531 = vmatprep.subr.bf16.mxu0 0
      %7532 = vmatpush1.bf16.msra.mxu0 %v7458
      %7533 = vmatprep.subr.bf16.mxu0 0
      %7534 = vmatpush1.bf16.msra.mxu0 %v7459
      %7535 = vmatprep.subr.bf16.mxu0 0
      %7536 = vmatpush1.bf16.msra.mxu0 %v7460
      %7537 = vmatprep.subr.bf16.mxu0 0
      %7538 = vmatpush1.bf16.msra.mxu0 %v7461
      %7539 = vmatprep.subr.bf16.mxu0 0
      %7540 = vmatpush1.bf16.msra.mxu0 %v7462
      %7541 = vmatprep.subr.bf16.mxu0 0
      %7542 = vmatpush1.bf16.msra.mxu0 %v7463
      %7543 = vmatprep.subr.bf16.mxu0 0
      %7544 = vmatpush1.bf16.msra.mxu0 %v7464
      %7545 = vmatprep.mubr.bf16.mxu0 %v7246
      %7546 = vmatmul.mubr.bf16.gmra.mrb[0].mxu0 %v7245
      %v7547 = vpop.f32.mrb[0].mxu0
      %v7548 = vadd.f32 0.0, %v7547
      %v7549 = vpop.f32.mrb[0].mxu0
      %v7550 = vpop.f32.mrb[0].mxu0
      %v7551 = vadd.f32 0.0, %v7550
      %v7552 = vpop.f32.mrb[0].mxu0
      %7553 = vmatprep.mubr.bf16.mxu0 %v7250
      %7554 = vmatmul.mubr.bf16.gmra.mrb[0].mxu0 %v7249
      %v7555 = vpop.f32.mrb[0].mxu0
      %v7556 = vadd.f32 0.0, %v7555
      %v7557 = vpop.f32.mrb[0].mxu0
      %v7558 = vpop.f32.mrb[0].mxu0
      %v7559 = vadd.f32 0.0, %v7558
      %v7560 = vpop.f32.mrb[0].mxu0
      %7561 = vmatprep.mubr.bf16.mxu0 %v7254
      %7562 = vmatmul.mubr.bf16.gmra.mrb[0].mxu0 %v7253
      %v7563 = vpop.f32.mrb[0].mxu0
      %v7564 = vpop.f32.mrb[0].mxu0
      %v7565 = vpop.f32.mrb[0].mxu0
      %v7566 = vpop.f32.mrb[0].mxu0
      %7567 = vdwg.mxu0
      %7568 = vmatprep.subr.bf16.mxu0 0
      %7569 = vmatpush1.bf16.msra.mxu0 %v7465
      %7570 = vmatprep.subr.bf16.mxu0 0
      %7571 = vmatpush1.bf16.msra.mxu0 %v7466
      %7572 = vmatprep.subr.bf16.mxu0 0
      %7573 = vmatpush1.bf16.msra.mxu0 %v7467
      %7574 = vmatprep.subr.bf16.mxu0 0
      %7575 = vmatpush1.bf16.msra.mxu0 %v7468
      %7576 = vmatprep.subr.bf16.mxu0 0
      %7577 = vmatpush1.bf16.msra.mxu0 %v7469
      %7578 = vmatprep.subr.bf16.mxu0 0
      %7579 = vmatpush1.bf16.msra.mxu0 %v7470
      %7580 = vmatprep.subr.bf16.mxu0 0
      %7581 = vmatpush1.bf16.msra.mxu0 %v7471
      %7582 = vmatprep.subr.bf16.mxu0 0
      %7583 = vmatpush1.bf16.msra.mxu0 %v7472
      %7584 = vmatprep.subr.bf16.mxu0 0
      %7585 = vmatpush1.bf16.msra.mxu0 %v7473
      %7586 = vmatprep.subr.bf16.mxu0 0
      %7587 = vmatpush1.bf16.msra.mxu0 %v7474
      %7588 = vmatprep.subr.bf16.mxu0 0
      %7589 = vmatpush1.bf16.msra.mxu0 %v7475
      %7590 = vmatprep.subr.bf16.mxu0 0
      %7591 = vmatpush1.bf16.msra.mxu0 %v7476
      %7592 = vmatprep.subr.bf16.mxu0 0
      %7593 = vmatpush1.bf16.msra.mxu0 %v7477
      %7594 = vmatprep.subr.bf16.mxu0 0
      %7595 = vmatpush1.bf16.msra.mxu0 %v7478
      %7596 = vmatprep.subr.bf16.mxu0 0
      %7597 = vmatpush1.bf16.msra.mxu0 %v7479
      %7598 = vmatprep.subr.bf16.mxu0 0
      %7599 = vmatpush1.bf16.msra.mxu0 %v7480
      %7600 = vmatprep.mubr.bf16.mxu0 %v7248
      %7601 = vmatmul.mubr.bf16.gmra.mrb[0].mxu0 %v7247
      %v7602 = vpop.f32.mrb[0].mxu0
      %v7603 = vadd.f32 %v7548, %v7602
      %v7604 = vpop.f32.mrb[0].mxu0
      %v7605 = vpop.f32.mrb[0].mxu0
      %v7606 = vadd.f32 %v7551, %v7605
      %v7607 = vpop.f32.mrb[0].mxu0
      %7608 = vmatprep.mubr.bf16.mxu0 %v7252
      %7609 = vmatmul.mubr.bf16.gmra.mrb[0].mxu0 %v7251
      %v7610 = vpop.f32.mrb[0].mxu0
      %v7611 = vadd.f32 %v7556, %v7610
      %v7612 = vpop.f32.mrb[0].mxu0
      %v7613 = vpop.f32.mrb[0].mxu0
      %v7614 = vadd.f32 %v7559, %v7613
      %v7615 = vpop.f32.mrb[0].mxu0
      %7616 = vmatprep.mubr.bf16.mxu0 %v7256
      %7617 = vmatmul.mubr.bf16.gmra.mrb[0].mxu0 %v7255
      %v7618 = vpop.f32.mrb[0].mxu0
      %v7619 = vpop.f32.mrb[0].mxu0
      %v7620 = vpop.f32.mrb[0].mxu0
      %v7621 = vpop.f32.mrb[0].mxu0
      %7622 = vdwg.mxu0
      %v7687 = vunpack.c.l.b16 %v6889
      %v7688 = vunpack.c.l.b16 %v6890
      %v7689 = vunpack.c.l.b16 %v6891
      %v7690 = vunpack.c.l.b16 %v6892
      %v7691 = vunpack.c.l.b16 %v6893
      %v7692 = vunpack.c.l.b16 %v6894
      %v7693 = vunpack.c.l.b16 %v6895
      %v7694 = vunpack.c.l.b16 %v6896
      %v7695 = vunpack.c.l.b16 %v6897
      %v7696 = vunpack.c.l.b16 %v6898
      %v7697 = vunpack.c.l.b16 %v6899
      %v7698 = vunpack.c.l.b16 %v6900
      %v7699 = vunpack.c.l.b16 %v6901
      %v7700 = vunpack.c.l.b16 %v6902
      %v7701 = vunpack.c.l.b16 %v6903
      %v7702 = vunpack.c.l.b16 %v6904
      %v7703 = vunpack.c.l.b16 %v6905
      %v7704 = vunpack.c.l.b16 %v6906
      %v7705 = vunpack.c.l.b16 %v6907
      %v7706 = vunpack.c.l.b16 %v6908
      %v7707 = vunpack.c.l.b16 %v6909
      %v7708 = vunpack.c.l.b16 %v6910
      %v7709 = vunpack.c.l.b16 %v6911
      %v7710 = vunpack.c.l.b16 %v6912
      %v7711 = vunpack.c.l.b16 %v6913
      %v7712 = vunpack.c.l.b16 %v6914
      %v7713 = vunpack.c.l.b16 %v6915
      %v7714 = vunpack.c.l.b16 %v6916
      %v7715 = vunpack.c.l.b16 %v6917
      %v7716 = vunpack.c.l.b16 %v6918
      %v7717 = vunpack.c.l.b16 %v6919
      %v7718 = vunpack.c.l.b16 %v6920
      %v7719 = vunpack.c.l.b16 %v6921
      %v7720 = vunpack.c.l.b16 %v6922
      %v7721 = vunpack.c.l.b16 %v6923
      %v7722 = vunpack.c.l.b16 %v6924
      %v7723 = vunpack.c.l.b16 %v6925
      %v7724 = vunpack.c.l.b16 %v6926
      %v7725 = vunpack.c.l.b16 %v6927
      %v7726 = vunpack.c.l.b16 %v6928
      %v7727 = vunpack.c.l.b16 %v6929
      %v7728 = vunpack.c.l.b16 %v6930
      %v7729 = vunpack.c.l.b16 %v6931
      %v7730 = vunpack.c.l.b16 %v6932
      %v7731 = vunpack.c.l.b16 %v6933
      %v7732 = vunpack.c.l.b16 %v6934
      %v7733 = vunpack.c.l.b16 %v6935
      %v7734 = vunpack.c.l.b16 %v6936
      %v7735 = vunpack.c.l.b16 %v6937
      %v7736 = vunpack.c.l.b16 %v6938
      %v7737 = vunpack.c.l.b16 %v6939
      %v7738 = vunpack.c.l.b16 %v6940
      %v7739 = vunpack.c.l.b16 %v6941
      %v7740 = vunpack.c.l.b16 %v6942
      %v7741 = vunpack.c.l.b16 %v6943
      %v7742 = vunpack.c.l.b16 %v6944
      %v7743 = vunpack.c.l.b16 %v6945
      %v7744 = vunpack.c.l.b16 %v6946
      %v7745 = vunpack.c.l.b16 %v6947
      %v7746 = vunpack.c.l.b16 %v6948
      %v7747 = vunpack.c.l.b16 %v6949
      %v7748 = vunpack.c.l.b16 %v6950
      %v7749 = vunpack.c.l.b16 %v6951
      %v7750 = vunpack.c.l.b16 %v6952
      %v7751 = vpack.c.b16 %v7688, %v7687
      %v7752 = vpack.c.b16 %v7690, %v7689
      %v7753 = vpack.c.b16 %v7692, %v7691
      %v7754 = vpack.c.b16 %v7694, %v7693
      %v7755 = vpack.c.b16 %v7696, %v7695
      %v7756 = vpack.c.b16 %v7698, %v7697
      %v7757 = vpack.c.b16 %v7700, %v7699
      %v7758 = vpack.c.b16 %v7702, %v7701
      %v7759 = vpack.c.b16 %v7704, %v7703
      %v7760 = vpack.c.b16 %v7706, %v7705
      %v7761 = vpack.c.b16 %v7708, %v7707
      %v7762 = vpack.c.b16 %v7710, %v7709
      %v7763 = vpack.c.b16 %v7712, %v7711
      %v7764 = vpack.c.b16 %v7714, %v7713
      %v7765 = vpack.c.b16 %v7716, %v7715
      %v7766 = vpack.c.b16 %v7718, %v7717
      %v7767 = vpack.c.b16 %v7720, %v7719
      %v7768 = vpack.c.b16 %v7722, %v7721
      %v7769 = vpack.c.b16 %v7724, %v7723
      %v7770 = vpack.c.b16 %v7726, %v7725
      %v7771 = vpack.c.b16 %v7728, %v7727
      %v7772 = vpack.c.b16 %v7730, %v7729
      %v7773 = vpack.c.b16 %v7732, %v7731
      %v7774 = vpack.c.b16 %v7734, %v7733
      %v7775 = vpack.c.b16 %v7736, %v7735
      %v7776 = vpack.c.b16 %v7738, %v7737
      %v7777 = vpack.c.b16 %v7740, %v7739
      %v7778 = vpack.c.b16 %v7742, %v7741
      %v7779 = vpack.c.b16 %v7744, %v7743
      %v7780 = vpack.c.b16 %v7746, %v7745
      %v7781 = vpack.c.b16 %v7748, %v7747
      %v7782 = vpack.c.b16 %v7750, %v7749
      %7815 = vmatprep.subr.bf16.mxu0 0
      %7816 = vmatpush1.bf16.msra.mxu0 %v7751
      %7817 = vmatprep.subr.bf16.mxu0 0
      %7818 = vmatpush1.bf16.msra.mxu0 %v7752
      %7819 = vmatprep.subr.bf16.mxu0 0
      %7820 = vmatpush1.bf16.msra.mxu0 %v7753
      %7821 = vmatprep.subr.bf16.mxu0 0
      %7822 = vmatpush1.bf16.msra.mxu0 %v7754
      %7823 = vmatprep.subr.bf16.mxu0 0
      %7824 = vmatpush1.bf16.msra.mxu0 %v7755
      %7825 = vmatprep.subr.bf16.mxu0 0
      %7826 = vmatpush1.bf16.msra.mxu0 %v7756
      %7827 = vmatprep.subr.bf16.mxu0 0
      %7828 = vmatpush1.bf16.msra.mxu0 %v7757
      %7829 = vmatprep.subr.bf16.mxu0 0
      %7830 = vmatpush1.bf16.msra.mxu0 %v7758
      %7831 = vmatprep.subr.bf16.mxu0 0
      %7832 = vmatpush1.bf16.msra.mxu0 %v7759
      %7833 = vmatprep.subr.bf16.mxu0 0
      %7834 = vmatpush1.bf16.msra.mxu0 %v7760
      %7835 = vmatprep.subr.bf16.mxu0 0
      %7836 = vmatpush1.bf16.msra.mxu0 %v7761
      %7837 = vmatprep.subr.bf16.mxu0 0
      %7838 = vmatpush1.bf16.msra.mxu0 %v7762
      %7839 = vmatprep.subr.bf16.mxu0 0
      %7840 = vmatpush1.bf16.msra.mxu0 %v7763
      %7841 = vmatprep.subr.bf16.mxu0 0
      %7842 = vmatpush1.bf16.msra.mxu0 %v7764
      %7843 = vmatprep.subr.bf16.mxu0 0
      %7844 = vmatpush1.bf16.msra.mxu0 %v7765
      %7845 = vmatprep.subr.bf16.mxu0 0
      %7846 = vmatpush1.bf16.msra.mxu0 %v7766
      %7847 = vmatprep.mubr.bf16.mxu0 %v6877
      %7848 = vmatmul.mubr.bf16.gmra.mrb[0].mxu0 %v6876
      %v7849 = vpop.f32.mrb[0].mxu0
      %v7850 = vadd.f32 %v7603, %v7849
      %v7851 = vpop.f32.mrb[0].mxu0
      %v7852 = vpop.f32.mrb[0].mxu0
      %v7853 = vadd.f32 %v7606, %v7852
      %v7854 = vpop.f32.mrb[0].mxu0
      %7855 = vmatprep.mubr.bf16.mxu0 %v6881
      %7856 = vmatmul.mubr.bf16.gmra.mrb[0].mxu0 %v6880
      %v7857 = vpop.f32.mrb[0].mxu0
      %v7858 = vadd.f32 %v7611, %v7857
      %v7859 = vpop.f32.mrb[0].mxu0
      %v7860 = vpop.f32.mrb[0].mxu0
      %v7861 = vadd.f32 %v7614, %v7860
      %v7862 = vpop.f32.mrb[0].mxu0
      %7863 = vmatprep.mubr.bf16.mxu0 %v6885
      %7864 = vmatmul.mubr.bf16.gmra.mrb[0].mxu0 %v6884
      %v7865 = vpop.f32.mrb[0].mxu0
      %v7866 = vpop.f32.mrb[0].mxu0
      %v7867 = vpop.f32.mrb[0].mxu0
      %v7868 = vpop.f32.mrb[0].mxu0
      %7869 = vdwg.mxu0
      %7870 = vmatprep.subr.bf16.mxu0 0
      %7871 = vmatpush1.bf16.msra.mxu0 %v7767
      %7872 = vmatprep.subr.bf16.mxu0 0
      %7873 = vmatpush1.bf16.msra.mxu0 %v7768
      %7874 = vmatprep.subr.bf16.mxu0 0
      %7875 = vmatpush1.bf16.msra.mxu0 %v7769
      %7876 = vmatprep.subr.bf16.mxu0 0
      %7877 = vmatpush1.bf16.msra.mxu0 %v7770
      %7878 = vmatprep.subr.bf16.mxu0 0
      %7879 = vmatpush1.bf16.msra.mxu0 %v7771
      %7880 = vmatprep.subr.bf16.mxu0 0
      %7881 = vmatpush1.bf16.msra.mxu0 %v7772
      %7882 = vmatprep.subr.bf16.mxu0 0
      %7883 = vmatpush1.bf16.msra.mxu0 %v7773
      %7884 = vmatprep.subr.bf16.mxu0 0
      %7885 = vmatpush1.bf16.msra.mxu0 %v7774
      %7886 = vmatprep.subr.bf16.mxu0 0
      %7887 = vmatpush1.bf16.msra.mxu0 %v7775
      %7888 = vmatprep.subr.bf16.mxu0 0
      %7889 = vmatpush1.bf16.msra.mxu0 %v7776
      %7890 = vmatprep.subr.bf16.mxu0 0
      %7891 = vmatpush1.bf16.msra.mxu0 %v7777
      %7892 = vmatprep.subr.bf16.mxu0 0
      %7893 = vmatpush1.bf16.msra.mxu0 %v7778
      %7894 = vmatprep.subr.bf16.mxu0 0
      %7895 = vmatpush1.bf16.msra.mxu0 %v7779
      %7896 = vmatprep.subr.bf16.mxu0 0
      %7897 = vmatpush1.bf16.msra.mxu0 %v7780
      %7898 = vmatprep.subr.bf16.mxu0 0
      %7899 = vmatpush1.bf16.msra.mxu0 %v7781
      %7900 = vmatprep.subr.bf16.mxu0 0
      %7901 = vmatpush1.bf16.msra.mxu0 %v7782
      %7902 = vmatprep.mubr.bf16.mxu0 %v6879
      %7903 = vmatmul.mubr.bf16.gmra.mrb[0].mxu0 %v6878
      %v7904 = vpop.f32.mrb[0].mxu0
      %v7905 = vadd.f32 %v7850, %v7904
      %v7906 = vpop.f32.mrb[0].mxu0
      %v7907 = vpop.f32.mrb[0].mxu0
      %v7908 = vadd.f32 %v7853, %v7907
      %v7909 = vpop.f32.mrb[0].mxu0
      %7910 = vmatprep.mubr.bf16.mxu0 %v6883
      %7911 = vmatmul.mubr.bf16.gmra.mrb[0].mxu0 %v6882
      %v7912 = vpop.f32.mrb[0].mxu0
      %v7913 = vadd.f32 %v7858, %v7912
      %v7914 = vpop.f32.mrb[0].mxu0
      %v7915 = vpop.f32.mrb[0].mxu0
      %v7916 = vadd.f32 %v7861, %v7915
      %v7917 = vpop.f32.mrb[0].mxu0
      %7918 = vmatprep.mubr.bf16.mxu0 %v6887
      %7919 = vmatmul.mubr.bf16.gmra.mrb[0].mxu0 %v6886
      %v7920 = vpop.f32.mrb[0].mxu0
      %v7921 = vpop.f32.mrb[0].mxu0
      %v7922 = vpop.f32.mrb[0].mxu0
      %v7923 = vpop.f32.mrb[0].mxu0
      %7924 = vdwg.mxu0
      %v7925 = vld [vmem:[%s6573 + $0x20] sm:$0xff]
      %v7926 = vld [vmem:[%s6573 + $0x28] sm:$0xff]
      %v7927 = vld [vmem:[%s6573 + $0x60] sm:$0xff]
      %v7928 = vld [vmem:[%s6573 + $0x68] sm:$0xff]
      %v7929 = vld [vmem:[%s6573 + $0xa0] sm:$0xff]
      %v7930 = vld [vmem:[%s6573 + $0xa8] sm:$0xff]
      %v7931 = vld [vmem:[%s6573 + $0xe0] sm:$0xff]
      %v7932 = vld [vmem:[%s6573 + $0xe8] sm:$0xff]
      %v7933 = vld [vmem:[%s6582 + $0x8] sm:$0xf]
      %v7935 = vlaneseq
      %v7936 = vshrl.u32 %v7935, 7
      %v7937 = vsub.s32 0, %v7936
      %v7938 = vrot.slane %v7933, %v7937
      %v7939 = vlaneseq
      %v7940 = vshrl.u32 %v7939, 7
      %v7941 = vsub.s32 1, %v7940
      %v7942 = vrot.slane %v7933, %v7941
      %v7943 = vlaneseq
      %v7944 = vshrl.u32 %v7943, 7
      %v7945 = vsub.s32 2, %v7944
      %v7946 = vrot.slane %v7933, %v7945
      %v7947 = vlaneseq
      %v7948 = vshrl.u32 %v7947, 7
      %v7949 = vsub.s32 3, %v7948
      %v7950 = vrot.slane %v7933, %v7949
      %v7963 = vunpack.c.l.b16 %v7925
      %v7964 = vunpack.c.h.b16 %v7925
      %v7965 = vunpack.c.l.b16 %v7926
      %v7966 = vunpack.c.h.b16 %v7926
      %v7967 = vunpack.c.l.b16 %v7927
      %v7968 = vunpack.c.h.b16 %v7927
      %v7969 = vunpack.c.l.b16 %v7928
      %v7970 = vunpack.c.h.b16 %v7928
      %v7971 = vunpack.c.l.b16 %v7929
      %v7972 = vunpack.c.h.b16 %v7929
      %v7973 = vunpack.c.l.b16 %v7930
      %v7974 = vunpack.c.h.b16 %v7930
      %v7975 = vunpack.c.l.b16 %v7931
      %v7976 = vunpack.c.h.b16 %v7931
      %v7977 = vunpack.c.l.b16 %v7932
      %v7978 = vunpack.c.h.b16 %v7932
      %v7979 = vpack.c.b16 %v7967, %v7963
      %v7980 = vpack.c.b16 %v7968, %v7964
      %v7981 = vpack.c.b16 %v7969, %v7965
      %v7982 = vpack.c.b16 %v7970, %v7966
      %v7983 = vpack.c.b16 %v7975, %v7971
      %v7984 = vpack.c.b16 %v7976, %v7972
      %v7985 = vpack.c.b16 %v7977, %v7973
      %v7986 = vpack.c.b16 %v7978, %v7974
      %7995 = vmatprep.subr.bf16.mxu0 %v7980
      %7996 = vmatpush1.bf16.msra.mxu0 %v7979
      %7997 = vmatprep.subr.bf16.mxu0 %v7984
      %7998 = vmatpush1.bf16.msra.mxu0 %v7983
      %7999 = vmatprep.subr.bf16.mxu0 0
      %8000 = vmatpush1.bf16.msra.mxu0 0
      %8001 = vmatprep.subr.bf16.mxu0 0
      %8002 = vmatpush1.bf16.msra.mxu0 0
      %8003 = vmatprep.subr.bf16.mxu0 0
      %8004 = vmatpush1.bf16.msra.mxu0 0
      %8005 = vmatprep.subr.bf16.mxu0 0
      %8006 = vmatpush1.bf16.msra.mxu0 0
      %8007 = vmatprep.subr.bf16.mxu0 0
      %8008 = vmatpush1.bf16.msra.mxu0 0
      %8009 = vmatprep.subr.bf16.mxu0 0
      %8010 = vmatpush1.bf16.msra.mxu0 0
      %8011 = vmatprep.subr.bf16.mxu0 0
      %8012 = vmatpush1.bf16.msra.mxu0 0
      %8013 = vmatprep.subr.bf16.mxu0 0
      %8014 = vmatpush1.bf16.msra.mxu0 0
      %8015 = vmatprep.subr.bf16.mxu0 0
      %8016 = vmatpush1.bf16.msra.mxu0 0
      %8017 = vmatprep.subr.bf16.mxu0 0
      %8018 = vmatpush1.bf16.msra.mxu0 0
      %8019 = vmatprep.subr.bf16.mxu0 0
      %8020 = vmatpush1.bf16.msra.mxu0 0
      %8021 = vmatprep.subr.bf16.mxu0 0
      %8022 = vmatpush1.bf16.msra.mxu0 0
      %8023 = vmatprep.subr.bf16.mxu0 0
      %8024 = vmatpush1.bf16.msra.mxu0 0
      %8025 = vmatprep.subr.bf16.mxu0 0
      %8026 = vmatpush1.bf16.msra.mxu0 0
      %8027 = vmatprep.mubr.bf16.mxu0 0
      %8028 = vmatmul.mubr.bf16.gmra.mrb[0].mxu0 %v6646
      %v8029 = vpop.f32.mrb[0].mxu0
      %v8030 = vadd.f32 %v7938, %v8029
      %v8031 = vpop.f32.mrb[0].mxu0
      %v8032 = vadd.f32 %v7942, %v8031
      %v8033 = vpop.f32.mrb[0].mxu0
      %v8034 = vadd.f32 %v7938, %v8033
      %v8035 = vpop.f32.mrb[0].mxu0
      %v8036 = vadd.f32 %v7942, %v8035
      %8037 = vmatprep.mubr.bf16.mxu0 0
      %8038 = vmatmul.mubr.bf16.gmra.mrb[0].mxu0 %v6649
      %v8039 = vpop.f32.mrb[0].mxu0
      %v8040 = vadd.f32 %v7938, %v8039
      %v8041 = vpop.f32.mrb[0].mxu0
      %v8042 = vadd.f32 %v7942, %v8041
      %v8043 = vpop.f32.mrb[0].mxu0
      %v8044 = vadd.f32 %v7938, %v8043
      %v8045 = vpop.f32.mrb[0].mxu0
      %v8046 = vadd.f32 %v7942, %v8045
      %8047 = vmatprep.mubr.bf16.mxu0 0
      %8048 = vmatmul.mubr.bf16.gmra.mrb[0].mxu0 %v6652
      %v8049 = vpop.f32.mrb[0].mxu0
      %v8050 = vadd.f32 %v7938, %v8049
      %v8051 = vpop.f32.mrb[0].mxu0
      %v8052 = vadd.f32 %v7942, %v8051
      %v8053 = vpop.f32.mrb[0].mxu0
      %v8054 = vpop.f32.mrb[0].mxu0
      %8055 = vdwg.mxu0
      %8056 = vmatprep.subr.bf16.mxu0 %v7982
      %8057 = vmatpush1.bf16.msra.mxu0 %v7981
      %8058 = vmatprep.subr.bf16.mxu0 %v7986
      %8059 = vmatpush1.bf16.msra.mxu0 %v7985
      %8060 = vmatprep.subr.bf16.mxu0 0
      %8061 = vmatpush1.bf16.msra.mxu0 0
      %8062 = vmatprep.subr.bf16.mxu0 0
      %8063 = vmatpush1.bf16.msra.mxu0 0
      %8064 = vmatprep.subr.bf16.mxu0 0
      %8065 = vmatpush1.bf16.msra.mxu0 0
      %8066 = vmatprep.subr.bf16.mxu0 0
      %8067 = vmatpush1.bf16.msra.mxu0 0
      %8068 = vmatprep.subr.bf16.mxu0 0
      %8069 = vmatpush1.bf16.msra.mxu0 0
      %8070 = vmatprep.subr.bf16.mxu0 0
      %8071 = vmatpush1.bf16.msra.mxu0 0
      %8072 = vmatprep.subr.bf16.mxu0 0
      %8073 = vmatpush1.bf16.msra.mxu0 0
      %8074 = vmatprep.subr.bf16.mxu0 0
      %8075 = vmatpush1.bf16.msra.mxu0 0
      %8076 = vmatprep.subr.bf16.mxu0 0
      %8077 = vmatpush1.bf16.msra.mxu0 0
      %8078 = vmatprep.subr.bf16.mxu0 0
      %8079 = vmatpush1.bf16.msra.mxu0 0
      %8080 = vmatprep.subr.bf16.mxu0 0
      %8081 = vmatpush1.bf16.msra.mxu0 0
      %8082 = vmatprep.subr.bf16.mxu0 0
      %8083 = vmatpush1.bf16.msra.mxu0 0
      %8084 = vmatprep.subr.bf16.mxu0 0
      %8085 = vmatpush1.bf16.msra.mxu0 0
      %8086 = vmatprep.subr.bf16.mxu0 0
      %8087 = vmatpush1.bf16.msra.mxu0 0
      %8088 = vmatprep.mubr.bf16.mxu0 0
      %8089 = vmatmul.mubr.bf16.gmra.mrb[0].mxu0 %v6646
      %v8090 = vpop.f32.mrb[0].mxu0
      %v8091 = vadd.f32 %v7946, %v8090
      %v8092 = vpop.f32.mrb[0].mxu0
      %v8093 = vadd.f32 %v7950, %v8092
      %v8094 = vpop.f32.mrb[0].mxu0
      %v8095 = vadd.f32 %v7946, %v8094
      %v8096 = vpop.f32.mrb[0].mxu0
      %v8097 = vadd.f32 %v7950, %v8096
      %8098 = vmatprep.mubr.bf16.mxu0 0
      %8099 = vmatmul.mubr.bf16.gmra.mrb[0].mxu0 %v6649
      %v8100 = vpop.f32.mrb[0].mxu0
      %v8101 = vadd.f32 %v7946, %v8100
      %v8102 = vpop.f32.mrb[0].mxu0
      %v8103 = vadd.f32 %v7950, %v8102
      %v8104 = vpop.f32.mrb[0].mxu0
      %v8105 = vadd.f32 %v7946, %v8104
      %v8106 = vpop.f32.mrb[0].mxu0
      %v8107 = vadd.f32 %v7950, %v8106
      %8108 = vmatprep.mubr.bf16.mxu0 0
      %8109 = vmatmul.mubr.bf16.gmra.mrb[0].mxu0 %v6652
      %v8110 = vpop.f32.mrb[0].mxu0
      %v8111 = vadd.f32 %v7946, %v8110
      %v8112 = vpop.f32.mrb[0].mxu0
      %v8113 = vadd.f32 %v7950, %v8112
      %v8114 = vpop.f32.mrb[0].mxu0
      %v8115 = vpop.f32.mrb[0].mxu0
      %8116 = vdwg.mxu0
      %v8117 = vmul.f32 %v8030, 0.5
      %v8118 = vmul.f32 %v8032, 0.5
      %v8119 = vmul.f32 %v8091, 0.5
      %v8120 = vmul.f32 %v8093, 0.5
      %v8121 = vmul.f32 %v8034, 0.5
      %v8122 = vmul.f32 %v8036, 0.5
      %v8123 = vmul.f32 %v8095, 0.5
      %v8124 = vmul.f32 %v8097, 0.5
      %v8125 = vmul.f32 %v8040, 0.5
      %v8126 = vmul.f32 %v8042, 0.5
      %v8127 = vmul.f32 %v8101, 0.5
      %v8128 = vmul.f32 %v8103, 0.5
      %v8129 = vmul.f32 %v8044, 0.5
      %v8130 = vmul.f32 %v8046, 0.5
      %v8131 = vmul.f32 %v8105, 0.5
      %v8132 = vmul.f32 %v8107, 0.5
      %v8133 = vmul.f32 %v8050, 0.5
      %v8134 = vmul.f32 %v8052, 0.5
      %v8135 = vmul.f32 %v8111, 0.5
      %v8136 = vmul.f32 %v8113, 0.5
      %v8137 = vmul.f32 %v8030, 0.70710677
      %v8138 = vmul.f32 %v8032, 0.70710677
      %v8139 = vmul.f32 %v8091, 0.70710677
      %v8140 = vmul.f32 %v8093, 0.70710677
      %v8141 = vmul.f32 %v8034, 0.70710677
      %v8142 = vmul.f32 %v8036, 0.70710677
      %v8143 = vmul.f32 %v8095, 0.70710677
      %v8144 = vmul.f32 %v8097, 0.70710677
      %v8145 = vmul.f32 %v8040, 0.70710677
      %v8146 = vmul.f32 %v8042, 0.70710677
      %v8147 = vmul.f32 %v8101, 0.70710677
      %v8148 = vmul.f32 %v8103, 0.70710677
      %v8149 = vmul.f32 %v8044, 0.70710677
      %v8150 = vmul.f32 %v8046, 0.70710677
      %v8151 = vmul.f32 %v8105, 0.70710677
      %v8152 = vmul.f32 %v8107, 0.70710677
      %v8153 = vmul.f32 %v8050, 0.70710677
      %v8154 = vmul.f32 %v8052, 0.70710677
      %v8155 = vmul.f32 %v8111, 0.70710677
      %v8156 = vmul.f32 %v8113, 0.70710677
      %v8157 = verf.f32.pop %v8137
      %v8158 = verf.f32.pop %v8138
      %v8159 = verf.f32.pop %v8139
      %v8160 = verf.f32.pop %v8140
      %v8161 = verf.f32.pop %v8141
      %v8162 = verf.f32.pop %v8142
      %v8163 = verf.f32.pop %v8143
      %v8164 = verf.f32.pop %v8144
      %v8165 = verf.f32.pop %v8145
      %v8166 = verf.f32.pop %v8146
      %v8167 = verf.f32.pop %v8147
      %v8168 = verf.f32.pop %v8148
      %v8169 = verf.f32.pop %v8149
      %v8170 = verf.f32.pop %v8150
      %v8171 = verf.f32.pop %v8151
      %v8172 = verf.f32.pop %v8152
      %v8173 = verf.f32.pop %v8153
      %v8174 = verf.f32.pop %v8154
      %v8175 = verf.f32.pop %v8155
      %v8176 = verf.f32.pop %v8156
      %v8177 = vadd.f32 %v8157, 1.0
      %v8178 = vadd.f32 %v8158, 1.0
      %v8179 = vadd.f32 %v8159, 1.0
      %v8180 = vadd.f32 %v8160, 1.0
      %v8181 = vadd.f32 %v8161, 1.0
      %v8182 = vadd.f32 %v8162, 1.0
      %v8183 = vadd.f32 %v8163, 1.0
      %v8184 = vadd.f32 %v8164, 1.0
      %v8185 = vadd.f32 %v8165, 1.0
      %v8186 = vadd.f32 %v8166, 1.0
      %v8187 = vadd.f32 %v8167, 1.0
      %v8188 = vadd.f32 %v8168, 1.0
      %v8189 = vadd.f32 %v8169, 1.0
      %v8190 = vadd.f32 %v8170, 1.0
      %v8191 = vadd.f32 %v8171, 1.0
      %v8192 = vadd.f32 %v8172, 1.0
      %v8193 = vadd.f32 %v8173, 1.0
      %v8194 = vadd.f32 %v8174, 1.0
      %v8195 = vadd.f32 %v8175, 1.0
      %v8196 = vadd.f32 %v8176, 1.0
      %v8197 = vmul.f32 %v8117, %v8177
      %v8198 = vmul.f32 %v8118, %v8178
      %v8199 = vmul.f32 %v8119, %v8179
      %v8200 = vmul.f32 %v8120, %v8180
      %v8201 = vmul.f32 %v8121, %v8181
      %v8202 = vmul.f32 %v8122, %v8182
      %v8203 = vmul.f32 %v8123, %v8183
      %v8204 = vmul.f32 %v8124, %v8184
      %v8205 = vmul.f32 %v8125, %v8185
      %v8206 = vmul.f32 %v8126, %v8186
      %v8207 = vmul.f32 %v8127, %v8187
      %v8208 = vmul.f32 %v8128, %v8188
      %v8209 = vmul.f32 %v8129, %v8189
      %v8210 = vmul.f32 %v8130, %v8190
      %v8211 = vmul.f32 %v8131, %v8191
      %v8212 = vmul.f32 %v8132, %v8192
      %v8213 = vmul.f32 %v8133, %v8193
      %v8214 = vmul.f32 %v8134, %v8194
      %v8215 = vmul.f32 %v8135, %v8195
      %v8216 = vmul.f32 %v8136, %v8196
      %v8217 = vpack.c.bf16 %v8201, %v8197
      %v8218 = vpack.c.bf16 %v8202, %v8198
      %v8219 = vpack.c.bf16 %v8203, %v8199
      %v8220 = vpack.c.bf16 %v8204, %v8200
      %v8221 = vpack.c.bf16 %v8209, %v8205
      %v8222 = vpack.c.bf16 %v8210, %v8206
      %v8223 = vpack.c.bf16 %v8211, %v8207
      %v8224 = vpack.c.bf16 %v8212, %v8208
      %v8225 = vpack.c.bf16 %v8213, %v8213
      %v8226 = vpack.c.bf16 %v8214, %v8214
      %v8227 = vpack.c.bf16 %v8215, %v8215
      %v8228 = vpack.c.bf16 %v8216, %v8216
      %v8229 = vld [vmem:[%s6888 + $0x200] sm:$0xf]
      %v8230 = vld [vmem:[%s6888 + $0x204] sm:$0xf]
      %v8231 = vld [vmem:[%s6888 + $0x208] sm:$0xf]
      %v8232 = vld [vmem:[%s6888 + $0x20c] sm:$0xf]
      %v8233 = vld [vmem:[%s6888 + $0x210] sm:$0xf]
      %v8234 = vld [vmem:[%s6888 + $0x214] sm:$0xf]
      %v8235 = vld [vmem:[%s6888 + $0x218] sm:$0xf]
      %v8236 = vld [vmem:[%s6888 + $0x21c] sm:$0xf]
      %v8237 = vld [vmem:[%s6888 + $0x220] sm:$0xf]
      %v8238 = vld [vmem:[%s6888 + $0x224] sm:$0xf]
      %v8239 = vld [vmem:[%s6888 + $0x228] sm:$0xf]
      %v8240 = vld [vmem:[%s6888 + $0x22c] sm:$0xf]
      %v8241 = vld [vmem:[%s6888 + $0x230] sm:$0xf]
      %v8242 = vld [vmem:[%s6888 + $0x234] sm:$0xf]
      %v8243 = vld [vmem:[%s6888 + $0x238] sm:$0xf]
      %v8244 = vld [vmem:[%s6888 + $0x23c] sm:$0xf]
      %v8245 = vld [vmem:[%s6888 + $0x240] sm:$0xf]
      %v8246 = vld [vmem:[%s6888 + $0x244] sm:$0xf]
      %v8247 = vld [vmem:[%s6888 + $0x248] sm:$0xf]
      %v8248 = vld [vmem:[%s6888 + $0x24c] sm:$0xf]
      %v8249 = vld [vmem:[%s6888 + $0x250] sm:$0xf]
      %v8250 = vld [vmem:[%s6888 + $0x254] sm:$0xf]
      %v8251 = vld [vmem:[%s6888 + $0x258] sm:$0xf]
      %v8252 = vld [vmem:[%s6888 + $0x25c] sm:$0xf]
      %v8253 = vld [vmem:[%s6888 + $0x260] sm:$0xf]
      %v8254 = vld [vmem:[%s6888 + $0x264] sm:$0xf]
      %v8255 = vld [vmem:[%s6888 + $0x268] sm:$0xf]
      %v8256 = vld [vmem:[%s6888 + $0x26c] sm:$0xf]
      %v8257 = vld [vmem:[%s6888 + $0x270] sm:$0xf]
      %v8258 = vld [vmem:[%s6888 + $0x274] sm:$0xf]
      %v8259 = vld [vmem:[%s6888 + $0x278] sm:$0xf]
      %v8260 = vld [vmem:[%s6888 + $0x27c] sm:$0xf]
      %v8261 = vld [vmem:[%s6888 + $0x280] sm:$0xf]
      %v8262 = vld [vmem:[%s6888 + $0x284] sm:$0xf]
      %v8263 = vld [vmem:[%s6888 + $0x288] sm:$0xf]
      %v8264 = vld [vmem:[%s6888 + $0x28c] sm:$0xf]
      %v8265 = vld [vmem:[%s6888 + $0x290] sm:$0xf]
      %v8266 = vld [vmem:[%s6888 + $0x294] sm:$0xf]
      %v8267 = vld [vmem:[%s6888 + $0x298] sm:$0xf]
      %v8268 = vld [vmem:[%s6888 + $0x29c] sm:$0xf]
      %v8269 = vld [vmem:[%s6888 + $0x2a0] sm:$0xf]
      %v8270 = vld [vmem:[%s6888 + $0x2a4] sm:$0xf]
      %v8271 = vld [vmem:[%s6888 + $0x2a8] sm:$0xf]
      %v8272 = vld [vmem:[%s6888 + $0x2ac] sm:$0xf]
      %v8273 = vld [vmem:[%s6888 + $0x2b0] sm:$0xf]
      %v8274 = vld [vmem:[%s6888 + $0x2b4] sm:$0xf]
      %v8275 = vld [vmem:[%s6888 + $0x2b8] sm:$0xf]
      %v8276 = vld [vmem:[%s6888 + $0x2bc] sm:$0xf]
      %v8277 = vld [vmem:[%s6888 + $0x2c0] sm:$0xf]
      %v8278 = vld [vmem:[%s6888 + $0x2c4] sm:$0xf]
      %v8279 = vld [vmem:[%s6888 + $0x2c8] sm:$0xf]
      %v8280 = vld [vmem:[%s6888 + $0x2cc] sm:$0xf]
      %v8281 = vld [vmem:[%s6888 + $0x2d0] sm:$0xf]
      %v8282 = vld [vmem:[%s6888 + $0x2d4] sm:$0xf]
      %v8283 = vld [vmem:[%s6888 + $0x2d8] sm:$0xf]
      %v8284 = vld [vmem:[%s6888 + $0x2dc] sm:$0xf]
      %v8285 = vld [vmem:[%s6888 + $0x2e0] sm:$0xf]
      %v8286 = vld [vmem:[%s6888 + $0x2e4] sm:$0xf]
      %v8287 = vld [vmem:[%s6888 + $0x2e8] sm:$0xf]
      %v8288 = vld [vmem:[%s6888 + $0x2ec] sm:$0xf]
      %v8289 = vld [vmem:[%s6888 + $0x2f0] sm:$0xf]
      %v8290 = vld [vmem:[%s6888 + $0x2f4] sm:$0xf]
      %v8291 = vld [vmem:[%s6888 + $0x2f8] sm:$0xf]
      %v8292 = vld [vmem:[%s6888 + $0x2fc] sm:$0xf]
      %v8357 = vunpack.c.l.b16 %v8229
      %v8358 = vunpack.c.l.b16 %v8230
      %v8359 = vunpack.c.l.b16 %v8231
      %v8360 = vunpack.c.l.b16 %v8232
      %v8361 = vunpack.c.l.b16 %v8233
      %v8362 = vunpack.c.l.b16 %v8234
      %v8363 = vunpack.c.l.b16 %v8235
      %v8364 = vunpack.c.l.b16 %v8236
      %v8365 = vunpack.c.l.b16 %v8237
      %v8366 = vunpack.c.l.b16 %v8238
      %v8367 = vunpack.c.l.b16 %v8239
      %v8368 = vunpack.c.l.b16 %v8240
      %v8369 = vunpack.c.l.b16 %v8241
      %v8370 = vunpack.c.l.b16 %v8242
      %v8371 = vunpack.c.l.b16 %v8243
      %v8372 = vunpack.c.l.b16 %v8244
      %v8373 = vunpack.c.l.b16 %v8245
      %v8374 = vunpack.c.l.b16 %v8246
      %v8375 = vunpack.c.l.b16 %v8247
      %v8376 = vunpack.c.l.b16 %v8248
      %v8377 = vunpack.c.l.b16 %v8249
      %v8378 = vunpack.c.l.b16 %v8250
      %v8379 = vunpack.c.l.b16 %v8251
      %v8380 = vunpack.c.l.b16 %v8252
      %v8381 = vunpack.c.l.b16 %v8253
      %v8382 = vunpack.c.l.b16 %v8254
      %v8383 = vunpack.c.l.b16 %v8255
      %v8384 = vunpack.c.l.b16 %v8256
      %v8385 = vunpack.c.l.b16 %v8257
      %v8386 = vunpack.c.l.b16 %v8258
      %v8387 = vunpack.c.l.b16 %v8259
      %v8388 = vunpack.c.l.b16 %v8260
      %v8389 = vunpack.c.l.b16 %v8261
      %v8390 = vunpack.c.l.b16 %v8262
      %v8391 = vunpack.c.l.b16 %v8263
      %v8392 = vunpack.c.l.b16 %v8264
      %v8393 = vunpack.c.l.b16 %v8265
      %v8394 = vunpack.c.l.b16 %v8266
      %v8395 = vunpack.c.l.b16 %v8267
      %v8396 = vunpack.c.l.b16 %v8268
      %v8397 = vunpack.c.l.b16 %v8269
      %v8398 = vunpack.c.l.b16 %v8270
      %v8399 = vunpack.c.l.b16 %v8271
      %v8400 = vunpack.c.l.b16 %v8272
      %v8401 = vunpack.c.l.b16 %v8273
      %v8402 = vunpack.c.l.b16 %v8274
      %v8403 = vunpack.c.l.b16 %v8275
      %v8404 = vunpack.c.l.b16 %v8276
      %v8405 = vunpack.c.l.b16 %v8277
      %v8406 = vunpack.c.l.b16 %v8278
      %v8407 = vunpack.c.l.b16 %v8279
      %v8408 = vunpack.c.l.b16 %v8280
      %v8409 = vunpack.c.l.b16 %v8281
      %v8410 = vunpack.c.l.b16 %v8282
      %v8411 = vunpack.c.l.b16 %v8283
      %v8412 = vunpack.c.l.b16 %v8284
      %v8413 = vunpack.c.l.b16 %v8285
      %v8414 = vunpack.c.l.b16 %v8286
      %v8415 = vunpack.c.l.b16 %v8287
      %v8416 = vunpack.c.l.b16 %v8288
      %v8417 = vunpack.c.l.b16 %v8289
      %v8418 = vunpack.c.l.b16 %v8290
      %v8419 = vunpack.c.l.b16 %v8291
      %v8420 = vunpack.c.l.b16 %v8292
      %v8421 = vpack.c.b16 %v8358, %v8357
      %v8422 = vpack.c.b16 %v8360, %v8359
      %v8423 = vpack.c.b16 %v8362, %v8361
      %v8424 = vpack.c.b16 %v8364, %v8363
      %v8425 = vpack.c.b16 %v8366, %v8365
      %v8426 = vpack.c.b16 %v8368, %v8367
      %v8427 = vpack.c.b16 %v8370, %v8369
      %v8428 = vpack.c.b16 %v8372, %v8371
      %v8429 = vpack.c.b16 %v8374, %v8373
      %v8430 = vpack.c.b16 %v8376, %v8375
      %v8431 = vpack.c.b16 %v8378, %v8377
      %v8432 = vpack.c.b16 %v8380, %v8379
      %v8433 = vpack.c.b16 %v8382, %v8381
      %v8434 = vpack.c.b16 %v8384, %v8383
      %v8435 = vpack.c.b16 %v8386, %v8385
      %v8436 = vpack.c.b16 %v8388, %v8387
      %v8437 = vpack.c.b16 %v8390, %v8389
      %v8438 = vpack.c.b16 %v8392, %v8391
      %v8439 = vpack.c.b16 %v8394, %v8393
      %v8440 = vpack.c.b16 %v8396, %v8395
      %v8441 = vpack.c.b16 %v8398, %v8397
      %v8442 = vpack.c.b16 %v8400, %v8399
      %v8443 = vpack.c.b16 %v8402, %v8401
      %v8444 = vpack.c.b16 %v8404, %v8403
      %v8445 = vpack.c.b16 %v8406, %v8405
      %v8446 = vpack.c.b16 %v8408, %v8407
      %v8447 = vpack.c.b16 %v8410, %v8409
      %v8448 = vpack.c.b16 %v8412, %v8411
      %v8449 = vpack.c.b16 %v8414, %v8413
      %v8450 = vpack.c.b16 %v8416, %v8415
      %v8451 = vpack.c.b16 %v8418, %v8417
      %v8452 = vpack.c.b16 %v8420, %v8419
      %8485 = vmatprep.subr.bf16.mxu0 0
      %8486 = vmatpush1.bf16.msra.mxu0 %v8421
      %8487 = vmatprep.subr.bf16.mxu0 0
      %8488 = vmatpush1.bf16.msra.mxu0 %v8422
      %8489 = vmatprep.subr.bf16.mxu0 0
      %8490 = vmatpush1.bf16.msra.mxu0 %v8423
      %8491 = vmatprep.subr.bf16.mxu0 0
      %8492 = vmatpush1.bf16.msra.mxu0 %v8424
      %8493 = vmatprep.subr.bf16.mxu0 0
      %8494 = vmatpush1.bf16.msra.mxu0 %v8425
      %8495 = vmatprep.subr.bf16.mxu0 0
      %8496 = vmatpush1.bf16.msra.mxu0 %v8426
      %8497 = vmatprep.subr.bf16.mxu0 0
      %8498 = vmatpush1.bf16.msra.mxu0 %v8427
      %8499 = vmatprep.subr.bf16.mxu0 0
      %8500 = vmatpush1.bf16.msra.mxu0 %v8428
      %8501 = vmatprep.subr.bf16.mxu0 0
      %8502 = vmatpush1.bf16.msra.mxu0 %v8429
      %8503 = vmatprep.subr.bf16.mxu0 0
      %8504 = vmatpush1.bf16.msra.mxu0 %v8430
      %8505 = vmatprep.subr.bf16.mxu0 0
      %8506 = vmatpush1.bf16.msra.mxu0 %v8431
      %8507 = vmatprep.subr.bf16.mxu0 0
      %8508 = vmatpush1.bf16.msra.mxu0 %v8432
      %8509 = vmatprep.subr.bf16.mxu0 0
      %8510 = vmatpush1.bf16.msra.mxu0 %v8433
      %8511 = vmatprep.subr.bf16.mxu0 0
      %8512 = vmatpush1.bf16.msra.mxu0 %v8434
      %8513 = vmatprep.subr.bf16.mxu0 0
      %8514 = vmatpush1.bf16.msra.mxu0 %v8435
      %8515 = vmatprep.subr.bf16.mxu0 0
      %8516 = vmatpush1.bf16.msra.mxu0 %v8436
      %8517 = vmatprep.mubr.bf16.mxu0 %v8218
      %8518 = vmatmul.mubr.bf16.gmra.mrb[0].mxu0 %v8217
      %v8519 = vpop.f32.mrb[0].mxu0
      %v8520 = vadd.f32 0.0, %v8519
      %v8521 = vpop.f32.mrb[0].mxu0
      %v8522 = vpop.f32.mrb[0].mxu0
      %v8523 = vadd.f32 0.0, %v8522
      %v8524 = vpop.f32.mrb[0].mxu0
      %8525 = vmatprep.mubr.bf16.mxu0 %v8222
      %8526 = vmatmul.mubr.bf16.gmra.mrb[0].mxu0 %v8221
      %v8527 = vpop.f32.mrb[0].mxu0
      %v8528 = vadd.f32 0.0, %v8527
      %v8529 = vpop.f32.mrb[0].mxu0
      %v8530 = vpop.f32.mrb[0].mxu0
      %v8531 = vadd.f32 0.0, %v8530
      %v8532 = vpop.f32.mrb[0].mxu0
      %8533 = vmatprep.mubr.bf16.mxu0 %v8226
      %8534 = vmatmul.mubr.bf16.gmra.mrb[0].mxu0 %v8225
      %v8535 = vpop.f32.mrb[0].mxu0
      %v8536 = vpop.f32.mrb[0].mxu0
      %v8537 = vpop.f32.mrb[0].mxu0
      %v8538 = vpop.f32.mrb[0].mxu0
      %8539 = vdwg.mxu0
      %8540 = vmatprep.subr.bf16.mxu0 0
      %8541 = vmatpush1.bf16.msra.mxu0 %v8437
      %8542 = vmatprep.subr.bf16.mxu0 0
      %8543 = vmatpush1.bf16.msra.mxu0 %v8438
      %8544 = vmatprep.subr.bf16.mxu0 0
      %8545 = vmatpush1.bf16.msra.mxu0 %v8439
      %8546 = vmatprep.subr.bf16.mxu0 0
      %8547 = vmatpush1.bf16.msra.mxu0 %v8440
      %8548 = vmatprep.subr.bf16.mxu0 0
      %8549 = vmatpush1.bf16.msra.mxu0 %v8441
      %8550 = vmatprep.subr.bf16.mxu0 0
      %8551 = vmatpush1.bf16.msra.mxu0 %v8442
      %8552 = vmatprep.subr.bf16.mxu0 0
      %8553 = vmatpush1.bf16.msra.mxu0 %v8443
      %8554 = vmatprep.subr.bf16.mxu0 0
      %8555 = vmatpush1.bf16.msra.mxu0 %v8444
      %8556 = vmatprep.subr.bf16.mxu0 0
      %8557 = vmatpush1.bf16.msra.mxu0 %v8445
      %8558 = vmatprep.subr.bf16.mxu0 0
      %8559 = vmatpush1.bf16.msra.mxu0 %v8446
      %8560 = vmatprep.subr.bf16.mxu0 0
      %8561 = vmatpush1.bf16.msra.mxu0 %v8447
      %8562 = vmatprep.subr.bf16.mxu0 0
      %8563 = vmatpush1.bf16.msra.mxu0 %v8448
      %8564 = vmatprep.subr.bf16.mxu0 0
      %8565 = vmatpush1.bf16.msra.mxu0 %v8449
      %8566 = vmatprep.subr.bf16.mxu0 0
      %8567 = vmatpush1.bf16.msra.mxu0 %v8450
      %8568 = vmatprep.subr.bf16.mxu0 0
      %8569 = vmatpush1.bf16.msra.mxu0 %v8451
      %8570 = vmatprep.subr.bf16.mxu0 0
      %8571 = vmatpush1.bf16.msra.mxu0 %v8452
      %8572 = vmatprep.mubr.bf16.mxu0 %v8220
      %8573 = vmatmul.mubr.bf16.gmra.mrb[0].mxu0 %v8219
      %v8574 = vpop.f32.mrb[0].mxu0
      %v8575 = vadd.f32 %v8520, %v8574
      %v8576 = vpop.f32.mrb[0].mxu0
      %v8577 = vpop.f32.mrb[0].mxu0
      %v8578 = vadd.f32 %v8523, %v8577
      %v8579 = vpop.f32.mrb[0].mxu0
      %8580 = vmatprep.mubr.bf16.mxu0 %v8224
      %8581 = vmatmul.mubr.bf16.gmra.mrb[0].mxu0 %v8223
      %v8582 = vpop.f32.mrb[0].mxu0
      %v8583 = vadd.f32 %v8528, %v8582
      %v8584 = vpop.f32.mrb[0].mxu0
      %v8585 = vpop.f32.mrb[0].mxu0
      %v8586 = vadd.f32 %v8531, %v8585
      %v8587 = vpop.f32.mrb[0].mxu0
      %8588 = vmatprep.mubr.bf16.mxu0 %v8228
      %8589 = vmatmul.mubr.bf16.gmra.mrb[0].mxu0 %v8227
      %v8590 = vpop.f32.mrb[0].mxu0
      %v8591 = vpop.f32.mrb[0].mxu0
      %v8592 = vpop.f32.mrb[0].mxu0
      %v8593 = vpop.f32.mrb[0].mxu0
      %8594 = vdwg.mxu0
      %v8595 = vadd.f32 %v7905, %v8575
      %v8596 = vadd.f32 %v7908, %v8578
      %v8597 = vadd.f32 %v7913, %v8583
      %v8598 = vadd.f32 %v7916, %v8586
      %v8599 = vld [vmem:[%s6573 + $0x30] sm:$0xff]
      %v8600 = vld [vmem:[%s6573 + $0x38] sm:$0xff]
      %v8601 = vld [vmem:[%s6573 + $0x70] sm:$0xff]
      %v8602 = vld [vmem:[%s6573 + $0x78] sm:$0xff]
      %v8603 = vld [vmem:[%s6573 + $0xb0] sm:$0xff]
      %v8604 = vld [vmem:[%s6573 + $0xb8] sm:$0xff]
      %v8605 = vld [vmem:[%s6573 + $0xf0] sm:$0xff]
      %v8606 = vld [vmem:[%s6573 + $0xf8] sm:$0xff]
      %v8607 = vld [vmem:[%s6582 + $0xc] sm:$0xf]
      %v8609 = vlaneseq
      %v8610 = vshrl.u32 %v8609, 7
      %v8611 = vsub.s32 0, %v8610
      %v8612 = vrot.slane %v8607, %v8611
      %v8613 = vlaneseq
      %v8614 = vshrl.u32 %v8613, 7
      %v8615 = vsub.s32 1, %v8614
      %v8616 = vrot.slane %v8607, %v8615
      %v8617 = vlaneseq
      %v8618 = vshrl.u32 %v8617, 7
      %v8619 = vsub.s32 2, %v8618
      %v8620 = vrot.slane %v8607, %v8619
      %v8621 = vlaneseq
      %v8622 = vshrl.u32 %v8621, 7
      %v8623 = vsub.s32 3, %v8622
      %v8624 = vrot.slane %v8607, %v8623
      %v8637 = vunpack.c.l.b16 %v8599
      %v8638 = vunpack.c.h.b16 %v8599
      %v8639 = vunpack.c.l.b16 %v8600
      %v8640 = vunpack.c.h.b16 %v8600
      %v8641 = vunpack.c.l.b16 %v8601
      %v8642 = vunpack.c.h.b16 %v8601
      %v8643 = vunpack.c.l.b16 %v8602
      %v8644 = vunpack.c.h.b16 %v8602
      %v8645 = vunpack.c.l.b16 %v8603
      %v8646 = vunpack.c.h.b16 %v8603
      %v8647 = vunpack.c.l.b16 %v8604
      %v8648 = vunpack.c.h.b16 %v8604
      %v8649 = vunpack.c.l.b16 %v8605
      %v8650 = vunpack.c.h.b16 %v8605
      %v8651 = vunpack.c.l.b16 %v8606
      %v8652 = vunpack.c.h.b16 %v8606
      %v8653 = vpack.c.b16 %v8641, %v8637
      %v8654 = vpack.c.b16 %v8642, %v8638
      %v8655 = vpack.c.b16 %v8643, %v8639
      %v8656 = vpack.c.b16 %v8644, %v8640
      %v8657 = vpack.c.b16 %v8649, %v8645
      %v8658 = vpack.c.b16 %v8650, %v8646
      %v8659 = vpack.c.b16 %v8651, %v8647
      %v8660 = vpack.c.b16 %v8652, %v8648
      %8669 = vmatprep.subr.bf16.mxu0 %v8654
      %8670 = vmatpush1.bf16.msra.mxu0 %v8653
      %8671 = vmatprep.subr.bf16.mxu0 %v8658
      %8672 = vmatpush1.bf16.msra.mxu0 %v8657
      %8673 = vmatprep.subr.bf16.mxu0 0
      %8674 = vmatpush1.bf16.msra.mxu0 0
      %8675 = vmatprep.subr.bf16.mxu0 0
      %8676 = vmatpush1.bf16.msra.mxu0 0
      %8677 = vmatprep.subr.bf16.mxu0 0
      %8678 = vmatpush1.bf16.msra.mxu0 0
      %8679 = vmatprep.subr.bf16.mxu0 0
      %8680 = vmatpush1.bf16.msra.mxu0 0
      %8681 = vmatprep.subr.bf16.mxu0 0
      %8682 = vmatpush1.bf16.msra.mxu0 0
      %8683 = vmatprep.subr.bf16.mxu0 0
      %8684 = vmatpush1.bf16.msra.mxu0 0
      %8685 = vmatprep.subr.bf16.mxu0 0
      %8686 = vmatpush1.bf16.msra.mxu0 0
      %8687 = vmatprep.subr.bf16.mxu0 0
      %8688 = vmatpush1.bf16.msra.mxu0 0
      %8689 = vmatprep.subr.bf16.mxu0 0
      %8690 = vmatpush1.bf16.msra.mxu0 0
      %8691 = vmatprep.subr.bf16.mxu0 0
      %8692 = vmatpush1.bf16.msra.mxu0 0
      %8693 = vmatprep.subr.bf16.mxu0 0
      %8694 = vmatpush1.bf16.msra.mxu0 0
      %8695 = vmatprep.subr.bf16.mxu0 0
      %8696 = vmatpush1.bf16.msra.mxu0 0
      %8697 = vmatprep.subr.bf16.mxu0 0
      %8698 = vmatpush1.bf16.msra.mxu0 0
      %8699 = vmatprep.subr.bf16.mxu0 0
      %8700 = vmatpush1.bf16.msra.mxu0 0
      %8701 = vmatprep.mubr.bf16.mxu0 0
      %8702 = vmatmul.mubr.bf16.gmra.mrb[0].mxu0 %v6646
      %v8703 = vpop.f32.mrb[0].mxu0
      %v8704 = vadd.f32 %v8612, %v8703
      %v8705 = vpop.f32.mrb[0].mxu0
      %v8706 = vadd.f32 %v8616, %v8705
      %v8707 = vpop.f32.mrb[0].mxu0
      %v8708 = vadd.f32 %v8612, %v8707
      %v8709 = vpop.f32.mrb[0].mxu0
      %v8710 = vadd.f32 %v8616, %v8709
      %8711 = vmatprep.mubr.bf16.mxu0 0
      %8712 = vmatmul.mubr.bf16.gmra.mrb[0].mxu0 %v6649
      %v8713 = vpop.f32.mrb[0].mxu0
      %v8714 = vadd.f32 %v8612, %v8713
      %v8715 = vpop.f32.mrb[0].mxu0
      %v8716 = vadd.f32 %v8616, %v8715
      %v8717 = vpop.f32.mrb[0].mxu0
      %v8718 = vadd.f32 %v8612, %v8717
      %v8719 = vpop.f32.mrb[0].mxu0
      %v8720 = vadd.f32 %v8616, %v8719
      %8721 = vmatprep.mubr.bf16.mxu0 0
      %8722 = vmatmul.mubr.bf16.gmra.mrb[0].mxu0 %v6652
      %v8723 = vpop.f32.mrb[0].mxu0
      %v8724 = vadd.f32 %v8612, %v8723
      %v8725 = vpop.f32.mrb[0].mxu0
      %v8726 = vadd.f32 %v8616, %v8725
      %v8727 = vpop.f32.mrb[0].mxu0
      %v8728 = vpop.f32.mrb[0].mxu0
      %8729 = vdwg.mxu0
      %8730 = vmatprep.subr.bf16.mxu0 %v8656
      %8731 = vmatpush1.bf16.msra.mxu0 %v8655
      %8732 = vmatprep.subr.bf16.mxu0 %v8660
      %8733 = vmatpush1.bf16.msra.mxu0 %v8659
      %8734 = vmatprep.subr.bf16.mxu0 0
      %8735 = vmatpush1.bf16.msra.mxu0 0
      %8736 = vmatprep.subr.bf16.mxu0 0
      %8737 = vmatpush1.bf16.msra.mxu0 0
      %8738 = vmatprep.subr.bf16.mxu0 0
      %8739 = vmatpush1.bf16.msra.mxu0 0
      %8740 = vmatprep.subr.bf16.mxu0 0
      %8741 = vmatpush1.bf16.msra.mxu0 0
      %8742 = vmatprep.subr.bf16.mxu0 0
      %8743 = vmatpush1.bf16.msra.mxu0 0
      %8744 = vmatprep.subr.bf16.mxu0 0
      %8745 = vmatpush1.bf16.msra.mxu0 0
      %8746 = vmatprep.subr.bf16.mxu0 0
      %8747 = vmatpush1.bf16.msra.mxu0 0
      %8748 = vmatprep.subr.bf16.mxu0 0
      %8749 = vmatpush1.bf16.msra.mxu0 0
      %8750 = vmatprep.subr.bf16.mxu0 0
      %8751 = vmatpush1.bf16.msra.mxu0 0
      %8752 = vmatprep.subr.bf16.mxu0 0
      %8753 = vmatpush1.bf16.msra.mxu0 0
      %8754 = vmatprep.subr.bf16.mxu0 0
      %8755 = vmatpush1.bf16.msra.mxu0 0
      %8756 = vmatprep.subr.bf16.mxu0 0
      %8757 = vmatpush1.bf16.msra.mxu0 0
      %8758 = vmatprep.subr.bf16.mxu0 0
      %8759 = vmatpush1.bf16.msra.mxu0 0
      %8760 = vmatprep.subr.bf16.mxu0 0
      %8761 = vmatpush1.bf16.msra.mxu0 0
      %8762 = vmatprep.mubr.bf16.mxu0 0
      %8763 = vmatmul.mubr.bf16.gmra.mrb[0].mxu0 %v6646
      %v8764 = vpop.f32.mrb[0].mxu0
      %v8765 = vadd.f32 %v8620, %v8764
      %v8766 = vpop.f32.mrb[0].mxu0
      %v8767 = vadd.f32 %v8624, %v8766
      %v8768 = vpop.f32.mrb[0].mxu0
      %v8769 = vadd.f32 %v8620, %v8768
      %v8770 = vpop.f32.mrb[0].mxu0
      %v8771 = vadd.f32 %v8624, %v8770
      %8772 = vmatprep.mubr.bf16.mxu0 0
      %8773 = vmatmul.mubr.bf16.gmra.mrb[0].mxu0 %v6649
      %v8774 = vpop.f32.mrb[0].mxu0
      %v8775 = vadd.f32 %v8620, %v8774
      %v8776 = vpop.f32.mrb[0].mxu0
      %v8777 = vadd.f32 %v8624, %v8776
      %v8778 = vpop.f32.mrb[0].mxu0
      %v8779 = vadd.f32 %v8620, %v8778
      %v8780 = vpop.f32.mrb[0].mxu0
      %v8781 = vadd.f32 %v8624, %v8780
      %8782 = vmatprep.mubr.bf16.mxu0 0
      %8783 = vmatmul.mubr.bf16.gmra.mrb[0].mxu0 %v6652
      %v8784 = vpop.f32.mrb[0].mxu0
      %v8785 = vadd.f32 %v8620, %v8784
      %v8786 = vpop.f32.mrb[0].mxu0
      %v8787 = vadd.f32 %v8624, %v8786
      %v8788 = vpop.f32.mrb[0].mxu0
      %v8789 = vpop.f32.mrb[0].mxu0
      %8790 = vdwg.mxu0
      %v8791 = vmul.f32 %v8704, 0.5
      %v8792 = vmul.f32 %v8706, 0.5
      %v8793 = vmul.f32 %v8765, 0.5
      %v8794 = vmul.f32 %v8767, 0.5
      %v8795 = vmul.f32 %v8708, 0.5
      %v8796 = vmul.f32 %v8710, 0.5
      %v8797 = vmul.f32 %v8769, 0.5
      %v8798 = vmul.f32 %v8771, 0.5
      %v8799 = vmul.f32 %v8714, 0.5
      %v8800 = vmul.f32 %v8716, 0.5
      %v8801 = vmul.f32 %v8775, 0.5
      %v8802 = vmul.f32 %v8777, 0.5
      %v8803 = vmul.f32 %v8718, 0.5
      %v8804 = vmul.f32 %v8720, 0.5
      %v8805 = vmul.f32 %v8779, 0.5
      %v8806 = vmul.f32 %v8781, 0.5
      %v8807 = vmul.f32 %v8724, 0.5
      %v8808 = vmul.f32 %v8726, 0.5
      %v8809 = vmul.f32 %v8785, 0.5
      %v8810 = vmul.f32 %v8787, 0.5
      %v8811 = vmul.f32 %v8704, 0.70710677
      %v8812 = vmul.f32 %v8706, 0.70710677
      %v8813 = vmul.f32 %v8765, 0.70710677
      %v8814 = vmul.f32 %v8767, 0.70710677
      %v8815 = vmul.f32 %v8708, 0.70710677
      %v8816 = vmul.f32 %v8710, 0.70710677
      %v8817 = vmul.f32 %v8769, 0.70710677
      %v8818 = vmul.f32 %v8771, 0.70710677
      %v8819 = vmul.f32 %v8714, 0.70710677
      %v8820 = vmul.f32 %v8716, 0.70710677
      %v8821 = vmul.f32 %v8775, 0.70710677
      %v8822 = vmul.f32 %v8777, 0.70710677
      %v8823 = vmul.f32 %v8718, 0.70710677
      %v8824 = vmul.f32 %v8720, 0.70710677
      %v8825 = vmul.f32 %v8779, 0.70710677
      %v8826 = vmul.f32 %v8781, 0.70710677
      %v8827 = vmul.f32 %v8724, 0.70710677
      %v8828 = vmul.f32 %v8726, 0.70710677
      %v8829 = vmul.f32 %v8785, 0.70710677
      %v8830 = vmul.f32 %v8787, 0.70710677
      %v8831 = verf.f32.pop %v8811
      %v8832 = verf.f32.pop %v8812
      %v8833 = verf.f32.pop %v8813
      %v8834 = verf.f32.pop %v8814
      %v8835 = verf.f32.pop %v8815
      %v8836 = verf.f32.pop %v8816
      %v8837 = verf.f32.pop %v8817
      %v8838 = verf.f32.pop %v8818
      %v8839 = verf.f32.pop %v8819
      %v8840 = verf.f32.pop %v8820
      %v8841 = verf.f32.pop %v8821
      %v8842 = verf.f32.pop %v8822
      %v8843 = verf.f32.pop %v8823
      %v8844 = verf.f32.pop %v8824
      %v8845 = verf.f32.pop %v8825
      %v8846 = verf.f32.pop %v8826
      %v8847 = verf.f32.pop %v8827
      %v8848 = verf.f32.pop %v8828
      %v8849 = verf.f32.pop %v8829
      %v8850 = verf.f32.pop %v8830
      %v8851 = vadd.f32 %v8831, 1.0
      %v8852 = vadd.f32 %v8832, 1.0
      %v8853 = vadd.f32 %v8833, 1.0
      %v8854 = vadd.f32 %v8834, 1.0
      %v8855 = vadd.f32 %v8835, 1.0
      %v8856 = vadd.f32 %v8836, 1.0
      %v8857 = vadd.f32 %v8837, 1.0
      %v8858 = vadd.f32 %v8838, 1.0
      %v8859 = vadd.f32 %v8839, 1.0
      %v8860 = vadd.f32 %v8840, 1.0
      %v8861 = vadd.f32 %v8841, 1.0
      %v8862 = vadd.f32 %v8842, 1.0
      %v8863 = vadd.f32 %v8843, 1.0
      %v8864 = vadd.f32 %v8844, 1.0
      %v8865 = vadd.f32 %v8845, 1.0
      %v8866 = vadd.f32 %v8846, 1.0
      %v8867 = vadd.f32 %v8847, 1.0
      %v8868 = vadd.f32 %v8848, 1.0
      %v8869 = vadd.f32 %v8849, 1.0
      %v8870 = vadd.f32 %v8850, 1.0
      %v8871 = vmul.f32 %v8791, %v8851
      %v8872 = vmul.f32 %v8792, %v8852
      %v8873 = vmul.f32 %v8793, %v8853
      %v8874 = vmul.f32 %v8794, %v8854
      %v8875 = vmul.f32 %v8795, %v8855
      %v8876 = vmul.f32 %v8796, %v8856
      %v8877 = vmul.f32 %v8797, %v8857
      %v8878 = vmul.f32 %v8798, %v8858
      %v8879 = vmul.f32 %v8799, %v8859
      %v8880 = vmul.f32 %v8800, %v8860
      %v8881 = vmul.f32 %v8801, %v8861
      %v8882 = vmul.f32 %v8802, %v8862
      %v8883 = vmul.f32 %v8803, %v8863
      %v8884 = vmul.f32 %v8804, %v8864
      %v8885 = vmul.f32 %v8805, %v8865
      %v8886 = vmul.f32 %v8806, %v8866
      %v8887 = vmul.f32 %v8807, %v8867
      %v8888 = vmul.f32 %v8808, %v8868
      %v8889 = vmul.f32 %v8809, %v8869
      %v8890 = vmul.f32 %v8810, %v8870
      %v8891 = vpack.c.bf16 %v8875, %v8871
      %v8892 = vpack.c.bf16 %v8876, %v8872
      %v8893 = vpack.c.bf16 %v8877, %v8873
      %v8894 = vpack.c.bf16 %v8878, %v8874
      %v8895 = vpack.c.bf16 %v8883, %v8879
      %v8896 = vpack.c.bf16 %v8884, %v8880
      %v8897 = vpack.c.bf16 %v8885, %v8881
      %v8898 = vpack.c.bf16 %v8886, %v8882
      %v8899 = vpack.c.bf16 %v8887, %v8887
      %v8900 = vpack.c.bf16 %v8888, %v8888
      %v8901 = vpack.c.bf16 %v8889, %v8889
      %v8902 = vpack.c.bf16 %v8890, %v8890
      %v8903 = vld [vmem:[%s6888 + $0x300] sm:$0xf]
      %v8904 = vld [vmem:[%s6888 + $0x304] sm:$0xf]
      %v8905 = vld [vmem:[%s6888 + $0x308] sm:$0xf]
      %v8906 = vld [vmem:[%s6888 + $0x30c] sm:$0xf]
      %v8907 = vld [vmem:[%s6888 + $0x310] sm:$0xf]
      %v8908 = vld [vmem:[%s6888 + $0x314] sm:$0xf]
      %v8909 = vld [vmem:[%s6888 + $0x318] sm:$0xf]
      %v8910 = vld [vmem:[%s6888 + $0x31c] sm:$0xf]
      %v8911 = vld [vmem:[%s6888 + $0x320] sm:$0xf]
      %v8912 = vld [vmem:[%s6888 + $0x324] sm:$0xf]
      %v8913 = vld [vmem:[%s6888 + $0x328] sm:$0xf]
      %v8914 = vld [vmem:[%s6888 + $0x32c] sm:$0xf]
      %v8915 = vld [vmem:[%s6888 + $0x330] sm:$0xf]
      %v8916 = vld [vmem:[%s6888 + $0x334] sm:$0xf]
      %v8917 = vld [vmem:[%s6888 + $0x338] sm:$0xf]
      %v8918 = vld [vmem:[%s6888 + $0x33c] sm:$0xf]
      %v8919 = vld [vmem:[%s6888 + $0x340] sm:$0xf]
      %v8920 = vld [vmem:[%s6888 + $0x344] sm:$0xf]
      %v8921 = vld [vmem:[%s6888 + $0x348] sm:$0xf]
      %v8922 = vld [vmem:[%s6888 + $0x34c] sm:$0xf]
      %v8923 = vld [vmem:[%s6888 + $0x350] sm:$0xf]
      %v8924 = vld [vmem:[%s6888 + $0x354] sm:$0xf]
      %v8925 = vld [vmem:[%s6888 + $0x358] sm:$0xf]
      %v8926 = vld [vmem:[%s6888 + $0x35c] sm:$0xf]
      %v8927 = vld [vmem:[%s6888 + $0x360] sm:$0xf]
      %v8928 = vld [vmem:[%s6888 + $0x364] sm:$0xf]
      %v8929 = vld [vmem:[%s6888 + $0x368] sm:$0xf]
      %v8930 = vld [vmem:[%s6888 + $0x36c] sm:$0xf]
      %v8931 = vld [vmem:[%s6888 + $0x370] sm:$0xf]
      %v8932 = vld [vmem:[%s6888 + $0x374] sm:$0xf]
      %v8933 = vld [vmem:[%s6888 + $0x378] sm:$0xf]
      %v8934 = vld [vmem:[%s6888 + $0x37c] sm:$0xf]
      %v8935 = vld [vmem:[%s6888 + $0x380] sm:$0xf]
      %v8936 = vld [vmem:[%s6888 + $0x384] sm:$0xf]
      %v8937 = vld [vmem:[%s6888 + $0x388] sm:$0xf]
      %v8938 = vld [vmem:[%s6888 + $0x38c] sm:$0xf]
      %v8939 = vld [vmem:[%s6888 + $0x390] sm:$0xf]
      %v8940 = vld [vmem:[%s6888 + $0x394] sm:$0xf]
      %v8941 = vld [vmem:[%s6888 + $0x398] sm:$0xf]
      %v8942 = vld [vmem:[%s6888 + $0x39c] sm:$0xf]
      %v8943 = vld [vmem:[%s6888 + $0x3a0] sm:$0xf]
      %v8944 = vld [vmem:[%s6888 + $0x3a4] sm:$0xf]
      %v8945 = vld [vmem:[%s6888 + $0x3a8] sm:$0xf]
      %v8946 = vld [vmem:[%s6888 + $0x3ac] sm:$0xf]
      %v8947 = vld [vmem:[%s6888 + $0x3b0] sm:$0xf]
      %v8948 = vld [vmem:[%s6888 + $0x3b4] sm:$0xf]
      %v8949 = vld [vmem:[%s6888 + $0x3b8] sm:$0xf]
      %v8950 = vld [vmem:[%s6888 + $0x3bc] sm:$0xf]
      %v8951 = vld [vmem:[%s6888 + $0x3c0] sm:$0xf]
      %v8952 = vld [vmem:[%s6888 + $0x3c4] sm:$0xf]
      %v8953 = vld [vmem:[%s6888 + $0x3c8] sm:$0xf]
      %v8954 = vld [vmem:[%s6888 + $0x3cc] sm:$0xf]
      %v8955 = vld [vmem:[%s6888 + $0x3d0] sm:$0xf]
      %v8956 = vld [vmem:[%s6888 + $0x3d4] sm:$0xf]
      %v8957 = vld [vmem:[%s6888 + $0x3d8] sm:$0xf]
      %v8958 = vld [vmem:[%s6888 + $0x3dc] sm:$0xf]
      %v8959 = vld [vmem:[%s6888 + $0x3e0] sm:$0xf]
      %v8960 = vld [vmem:[%s6888 + $0x3e4] sm:$0xf]
      %v8961 = vld [vmem:[%s6888 + $0x3e8] sm:$0xf]
      %v8962 = vld [vmem:[%s6888 + $0x3ec] sm:$0xf]
      %v8963 = vld [vmem:[%s6888 + $0x3f0] sm:$0xf]
      %v8964 = vld [vmem:[%s6888 + $0x3f4] sm:$0xf]
      %v8965 = vld [vmem:[%s6888 + $0x3f8] sm:$0xf]
      %v8966 = vld [vmem:[%s6888 + $0x3fc] sm:$0xf]
      %v9031 = vunpack.c.l.b16 %v8903
      %v9032 = vunpack.c.l.b16 %v8904
      %v9033 = vunpack.c.l.b16 %v8905
      %v9034 = vunpack.c.l.b16 %v8906
      %v9035 = vunpack.c.l.b16 %v8907
      %v9036 = vunpack.c.l.b16 %v8908
      %v9037 = vunpack.c.l.b16 %v8909
      %v9038 = vunpack.c.l.b16 %v8910
      %v9039 = vunpack.c.l.b16 %v8911
      %v9040 = vunpack.c.l.b16 %v8912
      %v9041 = vunpack.c.l.b16 %v8913
      %v9042 = vunpack.c.l.b16 %v8914
      %v9043 = vunpack.c.l.b16 %v8915
      %v9044 = vunpack.c.l.b16 %v8916
      %v9045 = vunpack.c.l.b16 %v8917
      %v9046 = vunpack.c.l.b16 %v8918
      %v9047 = vunpack.c.l.b16 %v8919
      %v9048 = vunpack.c.l.b16 %v8920
      %v9049 = vunpack.c.l.b16 %v8921
      %v9050 = vunpack.c.l.b16 %v8922
      %v9051 = vunpack.c.l.b16 %v8923
      %v9052 = vunpack.c.l.b16 %v8924
      %v9053 = vunpack.c.l.b16 %v8925
      %v9054 = vunpack.c.l.b16 %v8926
      %v9055 = vunpack.c.l.b16 %v8927
      %v9056 = vunpack.c.l.b16 %v8928
      %v9057 = vunpack.c.l.b16 %v8929
      %v9058 = vunpack.c.l.b16 %v8930
      %v9059 = vunpack.c.l.b16 %v8931
      %v9060 = vunpack.c.l.b16 %v8932
      %v9061 = vunpack.c.l.b16 %v8933
      %v9062 = vunpack.c.l.b16 %v8934
      %v9063 = vunpack.c.l.b16 %v8935
      %v9064 = vunpack.c.l.b16 %v8936
      %v9065 = vunpack.c.l.b16 %v8937
      %v9066 = vunpack.c.l.b16 %v8938
      %v9067 = vunpack.c.l.b16 %v8939
      %v9068 = vunpack.c.l.b16 %v8940
      %v9069 = vunpack.c.l.b16 %v8941
      %v9070 = vunpack.c.l.b16 %v8942
      %v9071 = vunpack.c.l.b16 %v8943
      %v9072 = vunpack.c.l.b16 %v8944
      %v9073 = vunpack.c.l.b16 %v8945
      %v9074 = vunpack.c.l.b16 %v8946
      %v9075 = vunpack.c.l.b16 %v8947
      %v9076 = vunpack.c.l.b16 %v8948
      %v9077 = vunpack.c.l.b16 %v8949
      %v9078 = vunpack.c.l.b16 %v8950
      %v9079 = vunpack.c.l.b16 %v8951
      %v9080 = vunpack.c.l.b16 %v8952
      %v9081 = vunpack.c.l.b16 %v8953
      %v9082 = vunpack.c.l.b16 %v8954
      %v9083 = vunpack.c.l.b16 %v8955
      %v9084 = vunpack.c.l.b16 %v8956
      %v9085 = vunpack.c.l.b16 %v8957
      %v9086 = vunpack.c.l.b16 %v8958
      %v9087 = vunpack.c.l.b16 %v8959
      %v9088 = vunpack.c.l.b16 %v8960
      %v9089 = vunpack.c.l.b16 %v8961
      %v9090 = vunpack.c.l.b16 %v8962
      %v9091 = vunpack.c.l.b16 %v8963
      %v9092 = vunpack.c.l.b16 %v8964
      %v9093 = vunpack.c.l.b16 %v8965
      %v9094 = vunpack.c.l.b16 %v8966
      %v9095 = vpack.c.b16 %v9032, %v9031
      %v9096 = vpack.c.b16 %v9034, %v9033
      %v9097 = vpack.c.b16 %v9036, %v9035
      %v9098 = vpack.c.b16 %v9038, %v9037
      %v9099 = vpack.c.b16 %v9040, %v9039
      %v9100 = vpack.c.b16 %v9042, %v9041
      %v9101 = vpack.c.b16 %v9044, %v9043
      %v9102 = vpack.c.b16 %v9046, %v9045
      %v9103 = vpack.c.b16 %v9048, %v9047
      %v9104 = vpack.c.b16 %v9050, %v9049
      %v9105 = vpack.c.b16 %v9052, %v9051
      %v9106 = vpack.c.b16 %v9054, %v9053
      %v9107 = vpack.c.b16 %v9056, %v9055
      %v9108 = vpack.c.b16 %v9058, %v9057
      %v9109 = vpack.c.b16 %v9060, %v9059
      %v9110 = vpack.c.b16 %v9062, %v9061
      %v9111 = vpack.c.b16 %v9064, %v9063
      %v9112 = vpack.c.b16 %v9066, %v9065
      %v9113 = vpack.c.b16 %v9068, %v9067
      %v9114 = vpack.c.b16 %v9070, %v9069
      %v9115 = vpack.c.b16 %v9072, %v9071
      %v9116 = vpack.c.b16 %v9074, %v9073
      %v9117 = vpack.c.b16 %v9076, %v9075
      %v9118 = vpack.c.b16 %v9078, %v9077
      %v9119 = vpack.c.b16 %v9080, %v9079
      %v9120 = vpack.c.b16 %v9082, %v9081
      %v9121 = vpack.c.b16 %v9084, %v9083
      %v9122 = vpack.c.b16 %v9086, %v9085
      %v9123 = vpack.c.b16 %v9088, %v9087
      %v9124 = vpack.c.b16 %v9090, %v9089
      %v9125 = vpack.c.b16 %v9092, %v9091
      %v9126 = vpack.c.b16 %v9094, %v9093
      %9159 = vmatprep.subr.bf16.mxu0 0
      %9160 = vmatpush1.bf16.msra.mxu0 %v9095
      %9161 = vmatprep.subr.bf16.mxu0 0
      %9162 = vmatpush1.bf16.msra.mxu0 %v9096
      %9163 = vmatprep.subr.bf16.mxu0 0
      %9164 = vmatpush1.bf16.msra.mxu0 %v9097
      %9165 = vmatprep.subr.bf16.mxu0 0
      %9166 = vmatpush1.bf16.msra.mxu0 %v9098
      %9167 = vmatprep.subr.bf16.mxu0 0
      %9168 = vmatpush1.bf16.msra.mxu0 %v9099
      %9169 = vmatprep.subr.bf16.mxu0 0
      %9170 = vmatpush1.bf16.msra.mxu0 %v9100
      %9171 = vmatprep.subr.bf16.mxu0 0
      %9172 = vmatpush1.bf16.msra.mxu0 %v9101
      %9173 = vmatprep.subr.bf16.mxu0 0
      %9174 = vmatpush1.bf16.msra.mxu0 %v9102
      %9175 = vmatprep.subr.bf16.mxu0 0
      %9176 = vmatpush1.bf16.msra.mxu0 %v9103
      %9177 = vmatprep.subr.bf16.mxu0 0
      %9178 = vmatpush1.bf16.msra.mxu0 %v9104
      %9179 = vmatprep.subr.bf16.mxu0 0
      %9180 = vmatpush1.bf16.msra.mxu0 %v9105
      %9181 = vmatprep.subr.bf16.mxu0 0
      %9182 = vmatpush1.bf16.msra.mxu0 %v9106
      %9183 = vmatprep.subr.bf16.mxu0 0
      %9184 = vmatpush1.bf16.msra.mxu0 %v9107
      %9185 = vmatprep.subr.bf16.mxu0 0
      %9186 = vmatpush1.bf16.msra.mxu0 %v9108
      %9187 = vmatprep.subr.bf16.mxu0 0
      %9188 = vmatpush1.bf16.msra.mxu0 %v9109
      %9189 = vmatprep.subr.bf16.mxu0 0
      %9190 = vmatpush1.bf16.msra.mxu0 %v9110
      %9191 = vmatprep.mubr.bf16.mxu0 %v8892
      %9192 = vmatmul.mubr.bf16.gmra.mrb[0].mxu0 %v8891
      %v9193 = vpop.f32.mrb[0].mxu0
      %v9194 = vadd.f32 0.0, %v9193
      %v9195 = vpop.f32.mrb[0].mxu0
      %v9196 = vpop.f32.mrb[0].mxu0
      %v9197 = vadd.f32 0.0, %v9196
      %v9198 = vpop.f32.mrb[0].mxu0
      %9199 = vmatprep.mubr.bf16.mxu0 %v8896
      %9200 = vmatmul.mubr.bf16.gmra.mrb[0].mxu0 %v8895
      %v9201 = vpop.f32.mrb[0].mxu0
      %v9202 = vadd.f32 0.0, %v9201
      %v9203 = vpop.f32.mrb[0].mxu0
      %v9204 = vpop.f32.mrb[0].mxu0
      %v9205 = vadd.f32 0.0, %v9204
      %v9206 = vpop.f32.mrb[0].mxu0
      %9207 = vmatprep.mubr.bf16.mxu0 %v8900
      %9208 = vmatmul.mubr.bf16.gmra.mrb[0].mxu0 %v8899
      %v9209 = vpop.f32.mrb[0].mxu0
      %v9210 = vpop.f32.mrb[0].mxu0
      %v9211 = vpop.f32.mrb[0].mxu0
      %v9212 = vpop.f32.mrb[0].mxu0
      %9213 = vdwg.mxu0
      %9214 = vmatprep.subr.bf16.mxu0 0
      %9215 = vmatpush1.bf16.msra.mxu0 %v9111
      %9216 = vmatprep.subr.bf16.mxu0 0
      %9217 = vmatpush1.bf16.msra.mxu0 %v9112
      %9218 = vmatprep.subr.bf16.mxu0 0
      %9219 = vmatpush1.bf16.msra.mxu0 %v9113
      %9220 = vmatprep.subr.bf16.mxu0 0
      %9221 = vmatpush1.bf16.msra.mxu0 %v9114
      %9222 = vmatprep.subr.bf16.mxu0 0
      %9223 = vmatpush1.bf16.msra.mxu0 %v9115
      %9224 = vmatprep.subr.bf16.mxu0 0
      %9225 = vmatpush1.bf16.msra.mxu0 %v9116
      %9226 = vmatprep.subr.bf16.mxu0 0
      %9227 = vmatpush1.bf16.msra.mxu0 %v9117
      %9228 = vmatprep.subr.bf16.mxu0 0
      %9229 = vmatpush1.bf16.msra.mxu0 %v9118
      %9230 = vmatprep.subr.bf16.mxu0 0
      %9231 = vmatpush1.bf16.msra.mxu0 %v9119
      %9232 = vmatprep.subr.bf16.mxu0 0
      %9233 = vmatpush1.bf16.msra.mxu0 %v9120
      %9234 = vmatprep.subr.bf16.mxu0 0
      %9235 = vmatpush1.bf16.msra.mxu0 %v9121
      %9236 = vmatprep.subr.bf16.mxu0 0
      %9237 = vmatpush1.bf16.msra.mxu0 %v9122
      %9238 = vmatprep.subr.bf16.mxu0 0
      %9239 = vmatpush1.bf16.msra.mxu0 %v9123
      %9240 = vmatprep.subr.bf16.mxu0 0
      %9241 = vmatpush1.bf16.msra.mxu0 %v9124
      %9242 = vmatprep.subr.bf16.mxu0 0
      %9243 = vmatpush1.bf16.msra.mxu0 %v9125
      %9244 = vmatprep.subr.bf16.mxu0 0
      %9245 = vmatpush1.bf16.msra.mxu0 %v9126
      %9246 = vmatprep.mubr.bf16.mxu0 %v8894
      %9247 = vmatmul.mubr.bf16.gmra.mrb[0].mxu0 %v8893
      %v9248 = vpop.f32.mrb[0].mxu0
      %v9249 = vadd.f32 %v9194, %v9248
      %v9250 = vpop.f32.mrb[0].mxu0
      %v9251 = vpop.f32.mrb[0].mxu0
      %v9252 = vadd.f32 %v9197, %v9251
      %v9253 = vpop.f32.mrb[0].mxu0
      %9254 = vmatprep.mubr.bf16.mxu0 %v8898
      %9255 = vmatmul.mubr.bf16.gmra.mrb[0].mxu0 %v8897
      %v9256 = vpop.f32.mrb[0].mxu0
      %v9257 = vadd.f32 %v9202, %v9256
      %v9258 = vpop.f32.mrb[0].mxu0
      %v9259 = vpop.f32.mrb[0].mxu0
      %v9260 = vadd.f32 %v9205, %v9259
      %v9261 = vpop.f32.mrb[0].mxu0
      %9262 = vmatprep.mubr.bf16.mxu0 %v8902
      %9263 = vmatmul.mubr.bf16.gmra.mrb[0].mxu0 %v8901
      %v9264 = vpop.f32.mrb[0].mxu0
      %v9265 = vpop.f32.mrb[0].mxu0
      %v9266 = vpop.f32.mrb[0].mxu0
      %v9267 = vpop.f32.mrb[0].mxu0
      %9268 = vdwg.mxu0
      %v9269 = vadd.f32 %v8595, %v9249
      %v9270 = vadd.f32 %v8596, %v9252
      %v9271 = vadd.f32 %v8597, %v9257
      %v9272 = vadd.f32 %v8598, %v9260
      %v9273 = vadd.f32 %v6565, %v9269
      %v9274 = vadd.f32 %v6566, %v9270
      %v9275 = vadd.f32 %v6567, %v9271
      %v9276 = vadd.f32 %v6568, %v9272
      %s9277 = scalar_lea.vmem %s10, 1
      %v9278 = vld [vmem:[%s9277] sm:$0x1]
      %v9280 = vlaneseq
      %v9281 = vshrl.u32 %v9280, 7
      %v9282 = vsub.s32 0, %v9281
      %v9283 = vrot.slane %v9278, %v9282
      %v9285 = vadd.f32 %v9273, %v9283
      %v9286 = vadd.f32 %v9274, %v9283
      %v9287 = vadd.f32 %v9275, %v9283
      %v9288 = vadd.f32 %v9276, %v9283
      %s9289 = scalar_lea.vmem %s11, 1
      %v9290 = vld [vmem:[%s9289] sm:$0x1]
      %s9291 = scalar_lea.vmem %s12, 1
      %v9292 = vld [vmem:[%s9291] sm:$0x1]
      %v9293 = vsel %vm607, %v9285, 0.0
      %9294 = vadd.xlane.f32.xlu0 %v9293
      %v9295 = vpop.xlane.xlu0 %9294
      %v9296 = vsel %vm607, %v9286, 0.0
      %9297 = vadd.xlane.f32.xlu0 %v9296
      %v9298 = vpop.xlane.xlu0 %9297
      %v9299 = vsel %vm607, %v9287, 0.0
      %9300 = vadd.xlane.f32.xlu0 %v9299
      %v9301 = vpop.xlane.xlu0 %9300
      %v9302 = vsel %vm607, %v9288, 0.0
      %9303 = vadd.xlane.f32.xlu0 %v9302
      %v9304 = vpop.xlane.xlu0 %9303
      %v9305 = vmul.f32 %v9295, %v2110
      %v9306 = vmul.f32 %v9298, %v2110
      %v9307 = vmul.f32 %v9301, %v2110
      %v9308 = vmul.f32 %v9304, %v2110
      %v9309 = vsub.f32 %v9285, %v9305
      %v9310 = vsub.f32 %v9286, %v9306
      %v9311 = vsub.f32 %v9287, %v9307
      %v9312 = vsub.f32 %v9288, %v9308
      %v9313 = vmul.f32 %v9309, %v9309
      %v9314 = vmul.f32 %v9310, %v9310
      %v9315 = vmul.f32 %v9311, %v9311
      %v9316 = vmul.f32 %v9312, %v9312
      %v9317 = vsel %vm607, %v9313, 0.0
      %9318 = vadd.xlane.f32.xlu0 %v9317
      %v9319 = vpop.xlane.xlu0 %9318
      %v9320 = vsel %vm607, %v9314, 0.0
      %9321 = vadd.xlane.f32.xlu0 %v9320
      %v9322 = vpop.xlane.xlu0 %9321
      %v9323 = vsel %vm607, %v9315, 0.0
      %9324 = vadd.xlane.f32.xlu0 %v9323
      %v9325 = vpop.xlane.xlu0 %9324
      %v9326 = vsel %vm607, %v9316, 0.0
      %9327 = vadd.xlane.f32.xlu0 %v9326
      %v9328 = vpop.xlane.xlu0 %9327
      %v9329 = vmul.f32 %v9319, %v2110
      %v9330 = vmul.f32 %v9322, %v2110
      %v9331 = vmul.f32 %v9325, %v2110
      %v9332 = vmul.f32 %v9328, %v2110
      %v9333 = vadd.f32 %v9329, 1e-05
      %v9334 = vadd.f32 %v9330, 1e-05
      %v9335 = vadd.f32 %v9331, 1e-05
      %v9336 = vadd.f32 %v9332, 1e-05
      %v9337 = vrsqrt.pop %v9333
      %v9338 = vrsqrt.pop %v9334
      %v9339 = vrsqrt.pop %v9335
      %v9340 = vrsqrt.pop %v9336
      %v9341 = vmul.f32 %v9309, %v9337
      %v9342 = vmul.f32 %v9310, %v9338
      %v9343 = vmul.f32 %v9311, %v9339
      %v9344 = vmul.f32 %v9312, %v9340
      %v9346 = vlaneseq
      %v9347 = vshrl.u32 %v9346, 7
      %v9348 = vsub.s32 0, %v9347
      %v9349 = vrot.slane %v9290, %v9348
      %v9351 = vmul.f32 %v9341, %v9349
      %v9352 = vmul.f32 %v9342, %v9349
      %v9353 = vmul.f32 %v9343, %v9349
      %v9354 = vmul.f32 %v9344, %v9349
      %v9356 = vlaneseq
      %v9357 = vshrl.u32 %v9356, 7
      %v9358 = vsub.s32 0, %v9357
      %v9359 = vrot.slane %v9292, %v9358
      %v9361 = vadd.f32 %v9351, %v9359
      %v9362 = vadd.f32 %v9352, %v9359
      %v9363 = vadd.f32 %v9353, %v9359
      %v9364 = vadd.f32 %v9354, %v9359
      %v9365 = vld [vmem:[%s15] sm:$0xff]
      %v9366 = vld [vmem:[%s15 + $0x8] sm:$0xff]
      %v9367 = vld [vmem:[%s15 + $0x10] sm:$0xff]
      %v9368 = vld [vmem:[%s15 + $0x18] sm:$0xff]
      %v9369 = vld [vmem:[%s14] sm:$0xff]
      %v9370 = vld [vmem:[%s14 + $0x8] sm:$0xff]
      %v9371 = vld [vmem:[%s14 + $0x10] sm:$0xff]
      %v9372 = vld [vmem:[%s14 + $0x18] sm:$0x7]
      %v9373 = vld [vmem:[%s562] sm:$0xf]
      %vm9374 = vcmask 31744
      %v9376 = vsel %vm9374, %v9369, 0
      %v9379 = vsel %vm9374, %v9370, 0
      %v9382 = vsel %vm9374, %v9371, 0
      %v9385 = vsel %vm9374, %v9372, 0
      %vm9387 = vcmask 1043456
      %v9389 = vsel %vm9387, %v9373, 0
      %9391 = vmatprep.subr.mxu0 0.0
      %9392 = vmatpush1.msra.mxu0 %v9389
      %9393 = vmatprep.subr.mxu0 0.0
      %9394 = vmatpush1.msra.mxu0 0.0
      %9395 = vmatprep.subr.mxu0 0.0
      %9396 = vmatpush1.msra.mxu0 0.0
      %9397 = vmatprep.subr.mxu0 0.0
      %9398 = vmatpush1.msra.mxu0 0.0
      %9399 = vmatprep.subr.mxu0 0.0
      %9400 = vmatpush1.msra.mxu0 0.0
      %9401 = vmatprep.subr.mxu0 0.0
      %9402 = vmatpush1.msra.mxu0 0.0
      %9403 = vmatprep.subr.mxu0 0.0
      %9404 = vmatpush1.msra.mxu0 0.0
      %9405 = vmatprep.subr.mxu0 0.0
      %9406 = vmatpush1.msra.mxu0 0.0
      %9407 = vmatprep.subr.mxu0 0.0
      %9408 = vmatpush1.msra.mxu0 0.0
      %9409 = vmatprep.subr.mxu0 0.0
      %9410 = vmatpush1.msra.mxu0 0.0
      %9411 = vmatprep.subr.mxu0 0.0
      %9412 = vmatpush1.msra.mxu0 0.0
      %9413 = vmatprep.subr.mxu0 0.0
      %9414 = vmatpush1.msra.mxu0 0.0
      %9415 = vmatprep.subr.mxu0 0.0
      %9416 = vmatpush1.msra.mxu0 0.0
      %9417 = vmatprep.subr.mxu0 0.0
      %9418 = vmatpush1.msra.mxu0 0.0
      %9419 = vmatprep.subr.mxu0 0.0
      %9420 = vmatpush1.msra.mxu0 0.0
      %9421 = vmatprep.subr.mxu0 0.0
      %9422 = vmatpush1.msra.mxu0 0.0
      %9423 = vmatprep.subr.mxu0 0.0
      %9424 = vmatpush1.msra.mxu0 0.0
      %9425 = vmatprep.subr.mxu0 0.0
      %9426 = vmatpush1.msra.mxu0 0.0
      %9427 = vmatprep.subr.mxu0 0.0
      %9428 = vmatpush1.msra.mxu0 0.0
      %9429 = vmatprep.subr.mxu0 0.0
      %9430 = vmatpush1.msra.mxu0 0.0
      %9431 = vmatprep.subr.mxu0 0.0
      %9432 = vmatpush1.msra.mxu0 0.0
      %9433 = vmatprep.subr.mxu0 0.0
      %9434 = vmatpush1.msra.mxu0 0.0
      %9435 = vmatprep.subr.mxu0 0.0
      %9436 = vmatpush1.msra.mxu0 0.0
      %9437 = vmatprep.subr.mxu0 0.0
      %9438 = vmatpush1.msra.mxu0 0.0
      %9439 = vmatprep.subr.mxu0 0.0
      %9440 = vmatpush1.msra.mxu0 0.0
      %9441 = vmatprep.subr.mxu0 0.0
      %9442 = vmatpush1.msra.mxu0 0.0
      %9443 = vmatprep.subr.mxu0 0.0
      %9444 = vmatpush1.msra.mxu0 0.0
      %9445 = vmatprep.subr.mxu0 0.0
      %9446 = vmatpush1.msra.mxu0 0.0
      %9447 = vmatprep.subr.mxu0 0.0
      %9448 = vmatpush1.msra.mxu0 0.0
      %9449 = vmatprep.subr.mxu0 0.0
      %9450 = vmatpush1.msra.mxu0 0.0
      %9451 = vmatprep.subr.mxu0 0.0
      %9452 = vmatpush1.msra.mxu0 0.0
      %9453 = vmatprep.subr.mxu0 0.0
      %9454 = vmatpush1.msra.mxu0 0.0
      %9455 = vmatprep.mubr.f32.mxu0 0.0
      %9456 = vmatmul.mubr.f32.gmra.mrb[0].mxu0 %v9376
      %v9457 = vpop.f32.mrb[0].mxu0
      %v9458 = vadd.f32 0.0, %v9457
      %v9459 = vpop.f32.mrb[0].mxu0
      %9460 = vmatprep.mubr.f32.mxu0 0.0
      %9461 = vmatmul.mubr.f32.gmra.mrb[0].mxu0 %v9379
      %v9462 = vpop.f32.mrb[0].mxu0
      %v9463 = vadd.f32 0.0, %v9462
      %v9464 = vpop.f32.mrb[0].mxu0
      %9465 = vmatprep.mubr.f32.mxu0 0.0
      %9466 = vmatmul.mubr.f32.gmra.mrb[0].mxu0 %v9382
      %v9467 = vpop.f32.mrb[0].mxu0
      %v9468 = vadd.f32 0.0, %v9467
      %v9469 = vpop.f32.mrb[0].mxu0
      %9470 = vmatprep.mubr.f32.mxu0 0.0
      %9471 = vmatmul.mubr.f32.gmra.mrb[0].mxu0 %v9385
      %v9472 = vpop.f32.mrb[0].mxu0
      %v9473 = vadd.f32 0.0, %v9472
      %v9474 = vpop.f32.mrb[0].mxu0
      %9475 = vdwg.mxu0
      %v9477 = vsel %vm607, %v9361, 0
      %v9480 = vsel %vm607, %v9362, 0
      %v9483 = vsel %vm607, %v9363, 0
      %v9486 = vsel %vm607, %v9364, 0
      %9488 = vmatprep.subr.mxu0 0.0
      %9489 = vmatpush1.msra.mxu0 %v9365
      %9490 = vmatprep.subr.mxu0 0.0
      %9491 = vmatpush1.msra.mxu0 %v9366
      %9492 = vmatprep.subr.mxu0 0.0
      %9493 = vmatpush1.msra.mxu0 %v9367
      %9494 = vmatprep.subr.mxu0 0.0
      %9495 = vmatpush1.msra.mxu0 %v9368
      %9496 = vmatprep.subr.mxu0 0.0
      %9497 = vmatpush1.msra.mxu0 0.0
      %9498 = vmatprep.subr.mxu0 0.0
      %9499 = vmatpush1.msra.mxu0 0.0
      %9500 = vmatprep.subr.mxu0 0.0
      %9501 = vmatpush1.msra.mxu0 0.0
      %9502 = vmatprep.subr.mxu0 0.0
      %9503 = vmatpush1.msra.mxu0 0.0
      %9504 = vmatprep.subr.mxu0 0.0
      %9505 = vmatpush1.msra.mxu0 0.0
      %9506 = vmatprep.subr.mxu0 0.0
      %9507 = vmatpush1.msra.mxu0 0.0
      %9508 = vmatprep.subr.mxu0 0.0
      %9509 = vmatpush1.msra.mxu0 0.0
      %9510 = vmatprep.subr.mxu0 0.0
      %9511 = vmatpush1.msra.mxu0 0.0
      %9512 = vmatprep.subr.mxu0 0.0
      %9513 = vmatpush1.msra.mxu0 0.0
      %9514 = vmatprep.subr.mxu0 0.0
      %9515 = vmatpush1.msra.mxu0 0.0
      %9516 = vmatprep.subr.mxu0 0.0
      %9517 = vmatpush1.msra.mxu0 0.0
      %9518 = vmatprep.subr.mxu0 0.0
      %9519 = vmatpush1.msra.mxu0 0.0
      %9520 = vmatprep.subr.mxu0 0.0
      %9521 = vmatpush1.msra.mxu0 0.0
      %9522 = vmatprep.subr.mxu0 0.0
      %9523 = vmatpush1.msra.mxu0 0.0
      %9524 = vmatprep.subr.mxu0 0.0
      %9525 = vmatpush1.msra.mxu0 0.0
      %9526 = vmatprep.subr.mxu0 0.0
      %9527 = vmatpush1.msra.mxu0 0.0
      %9528 = vmatprep.subr.mxu0 0.0
      %9529 = vmatpush1.msra.mxu0 0.0
      %9530 = vmatprep.subr.mxu0 0.0
      %9531 = vmatpush1.msra.mxu0 0.0
      %9532 = vmatprep.subr.mxu0 0.0
      %9533 = vmatpush1.msra.mxu0 0.0
      %9534 = vmatprep.subr.mxu0 0.0
      %9535 = vmatpush1.msra.mxu0 0.0
      %9536 = vmatprep.subr.mxu0 0.0
      %9537 = vmatpush1.msra.mxu0 0.0
      %9538 = vmatprep.subr.mxu0 0.0
      %9539 = vmatpush1.msra.mxu0 0.0
      %9540 = vmatprep.subr.mxu0 0.0
      %9541 = vmatpush1.msra.mxu0 0.0
      %9542 = vmatprep.subr.mxu0 0.0
      %9543 = vmatpush1.msra.mxu0 0.0
      %9544 = vmatprep.subr.mxu0 0.0
      %9545 = vmatpush1.msra.mxu0 0.0
      %9546 = vmatprep.subr.mxu0 0.0
      %9547 = vmatpush1.msra.mxu0 0.0
      %9548 = vmatprep.subr.mxu0 0.0
      %9549 = vmatpush1.msra.mxu0 0.0
      %9550 = vmatprep.subr.mxu0 0.0
      %9551 = vmatpush1.msra.mxu0 0.0
      %9552 = vmatprep.mubr.f32.mxu0 0.0
      %9553 = vmatmul.mubr.f32.gmra.mrb[0].mxu0 %v9477
      %v9554 = vpop.f32.mrb[0].mxu0
      %v9555 = vadd.f32 %v9458, %v9554
      %v9556 = vpop.f32.mrb[0].mxu0
      %9557 = vmatprep.mubr.f32.mxu0 0.0
      %9558 = vmatmul.mubr.f32.gmra.mrb[0].mxu0 %v9480
      %v9559 = vpop.f32.mrb[0].mxu0
      %v9560 = vadd.f32 %v9463, %v9559
      %v9561 = vpop.f32.mrb[0].mxu0
      %9562 = vmatprep.mubr.f32.mxu0 0.0
      %9563 = vmatmul.mubr.f32.gmra.mrb[0].mxu0 %v9483
      %v9564 = vpop.f32.mrb[0].mxu0
      %v9565 = vadd.f32 %v9468, %v9564
      %v9566 = vpop.f32.mrb[0].mxu0
      %9567 = vmatprep.mubr.f32.mxu0 0.0
      %9568 = vmatmul.mubr.f32.gmra.mrb[0].mxu0 %v9486
      %v9569 = vpop.f32.mrb[0].mxu0
      %v9570 = vadd.f32 %v9473, %v9569
      %v9571 = vpop.f32.mrb[0].mxu0
      %9572 = vdwg.mxu0
      %v9573 = vld [vmem:[#allocation2] sm:$0x1]
      %v9575 = vlaneseq
      %v9576 = vshrl.u32 %v9575, 7
      %v9577 = vsub.s32 0, %v9576
      %v9578 = vrot.slane %v9573, %v9577
      %v9580 = vadd.f32 %v9555, %v9578
      %v9581 = vadd.f32 %v9560, %v9578
      %v9582 = vadd.f32 %v9565, %v9578
      %v9583 = vadd.f32 %v9570, %v9578
      %vm9584 = vcmask 7168
      %9585 = vst.msk [vmem:[%s567] sm:$0xff] %vm9584, %v9580
      %9586 = vst.msk [vmem:[%s567 + $0x8] sm:$0xff] %vm9584, %v9581
      %9587 = vst.msk [vmem:[%s567 + $0x10] sm:$0xff] %vm9584, %v9582
      %vm9588 = vcmask 2048
      %9589 = vst.msk [vmem:[%s567 + $0x18] sm:$0x7] %vm9588, %v9583
      %p9590 = scmp.lt.s32.totalorder %s30, 1
      %s9591 = scalar_select %p9590, %s30, 1
      %s9592 = smul.addr %s9591, 4
      %s9593 = smul.addr %s9592, 8
      %s9594 = scalar_lea.vmem %s17, %s9593
      // Predicated region
      $region89: #{_lambda_.7} parent=87 // pred_check
        %p9595 = pneg %p415
      $region90: #{_lambda_.7} parent=87 // pred_check_branch
        %9597 = sbr.rel (%p9595) target = $region92
      $region91: #{_lambda_.7} parent=87 // pred_region
        _
      $region92: #{_lambda_.7} parent=87 // pred_fallthru
        _
    $region88: #{_lambda_.7} parent=5 // pred_fallthru
      _
    %p9598 = scmp.le.s32.totalorder 2, %s25
    // Predicated region
    $region93: #{_lambda_.7} parent=5 // pred_check
      %p9599 = pneg %p9598
    $region94: #{_lambda_.7} parent=5 // pred_check_branch
      %9601 = sbr.rel (%p9599) target = $region96
    $region95: #{_lambda_.7} parent=5 // pred_region
      %s9602 = ssub.s32 %s25, 2
      // Predicated region
      $region97: #{_lambda_.7} parent=95 // pred_check
        %p9603 = pneg %p421
      $region98: #{_lambda_.7} parent=95 // pred_check_branch
        %9605 = sbr.rel (%p9603) target = $region100
      $region99: #{_lambda_.7} parent=95 // pred_region
        %p9606 = scmp.lt.s32.totalorder %s31, 1
        %s9607 = scalar_select %p9606, %s31, 1
        %s9608 = smul.addr %s9607, 4
        %s9609 = smul.addr %s9608, 8
        %s9610 = scalar_lea.vmem %s17, %s9609
      $region100: #{_lambda_.7} parent=95 // pred_fallthru
        _
    $region96: #{_lambda_.7} parent=5 // pred_fallthru
      _
  $region6: #{_lambda_.7} parent=0 // loop_footer
    %s29 = sadd.s32 1, %s25
  $region7: #{_lambda_.7} parent=0 // loop_footer_branch
    %24 = sbr.rel target = $region3
  $region8: #{_lambda_.7} parent=0 // loop_exit
    _

</llo_original>
